<compile_context>
chip_gen: v6e
topology: v6e:2x2x1
jax: 0.10.0
libtpu: 0.0.40
codegen_flags: <defaults>
</compile_context>

<pallas_src>
import jax
import jax.numpy as jnp
from jax import lax
from jax.experimental import pallas as pl
from jax.experimental.pallas import tpu as pltpu


# ----------------------------- small helpers --------------------------------

def _round_up(n, m):
    return ((n + m - 1) // m) * m


def _divisor_tile(n, cap, mult=1):
    """Largest d with d | n, d <= cap and (d % mult == 0 or d == n); fallback n."""
    cap = max(1, min(cap, n))
    for d in range(cap, 0, -1):
        if n % d == 0 and (d % mult == 0 or d == n):
            return d
    return n


# ----------------------------- Pallas kernels -------------------------------

def deconv_conv_tower_kernel(x_ref, wd_ref, bd_ref,
                             wc0_ref, bc0_ref, wc1_ref, bc1_ref,
                             wc2_ref, bc2_ref, wc3_ref, bc3_ref,
                             o_ref, buf_ref):
    """Fused [deconv2x2 s2 + ReLU] -> 3x[conv3x3 s1 + ReLU] -> [conv3x3 s2 + ReLU].

    x_ref  : (bt, R, R, C)       bf16   RoI features (NHWC)
    wd_ref : (2, 2, C, C)        bf16   deconv weight (kh, kw, cin, cout)
    bd_ref : (1, C)              f32
    wc*_ref: (3, 3, C, C)        bf16   conv weights (HWIO); bc*_ref: (1, C) f32
    o_ref  : (bt, R, R, C)       bf16   output of the final stride-2 conv
    buf_ref: VMEM (bt, H+2, Ws+2, C) bf16 padded activation scratch,
             H = 2R, Ws = round_up(H, 8) (extra cols stay zero).
    """
    bt, R = x_ref.shape[0], x_ref.shape[1]
    C = x_ref.shape[3]
    H = 2 * R
    Ws = buf_ref.shape[2] - 2

    # Zero halo + alignment columns (interior is fully overwritten below).
    buf_ref[...] = jnp.zeros(buf_ref.shape, buf_ref.dtype)

    # ---- ConvTranspose2d(k=2, s=2) + ReLU, written straight into the scratch ----
    x2 = x_ref[...].reshape(bt * R * R, C)            # bf16, rows = (b, h, w)
    bd = bd_ref[...]                                   # (1, C) f32
    ups = []
    for di in range(2):
        phases = []
        for dj in range(2):
            z = jnp.dot(x2, wd_ref[di, dj], preferred_element_type=jnp.float32) + bd
            phases.append(jnp.maximum(z, 0.0).astype(buf_ref.dtype))
        # interleave the dj phase into the W axis: (M, 2, C) -> (bt, R, 2R, C)
        ups.append(jnp.stack(phases, axis=1).reshape(bt, R, H, C))
    # interleave the di phase into the H axis: (bt, R, 2, 2R, C) -> (bt, 2R, 2R, C)
    up = jnp.stack(ups, axis=2).reshape(bt, H, H, C)
    buf_ref[:, 1:H + 1, 1:H + 1, :] = up

    # ---- three stride-1 3x3 convs (pad=1) + ReLU, scratch-resident ----
    M = bt * H * Ws
    for w_ref, b_ref in ((wc0_ref, bc0_ref), (wc1_ref, bc1_ref), (wc2_ref, bc2_ref)):
        acc = jnp.broadcast_to(b_ref[...], (M, C))                     # f32, bias-init
        for dh in range(3):
            for dw in range(3):
                patch = buf_ref[:, dh:dh + H, dw:dw + Ws, :].reshape(M, C)   # free: Ws % 8 == 0
                acc = acc + jnp.dot(patch, w_ref[dh, dw],
                                    preferred_element_type=jnp.float32)
        y = jnp.maximum(acc, 0.0).astype(buf_ref.dtype).reshape(bt, H, Ws, C)
        buf_ref[:, 1:H + 1, 1:H + 1, :] = y[:, :, :H, :]

    # ---- last 3x3 conv, stride 2 (pad=1) + ReLU: even rows/cols only ----
    Ms = bt * R * Ws
    acc = jnp.broadcast_to(bc3_ref[...], (Ms, C))
    for dh in range(3):
        for dw in range(3):
            taps = buf_ref[:, dh:dh + H, dw:dw + Ws, :]                 # (bt, 2R, Ws, C)
            taps = taps.reshape(bt, R, 2, Ws, C)[:, :, 0]               # even input rows (free)
            acc = acc + jnp.dot(taps.reshape(Ms, C), wc3_ref[dh, dw],
                                preferred_element_type=jnp.float32)
    y = jnp.maximum(acc, 0.0).astype(o_ref.dtype)
    y = y.reshape(bt, R, Ws // 2, 2, C)                                 # split W by parity
    o_ref[...] = y[:, :, :R, 0, :]                                      # even output columns


def fc_head_kernel(x_ref, w1_ref, b1_ref, w2_ref, b2_ref, w3_ref, b3_ref,
                   o_ref, acc_ref):
    """fc1 (K-tiled accumulation) + ReLU -> fc2 + ReLU -> fc_bbox_iou.

    grid = (RoI tiles, F reduction tiles).  acc_ref: VMEM (tm, H1) f32.
    b3_ref lives in SMEM (scalar).  The final (H1 -> 1) projection is an
    elementwise-mul + lane reduction (VPU/XLU), not a width-1 MXU matmul.
    """
    k = pl.program_id(1)

    @pl.when(k == 0)
    def _init():
        acc_ref[...] = jnp.broadcast_to(b1_ref[...], acc_ref.shape)

    acc_ref[...] += jnp.dot(x_ref[...], w1_ref[...],
                            preferred_element_type=jnp.float32)

    @pl.when(k == pl.num_programs(1) - 1)
    def _finish():
        h = jnp.maximum(acc_ref[...], 0.0).astype(w2_ref.dtype)        # bf16 for the MXU
        h2 = jnp.dot(h, w2_ref[...], preferred_element_type=jnp.float32) + b2_ref[...]
        h2 = jnp.maximum(h2, 0.0)
        o_ref[...] = (jnp.sum(h2 * w3_ref[...], axis=-1, keepdims=True)
                      + b3_ref[0, 0]).astype(o_ref.dtype)


# ------------------------------- wrappers -----------------------------------

_VMEM_LIMIT = 32 * 1024 * 1024   # fits default/physical VMEM of v5e/v6e/v7x


def deconv_conv_tower(x, wd, bd, wcs, bcs, *, bt):
    """x: (N, R, R, C) bf16 NHWC.  Returns (N, R, R, C) bf16 (after the s2 conv)."""
    N, R, _, C = x.shape
    H = 2 * R
    Ws = _round_up(H, 8)
    const4 = lambda n: (0, 0, 0, 0)
    const2 = lambda n: (0, 0)

    # TODO(synk): the constant-index weight blocks could be single-buffered
    # (pipeline_mode=pl.Buffered(1)) to save VMEM headroom on v7x; Pallas
    # already skips re-copying blocks whose index does not change, so only the
    # second buffer allocation is wasted and the budget below is safe.
    in_specs = [pl.BlockSpec((bt, R, R, C), lambda n: (n, 0, 0, 0)),
                pl.BlockSpec((2, 2, C, C), const4),
                pl.BlockSpec((1, C), const2)]
    args = [x, wd, bd]
    for w, b in zip(wcs, bcs):
        in_specs += [pl.BlockSpec((3, 3, C, C), const4),
                     pl.BlockSpec((1, C), const2)]
        args += [w, b]

    return pl.pallas_call(
        deconv_conv_tower_kernel,
        grid=(N // bt,),
        in_specs=in_specs,
        out_specs=pl.BlockSpec((bt, R, R, C), lambda n: (n, 0, 0, 0)),
        out_shape=jax.ShapeDtypeStruct((N, R, R, C), jnp.bfloat16),
        scratch_shapes=[pltpu.VMEM((bt, H + 2, Ws + 2, C), jnp.bfloat16)],
        compiler_params=pltpu.CompilerParams(
            dimension_semantics=("parallel",),
            vmem_limit_bytes=_VMEM_LIMIT),
    )(*args)


def fc_head(x, w1, b1, w2, b2, w3row, b3, *, tm, tk):
    """x: (N, F) bf16; w1: (F, H1) bf16; w2: (H1, H1) bf16; w3row: (1, H1) f32."""
    N, F = x.shape
    H1 = w1.shape[-1]
    return pl.pallas_call(
        fc_head_kernel,
        grid=(N // tm, F // tk),
        in_specs=[
            pl.BlockSpec((tm, tk), lambda i, k: (i, k)),
            pl.BlockSpec((tk, H1), lambda i, k: (k, 0)),
            pl.BlockSpec((1, H1), lambda i, k: (0, 0)),
            pl.BlockSpec((H1, H1), lambda i, k: (0, 0)),
            pl.BlockSpec((1, H1), lambda i, k: (0, 0)),
            pl.BlockSpec((1, H1), lambda i, k: (0, 0)),
            pl.BlockSpec(memory_space=pltpu.MemorySpace.SMEM),   # scalar b3
        ],
        out_specs=pl.BlockSpec((tm, 1), lambda i, k: (i, 0)),
        out_shape=jax.ShapeDtypeStruct((N, 1), jnp.float32),
        scratch_shapes=[pltpu.VMEM((tm, H1), jnp.float32)],
        compiler_params=pltpu.CompilerParams(
            dimension_semantics=("parallel", "arbitrary"),
            vmem_limit_bytes=_VMEM_LIMIT),
    )(x, w1, b1, w2, b2, w3row, b3)


def bbox_iou_head_forward(params, bbox_feat, cls_pred, bbox_pred):
    """Forward pass of BBoxIoUHead.  bbox_feat is NCHW, like the PyTorch module."""
    _ = jax.nn.sigmoid(cls_pred)      # computed and discarded, as in the torch forward
    del bbox_pred                     # unused by the torch forward's return value

    N = bbox_feat.shape[0]
    x = jnp.transpose(bbox_feat, (0, 2, 3, 1)).astype(jnp.bfloat16)   # NCHW -> NHWC
    _, R, _, C = x.shape

    # RoI tile for the fused deconv+tower kernel (prefer >= 2 grid steps).
    bt = _divisor_tile(N, min(16, max(1, N // 2)))
    y = deconv_conv_tower(
        x,
        params['wd'].astype(jnp.bfloat16), params['bd'],
        [w.astype(jnp.bfloat16) for w in params['wc']], list(params['bc']),
        bt=bt)                                                         # (N, R, R, C) bf16
    flat = y.reshape(N, R * R * C)                                     # metadata-only

    # ---- FC head tiling: pad K to a multiple of 128 and rows to 8/128 ----
    w1 = params['w1'].astype(jnp.bfloat16)
    F = flat.shape[1]
    pad_f = (-F) % 128
    if pad_f:
        flat = jnp.pad(flat, ((0, 0), (0, pad_f)))
        w1 = jnp.pad(w1, ((0, pad_f), (0, 0)))
    Fp = F + pad_f

    row_mult = 128 if N >= 128 else 8
    pad_n = (-N) % row_mult
    if pad_n:
        flat = jnp.pad(flat, ((0, pad_n), (0, 0)))
    Np = N + pad_n

    tm = _divisor_tile(Np, min(512, max(8, Np // 2)), mult=8)
    tk = _divisor_tile(Fp, 1024, mult=128)

    out = fc_head(flat,
                  w1, params['b1'],
                  params['w2'].astype(jnp.bfloat16), params['b2'],
                  params['w3'].reshape(1, -1), params['b3'],
                  tm=tm, tk=tk)
    return out[:N]


# ----------------------------- params / reference ---------------------------

def init_params(key, channels=8, roi_size=4, fc_out=32, num_convs=4):
    """With the module defaults in_channels == conv_out_channels; use one C."""
    ks = iter(jax.random.split(key, 2 + 2 * num_convs + 6))

    def nrm(k, shape, fan_in):
        return jax.random.normal(k, shape, jnp.float32) * (2.0 / fan_in) ** 0.5

    p = {}
    p['wd'] = nrm(next(ks), (2, 2, channels, channels), 4 * channels)   # deconv k=s=2
    p['bd'] = jax.random.normal(next(ks), (1, channels), jnp.float32) * 0.01
    wc, bc = [], []
    for _ in range(num_convs):
        wc.append(nrm(next(ks), (3, 3, channels, channels), 9 * channels))
        bc.append(jax.random.normal(next(ks), (1, channels), jnp.float32) * 0.01)
    p['wc'] = tuple(wc)
    p['bc'] = tuple(bc)
    flat_dim = channels * roi_size * roi_size
    p['w1'] = nrm(next(ks), (flat_dim, fc_out), flat_dim)
    p['b1'] = jax.random.normal(next(ks), (1, fc_out), jnp.float32) * 0.01
    p['w2'] = nrm(next(ks), (fc_out, fc_out), fc_out)
    p['b2'] = jax.random.normal(next(ks), (1, fc_out), jnp.float32) * 0.01
    p['w3'] = jax.random.normal(next(ks), (fc_out, 1), jnp.float32) * 0.1
    p['b3'] = jnp.zeros((1, 1), jnp.float32)
    return p


def reference_forward(params, bbox_feat):
    """Pure-JAX reference mimicking the kernel's bf16 rounding points."""
    f32 = jnp.float32
    q = lambda a: a.astype(jnp.bfloat16).astype(f32)
    hp = lax.Precision.HIGHEST

    x = q(jnp.transpose(bbox_feat, (0, 2, 3, 1)).astype(f32))
    N, H, W, C = x.shape
    Co = params['wd'].shape[-1]
    up = jnp.einsum('nhwc,ijco->nhiwjo', x, q(params['wd']),
                    precision=hp).reshape(N, 2 * H, 2 * W, Co)
    up = q(jnp.maximum(up + params['bd'][0], 0.0))

    dn = ('NHWC', 'HWIO', 'NHWC')
    f = up
    for i in range(3):
        f = q(jnp.maximum(
            lax.conv_general_dilated(f, q(params['wc'][i]), (1, 1), 'SAME',
                                     dimension_numbers=dn, precision=hp)
            + params['bc'][i][0], 0.0))
    f = q(jnp.maximum(
        lax.conv_general_dilated(f, q(params['wc'][3]), (2, 2), ((1, 1), (1, 1)),
                                 dimension_numbers=dn, precision=hp)
        + params['bc'][3][0], 0.0))
    flat = f.reshape(N, -1)
    h = q(jnp.maximum(jnp.dot(q(flat), q(params['w1']), precision=hp)
                      + params['b1'], 0.0))
    h2 = jnp.maximum(jnp.dot(h, q(params['w2']), precision=hp) + params['b2'], 0.0)
    return jnp.sum(h2 * params['w3'].reshape(1, -1), axis=-1, keepdims=True) + params['b3']


# TODO(synk): loss() / get_bboxes() (DeltaXYWHBBoxCoder.decode, multiclass NMS) are
# not part of forward() and are not implemented here.

if __name__ == "__main__":
    key = jax.random.PRNGKey(0)
    N, C, R, FC_OUT, NUM_CLASSES = 2, 8, 4, 32, 5   # small analog of (256, 7, 1024, 80)
    kx, kc, kb, kp = jax.random.split(key, 4)
    bbox_feat = jax.random.normal(kx, (N, C, R, R), jnp.float32)   # NCHW, like PyTorch
    cls_pred = jax.random.normal(kc, (N, NUM_CLASSES), jnp.float32)
    bbox_pred = jax.random.normal(kb, (N, 4), jnp.float32)
    params = init_params(kp, channels=C, roi_size=R, fc_out=FC_OUT)

    fwd = jax.jit(bbox_iou_head_forward)
    out = fwd(params, bbox_feat, cls_pred, bbox_pred)
    jax.block_until_ready(out)

    with jax.default_matmul_precision("highest"):
        ref = reference_forward(params, bbox_feat)

    assert out.shape == (N, 1), out.shape
    err = float(jnp.max(jnp.abs(out - ref)))
    assert err < 1e-2, f"max abs error vs reference: {err}"
    print("KERNEL_OK")
</pallas_src>

<mosaic_0001>
module attributes {stable_mosaic.version = 11 : i64} {
  func.func @fc_head_kernel(%arg0: i32, %arg1: i32, %arg2: memref<8x128xbf16, #tpu.memory_space<vmem>>, %arg3: memref<128x32xbf16, #tpu.memory_space<vmem>>, %arg4: memref<1x32xf32, #tpu.memory_space<vmem>>, %arg5: memref<32x32xbf16, #tpu.memory_space<vmem>>, %arg6: memref<1x32xf32, #tpu.memory_space<vmem>>, %arg7: memref<1x32xf32, #tpu.memory_space<vmem>>, %arg8: memref<1x1xf32, #tpu.memory_space<smem>>, %arg9: memref<8x1xf32, #tpu.memory_space<vmem>>, %arg10: memref<8x32xf32, #tpu.memory_space<vmem>>) attributes {dimension_semantics = [#tpu.dimension_semantics<parallel>, #tpu.dimension_semantics<arbitrary>], iteration_bounds = array<i64: 1, 1>, scalar_prefetch = 0 : i64, scratch_operands = 1 : i64, tpu.core_type = #tpu.core_type<tc>, window_params = [{transform_indices = @transform_0, window_bounds = array<i64: 8, 128>}, {transform_indices = @transform_1, window_bounds = array<i64: 128, 32>}, {pipeline_mode = #tpu.pipeline_mode<synchronous>, transform_indices = @transform_2, window_bounds = array<i64: 1, 32>}, {pipeline_mode = #tpu.pipeline_mode<synchronous>, transform_indices = @transform_3, window_bounds = array<i64: 32, 32>}, {pipeline_mode = #tpu.pipeline_mode<synchronous>, transform_indices = @transform_4, window_bounds = array<i64: 1, 32>}, {pipeline_mode = #tpu.pipeline_mode<synchronous>, transform_indices = @transform_5, window_bounds = array<i64: 1, 32>}, {transform_indices = @transform_6, window_bounds = array<i64: 1, 1>}, {transform_indices = @transform_7, window_bounds = array<i64: 8, 1>}]} {
    %c0_i32 = arith.constant 0 : i32
    %0 = arith.cmpi eq, %arg1, %c0_i32 : i32
    %1 = arith.extui %0 : i1 to i32
    %c0_i32_0 = arith.constant 0 : i32
    %2 = arith.cmpi ne, %1, %c0_i32_0 : i32
    scf.if %2 {
      %c0_10 = arith.constant 0 : index
      %c0_11 = arith.constant 0 : index
      %12 = vector.load %arg4[%c0_10, %c0_11] : memref<1x32xf32, #tpu.memory_space<vmem>>, vector<1x32xf32>
      %13 = vector.shape_cast %12 : vector<1x32xf32> to vector<1x32xf32>
      %14 = vector.broadcast %13 : vector<1x32xf32> to vector<8x32xf32>
      %c0_12 = arith.constant 0 : index
      %c0_13 = arith.constant 0 : index
      %15 = vector.load %arg10[%c0_12, %c0_13] : memref<8x32xf32, #tpu.memory_space<vmem>>, vector<8x32xf32>
      tpu.vector_store %arg10[%c0_12, %c0_13], %14 {strides = array<i32>} : memref<8x32xf32, #tpu.memory_space<vmem>>, vector<8x32xf32>,
    } else {
    }
    %c0 = arith.constant 0 : index
    %c0_1 = arith.constant 0 : index
    %3 = vector.load %arg10[%c0, %c0_1] : memref<8x32xf32, #tpu.memory_space<vmem>>, vector<8x32xf32>
    %c0_2 = arith.constant 0 : index
    %c0_3 = arith.constant 0 : index
    %4 = vector.load %arg2[%c0_2, %c0_3] : memref<8x128xbf16, #tpu.memory_space<vmem>>, vector<8x128xbf16>
    %c0_4 = arith.constant 0 : index
    %c0_5 = arith.constant 0 : index
    %5 = vector.load %arg3[%c0_4, %c0_5] : memref<128x32xbf16, #tpu.memory_space<vmem>>, vector<128x32xbf16>
    %cst = arith.constant dense<0.000000e+00> : vector<8x32xf32>
    %6 = tpu.matmul %4, %5, %cst {dimension_numbers = #tpu.dot_dimension_numbers<[1], [0], [0], [1], [0, 0, 1, 1], [], []>} : vector<8x128xbf16>, vector<128x32xbf16>, vector<8x32xf32> -> vector<8x32xf32>
    %7 = arith.addf %3, %6 : vector<8x32xf32>
    %c0_6 = arith.constant 0 : index
    %c0_7 = arith.constant 0 : index
    %8 = vector.load %arg10[%c0_6, %c0_7] : memref<8x32xf32, #tpu.memory_space<vmem>>, vector<8x32xf32>
    tpu.vector_store %arg10[%c0_6, %c0_7], %7 {strides = array<i32>} : memref<8x32xf32, #tpu.memory_space<vmem>>, vector<8x32xf32>,
    %c0_i32_8 = arith.constant 0 : i32
    %9 = arith.cmpi eq, %arg1, %c0_i32_8 : i32
    %10 = arith.extui %9 : i1 to i32
    %c0_i32_9 = arith.constant 0 : i32
    %11 = arith.cmpi ne, %10, %c0_i32_9 : i32
    scf.if %11 {
      %c0_10 = arith.constant 0 : index
      %c0_11 = arith.constant 0 : index
      %12 = vector.load %arg10[%c0_10, %c0_11] : memref<8x32xf32, #tpu.memory_space<vmem>>, vector<8x32xf32>
      %cst_12 = arith.constant 0.000000e+00 : f32
      %13 = vector.broadcast %cst_12 : f32 to vector<8x32xf32>
      %14 = arith.maximumf %12, %13 : vector<8x32xf32>
      %15 = arith.truncf %14 : vector<8x32xf32> to vector<8x32xbf16>
      %c0_13 = arith.constant 0 : index
      %c0_14 = arith.constant 0 : index
      %16 = vector.load %arg5[%c0_13, %c0_14] : memref<32x32xbf16, #tpu.memory_space<vmem>>, vector<32x32xbf16>
      %cst_15 = arith.constant dense<0.000000e+00> : vector<8x32xf32>
      %17 = tpu.matmul %15, %16, %cst_15 {dimension_numbers = #tpu.dot_dimension_numbers<[1], [0], [0], [1], [0, 0, 1, 1], [], []>} : vector<8x32xbf16>, vector<32x32xbf16>, vector<8x32xf32> -> vector<8x32xf32>
      %c0_16 = arith.constant 0 : index
      %c0_17 = arith.constant 0 : index
      %18 = vector.load %arg6[%c0_16, %c0_17] : memref<1x32xf32, #tpu.memory_space<vmem>>, vector<1x32xf32>
      %19 = vector.broadcast %18 : vector<1x32xf32> to vector<8x32xf32>
      %20 = arith.addf %17, %19 : vector<8x32xf32>
      %cst_18 = arith.constant 0.000000e+00 : f32
      %21 = vector.broadcast %cst_18 : f32 to vector<8x32xf32>
      %22 = arith.maximumf %20, %21 : vector<8x32xf32>
      %c0_19 = arith.constant 0 : index
      %c0_20 = arith.constant 0 : index
      %23 = vector.load %arg7[%c0_19, %c0_20] : memref<1x32xf32, #tpu.memory_space<vmem>>, vector<1x32xf32>
      %24 = vector.broadcast %23 : vector<1x32xf32> to vector<8x32xf32>
      %25 = arith.mulf %22, %24 : vector<8x32xf32>
      %cst_21 = arith.constant dense<0.000000e+00> : vector<8xf32>
      %26 = vector.multi_reduction <add>, %25, %cst_21 [1] : vector<8x32xf32> to vector<8xf32>
      %27 = vector.shape_cast %26 : vector<8xf32> to vector<8x1xf32>
      %c0_22 = arith.constant 0 : index
      %c0_23 = arith.constant 0 : index
      %28 = memref.load %arg8[%c0_22, %c0_23] : memref<1x1xf32, #tpu.memory_space<smem>>
      %29 = vector.broadcast %28 : f32 to vector<8x1xf32>
      %30 = arith.addf %27, %29 : vector<8x1xf32>
      %c0_24 = arith.constant 0 : index
      %c0_25 = arith.constant 0 : index
      %31 = vector.load %arg9[%c0_24, %c0_25] : memref<8x1xf32, #tpu.memory_space<vmem>>, vector<8x1xf32>
      tpu.vector_store %arg9[%c0_24, %c0_25], %30 {strides = array<i32>} : memref<8x1xf32, #tpu.memory_space<vmem>>, vector<8x1xf32>,
    } else {
    }
    return
  }
  func.func @transform_0(%arg0: i32, %arg1: i32) -> (i32, i32) {
    %c0_i32 = arith.constant 0 : i32
    return %arg0, %arg1 : i32, i32
  }
  func.func @transform_1(%arg0: i32, %arg1: i32) -> (i32, i32) {
    %c0_i32 = arith.constant 0 : i32
    %c0_i32_0 = arith.constant 0 : i32
    return %arg1, %c0_i32 : i32, i32
  }
  func.func @transform_2(%arg0: i32, %arg1: i32) -> (i32, i32) {
    %c0_i32 = arith.constant 0 : i32
    %c0_i32_0 = arith.constant 0 : i32
    %c0_i32_1 = arith.constant 0 : i32
    return %c0_i32, %c0_i32_0 : i32, i32
  }
  func.func @transform_3(%arg0: i32, %arg1: i32) -> (i32, i32) {
    %c0_i32 = arith.constant 0 : i32
    %c0_i32_0 = arith.constant 0 : i32
    %c0_i32_1 = arith.constant 0 : i32
    return %c0_i32, %c0_i32_0 : i32, i32
  }
  func.func @transform_4(%arg0: i32, %arg1: i32) -> (i32, i32) {
    %c0_i32 = arith.constant 0 : i32
    %c0_i32_0 = arith.constant 0 : i32
    %c0_i32_1 = arith.constant 0 : i32
    return %c0_i32, %c0_i32_0 : i32, i32
  }
  func.func @transform_5(%arg0: i32, %arg1: i32) -> (i32, i32) {
    %c0_i32 = arith.constant 0 : i32
    %c0_i32_0 = arith.constant 0 : i32
    %c0_i32_1 = arith.constant 0 : i32
    return %c0_i32, %c0_i32_0 : i32, i32
  }
  func.func @transform_6(%arg0: i32, %arg1: i32) -> (i32, i32) {
    %c0_i32 = arith.constant 0 : i32
    %c0_i32_0 = arith.constant 0 : i32
    %c0_i32_1 = arith.constant 0 : i32
    return %c0_i32, %c0_i32_0 : i32, i32
  }
  func.func @transform_7(%arg0: i32, %arg1: i32) -> (i32, i32) {
    %c0_i32 = arith.constant 0 : i32
    %c0_i32_0 = arith.constant 0 : i32
    return %arg0, %c0_i32 : i32, i32
  }
}

module attributes {stable_mosaic.version = 11 : i64} {
  func.func @deconv_conv_tower_kernel(%arg0: i32, %arg1: memref<1x4x4x8xbf16, #tpu.memory_space<vmem>>, %arg2: memref<2x2x8x8xbf16, #tpu.memory_space<vmem>>, %arg3: memref<1x8xf32, #tpu.memory_space<vmem>>, %arg4: memref<3x3x8x8xbf16, #tpu.memory_space<vmem>>, %arg5: memref<1x8xf32, #tpu.memory_space<vmem>>, %arg6: memref<3x3x8x8xbf16, #tpu.memory_space<vmem>>, %arg7: memref<1x8xf32, #tpu.memory_space<vmem>>, %arg8: memref<3x3x8x8xbf16, #tpu.memory_space<vmem>>, %arg9: memref<1x8xf32, #tpu.memory_space<vmem>>, %arg10: memref<3x3x8x8xbf16, #tpu.memory_space<vmem>>, %arg11: memref<1x8xf32, #tpu.memory_space<vmem>>, %arg12: memref<1x4x4x8xbf16, #tpu.memory_space<vmem>>, %arg13: memref<1x10x10x8xbf16, #tpu.memory_space<vmem>>) attributes {dimension_semantics = [#tpu.dimension_semantics<parallel>], iteration_bounds = array<i64: 2>, scalar_prefetch = 0 : i64, scratch_operands = 1 : i64, tpu.core_type = #tpu.core_type<tc>, window_params = [{transform_indices = @transform_0, window_bounds = array<i64: 1, 4, 4, 8>}, {pipeline_mode = #tpu.pipeline_mode<synchronous>, transform_indices = @transform_1, window_bounds = array<i64: 2, 2, 8, 8>}, {pipeline_mode = #tpu.pipeline_mode<synchronous>, transform_indices = @transform_2, window_bounds = array<i64: 1, 8>}, {pipeline_mode = #tpu.pipeline_mode<synchronous>, transform_indices = @transform_3, window_bounds = array<i64: 3, 3, 8, 8>}, {pipeline_mode = #tpu.pipeline_mode<synchronous>, transform_indices = @transform_4, window_bounds = array<i64: 1, 8>}, {pipeline_mode = #tpu.pipeline_mode<synchronous>, transform_indices = @transform_5, window_bounds = array<i64: 3, 3, 8, 8>}, {pipeline_mode = #tpu.pipeline_mode<synchronous>, transform_indices = @transform_6, window_bounds = array<i64: 1, 8>}, {pipeline_mode = #tpu.pipeline_mode<synchronous>, transform_indices = @transform_7, window_bounds = array<i64: 3, 3, 8, 8>}, {pipeline_mode = #tpu.pipeline_mode<synchronous>, transform_indices = @transform_8, window_bounds = array<i64: 1, 8>}, {pipeline_mode = #tpu.pipeline_mode<synchronous>, transform_indices = @transform_9, window_bounds = array<i64: 3, 3, 8, 8>}, {pipeline_mode = #tpu.pipeline_mode<synchronous>, transform_indices = @transform_10, window_bounds = array<i64: 1, 8>}, {transform_indices = @transform_11, window_bounds = array<i64: 1, 4, 4, 8>}]} {
    %cst = arith.constant 0.000000e+00 : bf16
    %0 = vector.broadcast %cst : bf16 to vector<1x10x10x8xbf16>
    %c0 = arith.constant 0 : index
    %c0_0 = arith.constant 0 : index
    %c0_1 = arith.constant 0 : index
    %c0_2 = arith.constant 0 : index
    %1 = vector.load %arg13[%c0, %c0_0, %c0_1, %c0_2] : memref<1x10x10x8xbf16, #tpu.memory_space<vmem>>, vector<1x10x10x8xbf16>
    tpu.vector_store %arg13[%c0, %c0_0, %c0_1, %c0_2], %0 {strides = array<i32>} : memref<1x10x10x8xbf16, #tpu.memory_space<vmem>>, vector<1x10x10x8xbf16>,
    %c0_3 = arith.constant 0 : index
    %c0_4 = arith.constant 0 : index
    %c0_5 = arith.constant 0 : index
    %c0_6 = arith.constant 0 : index
    %2 = vector.load %arg1[%c0_3, %c0_4, %c0_5, %c0_6] : memref<1x4x4x8xbf16, #tpu.memory_space<vmem>>, vector<1x4x4x8xbf16>
    %3 = vector.shape_cast %2 : vector<1x4x4x8xbf16> to vector<16x8xbf16>
    %c0_7 = arith.constant 0 : index
    %c0_8 = arith.constant 0 : index
    %4 = vector.load %arg3[%c0_7, %c0_8] : memref<1x8xf32, #tpu.memory_space<vmem>>, vector<1x8xf32>
    %c0_9 = arith.constant 0 : index
    %c0_10 = arith.constant 0 : index
    %c0_11 = arith.constant 0 : index
    %c0_12 = arith.constant 0 : index
    %5 = vector.load %arg2[%c0_9, %c0_10, %c0_11, %c0_12] : memref<2x2x8x8xbf16, #tpu.memory_space<vmem>>, vector<1x1x8x8xbf16>
    %6 = vector.shape_cast %5 : vector<1x1x8x8xbf16> to vector<8x8xbf16>
    %cst_13 = arith.constant dense<0.000000e+00> : vector<16x8xf32>
    %7 = tpu.matmul %3, %6, %cst_13 {dimension_numbers = #tpu.dot_dimension_numbers<[1], [0], [0], [1], [0, 0, 1, 1], [], []>} : vector<16x8xbf16>, vector<8x8xbf16>, vector<16x8xf32> -> vector<16x8xf32>
    %8 = vector.broadcast %4 : vector<1x8xf32> to vector<16x8xf32>
    %9 = arith.addf %7, %8 : vector<16x8xf32>
    %cst_14 = arith.constant 0.000000e+00 : f32
    %10 = vector.broadcast %cst_14 : f32 to vector<16x8xf32>
    %11 = arith.maximumf %9, %10 : vector<16x8xf32>
    %12 = arith.truncf %11 : vector<16x8xf32> to vector<16x8xbf16>
    %c0_15 = arith.constant 0 : index
    %c1 = arith.constant 1 : index
    %c0_16 = arith.constant 0 : index
    %c0_17 = arith.constant 0 : index
    %13 = vector.load %arg2[%c0_15, %c1, %c0_16, %c0_17] : memref<2x2x8x8xbf16, #tpu.memory_space<vmem>>, vector<1x1x8x8xbf16>
    %14 = vector.shape_cast %13 : vector<1x1x8x8xbf16> to vector<8x8xbf16>
    %cst_18 = arith.constant dense<0.000000e+00> : vector<16x8xf32>
    %15 = tpu.matmul %3, %14, %cst_18 {dimension_numbers = #tpu.dot_dimension_numbers<[1], [0], [0], [1], [0, 0, 1, 1], [], []>} : vector<16x8xbf16>, vector<8x8xbf16>, vector<16x8xf32> -> vector<16x8xf32>
    %16 = vector.broadcast %4 : vector<1x8xf32> to vector<16x8xf32>
    %17 = arith.addf %15, %16 : vector<16x8xf32>
    %cst_19 = arith.constant 0.000000e+00 : f32
    %18 = vector.broadcast %cst_19 : f32 to vector<16x8xf32>
    %19 = arith.maximumf %17, %18 : vector<16x8xf32>
    %20 = arith.truncf %19 : vector<16x8xf32> to vector<16x8xbf16>
    %21 = vector.shape_cast %12 : vector<16x8xbf16> to vector<16x1x8xbf16>
    %22 = vector.shape_cast %20 : vector<16x8xbf16> to vector<16x1x8xbf16>
    %23 = tpu.concatenate %21, %22 in 1 : vector<16x1x8xbf16>, vector<16x1x8xbf16> -> vector<16x2x8xbf16>
    %24 = vector.shape_cast %23 : vector<16x2x8xbf16> to vector<1x4x8x8xbf16>
    %c1_20 = arith.constant 1 : index
    %c0_21 = arith.constant 0 : index
    %c0_22 = arith.constant 0 : index
    %c0_23 = arith.constant 0 : index
    %25 = vector.load %arg2[%c1_20, %c0_21, %c0_22, %c0_23] : memref<2x2x8x8xbf16, #tpu.memory_space<vmem>>, vector<1x1x8x8xbf16>
    %26 = vector.shape_cast %25 : vector<1x1x8x8xbf16> to vector<8x8xbf16>
    %cst_24 = arith.constant dense<0.000000e+00> : vector<16x8xf32>
    %27 = tpu.matmul %3, %26, %cst_24 {dimension_numbers = #tpu.dot_dimension_numbers<[1], [0], [0], [1], [0, 0, 1, 1], [], []>} : vector<16x8xbf16>, vector<8x8xbf16>, vector<16x8xf32> -> vector<16x8xf32>
    %28 = vector.broadcast %4 : vector<1x8xf32> to vector<16x8xf32>
    %29 = arith.addf %27, %28 : vector<16x8xf32>
    %cst_25 = arith.constant 0.000000e+00 : f32
    %30 = vector.broadcast %cst_25 : f32 to vector<16x8xf32>
    %31 = arith.maximumf %29, %30 : vector<16x8xf32>
    %32 = arith.truncf %31 : vector<16x8xf32> to vector<16x8xbf16>
    %c1_26 = arith.constant 1 : index
    %c1_27 = arith.constant 1 : index
    %c0_28 = arith.constant 0 : index
    %c0_29 = arith.constant 0 : index
    %33 = vector.load %arg2[%c1_26, %c1_27, %c0_28, %c0_29] : memref<2x2x8x8xbf16, #tpu.memory_space<vmem>>, vector<1x1x8x8xbf16>
    %34 = vector.shape_cast %33 : vector<1x1x8x8xbf16> to vector<8x8xbf16>
    %cst_30 = arith.constant dense<0.000000e+00> : vector<16x8xf32>
    %35 = tpu.matmul %3, %34, %cst_30 {dimension_numbers = #tpu.dot_dimension_numbers<[1], [0], [0], [1], [0, 0, 1, 1], [], []>} : vector<16x8xbf16>, vector<8x8xbf16>, vector<16x8xf32> -> vector<16x8xf32>
    %36 = vector.broadcast %4 : vector<1x8xf32> to vector<16x8xf32>
    %37 = arith.addf %35, %36 : vector<16x8xf32>
    %cst_31 = arith.constant 0.000000e+00 : f32
    %38 = vector.broadcast %cst_31 : f32 to vector<16x8xf32>
    %39 = arith.maximumf %37, %38 : vector<16x8xf32>
    %40 = arith.truncf %39 : vector<16x8xf32> to vector<16x8xbf16>
    %41 = vector.shape_cast %32 : vector<16x8xbf16> to vector<16x1x8xbf16>
    %42 = vector.shape_cast %40 : vector<16x8xbf16> to vector<16x1x8xbf16>
    %43 = tpu.concatenate %41, %42 in 1 : vector<16x1x8xbf16>, vector<16x1x8xbf16> -> vector<16x2x8xbf16>
    %44 = vector.shape_cast %43 : vector<16x2x8xbf16> to vector<1x4x8x8xbf16>
    %45 = vector.shape_cast %24 : vector<1x4x8x8xbf16> to vector<1x4x1x8x8xbf16>
    %46 = vector.shape_cast %44 : vector<1x4x8x8xbf16> to vector<1x4x1x8x8xbf16>
    %47 = tpu.concatenate %45, %46 in 2 : vector<1x4x1x8x8xbf16>, vector<1x4x1x8x8xbf16> -> vector<1x4x2x8x8xbf16>
    %48 = vector.shape_cast %47 : vector<1x4x2x8x8xbf16> to vector<1x8x8x8xbf16>
    %c0_32 = arith.constant 0 : index
    %c1_33 = arith.constant 1 : index
    %c1_34 = arith.constant 1 : index
    %c0_35 = arith.constant 0 : index
    %49 = vector.load %arg13[%c0_32, %c1_33, %c1_34, %c0_35] : memref<1x10x10x8xbf16, #tpu.memory_space<vmem>>, vector<1x8x8x8xbf16>
    tpu.vector_store %arg13[%c0_32, %c1_33, %c1_34, %c0_35], %48 {strides = array<i32>} : memref<1x10x10x8xbf16, #tpu.memory_space<vmem>>, vector<1x8x8x8xbf16>,
    %c0_36 = arith.constant 0 : index
    %c0_37 = arith.constant 0 : index
    %50 = vector.load %arg5[%c0_36, %c0_37] : memref<1x8xf32, #tpu.memory_space<vmem>>, vector<1x8xf32>
    %51 = vector.shape_cast %50 : vector<1x8xf32> to vector<1x8xf32>
    %52 = vector.broadcast %51 : vector<1x8xf32> to vector<64x8xf32>
    %c0_38 = arith.constant 0 : index
    %c0_39 = arith.constant 0 : index
    %c0_40 = arith.constant 0 : index
    %c0_41 = arith.constant 0 : index
    %53 = vector.load %arg13[%c0_38, %c0_39, %c0_40, %c0_41] : memref<1x10x10x8xbf16, #tpu.memory_space<vmem>>, vector<1x8x8x8xbf16>
    %54 = vector.shape_cast %53 : vector<1x8x8x8xbf16> to vector<64x8xbf16>
    %c0_42 = arith.constant 0 : index
    %c0_43 = arith.constant 0 : index
    %c0_44 = arith.constant 0 : index
    %c0_45 = arith.constant 0 : index
    %55 = vector.load %arg4[%c0_42, %c0_43, %c0_44, %c0_45] : memref<3x3x8x8xbf16, #tpu.memory_space<vmem>>, vector<1x1x8x8xbf16>
    %56 = vector.shape_cast %55 : vector<1x1x8x8xbf16> to vector<8x8xbf16>
    %cst_46 = arith.constant dense<0.000000e+00> : vector<64x8xf32>
    %57 = tpu.matmul %54, %56, %cst_46 {dimension_numbers = #tpu.dot_dimension_numbers<[1], [0], [0], [1], [0, 0, 1, 1], [], []>} : vector<64x8xbf16>, vector<8x8xbf16>, vector<64x8xf32> -> vector<64x8xf32>
    %58 = arith.addf %52, %57 : vector<64x8xf32>
    %c0_47 = arith.constant 0 : index
    %c0_48 = arith.constant 0 : index
    %c1_49 = arith.constant 1 : index
    %c0_50 = arith.constant 0 : index
    %59 = vector.load %arg13[%c0_47, %c0_48, %c1_49, %c0_50] : memref<1x10x10x8xbf16, #tpu.memory_space<vmem>>, vector<1x8x8x8xbf16>
    %60 = vector.shape_cast %59 : vector<1x8x8x8xbf16> to vector<64x8xbf16>
    %c0_51 = arith.constant 0 : index
    %c1_52 = arith.constant 1 : index
    %c0_53 = arith.constant 0 : index
    %c0_54 = arith.constant 0 : index
    %61 = vector.load %arg4[%c0_51, %c1_52, %c0_53, %c0_54] : memref<3x3x8x8xbf16, #tpu.memory_space<vmem>>, vector<1x1x8x8xbf16>
    %62 = vector.shape_cast %61 : vector<1x1x8x8xbf16> to vector<8x8xbf16>
    %cst_55 = arith.constant dense<0.000000e+00> : vector<64x8xf32>
    %63 = tpu.matmul %60, %62, %cst_55 {dimension_numbers = #tpu.dot_dimension_numbers<[1], [0], [0], [1], [0, 0, 1, 1], [], []>} : vector<64x8xbf16>, vector<8x8xbf16>, vector<64x8xf32> -> vector<64x8xf32>
    %64 = arith.addf %58, %63 : vector<64x8xf32>
    %c0_56 = arith.constant 0 : index
    %c0_57 = arith.constant 0 : index
    %c2 = arith.constant 2 : index
    %c0_58 = arith.constant 0 : index
    %65 = vector.load %arg13[%c0_56, %c0_57, %c2, %c0_58] : memref<1x10x10x8xbf16, #tpu.memory_space<vmem>>, vector<1x8x8x8xbf16>
    %66 = vector.shape_cast %65 : vector<1x8x8x8xbf16> to vector<64x8xbf16>
    %c0_59 = arith.constant 0 : index
    %c2_60 = arith.constant 2 : index
    %c0_61 = arith.constant 0 : index
    %c0_62 = arith.constant 0 : index
    %67 = vector.load %arg4[%c0_59, %c2_60, %c0_61, %c0_62] : memref<3x3x8x8xbf16, #tpu.memory_space<vmem>>, vector<1x1x8x8xbf16>
    %68 = vector.shape_cast %67 : vector<1x1x8x8xbf16> to vector<8x8xbf16>
    %cst_63 = arith.constant dense<0.000000e+00> : vector<64x8xf32>
    %69 = tpu.matmul %66, %68, %cst_63 {dimension_numbers = #tpu.dot_dimension_numbers<[1], [0], [0], [1], [0, 0, 1, 1], [], []>} : vector<64x8xbf16>, vector<8x8xbf16>, vector<64x8xf32> -> vector<64x8xf32>
    %70 = arith.addf %64, %69 : vector<64x8xf32>
    %c0_64 = arith.constant 0 : index
    %c1_65 = arith.constant 1 : index
    %c0_66 = arith.constant 0 : index
    %c0_67 = arith.constant 0 : index
    %71 = vector.load %arg13[%c0_64, %c1_65, %c0_66, %c0_67] : memref<1x10x10x8xbf16, #tpu.memory_space<vmem>>, vector<1x8x8x8xbf16>
    %72 = vector.shape_cast %71 : vector<1x8x8x8xbf16> to vector<64x8xbf16>
    %c1_68 = arith.constant 1 : index
    %c0_69 = arith.constant 0 : index
    %c0_70 = arith.constant 0 : index
    %c0_71 = arith.constant 0 : index
    %73 = vector.load %arg4[%c1_68, %c0_69, %c0_70, %c0_71] : memref<3x3x8x8xbf16, #tpu.memory_space<vmem>>, vector<1x1x8x8xbf16>
    %74 = vector.shape_cast %73 : vector<1x1x8x8xbf16> to vector<8x8xbf16>
    %cst_72 = arith.constant dense<0.000000e+00> : vector<64x8xf32>
    %75 = tpu.matmul %72, %74, %cst_72 {dimension_numbers = #tpu.dot_dimension_numbers<[1], [0], [0], [1], [0, 0, 1, 1], [], []>} : vector<64x8xbf16>, vector<8x8xbf16>, vector<64x8xf32> -> vector<64x8xf32>
    %76 = arith.addf %70, %75 : vector<64x8xf32>
    %c0_73 = arith.constant 0 : index
    %c1_74 = arith.constant 1 : index
    %c1_75 = arith.constant 1 : index
    %c0_76 = arith.constant 0 : index
    %77 = vector.load %arg13[%c0_73, %c1_74, %c1_75, %c0_76] : memref<1x10x10x8xbf16, #tpu.memory_space<vmem>>, vector<1x8x8x8xbf16>
    %78 = vector.shape_cast %77 : vector<1x8x8x8xbf16> to vector<64x8xbf16>
    %c1_77 = arith.constant 1 : index
    %c1_78 = arith.constant 1 : index
    %c0_79 = arith.constant 0 : index
    %c0_80 = arith.constant 0 : index
    %79 = vector.load %arg4[%c1_77, %c1_78, %c0_79, %c0_80] : memref<3x3x8x8xbf16, #tpu.memory_space<vmem>>, vector<1x1x8x8xbf16>
    %80 = vector.shape_cast %79 : vector<1x1x8x8xbf16> to vector<8x8xbf16>
    %cst_81 = arith.constant dense<0.000000e+00> : vector<64x8xf32>
    %81 = tpu.matmul %78, %80, %cst_81 {dimension_numbers = #tpu.dot_dimension_numbers<[1], [0], [0], [1], [0, 0, 1, 1], [], []>} : vector<64x8xbf16>, vector<8x8xbf16>, vector<64x8xf32> -> vector<64x8xf32>
    %82 = arith.addf %76, %81 : vector<64x8xf32>
    %c0_82 = arith.constant 0 : index
    %c1_83 = arith.constant 1 : index
    %c2_84 = arith.constant 2 : index
    %c0_85 = arith.constant 0 : index
    %83 = vector.load %arg13[%c0_82, %c1_83, %c2_84, %c0_85] : memref<1x10x10x8xbf16, #tpu.memory_space<vmem>>, vector<1x8x8x8xbf16>
    %84 = vector.shape_cast %83 : vector<1x8x8x8xbf16> to vector<64x8xbf16>
    %c1_86 = arith.constant 1 : index
    %c2_87 = arith.constant 2 : index
    %c0_88 = arith.constant 0 : index
    %c0_89 = arith.constant 0 : index
    %85 = vector.load %arg4[%c1_86, %c2_87, %c0_88, %c0_89] : memref<3x3x8x8xbf16, #tpu.memory_space<vmem>>, vector<1x1x8x8xbf16>
    %86 = vector.shape_cast %85 : vector<1x1x8x8xbf16> to vector<8x8xbf16>
    %cst_90 = arith.constant dense<0.000000e+00> : vector<64x8xf32>
    %87 = tpu.matmul %84, %86, %cst_90 {dimension_numbers = #tpu.dot_dimension_numbers<[1], [0], [0], [1], [0, 0, 1, 1], [], []>} : vector<64x8xbf16>, vector<8x8xbf16>, vector<64x8xf32> -> vector<64x8xf32>
    %88 = arith.addf %82, %87 : vector<64x8xf32>
    %c0_91 = arith.constant 0 : index
    %c2_92 = arith.constant 2 : index
    %c0_93 = arith.constant 0 : index
    %c0_94 = arith.constant 0 : index
    %89 = vector.load %arg13[%c0_91, %c2_92, %c0_93, %c0_94] : memref<1x10x10x8xbf16, #tpu.memory_space<vmem>>, vector<1x8x8x8xbf16>
    %90 = vector.shape_cast %89 : vector<1x8x8x8xbf16> to vector<64x8xbf16>
    %c2_95 = arith.constant 2 : index
    %c0_96 = arith.constant 0 : index
    %c0_97 = arith.constant 0 : index
    %c0_98 = arith.constant 0 : index
    %91 = vector.load %arg4[%c2_95, %c0_96, %c0_97, %c0_98] : memref<3x3x8x8xbf16, #tpu.memory_space<vmem>>, vector<1x1x8x8xbf16>
    %92 = vector.shape_cast %91 : vector<1x1x8x8xbf16> to vector<8x8xbf16>
    %cst_99 = arith.constant dense<0.000000e+00> : vector<64x8xf32>
    %93 = tpu.matmul %90, %92, %cst_99 {dimension_numbers = #tpu.dot_dimension_numbers<[1], [0], [0], [1], [0, 0, 1, 1], [], []>} : vector<64x8xbf16>, vector<8x8xbf16>, vector<64x8xf32> -> vector<64x8xf32>
    %94 = arith.addf %88, %93 : vector<64x8xf32>
    %c0_100 = arith.constant 0 : index
    %c2_101 = arith.constant 2 : index
    %c1_102 = arith.constant 1 : index
    %c0_103 = arith.constant 0 : index
    %95 = vector.load %arg13[%c0_100, %c2_101, %c1_102, %c0_103] : memref<1x10x10x8xbf16, #tpu.memory_space<vmem>>, vector<1x8x8x8xbf16>
    %96 = vector.shape_cast %95 : vector<1x8x8x8xbf16> to vector<64x8xbf16>
    %c2_104 = arith.constant 2 : index
    %c1_105 = arith.constant 1 : index
    %c0_106 = arith.constant 0 : index
    %c0_107 = arith.constant 0 : index
    %97 = vector.load %arg4[%c2_104, %c1_105, %c0_106, %c0_107] : memref<3x3x8x8xbf16, #tpu.memory_space<vmem>>, vector<1x1x8x8xbf16>
    %98 = vector.shape_cast %97 : vector<1x1x8x8xbf16> to vector<8x8xbf16>
    %cst_108 = arith.constant dense<0.000000e+00> : vector<64x8xf32>
    %99 = tpu.matmul %96, %98, %cst_108 {dimension_numbers = #tpu.dot_dimension_numbers<[1], [0], [0], [1], [0, 0, 1, 1], [], []>} : vector<64x8xbf16>, vector<8x8xbf16>, vector<64x8xf32> -> vector<64x8xf32>
    %100 = arith.addf %94, %99 : vector<64x8xf32>
    %c0_109 = arith.constant 0 : index
    %c2_110 = arith.constant 2 : index
    %c2_111 = arith.constant 2 : index
    %c0_112 = arith.constant 0 : index
    %101 = vector.load %arg13[%c0_109, %c2_110, %c2_111, %c0_112] : memref<1x10x10x8xbf16, #tpu.memory_space<vmem>>, vector<1x8x8x8xbf16>
    %102 = vector.shape_cast %101 : vector<1x8x8x8xbf16> to vector<64x8xbf16>
    %c2_113 = arith.constant 2 : index
    %c2_114 = arith.constant 2 : index
    %c0_115 = arith.constant 0 : index
    %c0_116 = arith.constant 0 : index
    %103 = vector.load %arg4[%c2_113, %c2_114, %c0_115, %c0_116] : memref<3x3x8x8xbf16, #tpu.memory_space<vmem>>, vector<1x1x8x8xbf16>
    %104 = vector.shape_cast %103 : vector<1x1x8x8xbf16> to vector<8x8xbf16>
    %cst_117 = arith.constant dense<0.000000e+00> : vector<64x8xf32>
    %105 = tpu.matmul %102, %104, %cst_117 {dimension_numbers = #tpu.dot_dimension_numbers<[1], [0], [0], [1], [0, 0, 1, 1], [], []>} : vector<64x8xbf16>, vector<8x8xbf16>, vector<64x8xf32> -> vector<64x8xf32>
    %106 = arith.addf %100, %105 : vector<64x8xf32>
    %cst_118 = arith.constant 0.000000e+00 : f32
    %107 = vector.broadcast %cst_118 : f32 to vector<64x8xf32>
    %108 = arith.maximumf %106, %107 : vector<64x8xf32>
    %109 = arith.truncf %108 : vector<64x8xf32> to vector<64x8xbf16>
    %110 = vector.shape_cast %109 : vector<64x8xbf16> to vector<1x8x8x8xbf16>
    %c0_119 = arith.constant 0 : index
    %c1_120 = arith.constant 1 : index
    %c1_121 = arith.constant 1 : index
    %c0_122 = arith.constant 0 : index
    %111 = vector.load %arg13[%c0_119, %c1_120, %c1_121, %c0_122] : memref<1x10x10x8xbf16, #tpu.memory_space<vmem>>, vector<1x8x8x8xbf16>
    tpu.vector_store %arg13[%c0_119, %c1_120, %c1_121, %c0_122], %110 {strides = array<i32>} : memref<1x10x10x8xbf16, #tpu.memory_space<vmem>>, vector<1x8x8x8xbf16>,
    %c0_123 = arith.constant 0 : index
    %c0_124 = arith.constant 0 : index
    %112 = vector.load %arg7[%c0_123, %c0_124] : memref<1x8xf32, #tpu.memory_space<vmem>>, vector<1x8xf32>
    %113 = vector.shape_cast %112 : vector<1x8xf32> to vector<1x8xf32>
    %114 = vector.broadcast %113 : vector<1x8xf32> to vector<64x8xf32>
    %c0_125 = arith.constant 0 : index
    %c0_126 = arith.constant 0 : index
    %c0_127 = arith.constant 0 : index
    %c0_128 = arith.constant 0 : index
    %115 = vector.load %arg13[%c0_125, %c0_126, %c0_127, %c0_128] : memref<1x10x10x8xbf16, #tpu.memory_space<vmem>>, vector<1x8x8x8xbf16>
    %116 = vector.shape_cast %115 : vector<1x8x8x8xbf16> to vector<64x8xbf16>
    %c0_129 = arith.constant 0 : index
    %c0_130 = arith.constant 0 : index
    %c0_131 = arith.constant 0 : index
    %c0_132 = arith.constant 0 : index
    %117 = vector.load %arg6[%c0_129, %c0_130, %c0_131, %c0_132] : memref<3x3x8x8xbf16, #tpu.memory_space<vmem>>, vector<1x1x8x8xbf16>
    %118 = vector.shape_cast %117 : vector<1x1x8x8xbf16> to vector<8x8xbf16>
    %cst_133 = arith.constant dense<0.000000e+00> : vector<64x8xf32>
    %119 = tpu.matmul %116, %118, %cst_133 {dimension_numbers = #tpu.dot_dimension_numbers<[1], [0], [0], [1], [0, 0, 1, 1], [], []>} : vector<64x8xbf16>, vector<8x8xbf16>, vector<64x8xf32> -> vector<64x8xf32>
    %120 = arith.addf %114, %119 : vector<64x8xf32>
    %c0_134 = arith.constant 0 : index
    %c0_135 = arith.constant 0 : index
    %c1_136 = arith.constant 1 : index
    %c0_137 = arith.constant 0 : index
    %121 = vector.load %arg13[%c0_134, %c0_135, %c1_136, %c0_137] : memref<1x10x10x8xbf16, #tpu.memory_space<vmem>>, vector<1x8x8x8xbf16>
    %122 = vector.shape_cast %121 : vector<1x8x8x8xbf16> to vector<64x8xbf16>
    %c0_138 = arith.constant 0 : index
    %c1_139 = arith.constant 1 : index
    %c0_140 = arith.constant 0 : index
    %c0_141 = arith.constant 0 : index
    %123 = vector.load %arg6[%c0_138, %c1_139, %c0_140, %c0_141] : memref<3x3x8x8xbf16, #tpu.memory_space<vmem>>, vector<1x1x8x8xbf16>
    %124 = vector.shape_cast %123 : vector<1x1x8x8xbf16> to vector<8x8xbf16>
    %cst_142 = arith.constant dense<0.000000e+00> : vector<64x8xf32>
    %125 = tpu.matmul %122, %124, %cst_142 {dimension_numbers = #tpu.dot_dimension_numbers<[1], [0], [0], [1], [0, 0, 1, 1], [], []>} : vector<64x8xbf16>, vector<8x8xbf16>, vector<64x8xf32> -> vector<64x8xf32>
    %126 = arith.addf %120, %125 : vector<64x8xf32>
    %c0_143 = arith.constant 0 : index
    %c0_144 = arith.constant 0 : index
    %c2_145 = arith.constant 2 : index
    %c0_146 = arith.constant 0 : index
    %127 = vector.load %arg13[%c0_143, %c0_144, %c2_145, %c0_146] : memref<1x10x10x8xbf16, #tpu.memory_space<vmem>>, vector<1x8x8x8xbf16>
    %128 = vector.shape_cast %127 : vector<1x8x8x8xbf16> to vector<64x8xbf16>
    %c0_147 = arith.constant 0 : index
    %c2_148 = arith.constant 2 : index
    %c0_149 = arith.constant 0 : index
    %c0_150 = arith.constant 0 : index
    %129 = vector.load %arg6[%c0_147, %c2_148, %c0_149, %c0_150] : memref<3x3x8x8xbf16, #tpu.memory_space<vmem>>, vector<1x1x8x8xbf16>
    %130 = vector.shape_cast %129 : vector<1x1x8x8xbf16> to vector<8x8xbf16>
    %cst_151 = arith.constant dense<0.000000e+00> : vector<64x8xf32>
    %131 = tpu.matmul %128, %130, %cst_151 {dimension_numbers = #tpu.dot_dimension_numbers<[1], [0], [0], [1], [0, 0, 1, 1], [], []>} : vector<64x8xbf16>, vector<8x8xbf16>, vector<64x8xf32> -> vector<64x8xf32>
    %132 = arith.addf %126, %131 : vector<64x8xf32>
    %c0_152 = arith.constant 0 : index
    %c1_153 = arith.constant 1 : index
    %c0_154 = arith.constant 0 : index
    %c0_155 = arith.constant 0 : index
    %133 = vector.load %arg13[%c0_152, %c1_153, %c0_154, %c0_155] : memref<1x10x10x8xbf16, #tpu.memory_space<vmem>>, vector<1x8x8x8xbf16>
    %134 = vector.shape_cast %133 : vector<1x8x8x8xbf16> to vector<64x8xbf16>
    %c1_156 = arith.constant 1 : index
    %c0_157 = arith.constant 0 : index
    %c0_158 = arith.constant 0 : index
    %c0_159 = arith.constant 0 : index
    %135 = vector.load %arg6[%c1_156, %c0_157, %c0_158, %c0_159] : memref<3x3x8x8xbf16, #tpu.memory_space<vmem>>, vector<1x1x8x8xbf16>
    %136 = vector.shape_cast %135 : vector<1x1x8x8xbf16> to vector<8x8xbf16>
    %cst_160 = arith.constant dense<0.000000e+00> : vector<64x8xf32>
    %137 = tpu.matmul %134, %136, %cst_160 {dimension_numbers = #tpu.dot_dimension_numbers<[1], [0], [0], [1], [0, 0, 1, 1], [], []>} : vector<64x8xbf16>, vector<8x8xbf16>, vector<64x8xf32> -> vector<64x8xf32>
    %138 = arith.addf %132, %137 : vector<64x8xf32>
    %c0_161 = arith.constant 0 : index
    %c1_162 = arith.constant 1 : index
    %c1_163 = arith.constant 1 : index
    %c0_164 = arith.constant 0 : index
    %139 = vector.load %arg13[%c0_161, %c1_162, %c1_163, %c0_164] : memref<1x10x10x8xbf16, #tpu.memory_space<vmem>>, vector<1x8x8x8xbf16>
    %140 = vector.shape_cast %139 : vector<1x8x8x8xbf16> to vector<64x8xbf16>
    %c1_165 = arith.constant 1 : index
    %c1_166 = arith.constant 1 : index
    %c0_167 = arith.constant 0 : index
    %c0_168 = arith.constant 0 : index
    %141 = vector.load %arg6[%c1_165, %c1_166, %c0_167, %c0_168] : memref<3x3x8x8xbf16, #tpu.memory_space<vmem>>, vector<1x1x8x8xbf16>
    %142 = vector.shape_cast %141 : vector<1x1x8x8xbf16> to vector<8x8xbf16>
    %cst_169 = arith.constant dense<0.000000e+00> : vector<64x8xf32>
    %143 = tpu.matmul %140, %142, %cst_169 {dimension_numbers = #tpu.dot_dimension_numbers<[1], [0], [0], [1], [0, 0, 1, 1], [], []>} : vector<64x8xbf16>, vector<8x8xbf16>, vector<64x8xf32> -> vector<64x8xf32>
    %144 = arith.addf %138, %143 : vector<64x8xf32>
    %c0_170 = arith.constant 0 : index
    %c1_171 = arith.constant 1 : index
    %c2_172 = arith.constant 2 : index
    %c0_173 = arith.constant 0 : index
    %145 = vector.load %arg13[%c0_170, %c1_171, %c2_172, %c0_173] : memref<1x10x10x8xbf16, #tpu.memory_space<vmem>>, vector<1x8x8x8xbf16>
    %146 = vector.shape_cast %145 : vector<1x8x8x8xbf16> to vector<64x8xbf16>
    %c1_174 = arith.constant 1 : index
    %c2_175 = arith.constant 2 : index
    %c0_176 = arith.constant 0 : index
    %c0_177 = arith.constant 0 : index
    %147 = vector.load %arg6[%c1_174, %c2_175, %c0_176, %c0_177] : memref<3x3x8x8xbf16, #tpu.memory_space<vmem>>, vector<1x1x8x8xbf16>
    %148 = vector.shape_cast %147 : vector<1x1x8x8xbf16> to vector<8x8xbf16>
    %cst_178 = arith.constant dense<0.000000e+00> : vector<64x8xf32>
    %149 = tpu.matmul %146, %148, %cst_178 {dimension_numbers = #tpu.dot_dimension_numbers<[1], [0], [0], [1], [0, 0, 1, 1], [], []>} : vector<64x8xbf16>, vector<8x8xbf16>, vector<64x8xf32> -> vector<64x8xf32>
    %150 = arith.addf %144, %149 : vector<64x8xf32>
    %c0_179 = arith.constant 0 : index
    %c2_180 = arith.constant 2 : index
    %c0_181 = arith.constant 0 : index
    %c0_182 = arith.constant 0 : index
    %151 = vector.load %arg13[%c0_179, %c2_180, %c0_181, %c0_182] : memref<1x10x10x8xbf16, #tpu.memory_space<vmem>>, vector<1x8x8x8xbf16>
    %152 = vector.shape_cast %151 : vector<1x8x8x8xbf16> to vector<64x8xbf16>
    %c2_183 = arith.constant 2 : index
    %c0_184 = arith.constant 0 : index
    %c0_185 = arith.constant 0 : index
    %c0_186 = arith.constant 0 : index
    %153 = vector.load %arg6[%c2_183, %c0_184, %c0_185, %c0_186] : memref<3x3x8x8xbf16, #tpu.memory_space<vmem>>, vector<1x1x8x8xbf16>
    %154 = vector.shape_cast %153 : vector<1x1x8x8xbf16> to vector<8x8xbf16>
    %cst_187 = arith.constant dense<0.000000e+00> : vector<64x8xf32>
    %155 = tpu.matmul %152, %154, %cst_187 {dimension_numbers = #tpu.dot_dimension_numbers<[1], [0], [0], [1], [0, 0, 1, 1], [], []>} : vector<64x8xbf16>, vector<8x8xbf16>, vector<64x8xf32> -> vector<64x8xf32>
    %156 = arith.addf %150, %155 : vector<64x8xf32>
    %c0_188 = arith.constant 0 : index
    %c2_189 = arith.constant 2 : index
    %c1_190 = arith.constant 1 : index
    %c0_191 = arith.constant 0 : index
    %157 = vector.load %arg13[%c0_188, %c2_189, %c1_190, %c0_191] : memref<1x10x10x8xbf16, #tpu.memory_space<vmem>>, vector<1x8x8x8xbf16>
    %158 = vector.shape_cast %157 : vector<1x8x8x8xbf16> to vector<64x8xbf16>
    %c2_192 = arith.constant 2 : index
    %c1_193 = arith.constant 1 : index
    %c0_194 = arith.constant 0 : index
    %c0_195 = arith.constant 0 : index
    %159 = vector.load %arg6[%c2_192, %c1_193, %c0_194, %c0_195] : memref<3x3x8x8xbf16, #tpu.memory_space<vmem>>, vector<1x1x8x8xbf16>
    %160 = vector.shape_cast %159 : vector<1x1x8x8xbf16> to vector<8x8xbf16>
    %cst_196 = arith.constant dense<0.000000e+00> : vector<64x8xf32>
    %161 = tpu.matmul %158, %160, %cst_196 {dimension_numbers = #tpu.dot_dimension_numbers<[1], [0], [0], [1], [0, 0, 1, 1], [], []>} : vector<64x8xbf16>, vector<8x8xbf16>, vector<64x8xf32> -> vector<64x8xf32>
    %162 = arith.addf %156, %161 : vector<64x8xf32>
    %c0_197 = arith.constant 0 : index
    %c2_198 = arith.constant 2 : index
    %c2_199 = arith.constant 2 : index
    %c0_200 = arith.constant 0 : index
    %163 = vector.load %arg13[%c0_197, %c2_198, %c2_199, %c0_200] : memref<1x10x10x8xbf16, #tpu.memory_space<vmem>>, vector<1x8x8x8xbf16>
    %164 = vector.shape_cast %163 : vector<1x8x8x8xbf16> to vector<64x8xbf16>
    %c2_201 = arith.constant 2 : index
    %c2_202 = arith.constant 2 : index
    %c0_203 = arith.constant 0 : index
    %c0_204 = arith.constant 0 : index
    %165 = vector.load %arg6[%c2_201, %c2_202, %c0_203, %c0_204] : memref<3x3x8x8xbf16, #tpu.memory_space<vmem>>, vector<1x1x8x8xbf16>
    %166 = vector.shape_cast %165 : vector<1x1x8x8xbf16> to vector<8x8xbf16>
    %cst_205 = arith.constant dense<0.000000e+00> : vector<64x8xf32>
    %167 = tpu.matmul %164, %166, %cst_205 {dimension_numbers = #tpu.dot_dimension_numbers<[1], [0], [0], [1], [0, 0, 1, 1], [], []>} : vector<64x8xbf16>, vector<8x8xbf16>, vector<64x8xf32> -> vector<64x8xf32>
    %168 = arith.addf %162, %167 : vector<64x8xf32>
    %cst_206 = arith.constant 0.000000e+00 : f32
    %169 = vector.broadcast %cst_206 : f32 to vector<64x8xf32>
    %170 = arith.maximumf %168, %169 : vector<64x8xf32>
    %171 = arith.truncf %170 : vector<64x8xf32> to vector<64x8xbf16>
    %172 = vector.shape_cast %171 : vector<64x8xbf16> to vector<1x8x8x8xbf16>
    %c0_207 = arith.constant 0 : index
    %c1_208 = arith.constant 1 : index
    %c1_209 = arith.constant 1 : index
    %c0_210 = arith.constant 0 : index
    %173 = vector.load %arg13[%c0_207, %c1_208, %c1_209, %c0_210] : memref<1x10x10x8xbf16, #tpu.memory_space<vmem>>, vector<1x8x8x8xbf16>
    tpu.vector_store %arg13[%c0_207, %c1_208, %c1_209, %c0_210], %172 {strides = array<i32>} : memref<1x10x10x8xbf16, #tpu.memory_space<vmem>>, vector<1x8x8x8xbf16>,
    %c0_211 = arith.constant 0 : index
    %c0_212 = arith.constant 0 : index
    %174 = vector.load %arg9[%c0_211, %c0_212] : memref<1x8xf32, #tpu.memory_space<vmem>>, vector<1x8xf32>
    %175 = vector.shape_cast %174 : vector<1x8xf32> to vector<1x8xf32>
    %176 = vector.broadcast %175 : vector<1x8xf32> to vector<64x8xf32>
    %c0_213 = arith.constant 0 : index
    %c0_214 = arith.constant 0 : index
    %c0_215 = arith.constant 0 : index
    %c0_216 = arith.constant 0 : index
    %177 = vector.load %arg13[%c0_213, %c0_214, %c0_215, %c0_216] : memref<1x10x10x8xbf16, #tpu.memory_space<vmem>>, vector<1x8x8x8xbf16>
    %178 = vector.shape_cast %177 : vector<1x8x8x8xbf16> to vector<64x8xbf16>
    %c0_217 = arith.constant 0 : index
    %c0_218 = arith.constant 0 : index
    %c0_219 = arith.constant 0 : index
    %c0_220 = arith.constant 0 : index
    %179 = vector.load %arg8[%c0_217, %c0_218, %c0_219, %c0_220] : memref<3x3x8x8xbf16, #tpu.memory_space<vmem>>, vector<1x1x8x8xbf16>
    %180 = vector.shape_cast %179 : vector<1x1x8x8xbf16> to vector<8x8xbf16>
    %cst_221 = arith.constant dense<0.000000e+00> : vector<64x8xf32>
    %181 = tpu.matmul %178, %180, %cst_221 {dimension_numbers = #tpu.dot_dimension_numbers<[1], [0], [0], [1], [0, 0, 1, 1], [], []>} : vector<64x8xbf16>, vector<8x8xbf16>, vector<64x8xf32> -> vector<64x8xf32>
    %182 = arith.addf %176, %181 : vector<64x8xf32>
    %c0_222 = arith.constant 0 : index
    %c0_223 = arith.constant 0 : index
    %c1_224 = arith.constant 1 : index
    %c0_225 = arith.constant 0 : index
    %183 = vector.load %arg13[%c0_222, %c0_223, %c1_224, %c0_225] : memref<1x10x10x8xbf16, #tpu.memory_space<vmem>>, vector<1x8x8x8xbf16>
    %184 = vector.shape_cast %183 : vector<1x8x8x8xbf16> to vector<64x8xbf16>
    %c0_226 = arith.constant 0 : index
    %c1_227 = arith.constant 1 : index
    %c0_228 = arith.constant 0 : index
    %c0_229 = arith.constant 0 : index
    %185 = vector.load %arg8[%c0_226, %c1_227, %c0_228, %c0_229] : memref<3x3x8x8xbf16, #tpu.memory_space<vmem>>, vector<1x1x8x8xbf16>
    %186 = vector.shape_cast %185 : vector<1x1x8x8xbf16> to vector<8x8xbf16>
    %cst_230 = arith.constant dense<0.000000e+00> : vector<64x8xf32>
    %187 = tpu.matmul %184, %186, %cst_230 {dimension_numbers = #tpu.dot_dimension_numbers<[1], [0], [0], [1], [0, 0, 1, 1], [], []>} : vector<64x8xbf16>, vector<8x8xbf16>, vector<64x8xf32> -> vector<64x8xf32>
    %188 = arith.addf %182, %187 : vector<64x8xf32>
    %c0_231 = arith.constant 0 : index
    %c0_232 = arith.constant 0 : index
    %c2_233 = arith.constant 2 : index
    %c0_234 = arith.constant 0 : index
    %189 = vector.load %arg13[%c0_231, %c0_232, %c2_233, %c0_234] : memref<1x10x10x8xbf16, #tpu.memory_space<vmem>>, vector<1x8x8x8xbf16>
    %190 = vector.shape_cast %189 : vector<1x8x8x8xbf16> to vector<64x8xbf16>
    %c0_235 = arith.constant 0 : index
    %c2_236 = arith.constant 2 : index
    %c0_237 = arith.constant 0 : index
    %c0_238 = arith.constant 0 : index
    %191 = vector.load %arg8[%c0_235, %c2_236, %c0_237, %c0_238] : memref<3x3x8x8xbf16, #tpu.memory_space<vmem>>, vector<1x1x8x8xbf16>
    %192 = vector.shape_cast %191 : vector<1x1x8x8xbf16> to vector<8x8xbf16>
    %cst_239 = arith.constant dense<0.000000e+00> : vector<64x8xf32>
    %193 = tpu.matmul %190, %192, %cst_239 {dimension_numbers = #tpu.dot_dimension_numbers<[1], [0], [0], [1], [0, 0, 1, 1], [], []>} : vector<64x8xbf16>, vector<8x8xbf16>, vector<64x8xf32> -> vector<64x8xf32>
    %194 = arith.addf %188, %193 : vector<64x8xf32>
    %c0_240 = arith.constant 0 : index
    %c1_241 = arith.constant 1 : index
    %c0_242 = arith.constant 0 : index
    %c0_243 = arith.constant 0 : index
    %195 = vector.load %arg13[%c0_240, %c1_241, %c0_242, %c0_243] : memref<1x10x10x8xbf16, #tpu.memory_space<vmem>>, vector<1x8x8x8xbf16>
    %196 = vector.shape_cast %195 : vector<1x8x8x8xbf16> to vector<64x8xbf16>
    %c1_244 = arith.constant 1 : index
    %c0_245 = arith.constant 0 : index
    %c0_246 = arith.constant 0 : index
    %c0_247 = arith.constant 0 : index
    %197 = vector.load %arg8[%c1_244, %c0_245, %c0_246, %c0_247] : memref<3x3x8x8xbf16, #tpu.memory_space<vmem>>, vector<1x1x8x8xbf16>
    %198 = vector.shape_cast %197 : vector<1x1x8x8xbf16> to vector<8x8xbf16>
    %cst_248 = arith.constant dense<0.000000e+00> : vector<64x8xf32>
    %199 = tpu.matmul %196, %198, %cst_248 {dimension_numbers = #tpu.dot_dimension_numbers<[1], [0], [0], [1], [0, 0, 1, 1], [], []>} : vector<64x8xbf16>, vector<8x8xbf16>, vector<64x8xf32> -> vector<64x8xf32>
    %200 = arith.addf %194, %199 : vector<64x8xf32>
    %c0_249 = arith.constant 0 : index
    %c1_250 = arith.constant 1 : index
    %c1_251 = arith.constant 1 : index
    %c0_252 = arith.constant 0 : index
    %201 = vector.load %arg13[%c0_249, %c1_250, %c1_251, %c0_252] : memref<1x10x10x8xbf16, #tpu.memory_space<vmem>>, vector<1x8x8x8xbf16>
    %202 = vector.shape_cast %201 : vector<1x8x8x8xbf16> to vector<64x8xbf16>
    %c1_253 = arith.constant 1 : index
    %c1_254 = arith.constant 1 : index
    %c0_255 = arith.constant 0 : index
    %c0_256 = arith.constant 0 : index
    %203 = vector.load %arg8[%c1_253, %c1_254, %c0_255, %c0_256] : memref<3x3x8x8xbf16, #tpu.memory_space<vmem>>, vector<1x1x8x8xbf16>
    %204 = vector.shape_cast %203 : vector<1x1x8x8xbf16> to vector<8x8xbf16>
    %cst_257 = arith.constant dense<0.000000e+00> : vector<64x8xf32>
    %205 = tpu.matmul %202, %204, %cst_257 {dimension_numbers = #tpu.dot_dimension_numbers<[1], [0], [0], [1], [0, 0, 1, 1], [], []>} : vector<64x8xbf16>, vector<8x8xbf16>, vector<64x8xf32> -> vector<64x8xf32>
    %206 = arith.addf %200, %205 : vector<64x8xf32>
    %c0_258 = arith.constant 0 : index
    %c1_259 = arith.constant 1 : index
    %c2_260 = arith.constant 2 : index
    %c0_261 = arith.constant 0 : index
    %207 = vector.load %arg13[%c0_258, %c1_259, %c2_260, %c0_261] : memref<1x10x10x8xbf16, #tpu.memory_space<vmem>>, vector<1x8x8x8xbf16>
    %208 = vector.shape_cast %207 : vector<1x8x8x8xbf16> to vector<64x8xbf16>
    %c1_262 = arith.constant 1 : index
    %c2_263 = arith.constant 2 : index
    %c0_264 = arith.constant 0 : index
    %c0_265 = arith.constant 0 : index
    %209 = vector.load %arg8[%c1_262, %c2_263, %c0_264, %c0_265] : memref<3x3x8x8xbf16, #tpu.memory_space<vmem>>, vector<1x1x8x8xbf16>
    %210 = vector.shape_cast %209 : vector<1x1x8x8xbf16> to vector<8x8xbf16>
    %cst_266 = arith.constant dense<0.000000e+00> : vector<64x8xf32>
    %211 = tpu.matmul %208, %210, %cst_266 {dimension_numbers = #tpu.dot_dimension_numbers<[1], [0], [0], [1], [0, 0, 1, 1], [], []>} : vector<64x8xbf16>, vector<8x8xbf16>, vector<64x8xf32> -> vector<64x8xf32>
    %212 = arith.addf %206, %211 : vector<64x8xf32>
    %c0_267 = arith.constant 0 : index
    %c2_268 = arith.constant 2 : index
    %c0_269 = arith.constant 0 : index
    %c0_270 = arith.constant 0 : index
    %213 = vector.load %arg13[%c0_267, %c2_268, %c0_269, %c0_270] : memref<1x10x10x8xbf16, #tpu.memory_space<vmem>>, vector<1x8x8x8xbf16>
    %214 = vector.shape_cast %213 : vector<1x8x8x8xbf16> to vector<64x8xbf16>
    %c2_271 = arith.constant 2 : index
    %c0_272 = arith.constant 0 : index
    %c0_273 = arith.constant 0 : index
    %c0_274 = arith.constant 0 : index
    %215 = vector.load %arg8[%c2_271, %c0_272, %c0_273, %c0_274] : memref<3x3x8x8xbf16, #tpu.memory_space<vmem>>, vector<1x1x8x8xbf16>
    %216 = vector.shape_cast %215 : vector<1x1x8x8xbf16> to vector<8x8xbf16>
    %cst_275 = arith.constant dense<0.000000e+00> : vector<64x8xf32>
    %217 = tpu.matmul %214, %216, %cst_275 {dimension_numbers = #tpu.dot_dimension_numbers<[1], [0], [0], [1], [0, 0, 1, 1], [], []>} : vector<64x8xbf16>, vector<8x8xbf16>, vector<64x8xf32> -> vector<64x8xf32>
    %218 = arith.addf %212, %217 : vector<64x8xf32>
    %c0_276 = arith.constant 0 : index
    %c2_277 = arith.constant 2 : index
    %c1_278 = arith.constant 1 : index
    %c0_279 = arith.constant 0 : index
    %219 = vector.load %arg13[%c0_276, %c2_277, %c1_278, %c0_279] : memref<1x10x10x8xbf16, #tpu.memory_space<vmem>>, vector<1x8x8x8xbf16>
    %220 = vector.shape_cast %219 : vector<1x8x8x8xbf16> to vector<64x8xbf16>
    %c2_280 = arith.constant 2 : index
    %c1_281 = arith.constant 1 : index
    %c0_282 = arith.constant 0 : index
    %c0_283 = arith.constant 0 : index
    %221 = vector.load %arg8[%c2_280, %c1_281, %c0_282, %c0_283] : memref<3x3x8x8xbf16, #tpu.memory_space<vmem>>, vector<1x1x8x8xbf16>
    %222 = vector.shape_cast %221 : vector<1x1x8x8xbf16> to vector<8x8xbf16>
    %cst_284 = arith.constant dense<0.000000e+00> : vector<64x8xf32>
    %223 = tpu.matmul %220, %222, %cst_284 {dimension_numbers = #tpu.dot_dimension_numbers<[1], [0], [0], [1], [0, 0, 1, 1], [], []>} : vector<64x8xbf16>, vector<8x8xbf16>, vector<64x8xf32> -> vector<64x8xf32>
    %224 = arith.addf %218, %223 : vector<64x8xf32>
    %c0_285 = arith.constant 0 : index
    %c2_286 = arith.constant 2 : index
    %c2_287 = arith.constant 2 : index
    %c0_288 = arith.constant 0 : index
    %225 = vector.load %arg13[%c0_285, %c2_286, %c2_287, %c0_288] : memref<1x10x10x8xbf16, #tpu.memory_space<vmem>>, vector<1x8x8x8xbf16>
    %226 = vector.shape_cast %225 : vector<1x8x8x8xbf16> to vector<64x8xbf16>
    %c2_289 = arith.constant 2 : index
    %c2_290 = arith.constant 2 : index
    %c0_291 = arith.constant 0 : index
    %c0_292 = arith.constant 0 : index
    %227 = vector.load %arg8[%c2_289, %c2_290, %c0_291, %c0_292] : memref<3x3x8x8xbf16, #tpu.memory_space<vmem>>, vector<1x1x8x8xbf16>
    %228 = vector.shape_cast %227 : vector<1x1x8x8xbf16> to vector<8x8xbf16>
    %cst_293 = arith.constant dense<0.000000e+00> : vector<64x8xf32>
    %229 = tpu.matmul %226, %228, %cst_293 {dimension_numbers = #tpu.dot_dimension_numbers<[1], [0], [0], [1], [0, 0, 1, 1], [], []>} : vector<64x8xbf16>, vector<8x8xbf16>, vector<64x8xf32> -> vector<64x8xf32>
    %230 = arith.addf %224, %229 : vector<64x8xf32>
    %cst_294 = arith.constant 0.000000e+00 : f32
    %231 = vector.broadcast %cst_294 : f32 to vector<64x8xf32>
    %232 = arith.maximumf %230, %231 : vector<64x8xf32>
    %233 = arith.truncf %232 : vector<64x8xf32> to vector<64x8xbf16>
    %234 = vector.shape_cast %233 : vector<64x8xbf16> to vector<1x8x8x8xbf16>
    %c0_295 = arith.constant 0 : index
    %c1_296 = arith.constant 1 : index
    %c1_297 = arith.constant 1 : index
    %c0_298 = arith.constant 0 : index
    %235 = vector.load %arg13[%c0_295, %c1_296, %c1_297, %c0_298] : memref<1x10x10x8xbf16, #tpu.memory_space<vmem>>, vector<1x8x8x8xbf16>
    tpu.vector_store %arg13[%c0_295, %c1_296, %c1_297, %c0_298], %234 {strides = array<i32>} : memref<1x10x10x8xbf16, #tpu.memory_space<vmem>>, vector<1x8x8x8xbf16>,
    %c0_299 = arith.constant 0 : index
    %c0_300 = arith.constant 0 : index
    %236 = vector.load %arg11[%c0_299, %c0_300] : memref<1x8xf32, #tpu.memory_space<vmem>>, vector<1x8xf32>
    %237 = vector.shape_cast %236 : vector<1x8xf32> to vector<1x8xf32>
    %238 = vector.broadcast %237 : vector<1x8xf32> to vector<32x8xf32>
    %c0_301 = arith.constant 0 : index
    %c0_302 = arith.constant 0 : index
    %c0_303 = arith.constant 0 : index
    %c0_304 = arith.constant 0 : index
    %239 = vector.load %arg13[%c0_301, %c0_302, %c0_303, %c0_304] : memref<1x10x10x8xbf16, #tpu.memory_space<vmem>>, vector<1x8x8x8xbf16>
    %240 = vector.shape_cast %239 : vector<1x8x8x8xbf16> to vector<1x4x2x8x8xbf16>
    %241 = vector.extract_strided_slice %240 {offsets = [0, 0, 0, 0, 0], sizes = [1, 4, 1, 8, 8], strides = [1, 1, 1, 1, 1]} : vector<1x4x2x8x8xbf16> to vector<1x4x1x8x8xbf16>
    %242 = vector.shape_cast %241 : vector<1x4x1x8x8xbf16> to vector<1x4x8x8xbf16>
    %243 = vector.shape_cast %242 : vector<1x4x8x8xbf16> to vector<32x8xbf16>
    %c0_305 = arith.constant 0 : index
    %c0_306 = arith.constant 0 : index
    %c0_307 = arith.constant 0 : index
    %c0_308 = arith.constant 0 : index
    %244 = vector.load %arg10[%c0_305, %c0_306, %c0_307, %c0_308] : memref<3x3x8x8xbf16, #tpu.memory_space<vmem>>, vector<1x1x8x8xbf16>
    %245 = vector.shape_cast %244 : vector<1x1x8x8xbf16> to vector<8x8xbf16>
    %cst_309 = arith.constant dense<0.000000e+00> : vector<32x8xf32>
    %246 = tpu.matmul %243, %245, %cst_309 {dimension_numbers = #tpu.dot_dimension_numbers<[1], [0], [0], [1], [0, 0, 1, 1], [], []>} : vector<32x8xbf16>, vector<8x8xbf16>, vector<32x8xf32> -> vector<32x8xf32>
    %247 = arith.addf %238, %246 : vector<32x8xf32>
    %c0_310 = arith.constant 0 : index
    %c0_311 = arith.constant 0 : index
    %c1_312 = arith.constant 1 : index
    %c0_313 = arith.constant 0 : index
    %248 = vector.load %arg13[%c0_310, %c0_311, %c1_312, %c0_313] : memref<1x10x10x8xbf16, #tpu.memory_space<vmem>>, vector<1x8x8x8xbf16>
    %249 = vector.shape_cast %248 : vector<1x8x8x8xbf16> to vector<1x4x2x8x8xbf16>
    %250 = vector.extract_strided_slice %249 {offsets = [0, 0, 0, 0, 0], sizes = [1, 4, 1, 8, 8], strides = [1, 1, 1, 1, 1]} : vector<1x4x2x8x8xbf16> to vector<1x4x1x8x8xbf16>
    %251 = vector.shape_cast %250 : vector<1x4x1x8x8xbf16> to vector<1x4x8x8xbf16>
    %252 = vector.shape_cast %251 : vector<1x4x8x8xbf16> to vector<32x8xbf16>
    %c0_314 = arith.constant 0 : index
    %c1_315 = arith.constant 1 : index
    %c0_316 = arith.constant 0 : index
    %c0_317 = arith.constant 0 : index
    %253 = vector.load %arg10[%c0_314, %c1_315, %c0_316, %c0_317] : memref<3x3x8x8xbf16, #tpu.memory_space<vmem>>, vector<1x1x8x8xbf16>
    %254 = vector.shape_cast %253 : vector<1x1x8x8xbf16> to vector<8x8xbf16>
    %cst_318 = arith.constant dense<0.000000e+00> : vector<32x8xf32>
    %255 = tpu.matmul %252, %254, %cst_318 {dimension_numbers = #tpu.dot_dimension_numbers<[1], [0], [0], [1], [0, 0, 1, 1], [], []>} : vector<32x8xbf16>, vector<8x8xbf16>, vector<32x8xf32> -> vector<32x8xf32>
    %256 = arith.addf %247, %255 : vector<32x8xf32>
    %c0_319 = arith.constant 0 : index
    %c0_320 = arith.constant 0 : index
    %c2_321 = arith.constant 2 : index
    %c0_322 = arith.constant 0 : index
    %257 = vector.load %arg13[%c0_319, %c0_320, %c2_321, %c0_322] : memref<1x10x10x8xbf16, #tpu.memory_space<vmem>>, vector<1x8x8x8xbf16>
    %258 = vector.shape_cast %257 : vector<1x8x8x8xbf16> to vector<1x4x2x8x8xbf16>
    %259 = vector.extract_strided_slice %258 {offsets = [0, 0, 0, 0, 0], sizes = [1, 4, 1, 8, 8], strides = [1, 1, 1, 1, 1]} : vector<1x4x2x8x8xbf16> to vector<1x4x1x8x8xbf16>
    %260 = vector.shape_cast %259 : vector<1x4x1x8x8xbf16> to vector<1x4x8x8xbf16>
    %261 = vector.shape_cast %260 : vector<1x4x8x8xbf16> to vector<32x8xbf16>
    %c0_323 = arith.constant 0 : index
    %c2_324 = arith.constant 2 : index
    %c0_325 = arith.constant 0 : index
    %c0_326 = arith.constant 0 : index
    %262 = vector.load %arg10[%c0_323, %c2_324, %c0_325, %c0_326] : memref<3x3x8x8xbf16, #tpu.memory_space<vmem>>, vector<1x1x8x8xbf16>
    %263 = vector.shape_cast %262 : vector<1x1x8x8xbf16> to vector<8x8xbf16>
    %cst_327 = arith.constant dense<0.000000e+00> : vector<32x8xf32>
    %264 = tpu.matmul %261, %263, %cst_327 {dimension_numbers = #tpu.dot_dimension_numbers<[1], [0], [0], [1], [0, 0, 1, 1], [], []>} : vector<32x8xbf16>, vector<8x8xbf16>, vector<32x8xf32> -> vector<32x8xf32>
    %265 = arith.addf %256, %264 : vector<32x8xf32>
    %c0_328 = arith.constant 0 : index
    %c1_329 = arith.constant 1 : index
    %c0_330 = arith.constant 0 : index
    %c0_331 = arith.constant 0 : index
    %266 = vector.load %arg13[%c0_328, %c1_329, %c0_330, %c0_331] : memref<1x10x10x8xbf16, #tpu.memory_space<vmem>>, vector<1x8x8x8xbf16>
    %267 = vector.shape_cast %266 : vector<1x8x8x8xbf16> to vector<1x4x2x8x8xbf16>
    %268 = vector.extract_strided_slice %267 {offsets = [0, 0, 0, 0, 0], sizes = [1, 4, 1, 8, 8], strides = [1, 1, 1, 1, 1]} : vector<1x4x2x8x8xbf16> to vector<1x4x1x8x8xbf16>
    %269 = vector.shape_cast %268 : vector<1x4x1x8x8xbf16> to vector<1x4x8x8xbf16>
    %270 = vector.shape_cast %269 : vector<1x4x8x8xbf16> to vector<32x8xbf16>
    %c1_332 = arith.constant 1 : index
    %c0_333 = arith.constant 0 : index
    %c0_334 = arith.constant 0 : index
    %c0_335 = arith.constant 0 : index
    %271 = vector.load %arg10[%c1_332, %c0_333, %c0_334, %c0_335] : memref<3x3x8x8xbf16, #tpu.memory_space<vmem>>, vector<1x1x8x8xbf16>
    %272 = vector.shape_cast %271 : vector<1x1x8x8xbf16> to vector<8x8xbf16>
    %cst_336 = arith.constant dense<0.000000e+00> : vector<32x8xf32>
    %273 = tpu.matmul %270, %272, %cst_336 {dimension_numbers = #tpu.dot_dimension_numbers<[1], [0], [0], [1], [0, 0, 1, 1], [], []>} : vector<32x8xbf16>, vector<8x8xbf16>, vector<32x8xf32> -> vector<32x8xf32>
    %274 = arith.addf %265, %273 : vector<32x8xf32>
    %c0_337 = arith.constant 0 : index
    %c1_338 = arith.constant 1 : index
    %c1_339 = arith.constant 1 : index
    %c0_340 = arith.constant 0 : index
    %275 = vector.load %arg13[%c0_337, %c1_338, %c1_339, %c0_340] : memref<1x10x10x8xbf16, #tpu.memory_space<vmem>>, vector<1x8x8x8xbf16>
    %276 = vector.shape_cast %275 : vector<1x8x8x8xbf16> to vector<1x4x2x8x8xbf16>
    %277 = vector.extract_strided_slice %276 {offsets = [0, 0, 0, 0, 0], sizes = [1, 4, 1, 8, 8], strides = [1, 1, 1, 1, 1]} : vector<1x4x2x8x8xbf16> to vector<1x4x1x8x8xbf16>
    %278 = vector.shape_cast %277 : vector<1x4x1x8x8xbf16> to vector<1x4x8x8xbf16>
    %279 = vector.shape_cast %278 : vector<1x4x8x8xbf16> to vector<32x8xbf16>
    %c1_341 = arith.constant 1 : index
    %c1_342 = arith.constant 1 : index
    %c0_343 = arith.constant 0 : index
    %c0_344 = arith.constant 0 : index
    %280 = vector.load %arg10[%c1_341, %c1_342, %c0_343, %c0_344] : memref<3x3x8x8xbf16, #tpu.memory_space<vmem>>, vector<1x1x8x8xbf16>
    %281 = vector.shape_cast %280 : vector<1x1x8x8xbf16> to vector<8x8xbf16>
    %cst_345 = arith.constant dense<0.000000e+00> : vector<32x8xf32>
    %282 = tpu.matmul %279, %281, %cst_345 {dimension_numbers = #tpu.dot_dimension_numbers<[1], [0], [0], [1], [0, 0, 1, 1], [], []>} : vector<32x8xbf16>, vector<8x8xbf16>, vector<32x8xf32> -> vector<32x8xf32>
    %283 = arith.addf %274, %282 : vector<32x8xf32>
    %c0_346 = arith.constant 0 : index
    %c1_347 = arith.constant 1 : index
    %c2_348 = arith.constant 2 : index
    %c0_349 = arith.constant 0 : index
    %284 = vector.load %arg13[%c0_346, %c1_347, %c2_348, %c0_349] : memref<1x10x10x8xbf16, #tpu.memory_space<vmem>>, vector<1x8x8x8xbf16>
    %285 = vector.shape_cast %284 : vector<1x8x8x8xbf16> to vector<1x4x2x8x8xbf16>
    %286 = vector.extract_strided_slice %285 {offsets = [0, 0, 0, 0, 0], sizes = [1, 4, 1, 8, 8], strides = [1, 1, 1, 1, 1]} : vector<1x4x2x8x8xbf16> to vector<1x4x1x8x8xbf16>
    %287 = vector.shape_cast %286 : vector<1x4x1x8x8xbf16> to vector<1x4x8x8xbf16>
    %288 = vector.shape_cast %287 : vector<1x4x8x8xbf16> to vector<32x8xbf16>
    %c1_350 = arith.constant 1 : index
    %c2_351 = arith.constant 2 : index
    %c0_352 = arith.constant 0 : index
    %c0_353 = arith.constant 0 : index
    %289 = vector.load %arg10[%c1_350, %c2_351, %c0_352, %c0_353] : memref<3x3x8x8xbf16, #tpu.memory_space<vmem>>, vector<1x1x8x8xbf16>
    %290 = vector.shape_cast %289 : vector<1x1x8x8xbf16> to vector<8x8xbf16>
    %cst_354 = arith.constant dense<0.000000e+00> : vector<32x8xf32>
    %291 = tpu.matmul %288, %290, %cst_354 {dimension_numbers = #tpu.dot_dimension_numbers<[1], [0], [0], [1], [0, 0, 1, 1], [], []>} : vector<32x8xbf16>, vector<8x8xbf16>, vector<32x8xf32> -> vector<32x8xf32>
    %292 = arith.addf %283, %291 : vector<32x8xf32>
    %c0_355 = arith.constant 0 : index
    %c2_356 = arith.constant 2 : index
    %c0_357 = arith.constant 0 : index
    %c0_358 = arith.constant 0 : index
    %293 = vector.load %arg13[%c0_355, %c2_356, %c0_357, %c0_358] : memref<1x10x10x8xbf16, #tpu.memory_space<vmem>>, vector<1x8x8x8xbf16>
    %294 = vector.shape_cast %293 : vector<1x8x8x8xbf16> to vector<1x4x2x8x8xbf16>
    %295 = vector.extract_strided_slice %294 {offsets = [0, 0, 0, 0, 0], sizes = [1, 4, 1, 8, 8], strides = [1, 1, 1, 1, 1]} : vector<1x4x2x8x8xbf16> to vector<1x4x1x8x8xbf16>
    %296 = vector.shape_cast %295 : vector<1x4x1x8x8xbf16> to vector<1x4x8x8xbf16>
    %297 = vector.shape_cast %296 : vector<1x4x8x8xbf16> to vector<32x8xbf16>
    %c2_359 = arith.constant 2 : index
    %c0_360 = arith.constant 0 : index
    %c0_361 = arith.constant 0 : index
    %c0_362 = arith.constant 0 : index
    %298 = vector.load %arg10[%c2_359, %c0_360, %c0_361, %c0_362] : memref<3x3x8x8xbf16, #tpu.memory_space<vmem>>, vector<1x1x8x8xbf16>
    %299 = vector.shape_cast %298 : vector<1x1x8x8xbf16> to vector<8x8xbf16>
    %cst_363 = arith.constant dense<0.000000e+00> : vector<32x8xf32>
    %300 = tpu.matmul %297, %299, %cst_363 {dimension_numbers = #tpu.dot_dimension_numbers<[1], [0], [0], [1], [0, 0, 1, 1], [], []>} : vector<32x8xbf16>, vector<8x8xbf16>, vector<32x8xf32> -> vector<32x8xf32>
    %301 = arith.addf %292, %300 : vector<32x8xf32>
    %c0_364 = arith.constant 0 : index
    %c2_365 = arith.constant 2 : index
    %c1_366 = arith.constant 1 : index
    %c0_367 = arith.constant 0 : index
    %302 = vector.load %arg13[%c0_364, %c2_365, %c1_366, %c0_367] : memref<1x10x10x8xbf16, #tpu.memory_space<vmem>>, vector<1x8x8x8xbf16>
    %303 = vector.shape_cast %302 : vector<1x8x8x8xbf16> to vector<1x4x2x8x8xbf16>
    %304 = vector.extract_strided_slice %303 {offsets = [0, 0, 0, 0, 0], sizes = [1, 4, 1, 8, 8], strides = [1, 1, 1, 1, 1]} : vector<1x4x2x8x8xbf16> to vector<1x4x1x8x8xbf16>
    %305 = vector.shape_cast %304 : vector<1x4x1x8x8xbf16> to vector<1x4x8x8xbf16>
    %306 = vector.shape_cast %305 : vector<1x4x8x8xbf16> to vector<32x8xbf16>
    %c2_368 = arith.constant 2 : index
    %c1_369 = arith.constant 1 : index
    %c0_370 = arith.constant 0 : index
    %c0_371 = arith.constant 0 : index
    %307 = vector.load %arg10[%c2_368, %c1_369, %c0_370, %c0_371] : memref<3x3x8x8xbf16, #tpu.memory_space<vmem>>, vector<1x1x8x8xbf16>
    %308 = vector.shape_cast %307 : vector<1x1x8x8xbf16> to vector<8x8xbf16>
    %cst_372 = arith.constant dense<0.000000e+00> : vector<32x8xf32>
    %309 = tpu.matmul %306, %308, %cst_372 {dimension_numbers = #tpu.dot_dimension_numbers<[1], [0], [0], [1], [0, 0, 1, 1], [], []>} : vector<32x8xbf16>, vector<8x8xbf16>, vector<32x8xf32> -> vector<32x8xf32>
    %310 = arith.addf %301, %309 : vector<32x8xf32>
    %c0_373 = arith.constant 0 : index
    %c2_374 = arith.constant 2 : index
    %c2_375 = arith.constant 2 : index
    %c0_376 = arith.constant 0 : index
    %311 = vector.load %arg13[%c0_373, %c2_374, %c2_375, %c0_376] : memref<1x10x10x8xbf16, #tpu.memory_space<vmem>>, vector<1x8x8x8xbf16>
    %312 = vector.shape_cast %311 : vector<1x8x8x8xbf16> to vector<1x4x2x8x8xbf16>
    %313 = vector.extract_strided_slice %312 {offsets = [0, 0, 0, 0, 0], sizes = [1, 4, 1, 8, 8], strides = [1, 1, 1, 1, 1]} : vector<1x4x2x8x8xbf16> to vector<1x4x1x8x8xbf16>
    %314 = vector.shape_cast %313 : vector<1x4x1x8x8xbf16> to vector<1x4x8x8xbf16>
    %315 = vector.shape_cast %314 : vector<1x4x8x8xbf16> to vector<32x8xbf16>
    %c2_377 = arith.constant 2 : index
    %c2_378 = arith.constant 2 : index
    %c0_379 = arith.constant 0 : index
    %c0_380 = arith.constant 0 : index
    %316 = vector.load %arg10[%c2_377, %c2_378, %c0_379, %c0_380] : memref<3x3x8x8xbf16, #tpu.memory_space<vmem>>, vector<1x1x8x8xbf16>
    %317 = vector.shape_cast %316 : vector<1x1x8x8xbf16> to vector<8x8xbf16>
    %cst_381 = arith.constant dense<0.000000e+00> : vector<32x8xf32>
    %318 = tpu.matmul %315, %317, %cst_381 {dimension_numbers = #tpu.dot_dimension_numbers<[1], [0], [0], [1], [0, 0, 1, 1], [], []>} : vector<32x8xbf16>, vector<8x8xbf16>, vector<32x8xf32> -> vector<32x8xf32>
    %319 = arith.addf %310, %318 : vector<32x8xf32>
    %cst_382 = arith.constant 0.000000e+00 : f32
    %320 = vector.broadcast %cst_382 : f32 to vector<32x8xf32>
    %321 = arith.maximumf %319, %320 : vector<32x8xf32>
    %322 = arith.truncf %321 : vector<32x8xf32> to vector<32x8xbf16>
    %323 = vector.shape_cast %322 : vector<32x8xbf16> to vector<1x4x4x2x8xbf16>
    %324 = vector.extract_strided_slice %323 {offsets = [0, 0, 0, 0, 0], sizes = [1, 4, 4, 1, 8], strides = [1, 1, 1, 1, 1]} : vector<1x4x4x2x8xbf16> to vector<1x4x4x1x8xbf16>
    %325 = vector.shape_cast %324 : vector<1x4x4x1x8xbf16> to vector<1x4x4x8xbf16>
    %c0_383 = arith.constant 0 : index
    %c0_384 = arith.constant 0 : index
    %c0_385 = arith.constant 0 : index
    %c0_386 = arith.constant 0 : index
    %326 = vector.load %arg12[%c0_383, %c0_384, %c0_385, %c0_386] : memref<1x4x4x8xbf16, #tpu.memory_space<vmem>>, vector<1x4x4x8xbf16>
    tpu.vector_store %arg12[%c0_383, %c0_384, %c0_385, %c0_386], %325 {strides = array<i32>} : memref<1x4x4x8xbf16, #tpu.memory_space<vmem>>, vector<1x4x4x8xbf16>,
    return
  }
  func.func @transform_0(%arg0: i32) -> (i32, i32, i32, i32) {
    %c0_i32 = arith.constant 0 : i32
    %c0_i32_0 = arith.constant 0 : i32
    %c0_i32_1 = arith.constant 0 : i32
    %c0_i32_2 = arith.constant 0 : i32
    return %arg0, %c0_i32, %c0_i32_0, %c0_i32_1 : i32, i32, i32, i32
  }
  func.func @transform_1(%arg0: i32) -> (i32, i32, i32, i32) {
    %c0_i32 = arith.constant 0 : i32
    %c0_i32_0 = arith.constant 0 : i32
    %c0_i32_1 = arith.constant 0 : i32
    %c0_i32_2 = arith.constant 0 : i32
    %c0_i32_3 = arith.constant 0 : i32
    return %c0_i32, %c0_i32_0, %c0_i32_1, %c0_i32_2 : i32, i32, i32, i32
  }
  func.func @transform_2(%arg0: i32) -> (i32, i32) {
    %c0_i32 = arith.constant 0 : i32
    %c0_i32_0 = arith.constant 0 : i32
    %c0_i32_1 = arith.constant 0 : i32
    return %c0_i32, %c0_i32_0 : i32, i32
  }
  func.func @transform_3(%arg0: i32) -> (i32, i32, i32, i32) {
    %c0_i32 = arith.constant 0 : i32
    %c0_i32_0 = arith.constant 0 : i32
    %c0_i32_1 = arith.constant 0 : i32
    %c0_i32_2 = arith.constant 0 : i32
    %c0_i32_3 = arith.constant 0 : i32
    return %c0_i32, %c0_i32_0, %c0_i32_1, %c0_i32_2 : i32, i32, i32, i32
  }
  func.func @transform_4(%arg0: i32) -> (i32, i32) {
    %c0_i32 = arith.constant 0 : i32
    %c0_i32_0 = arith.constant 0 : i32
    %c0_i32_1 = arith.constant 0 : i32
    return %c0_i32, %c0_i32_0 : i32, i32
  }
  func.func @transform_5(%arg0: i32) -> (i32, i32, i32, i32) {
    %c0_i32 = arith.constant 0 : i32
    %c0_i32_0 = arith.constant 0 : i32
    %c0_i32_1 = arith.constant 0 : i32
    %c0_i32_2 = arith.constant 0 : i32
    %c0_i32_3 = arith.constant 0 : i32
    return %c0_i32, %c0_i32_0, %c0_i32_1, %c0_i32_2 : i32, i32, i32, i32
  }
  func.func @transform_6(%arg0: i32) -> (i32, i32) {
    %c0_i32 = arith.constant 0 : i32
    %c0_i32_0 = arith.constant 0 : i32
    %c0_i32_1 = arith.constant 0 : i32
    return %c0_i32, %c0_i32_0 : i32, i32
  }
  func.func @transform_7(%arg0: i32) -> (i32, i32, i32, i32) {
    %c0_i32 = arith.constant 0 : i32
    %c0_i32_0 = arith.constant 0 : i32
    %c0_i32_1 = arith.constant 0 : i32
    %c0_i32_2 = arith.constant 0 : i32
    %c0_i32_3 = arith.constant 0 : i32
    return %c0_i32, %c0_i32_0, %c0_i32_1, %c0_i32_2 : i32, i32, i32, i32
  }
  func.func @transform_8(%arg0: i32) -> (i32, i32) {
    %c0_i32 = arith.constant 0 : i32
    %c0_i32_0 = arith.constant 0 : i32
    %c0_i32_1 = arith.constant 0 : i32
    return %c0_i32, %c0_i32_0 : i32, i32
  }
  func.func @transform_9(%arg0: i32) -> (i32, i32, i32, i32) {
    %c0_i32 = arith.constant 0 : i32
    %c0_i32_0 = arith.constant 0 : i32
    %c0_i32_1 = arith.constant 0 : i32
    %c0_i32_2 = arith.constant 0 : i32
    %c0_i32_3 = arith.constant 0 : i32
    return %c0_i32, %c0_i32_0, %c0_i32_1, %c0_i32_2 : i32, i32, i32, i32
  }
  func.func @transform_10(%arg0: i32) -> (i32, i32) {
    %c0_i32 = arith.constant 0 : i32
    %c0_i32_0 = arith.constant 0 : i32
    %c0_i32_1 = arith.constant 0 : i32
    return %c0_i32, %c0_i32_0 : i32, i32
  }
  func.func @transform_11(%arg0: i32) -> (i32, i32, i32, i32) {
    %c0_i32 = arith.constant 0 : i32
    %c0_i32_0 = arith.constant 0 : i32
    %c0_i32_1 = arith.constant 0 : i32
    %c0_i32_2 = arith.constant 0 : i32
    return %arg0, %c0_i32, %c0_i32_0, %c0_i32_1 : i32, i32, i32, i32
  }
}

</mosaic_0001>

<llo_original>
// kernel: bbox_iou_head_forward.3
$region0: #{bbox_iou_head_forward.3}
  #allocation0 [shape = 'u32[]', space=smem, size = 0x4, offset = 0x4, fixed_abs, tag = 'smem constant byte address 0x4 - core index']
  #allocation1 [shape = 'u32[144,128]{1,0:T(1,128)}', space=vmem, size = 0x12000, scoped, tag = 'internal scratch']
  #allocation2 [shape = 'f32[8,32]{1,0:T(8,128)}', space=vmem, size = 0x1000, scoped, tag = 'scratch operand']
  #allocation3 [shape = 'f32[1,1]{1,0:T(1,128)S(6)}', space=smem, size = 0x200, scoped, tag = 'scoped memory for bbox_iou_head_forward.3']
  %s0 = inlined_call_operand.vmem [shape: bf16[8,128], index: 0, kind: input, shape index: {}]
  %s1 = inlined_call_operand.vmem [shape: bf16[128,32], index: 1, kind: input, shape index: {}]
  %s2 = inlined_call_operand.vmem [shape: f32[1,32], index: 2, kind: input, shape index: {}]
  %s3 = inlined_call_operand.vmem [shape: bf16[32,32], index: 3, kind: input, shape index: {}]
  %s4 = inlined_call_operand.vmem [shape: f32[1,32], index: 4, kind: input, shape index: {}]
  %s5 = inlined_call_operand.vmem [shape: f32[1,32], index: 5, kind: input, shape index: {}]
  %s6 = inlined_call_operand.<no memory space> [shape: f32[1,1], index: 6, kind: input, shape index: {}]
  %s7 = inlined_call_operand.vmem [shape: f32[8,1], index: 7, kind: output, shape index: {}]
  %s8 = sld [smem:[#allocation0]]
  $region46: #{bbox_iou_head_forward.3} parent=0
    _
  %s10 = ssub.s32 1, %s8
  %s11 = scalar_select 0, %s10, %s8
  %12 = sst [smem:[#allocation3]] %s6
  // Predicated region
  $region2: #{bbox_iou_head_forward.3} parent=0 // pred_check
    _
  $region3: #{bbox_iou_head_forward.3} parent=0 // pred_check_branch
    %14 = sbr.rel (0) target = $region5
  $region4: #{bbox_iou_head_forward.3} parent=0 // pred_region
    _
  $region5: #{bbox_iou_head_forward.3} parent=0 // pred_fallthru
    _
  // Predicated region
  $region6: #{bbox_iou_head_forward.3} parent=0 // pred_check
    _
  $region7: #{bbox_iou_head_forward.3} parent=0 // pred_check_branch
    %16 = sbr.rel (0) target = $region9
  $region8: #{bbox_iou_head_forward.3} parent=0 // pred_region
    _
  $region9: #{bbox_iou_head_forward.3} parent=0 // pred_fallthru
    _
  // Predicated region
  $region10: #{bbox_iou_head_forward.3} parent=0 // pred_check
    _
  $region11: #{bbox_iou_head_forward.3} parent=0 // pred_check_branch
    %18 = sbr.rel (0) target = $region13
  $region12: #{bbox_iou_head_forward.3} parent=0 // pred_region
    _
  $region13: #{bbox_iou_head_forward.3} parent=0 // pred_fallthru
    _
  // Predicated region
  $region14: #{bbox_iou_head_forward.3} parent=0 // pred_check
    _
  $region15: #{bbox_iou_head_forward.3} parent=0 // pred_check_branch
    %20 = sbr.rel (0) target = $region17
  $region16: #{bbox_iou_head_forward.3} parent=0 // pred_region
    _
  $region17: #{bbox_iou_head_forward.3} parent=0 // pred_fallthru
    _
  // Predicated region
  $region18: #{bbox_iou_head_forward.3} parent=0 // pred_check
    _
  $region19: #{bbox_iou_head_forward.3} parent=0 // pred_check_branch
    %22 = sbr.rel (0) target = $region21
  $region20: #{bbox_iou_head_forward.3} parent=0 // pred_region
    _
  $region21: #{bbox_iou_head_forward.3} parent=0 // pred_fallthru
    _
  // Predicated region
  $region22: #{bbox_iou_head_forward.3} parent=0 // pred_check
    _
  $region23: #{bbox_iou_head_forward.3} parent=0 // pred_check_branch
    %24 = sbr.rel (0) target = $region25
  $region24: #{bbox_iou_head_forward.3} parent=0 // pred_region
    _
  $region25: #{bbox_iou_head_forward.3} parent=0 // pred_fallthru
    _
  // Predicated region
  $region26: #{bbox_iou_head_forward.3} parent=0 // pred_check
    _
  $region27: #{bbox_iou_head_forward.3} parent=0 // pred_check_branch
    %26 = sbr.rel (0) target = $region29
  $region28: #{bbox_iou_head_forward.3} parent=0 // pred_region
    _
  $region29: #{bbox_iou_head_forward.3} parent=0 // pred_fallthru
    _
  %p28 = scmp.eq.s32.totalorder 0, 0
  // Predicated region
  $region30: #{bbox_iou_head_forward.3} parent=0 // pred_check
    %p29 = pneg %p28
  $region31: #{bbox_iou_head_forward.3} parent=0 // pred_check_branch
    %31 = sbr.rel (%p29) target = $region33
  $region32: #{bbox_iou_head_forward.3} parent=0 // pred_region
    %v32 = vld [vmem:[%s2] sm:$0x1]
    %v34 = vlaneseq
    %v35 = vshrl.u32 %v34, 7
    %v36 = vsub.s32 0, %v35
    %v37 = vrot.slane %v32, %v36
    %vm39 = vcmask 261120
    %40 = vst.msk [vmem:[#allocation2] sm:$0xff] %vm39, %v37
  $region33: #{bbox_iou_head_forward.3} parent=0 // pred_fallthru
    _
  %v41 = vld [vmem:[#allocation2] sm:$0xff]
  %v42 = vld [vmem:[%s0] sm:$0xf]
  %v43 = vld [vmem:[%s1] sm:$0xf]
  %v44 = vld [vmem:[%s1 + $0x4] sm:$0xf]
  %v45 = vld [vmem:[%s1 + $0x8] sm:$0xf]
  %v46 = vld [vmem:[%s1 + $0xc] sm:$0xf]
  %v47 = vld [vmem:[%s1 + $0x10] sm:$0xf]
  %v48 = vld [vmem:[%s1 + $0x14] sm:$0xf]
  %v49 = vld [vmem:[%s1 + $0x18] sm:$0xf]
  %v50 = vld [vmem:[%s1 + $0x1c] sm:$0xf]
  %v51 = vld [vmem:[%s1 + $0x20] sm:$0xf]
  %v52 = vld [vmem:[%s1 + $0x24] sm:$0xf]
  %v53 = vld [vmem:[%s1 + $0x28] sm:$0xf]
  %v54 = vld [vmem:[%s1 + $0x2c] sm:$0xf]
  %v55 = vld [vmem:[%s1 + $0x30] sm:$0xf]
  %v56 = vld [vmem:[%s1 + $0x34] sm:$0xf]
  %v57 = vld [vmem:[%s1 + $0x38] sm:$0xf]
  %v58 = vld [vmem:[%s1 + $0x3c] sm:$0xf]
  %v75 = vunpack.c.l.b16 %v43
  %v76 = vunpack.c.l.b16 %v44
  %v77 = vunpack.c.l.b16 %v45
  %v78 = vunpack.c.l.b16 %v46
  %v79 = vunpack.c.l.b16 %v47
  %v80 = vunpack.c.l.b16 %v48
  %v81 = vunpack.c.l.b16 %v49
  %v82 = vunpack.c.l.b16 %v50
  %v83 = vunpack.c.l.b16 %v51
  %v84 = vunpack.c.l.b16 %v52
  %v85 = vunpack.c.l.b16 %v53
  %v86 = vunpack.c.l.b16 %v54
  %v87 = vunpack.c.l.b16 %v55
  %v88 = vunpack.c.l.b16 %v56
  %v89 = vunpack.c.l.b16 %v57
  %v90 = vunpack.c.l.b16 %v58
  %v91 = vpack.c.b16 %v76, %v75
  %v92 = vpack.c.b16 %v78, %v77
  %v93 = vpack.c.b16 %v80, %v79
  %v94 = vpack.c.b16 %v82, %v81
  %v95 = vpack.c.b16 %v84, %v83
  %v96 = vpack.c.b16 %v86, %v85
  %v97 = vpack.c.b16 %v88, %v87
  %v98 = vpack.c.b16 %v90, %v89
  %107 = vmatprep.subr.bf16.mxu0 0
  %108 = vmatpush1.bf16.msra.mxu0 %v98
  %109 = vmatprep.subr.bf16.mxu0 0
  %110 = vmatpush1.bf16.msra.mxu0 %v97
  %111 = vmatprep.subr.bf16.mxu0 0
  %112 = vmatpush1.bf16.msra.mxu0 %v96
  %113 = vmatprep.subr.bf16.mxu0 0
  %114 = vmatpush1.bf16.msra.mxu0 %v95
  %115 = vmatprep.subr.bf16.mxu0 0
  %116 = vmatpush1.bf16.msra.mxu0 %v94
  %117 = vmatprep.subr.bf16.mxu0 0
  %118 = vmatpush1.bf16.msra.mxu0 %v93
  %119 = vmatprep.subr.bf16.mxu0 0
  %120 = vmatpush1.bf16.msra.mxu0 %v92
  %121 = vmatprep.subr.bf16.mxu0 0
  %122 = vmatpush1.bf16.msra.mxu0 %v91
  %123 = vmatprep.subr.bf16.mxu0 0
  %124 = vmatpush2.bf16.msra.mxu0 0
  %125 = vmatprep.subr.bf16.mxu0 0
  %126 = vmatpush2.bf16.msra.mxu0 0
  %127 = vmatprep.subr.bf16.mxu0 0
  %128 = vmatpush2.bf16.msra.mxu0 0
  %129 = vmatprep.subr.bf16.mxu0 0
  %130 = vmatpush2.bf16.msra.mxu0 0
  %131 = vmatprep.subr.bf16.mxu0 0
  %132 = vmatpush2.bf16.msra.mxu0 0
  %133 = vmatprep.subr.bf16.mxu0 0
  %134 = vmatpush2.bf16.msra.mxu0 0
  %135 = vmatprep.subr.bf16.mxu0 0
  %136 = vmatpush2.bf16.msra.mxu0 0
  %137 = vmatprep.subr.bf16.mxu0 0
  %138 = vmatpush2.bf16.msra.mxu0 0
  %139 = vmatprep.mubr.bf16.mxu0 0
  %140 = vmatmul.mubr.bf16.gmra.mxu0 %v42
  %v141 = vpop.f32.mrf.mxu0
  %v142 = vadd.f32 0.0, %v141
  %v143 = vpop.f32.mrf.mxu0
  %v144 = vpop.f32.mrf.mxu0
  %v145 = vpop.f32.mrf.mxu0
  %146 = vdwg.mxu0
  %v147 = vadd.f32 %v41, %v142
  %vm148 = vcmask 261120
  %149 = vst.msk [vmem:[#allocation2] sm:$0xff] %vm148, %v147
  // Predicated region
  $region34: #{bbox_iou_head_forward.3} parent=0 // pred_check
    %p150 = pneg %p28
  $region35: #{bbox_iou_head_forward.3} parent=0 // pred_check_branch
    %152 = sbr.rel (%p150) target = $region37
  $region36: #{bbox_iou_head_forward.3} parent=0 // pred_region
    %v153 = vld [vmem:[#allocation2] sm:$0xff]
    %v154 = vmax.f32 %v153, 0.0
    %v155 = vpack.c.bf16 %v154, %v154
    %v156 = vld [vmem:[%s3] sm:$0xf]
    %v157 = vld [vmem:[%s3 + $0x4] sm:$0xf]
    %v158 = vld [vmem:[%s3 + $0x8] sm:$0xf]
    %v159 = vld [vmem:[%s3 + $0xc] sm:$0xf]
    %v160 = vld [vmem:[%s4] sm:$0x1]
    %v162 = vlaneseq
    %v163 = vshrl.u32 %v162, 7
    %v164 = vsub.s32 0, %v163
    %v165 = vrot.slane %v160, %v164
    %v171 = vunpack.c.l.b16 %v156
    %v172 = vunpack.c.l.b16 %v157
    %v173 = vunpack.c.l.b16 %v158
    %v174 = vunpack.c.l.b16 %v159
    %v175 = vpack.c.b16 %v172, %v171
    %v176 = vpack.c.b16 %v174, %v173
    %v180 = vsel %vm148, %v155, 0
    %182 = vmatprep.subr.bf16.mxu0 0
    %183 = vmatpush1.bf16.msra.mxu0 0
    %184 = vmatprep.subr.bf16.mxu0 0
    %185 = vmatpush1.bf16.msra.mxu0 0
    %186 = vmatprep.subr.bf16.mxu0 0
    %187 = vmatpush1.bf16.msra.mxu0 0
    %188 = vmatprep.subr.bf16.mxu0 0
    %189 = vmatpush1.bf16.msra.mxu0 0
    %190 = vmatprep.subr.bf16.mxu0 0
    %191 = vmatpush1.bf16.msra.mxu0 0
    %192 = vmatprep.subr.bf16.mxu0 0
    %193 = vmatpush1.bf16.msra.mxu0 0
    %194 = vmatprep.subr.bf16.mxu0 0
    %195 = vmatpush1.bf16.msra.mxu0 %v176
    %196 = vmatprep.subr.bf16.mxu0 0
    %197 = vmatpush1.bf16.msra.mxu0 %v175
    %198 = vmatprep.subr.bf16.mxu0 0
    %199 = vmatpush2.bf16.msra.mxu0 0
    %200 = vmatprep.subr.bf16.mxu0 0
    %201 = vmatpush2.bf16.msra.mxu0 0
    %202 = vmatprep.subr.bf16.mxu0 0
    %203 = vmatpush2.bf16.msra.mxu0 0
    %204 = vmatprep.subr.bf16.mxu0 0
    %205 = vmatpush2.bf16.msra.mxu0 0
    %206 = vmatprep.subr.bf16.mxu0 0
    %207 = vmatpush2.bf16.msra.mxu0 0
    %208 = vmatprep.subr.bf16.mxu0 0
    %209 = vmatpush2.bf16.msra.mxu0 0
    %210 = vmatprep.subr.bf16.mxu0 0
    %211 = vmatpush2.bf16.msra.mxu0 0
    %212 = vmatprep.subr.bf16.mxu0 0
    %213 = vmatpush2.bf16.msra.mxu0 0
    %214 = vmatprep.mubr.bf16.mxu0 0
    %215 = vmatmul.mubr.bf16.gmra.mxu0 %v180
    %v216 = vpop.f32.mrf.mxu0
    %v217 = vadd.f32 %v165, %v216
    %v218 = vpop.f32.mrf.mxu0
    %v219 = vpop.f32.mrf.mxu0
    %v220 = vpop.f32.mrf.mxu0
    %221 = vdwg.mxu0
    %v222 = vmax.f32 %v217, 0.0
    %v223 = vld [vmem:[%s5] sm:$0x1]
    %v225 = vlaneseq
    %v226 = vshrl.u32 %v225, 7
    %v227 = vsub.s32 0, %v226
    %v228 = vrot.slane %v223, %v227
    %v230 = vmul.f32 %v222, %v228
    %v231 = vsel %vm148, %v230, 0.0
    %232 = vadd.xlane.f32.xlu0 %v231
    %v233 = vpop.xlane.xlu0 %232
    %s234 = sld [smem:[#allocation3]]
    %v235 = vstv %s234
    %v236 = vadd.f32 %v233, %v235
    %vm237 = vcmask 7168
    %238 = vst.msk [vmem:[%s7] sm:$0xff] %vm237, %v236
  $region37: #{bbox_iou_head_forward.3} parent=0 // pred_fallthru
    _
  // Predicated region
  $region38: #{bbox_iou_head_forward.3} parent=0 // pred_check
    _
  $region39: #{bbox_iou_head_forward.3} parent=0 // pred_check_branch
    %240 = sbr.rel (0) target = $region41
  $region40: #{bbox_iou_head_forward.3} parent=0 // pred_region
    _
  $region41: #{bbox_iou_head_forward.3} parent=0 // pred_fallthru
    _
  // Predicated region
  $region42: #{bbox_iou_head_forward.3} parent=0 // pred_check
    _
  $region43: #{bbox_iou_head_forward.3} parent=0 // pred_check_branch
    %242 = sbr.rel (0) target = $region45
  $region44: #{bbox_iou_head_forward.3} parent=0 // pred_region
    _
  $region45: #{bbox_iou_head_forward.3} parent=0 // pred_fallthru
    _

// kernel: bbox_iou_head_forward.2
$region0: #{bbox_iou_head_forward.2}
  #allocation0 [shape = 'u32[]', space=smem, size = 0x4, offset = 0x4, fixed_abs, tag = 'smem constant byte address 0x4 - core index']
  #allocation1 [shape = 'u32[144,128]{1,0:T(1,128)}', space=vmem, size = 0x12000, scoped, tag = 'internal scratch']
  #allocation2 [shape = 'bf16[1,10,10,8]{3,2,1,0:T(8,128)(2,1)}', space=vmem, size = 0xa000, scoped, tag = 'scratch operand']
  %s0 = inlined_call_operand.vmem [shape: bf16[2,4,4,8], index: 0, kind: input, shape index: {}]
  %s1 = inlined_call_operand.vmem [shape: bf16[2,2,8,8], index: 1, kind: input, shape index: {}]
  %s2 = inlined_call_operand.vmem [shape: f32[1,8], index: 2, kind: input, shape index: {}]
  %s3 = inlined_call_operand.vmem [shape: bf16[3,3,8,8], index: 3, kind: input, shape index: {}]
  %s4 = inlined_call_operand.vmem [shape: f32[1,8], index: 4, kind: input, shape index: {}]
  %s5 = inlined_call_operand.vmem [shape: bf16[3,3,8,8], index: 5, kind: input, shape index: {}]
  %s6 = inlined_call_operand.vmem [shape: f32[1,8], index: 6, kind: input, shape index: {}]
  %s7 = inlined_call_operand.vmem [shape: bf16[3,3,8,8], index: 7, kind: input, shape index: {}]
  %s8 = inlined_call_operand.vmem [shape: f32[1,8], index: 8, kind: input, shape index: {}]
  %s9 = inlined_call_operand.vmem [shape: bf16[3,3,8,8], index: 9, kind: input, shape index: {}]
  %s10 = inlined_call_operand.vmem [shape: f32[1,8], index: 10, kind: input, shape index: {}]
  %s11 = inlined_call_operand.vmem [shape: bf16[2,4,4,8], index: 11, kind: output, shape index: {}]
  %s12 = sld [smem:[#allocation0]]
  $region77: #{bbox_iou_head_forward.2} parent=0
    _
  %s14 = ssub.s32 1, %s12
  %s15 = scalar_select 0, %s14, %s12
  loop: start=0, step=1, limit=4
  $region2: #{bbox_iou_head_forward.2} parent=0 // loop_pre_header
    _
  $region3: #{bbox_iou_head_forward.2} parent=0 // loop_header
    %s17 = sphi 0, %s21
    %p18 = scmp.ge.s32.totalorder %s17, 4
    %s27 = sphi 0, %s29
    %s30 = sphi 0, %s27
    %s31 = sphi 0, %s30
    %s47 = sphi 0, %s31
    %s51 = sphi 0, %s51
    %s53 = sphi 0, %s51
    %s54 = sphi 0, %s53
    %s68 = sphi 0, %s54
    %s72 = sphi 0, %s72
    %s74 = sphi 0, %s72
    %s75 = sphi 0, %s74
    %s89 = sphi 0, %s75
    %s93 = sphi 0, %s93
    %s95 = sphi 0, %s93
    %s96 = sphi 0, %s95
    %s110 = sphi 0, %s96
    %s114 = sphi 0, %s114
    %s116 = sphi 0, %s114
    %s117 = sphi 0, %s116
    %s131 = sphi 0, %s117
    %s135 = sphi 0, %s135
    %s137 = sphi 0, %s135
    %s138 = sphi 0, %s137
    %s152 = sphi 0, %s138
    %s156 = sphi 0, %s156
    %s158 = sphi 0, %s156
    %s159 = sphi 0, %s158
    %s173 = sphi 0, %s159
    %s177 = sphi 0, %s177
    %s179 = sphi 0, %s177
    %s180 = sphi 0, %s179
    %s194 = sphi 0, %s180
    %s198 = sphi 0, %s198
    %s200 = sphi 0, %s198
    %s201 = sphi 0, %s200
    %s215 = sphi 0, %s201
    %s219 = sphi 0, %s219
    %s221 = sphi 0, %s219
    %s222 = sphi 0, %s221
    %s236 = sphi 0, %s222
    %s240 = sphi 0, %s240
    %s242 = sphi 0, %s240
    %s243 = sphi 0, %s242
    %s257 = sphi 0, %s243
    %s263 = sphi 0, %s265
    %s266 = sphi 0, %s263
    %s267 = sphi 0, %s266
    %s283 = sphi 0, %s267
  $region4: #{bbox_iou_head_forward.2} parent=0 // loop_header_branch
    %20 = sbr.rel (%p18) target = $region8
  $region5: #{bbox_iou_head_forward.2} parent=0 // loop_body
    %s22 = ssub.s32 %s17, 1
    %s23 = ssub.s32 %s17, 2
    %s24 = sadd.s32 %s17, 1
    %s25 = ssub.s32 %s17, %s24
    %p26 = scmp.eq.s32.totalorder %s25, 0
    %s28 = sadd.s32 %s27, 1
    %s29 = scalar_select %p26, %s27, %s28
    %p32 = pneg %p26
    %p33 = scmp.eq.s32.totalorder %s17, 1
    %p34 = por %p32, %p33
    %p35 = scmp.ne.s32.totalorder %s27, %s30
    %p36 = scmp.eq.s32.totalorder %s17, 0
    %p37 = por %p35, %p36
    %p38 = scmp.ne.s32.totalorder %s27, %s30
    %p39 = scmp.eq.s32.totalorder %s22, 1
    %p40 = por %p38, %p39
    %p41 = scmp.ne.s32.totalorder %s30, %s31
    %p42 = scmp.eq.s32.totalorder %s22, 0
    %p43 = por %p41, %p42
    %p44 = scmp.ne.s32.totalorder %s30, %s31
    %p45 = scmp.eq.s32.totalorder %s23, 1
    %p46 = por %p44, %p45
    %p48 = scmp.ne.s32.totalorder %s31, %s47
    %p49 = scmp.eq.s32.totalorder %s23, 0
    %p50 = por %p48, %p49
    %s52 = sadd.s32 %s51, 1
    %p55 = scmp.eq.s32.totalorder %s17, 1
    %p56 = scmp.ne.s32.totalorder %s51, %s53
    %p57 = scmp.eq.s32.totalorder %s17, 0
    %p58 = por %p56, %p57
    %p59 = scmp.ne.s32.totalorder %s51, %s53
    %p60 = scmp.eq.s32.totalorder %s22, 1
    %p61 = por %p59, %p60
    %p62 = scmp.ne.s32.totalorder %s53, %s54
    %p63 = scmp.eq.s32.totalorder %s22, 0
    %p64 = por %p62, %p63
    %p65 = scmp.ne.s32.totalorder %s53, %s54
    %p66 = scmp.eq.s32.totalorder %s23, 1
    %p67 = por %p65, %p66
    %p69 = scmp.ne.s32.totalorder %s54, %s68
    %p70 = scmp.eq.s32.totalorder %s23, 0
    %p71 = por %p69, %p70
    %s73 = sadd.s32 %s72, 1
    %p76 = scmp.eq.s32.totalorder %s17, 1
    %p77 = scmp.ne.s32.totalorder %s72, %s74
    %p78 = scmp.eq.s32.totalorder %s17, 0
    %p79 = por %p77, %p78
    %p80 = scmp.ne.s32.totalorder %s72, %s74
    %p81 = scmp.eq.s32.totalorder %s22, 1
    %p82 = por %p80, %p81
    %p83 = scmp.ne.s32.totalorder %s74, %s75
    %p84 = scmp.eq.s32.totalorder %s22, 0
    %p85 = por %p83, %p84
    %p86 = scmp.ne.s32.totalorder %s74, %s75
    %p87 = scmp.eq.s32.totalorder %s23, 1
    %p88 = por %p86, %p87
    %p90 = scmp.ne.s32.totalorder %s75, %s89
    %p91 = scmp.eq.s32.totalorder %s23, 0
    %p92 = por %p90, %p91
    %s94 = sadd.s32 %s93, 1
    %p97 = scmp.eq.s32.totalorder %s17, 1
    %p98 = scmp.ne.s32.totalorder %s93, %s95
    %p99 = scmp.eq.s32.totalorder %s17, 0
    %p100 = por %p98, %p99
    %p101 = scmp.ne.s32.totalorder %s93, %s95
    %p102 = scmp.eq.s32.totalorder %s22, 1
    %p103 = por %p101, %p102
    %p104 = scmp.ne.s32.totalorder %s95, %s96
    %p105 = scmp.eq.s32.totalorder %s22, 0
    %p106 = por %p104, %p105
    %p107 = scmp.ne.s32.totalorder %s95, %s96
    %p108 = scmp.eq.s32.totalorder %s23, 1
    %p109 = por %p107, %p108
    %p111 = scmp.ne.s32.totalorder %s96, %s110
    %p112 = scmp.eq.s32.totalorder %s23, 0
    %p113 = por %p111, %p112
    %s115 = sadd.s32 %s114, 1
    %p118 = scmp.eq.s32.totalorder %s17, 1
    %p119 = scmp.ne.s32.totalorder %s114, %s116
    %p120 = scmp.eq.s32.totalorder %s17, 0
    %p121 = por %p119, %p120
    %p122 = scmp.ne.s32.totalorder %s114, %s116
    %p123 = scmp.eq.s32.totalorder %s22, 1
    %p124 = por %p122, %p123
    %p125 = scmp.ne.s32.totalorder %s116, %s117
    %p126 = scmp.eq.s32.totalorder %s22, 0
    %p127 = por %p125, %p126
    %p128 = scmp.ne.s32.totalorder %s116, %s117
    %p129 = scmp.eq.s32.totalorder %s23, 1
    %p130 = por %p128, %p129
    %p132 = scmp.ne.s32.totalorder %s117, %s131
    %p133 = scmp.eq.s32.totalorder %s23, 0
    %p134 = por %p132, %p133
    %s136 = sadd.s32 %s135, 1
    %p139 = scmp.eq.s32.totalorder %s17, 1
    %p140 = scmp.ne.s32.totalorder %s135, %s137
    %p141 = scmp.eq.s32.totalorder %s17, 0
    %p142 = por %p140, %p141
    %p143 = scmp.ne.s32.totalorder %s135, %s137
    %p144 = scmp.eq.s32.totalorder %s22, 1
    %p145 = por %p143, %p144
    %p146 = scmp.ne.s32.totalorder %s137, %s138
    %p147 = scmp.eq.s32.totalorder %s22, 0
    %p148 = por %p146, %p147
    %p149 = scmp.ne.s32.totalorder %s137, %s138
    %p150 = scmp.eq.s32.totalorder %s23, 1
    %p151 = por %p149, %p150
    %p153 = scmp.ne.s32.totalorder %s138, %s152
    %p154 = scmp.eq.s32.totalorder %s23, 0
    %p155 = por %p153, %p154
    %s157 = sadd.s32 %s156, 1
    %p160 = scmp.eq.s32.totalorder %s17, 1
    %p161 = scmp.ne.s32.totalorder %s156, %s158
    %p162 = scmp.eq.s32.totalorder %s17, 0
    %p163 = por %p161, %p162
    %p164 = scmp.ne.s32.totalorder %s156, %s158
    %p165 = scmp.eq.s32.totalorder %s22, 1
    %p166 = por %p164, %p165
    %p167 = scmp.ne.s32.totalorder %s158, %s159
    %p168 = scmp.eq.s32.totalorder %s22, 0
    %p169 = por %p167, %p168
    %p170 = scmp.ne.s32.totalorder %s158, %s159
    %p171 = scmp.eq.s32.totalorder %s23, 1
    %p172 = por %p170, %p171
    %p174 = scmp.ne.s32.totalorder %s159, %s173
    %p175 = scmp.eq.s32.totalorder %s23, 0
    %p176 = por %p174, %p175
    %s178 = sadd.s32 %s177, 1
    %p181 = scmp.eq.s32.totalorder %s17, 1
    %p182 = scmp.ne.s32.totalorder %s177, %s179
    %p183 = scmp.eq.s32.totalorder %s17, 0
    %p184 = por %p182, %p183
    %p185 = scmp.ne.s32.totalorder %s177, %s179
    %p186 = scmp.eq.s32.totalorder %s22, 1
    %p187 = por %p185, %p186
    %p188 = scmp.ne.s32.totalorder %s179, %s180
    %p189 = scmp.eq.s32.totalorder %s22, 0
    %p190 = por %p188, %p189
    %p191 = scmp.ne.s32.totalorder %s179, %s180
    %p192 = scmp.eq.s32.totalorder %s23, 1
    %p193 = por %p191, %p192
    %p195 = scmp.ne.s32.totalorder %s180, %s194
    %p196 = scmp.eq.s32.totalorder %s23, 0
    %p197 = por %p195, %p196
    %s199 = sadd.s32 %s198, 1
    %p202 = scmp.eq.s32.totalorder %s17, 1
    %p203 = scmp.ne.s32.totalorder %s198, %s200
    %p204 = scmp.eq.s32.totalorder %s17, 0
    %p205 = por %p203, %p204
    %p206 = scmp.ne.s32.totalorder %s198, %s200
    %p207 = scmp.eq.s32.totalorder %s22, 1
    %p208 = por %p206, %p207
    %p209 = scmp.ne.s32.totalorder %s200, %s201
    %p210 = scmp.eq.s32.totalorder %s22, 0
    %p211 = por %p209, %p210
    %p212 = scmp.ne.s32.totalorder %s200, %s201
    %p213 = scmp.eq.s32.totalorder %s23, 1
    %p214 = por %p212, %p213
    %p216 = scmp.ne.s32.totalorder %s201, %s215
    %p217 = scmp.eq.s32.totalorder %s23, 0
    %p218 = por %p216, %p217
    %s220 = sadd.s32 %s219, 1
    %p223 = scmp.eq.s32.totalorder %s17, 1
    %p224 = scmp.ne.s32.totalorder %s219, %s221
    %p225 = scmp.eq.s32.totalorder %s17, 0
    %p226 = por %p224, %p225
    %p227 = scmp.ne.s32.totalorder %s219, %s221
    %p228 = scmp.eq.s32.totalorder %s22, 1
    %p229 = por %p227, %p228
    %p230 = scmp.ne.s32.totalorder %s221, %s222
    %p231 = scmp.eq.s32.totalorder %s22, 0
    %p232 = por %p230, %p231
    %p233 = scmp.ne.s32.totalorder %s221, %s222
    %p234 = scmp.eq.s32.totalorder %s23, 1
    %p235 = por %p233, %p234
    %p237 = scmp.ne.s32.totalorder %s222, %s236
    %p238 = scmp.eq.s32.totalorder %s23, 0
    %p239 = por %p237, %p238
    %s241 = sadd.s32 %s240, 1
    %p244 = scmp.eq.s32.totalorder %s17, 1
    %p245 = scmp.ne.s32.totalorder %s240, %s242
    %p246 = scmp.eq.s32.totalorder %s17, 0
    %p247 = por %p245, %p246
    %p248 = scmp.ne.s32.totalorder %s240, %s242
    %p249 = scmp.eq.s32.totalorder %s22, 1
    %p250 = por %p248, %p249
    %p251 = scmp.ne.s32.totalorder %s242, %s243
    %p252 = scmp.eq.s32.totalorder %s22, 0
    %p253 = por %p251, %p252
    %p254 = scmp.ne.s32.totalorder %s242, %s243
    %p255 = scmp.eq.s32.totalorder %s23, 1
    %p256 = por %p254, %p255
    %p258 = scmp.ne.s32.totalorder %s243, %s257
    %p259 = scmp.eq.s32.totalorder %s23, 0
    %p260 = por %p258, %p259
    %s261 = ssub.s32 %s17, %s24
    %p262 = scmp.eq.s32.totalorder %s261, 0
    %s264 = sadd.s32 %s263, 1
    %s265 = scalar_select %p262, %s263, %s264
    %p268 = pneg %p262
    %p269 = scmp.eq.s32.totalorder %s17, 1
    %p270 = por %p268, %p269
    %p271 = scmp.ne.s32.totalorder %s263, %s266
    %p272 = scmp.eq.s32.totalorder %s17, 0
    %p273 = por %p271, %p272
    %p274 = scmp.ne.s32.totalorder %s263, %s266
    %p275 = scmp.eq.s32.totalorder %s22, 1
    %p276 = por %p274, %p275
    %p277 = scmp.ne.s32.totalorder %s266, %s267
    %p278 = scmp.eq.s32.totalorder %s22, 0
    %p279 = por %p277, %p278
    %p280 = scmp.ne.s32.totalorder %s266, %s267
    %p281 = scmp.eq.s32.totalorder %s23, 1
    %p282 = por %p280, %p281
    %p284 = scmp.ne.s32.totalorder %s267, %s283
    %p285 = scmp.eq.s32.totalorder %s23, 0
    %p286 = por %p284, %p285
    %p287 = scmp.le.s32.totalorder 1, %s17
    %p288 = scmp.lt.s32.totalorder %s17, 3
    %p289 = pnand %p287, %p288
    %p290 = pneg %p289
    // Predicated region
    $region9: #{bbox_iou_head_forward.2} parent=5 // pred_check
      _
    $region10: #{bbox_iou_head_forward.2} parent=5 // pred_check_branch
      %292 = sbr.rel (%p289) target = $region12
    $region11: #{bbox_iou_head_forward.2} parent=5 // pred_region
      %s293 = ssub.s32 %s17, 1
      // Predicated region
      $region13: #{bbox_iou_head_forward.2} parent=11 // pred_check
        %p294 = pneg %p64
      $region14: #{bbox_iou_head_forward.2} parent=11 // pred_check_branch
        %296 = sbr.rel (%p294) target = $region16
      $region15: #{bbox_iou_head_forward.2} parent=11 // pred_region
        _
      $region16: #{bbox_iou_head_forward.2} parent=11 // pred_fallthru
        _
      // Predicated region
      $region17: #{bbox_iou_head_forward.2} parent=11 // pred_check
        %p297 = pneg %p85
      $region18: #{bbox_iou_head_forward.2} parent=11 // pred_check_branch
        %299 = sbr.rel (%p297) target = $region20
      $region19: #{bbox_iou_head_forward.2} parent=11 // pred_region
        _
      $region20: #{bbox_iou_head_forward.2} parent=11 // pred_fallthru
        _
      // Predicated region
      $region21: #{bbox_iou_head_forward.2} parent=11 // pred_check
        %p300 = pneg %p106
      $region22: #{bbox_iou_head_forward.2} parent=11 // pred_check_branch
        %302 = sbr.rel (%p300) target = $region24
      $region23: #{bbox_iou_head_forward.2} parent=11 // pred_region
        _
      $region24: #{bbox_iou_head_forward.2} parent=11 // pred_fallthru
        _
      // Predicated region
      $region25: #{bbox_iou_head_forward.2} parent=11 // pred_check
        %p303 = pneg %p127
      $region26: #{bbox_iou_head_forward.2} parent=11 // pred_check_branch
        %305 = sbr.rel (%p303) target = $region28
      $region27: #{bbox_iou_head_forward.2} parent=11 // pred_region
        _
      $region28: #{bbox_iou_head_forward.2} parent=11 // pred_fallthru
        _
      // Predicated region
      $region29: #{bbox_iou_head_forward.2} parent=11 // pred_check
        %p306 = pneg %p148
      $region30: #{bbox_iou_head_forward.2} parent=11 // pred_check_branch
        %308 = sbr.rel (%p306) target = $region32
      $region31: #{bbox_iou_head_forward.2} parent=11 // pred_region
        _
      $region32: #{bbox_iou_head_forward.2} parent=11 // pred_fallthru
        _
      // Predicated region
      $region33: #{bbox_iou_head_forward.2} parent=11 // pred_check
        %p309 = pneg %p169
      $region34: #{bbox_iou_head_forward.2} parent=11 // pred_check_branch
        %311 = sbr.rel (%p309) target = $region36
      $region35: #{bbox_iou_head_forward.2} parent=11 // pred_region
        _
      $region36: #{bbox_iou_head_forward.2} parent=11 // pred_fallthru
        _
      // Predicated region
      $region37: #{bbox_iou_head_forward.2} parent=11 // pred_check
        %p312 = pneg %p190
      $region38: #{bbox_iou_head_forward.2} parent=11 // pred_check_branch
        %314 = sbr.rel (%p312) target = $region40
      $region39: #{bbox_iou_head_forward.2} parent=11 // pred_region
        _
      $region40: #{bbox_iou_head_forward.2} parent=11 // pred_fallthru
        _
      // Predicated region
      $region41: #{bbox_iou_head_forward.2} parent=11 // pred_check
        %p315 = pneg %p211
      $region42: #{bbox_iou_head_forward.2} parent=11 // pred_check_branch
        %317 = sbr.rel (%p315) target = $region44
      $region43: #{bbox_iou_head_forward.2} parent=11 // pred_region
        _
      $region44: #{bbox_iou_head_forward.2} parent=11 // pred_fallthru
        _
      // Predicated region
      $region45: #{bbox_iou_head_forward.2} parent=11 // pred_check
        %p318 = pneg %p232
      $region46: #{bbox_iou_head_forward.2} parent=11 // pred_check_branch
        %320 = sbr.rel (%p318) target = $region48
      $region47: #{bbox_iou_head_forward.2} parent=11 // pred_region
        _
      $region48: #{bbox_iou_head_forward.2} parent=11 // pred_fallthru
        _
      // Predicated region
      $region49: #{bbox_iou_head_forward.2} parent=11 // pred_check
        %p321 = pneg %p253
      $region50: #{bbox_iou_head_forward.2} parent=11 // pred_check_branch
        %323 = sbr.rel (%p321) target = $region52
      $region51: #{bbox_iou_head_forward.2} parent=11 // pred_region
        _
      $region52: #{bbox_iou_head_forward.2} parent=11 // pred_fallthru
        _
    $region12: #{bbox_iou_head_forward.2} parent=5 // pred_fallthru
      _
    %p324 = scmp.lt.s32.totalorder %s17, 2
    // Predicated region
    $region53: #{bbox_iou_head_forward.2} parent=5 // pred_check
      %p325 = pneg %p324
    $region54: #{bbox_iou_head_forward.2} parent=5 // pred_check_branch
      %327 = sbr.rel (%p325) target = $region56
    $region55: #{bbox_iou_head_forward.2} parent=5 // pred_region
      // Predicated region
      $region57: #{bbox_iou_head_forward.2} parent=55 // pred_check
        %p328 = pneg %p37
      $region58: #{bbox_iou_head_forward.2} parent=55 // pred_check_branch
        %330 = sbr.rel (%p328) target = $region60
      $region59: #{bbox_iou_head_forward.2} parent=55 // pred_region
        %p331 = scmp.lt.s32.totalorder %s17, 1
        %s332 = scalar_select %p331, %s17, 1
        %s333 = smul.addr %s332, 4
        %s334 = smul.addr %s333, 2
        %s335 = scalar_lea.vmem %s0, %s334
      $region60: #{bbox_iou_head_forward.2} parent=55 // pred_fallthru
        _
    $region56: #{bbox_iou_head_forward.2} parent=5 // pred_fallthru
      _
    %p336 = scmp.le.s32.totalorder 1, %s17
    %p337 = scmp.lt.s32.totalorder %s17, 3
    %p338 = pnand %p336, %p337
    %p339 = pneg %p338
    // Predicated region
    $region61: #{bbox_iou_head_forward.2} parent=5 // pred_check
      _
    $region62: #{bbox_iou_head_forward.2} parent=5 // pred_check_branch
      %341 = sbr.rel (%p338) target = $region64
    $region63: #{bbox_iou_head_forward.2} parent=5 // pred_region
      %s342 = ssub.s32 %s17, 1
      %p343 = scmp.lt.s32.totalorder %s22, 1
      %s344 = scalar_select %p343, %s22, 1
      %s345 = smul.addr %s344, 4
      %s346 = smul.addr %s345, 2
      %s347 = scalar_lea.vmem %s0, %s346
      %p348 = pneg %p43
      %p349 = pneg %p40
      %p350 = pneg %p64
      %p351 = pneg %p61
      %p352 = pneg %p85
      %p353 = pneg %p82
      %p354 = pneg %p106
      %p355 = pneg %p103
      %p356 = pneg %p127
      %p357 = pneg %p124
      %p358 = pneg %p148
      %p359 = pneg %p145
      %p360 = pneg %p169
      %p361 = pneg %p166
      %p362 = pneg %p190
      %p363 = pneg %p187
      %p364 = pneg %p211
      %p365 = pneg %p208
      %p366 = pneg %p232
      %p367 = pneg %p229
      %p368 = pneg %p253
      %p369 = pneg %p250
      %p370 = pneg %p279
      %p371 = pneg %p276
      %p372 = scmp.lt.s32.totalorder %s22, 1
      %s373 = scalar_select %p372, %s22, 1
      %s374 = smul.addr %s373, 4
      %s375 = smul.addr %s374, 2
      %s376 = scalar_lea.vmem %s11, %s375
      %p377 = scmp.lt.s32.totalorder %s22, 1
      %s378 = scalar_select %p377, %s22, 1
      %s379 = smul.addr %s378, 4
      %s380 = smul.addr %s379, 2
      %s381 = scalar_lea.vmem %s0, %s380
      %p382 = scmp.lt.s32.totalorder %s22, 1
      %s383 = scalar_select %p382, %s22, 1
      %s384 = smul.addr %s383, 4
      %s385 = smul.addr %s384, 2
      %s386 = scalar_lea.vmem %s11, %s385
      %vm388 = vcmask 60416
      %389 = vst.msk [vmem:[#allocation2] sm:$0xf] %vm388, 0
      %vm390 = vcmask 57344
      %391 = vst.msk [vmem:[#allocation2 + $0x4] sm:$0x1] %vm390, 0
      %392 = vst.msk [vmem:[#allocation2 + $0x8] sm:$0xf] %vm388, 0
      %393 = vst.msk [vmem:[#allocation2 + $0xc] sm:$0x1] %vm390, 0
      %394 = vst.msk [vmem:[#allocation2 + $0x10] sm:$0xf] %vm388, 0
      %395 = vst.msk [vmem:[#allocation2 + $0x14] sm:$0x1] %vm390, 0
      %396 = vst.msk [vmem:[#allocation2 + $0x18] sm:$0xf] %vm388, 0
      %397 = vst.msk [vmem:[#allocation2 + $0x1c] sm:$0x1] %vm390, 0
      %398 = vst.msk [vmem:[#allocation2 + $0x20] sm:$0xf] %vm388, 0
      %399 = vst.msk [vmem:[#allocation2 + $0x24] sm:$0x1] %vm390, 0
      %400 = vst.msk [vmem:[#allocation2 + $0x28] sm:$0xf] %vm388, 0
      %401 = vst.msk [vmem:[#allocation2 + $0x2c] sm:$0x1] %vm390, 0
      %402 = vst.msk [vmem:[#allocation2 + $0x30] sm:$0xf] %vm388, 0
      %403 = vst.msk [vmem:[#allocation2 + $0x34] sm:$0x1] %vm390, 0
      %404 = vst.msk [vmem:[#allocation2 + $0x38] sm:$0xf] %vm388, 0
      %405 = vst.msk [vmem:[#allocation2 + $0x3c] sm:$0x1] %vm390, 0
      %406 = vst.msk [vmem:[#allocation2 + $0x40] sm:$0xf] %vm388, 0
      %407 = vst.msk [vmem:[#allocation2 + $0x44] sm:$0x1] %vm390, 0
      %408 = vst.msk [vmem:[#allocation2 + $0x48] sm:$0xf] %vm388, 0
      %409 = vst.msk [vmem:[#allocation2 + $0x4c] sm:$0x1] %vm390, 0
      %v410 = vld [vmem:[%s381] sm:$0x3]
      %v411 = vld [vmem:[%s381 + $0x2] sm:$0x3]
      %v412 = vld [vmem:[%s381 + $0x4] sm:$0x3]
      %v413 = vld [vmem:[%s381 + $0x6] sm:$0x3]
      %v414 = vld [vmem:[%s2] sm:$0x1]
      %v415 = vld [vmem:[%s1] sm:$0xf]
      %v417 = vlaneseq
      %v418 = vshrl.u32 %v417, 7
      %v419 = vsub.s32 0, %v418
      %v420 = vrot.slane %v414, %v419
      %v426 = vcombine.low %v410, %v411
      %v427 = vcombine.low %v412, %v413
      %v429 = vunpack.c.l.s4 1983009808
      %v430 = vunpack.c.0.s8 %v429
      %v431 = vlaneseq
      %v432 = vshrl.u32 %v431, 7
      %v433 = vsub.s32 %v430, %v432
      %v434 = vrot.slane %v426, %v433
      %v436 = vunpack.c.l.s4 1983009808
      %v437 = vunpack.c.0.s8 %v436
      %v438 = vlaneseq
      %v439 = vshrl.u32 %v438, 7
      %v440 = vsub.s32 %v437, %v439
      %v441 = vrot.slane %v427, %v440
      %v442 = vcombine.low %v434, %v441
      %vm443 = vcmask 64512
      %v445 = vsel %vm443, %v442, 0
      %vm447 = vcmask 1043456
      %v449 = vsel %vm447, %v415, 0
      %451 = vmatprep.subr.bf16.mxu0 0
      %452 = vmatpush1.bf16.msra.mxu0 0
      %453 = vmatprep.subr.bf16.mxu0 0
      %454 = vmatpush1.bf16.msra.mxu0 0
      %455 = vmatprep.subr.bf16.mxu0 0
      %456 = vmatpush1.bf16.msra.mxu0 0
      %457 = vmatprep.subr.bf16.mxu0 0
      %458 = vmatpush1.bf16.msra.mxu0 0
      %459 = vmatprep.subr.bf16.mxu0 0
      %460 = vmatpush1.bf16.msra.mxu0 0
      %461 = vmatprep.subr.bf16.mxu0 0
      %462 = vmatpush1.bf16.msra.mxu0 0
      %463 = vmatprep.subr.bf16.mxu0 0
      %464 = vmatpush1.bf16.msra.mxu0 0
      %465 = vmatprep.subr.bf16.mxu0 0
      %466 = vmatpush1.bf16.msra.mxu0 %v449
      %467 = vmatprep.subr.bf16.mxu0 0
      %468 = vmatpush2.bf16.msra.mxu0 0
      %469 = vmatprep.subr.bf16.mxu0 0
      %470 = vmatpush2.bf16.msra.mxu0 0
      %471 = vmatprep.subr.bf16.mxu0 0
      %472 = vmatpush2.bf16.msra.mxu0 0
      %473 = vmatprep.subr.bf16.mxu0 0
      %474 = vmatpush2.bf16.msra.mxu0 0
      %475 = vmatprep.subr.bf16.mxu0 0
      %476 = vmatpush2.bf16.msra.mxu0 0
      %477 = vmatprep.subr.bf16.mxu0 0
      %478 = vmatpush2.bf16.msra.mxu0 0
      %479 = vmatprep.subr.bf16.mxu0 0
      %480 = vmatpush2.bf16.msra.mxu0 0
      %481 = vmatprep.subr.bf16.mxu0 0
      %482 = vmatpush2.bf16.msra.mxu0 0
      %483 = vmatprep.mubr.bf16.mxu0 0
      %484 = vmatmul.mubr.bf16.gmra.mxu0 %v445
      %v485 = vpop.f32.mrf.mxu0
      %v486 = vadd.f32 %v420, %v485
      %v487 = vpop.f32.mrf.mxu0
      %v488 = vpop.f32.mrf.mxu0
      %v489 = vadd.f32 %v420, %v488
      %v490 = vpop.f32.mrf.mxu0
      %491 = vdwg.mxu0
      %v492 = vmax.f32 %v486, 0.0
      %v493 = vmax.f32 %v489, 0.0
      %v494 = vpack.c.bf16 %v493, %v492
      %s495 = scalar_lea.vmem %s1, 4
      %v496 = vld [vmem:[%s495] sm:$0xf]
      %v498 = vsel %vm447, %v496, 0
      %500 = vmatprep.subr.bf16.mxu0 0
      %501 = vmatpush1.bf16.msra.mxu0 0
      %502 = vmatprep.subr.bf16.mxu0 0
      %503 = vmatpush1.bf16.msra.mxu0 0
      %504 = vmatprep.subr.bf16.mxu0 0
      %505 = vmatpush1.bf16.msra.mxu0 0
      %506 = vmatprep.subr.bf16.mxu0 0
      %507 = vmatpush1.bf16.msra.mxu0 0
      %508 = vmatprep.subr.bf16.mxu0 0
      %509 = vmatpush1.bf16.msra.mxu0 0
      %510 = vmatprep.subr.bf16.mxu0 0
      %511 = vmatpush1.bf16.msra.mxu0 0
      %512 = vmatprep.subr.bf16.mxu0 0
      %513 = vmatpush1.bf16.msra.mxu0 0
      %514 = vmatprep.subr.bf16.mxu0 0
      %515 = vmatpush1.bf16.msra.mxu0 %v498
      %516 = vmatprep.subr.bf16.mxu0 0
      %517 = vmatpush2.bf16.msra.mxu0 0
      %518 = vmatprep.subr.bf16.mxu0 0
      %519 = vmatpush2.bf16.msra.mxu0 0
      %520 = vmatprep.subr.bf16.mxu0 0
      %521 = vmatpush2.bf16.msra.mxu0 0
      %522 = vmatprep.subr.bf16.mxu0 0
      %523 = vmatpush2.bf16.msra.mxu0 0
      %524 = vmatprep.subr.bf16.mxu0 0
      %525 = vmatpush2.bf16.msra.mxu0 0
      %526 = vmatprep.subr.bf16.mxu0 0
      %527 = vmatpush2.bf16.msra.mxu0 0
      %528 = vmatprep.subr.bf16.mxu0 0
      %529 = vmatpush2.bf16.msra.mxu0 0
      %530 = vmatprep.subr.bf16.mxu0 0
      %531 = vmatpush2.bf16.msra.mxu0 0
      %532 = vmatprep.mubr.bf16.mxu0 0
      %533 = vmatmul.mubr.bf16.gmra.mxu0 %v445
      %v534 = vpop.f32.mrf.mxu0
      %v535 = vadd.f32 %v420, %v534
      %v536 = vpop.f32.mrf.mxu0
      %v537 = vpop.f32.mrf.mxu0
      %v538 = vadd.f32 %v420, %v537
      %v539 = vpop.f32.mrf.mxu0
      %540 = vdwg.mxu0
      %v541 = vmax.f32 %v535, 0.0
      %v542 = vmax.f32 %v538, 0.0
      %v543 = vpack.c.bf16 %v542, %v541
      %v545 = vcombine.high %v494, %v494
      %v547 = vunpack.c.l.s4 1966171168
      %v548 = vunpack.c.0.s8 %v547
      %v549 = vlaneseq
      %v550 = vshrl.u32 %v549, 7
      %v551 = vsub.s32 %v548, %v550
      %v552 = vrot.slane %v494, %v551
      %v554 = vunpack.c.l.s4 1966171168
      %v555 = vunpack.c.0.s8 %v554
      %v556 = vlaneseq
      %v557 = vshrl.u32 %v556, 7
      %v558 = vsub.s32 %v555, %v557
      %v559 = vrot.slane %v545, %v558
      %v560 = vcombine.high %v552, %v552
      %v561 = vcombine.high %v559, %v559
      %v563 = vunpack.c.l.s4 1966171168
      %v564 = vunpack.c.0.s8 %v563
      %v565 = vlaneseq
      %v566 = vshrl.u32 %v565, 7
      %v567 = vsub.s32 %v564, %v566
      %v568 = vrot.slane %v552, %v567
      %v570 = vunpack.c.l.s4 1966171168
      %v571 = vunpack.c.0.s8 %v570
      %v572 = vlaneseq
      %v573 = vshrl.u32 %v572, 7
      %v574 = vsub.s32 %v571, %v573
      %v575 = vrot.slane %v559, %v574
      %v577 = vunpack.c.l.s4 1966171168
      %v578 = vunpack.c.0.s8 %v577
      %v579 = vlaneseq
      %v580 = vshrl.u32 %v579, 7
      %v581 = vsub.s32 %v578, %v580
      %v582 = vrot.slane %v560, %v581
      %v584 = vunpack.c.l.s4 1966171168
      %v585 = vunpack.c.0.s8 %v584
      %v586 = vlaneseq
      %v587 = vshrl.u32 %v586, 7
      %v588 = vsub.s32 %v585, %v587
      %v589 = vrot.slane %v561, %v588
      %v590 = vcombine.high %v568, %v568
      %v591 = vcombine.high %v575, %v575
      %v592 = vcombine.high %v582, %v582
      %v593 = vcombine.high %v589, %v589
      %v594 = vunpack.i.l.s16 %v568
      %v595 = vunpack.i.h.s16 %v568
      %v596 = vunpack.i.l.s16 %v582
      %v597 = vunpack.i.h.s16 %v582
      %v598 = vunpack.i.l.s16 %v590
      %v599 = vunpack.i.h.s16 %v590
      %v600 = vunpack.i.l.s16 %v592
      %v601 = vunpack.i.h.s16 %v592
      %v602 = vunpack.i.l.s16 %v575
      %v603 = vunpack.i.h.s16 %v575
      %v604 = vunpack.i.l.s16 %v589
      %v605 = vunpack.i.h.s16 %v589
      %v606 = vunpack.i.l.s16 %v591
      %v607 = vunpack.i.h.s16 %v591
      %v608 = vunpack.i.l.s16 %v593
      %v609 = vunpack.i.h.s16 %v593
      %v611 = vcombine.high %v543, %v543
      %v613 = vunpack.c.l.s4 1966171168
      %v614 = vunpack.c.0.s8 %v613
      %v615 = vlaneseq
      %v616 = vshrl.u32 %v615, 7
      %v617 = vsub.s32 %v614, %v616
      %v618 = vrot.slane %v543, %v617
      %v620 = vunpack.c.l.s4 1966171168
      %v621 = vunpack.c.0.s8 %v620
      %v622 = vlaneseq
      %v623 = vshrl.u32 %v622, 7
      %v624 = vsub.s32 %v621, %v623
      %v625 = vrot.slane %v611, %v624
      %v626 = vcombine.high %v618, %v618
      %v627 = vcombine.high %v625, %v625
      %v629 = vunpack.c.l.s4 1966171168
      %v630 = vunpack.c.0.s8 %v629
      %v631 = vlaneseq
      %v632 = vshrl.u32 %v631, 7
      %v633 = vsub.s32 %v630, %v632
      %v634 = vrot.slane %v618, %v633
      %v636 = vunpack.c.l.s4 1966171168
      %v637 = vunpack.c.0.s8 %v636
      %v638 = vlaneseq
      %v639 = vshrl.u32 %v638, 7
      %v640 = vsub.s32 %v637, %v639
      %v641 = vrot.slane %v625, %v640
      %v643 = vunpack.c.l.s4 1966171168
      %v644 = vunpack.c.0.s8 %v643
      %v645 = vlaneseq
      %v646 = vshrl.u32 %v645, 7
      %v647 = vsub.s32 %v644, %v646
      %v648 = vrot.slane %v626, %v647
      %v650 = vunpack.c.l.s4 1966171168
      %v651 = vunpack.c.0.s8 %v650
      %v652 = vlaneseq
      %v653 = vshrl.u32 %v652, 7
      %v654 = vsub.s32 %v651, %v653
      %v655 = vrot.slane %v627, %v654
      %v656 = vcombine.high %v634, %v634
      %v657 = vcombine.high %v641, %v641
      %v658 = vcombine.high %v648, %v648
      %v659 = vcombine.high %v655, %v655
      %v660 = vunpack.i.l.s16 %v634
      %v661 = vunpack.i.h.s16 %v634
      %v662 = vunpack.i.l.s16 %v648
      %v663 = vunpack.i.h.s16 %v648
      %v664 = vunpack.i.l.s16 %v656
      %v665 = vunpack.i.h.s16 %v656
      %v666 = vunpack.i.l.s16 %v658
      %v667 = vunpack.i.h.s16 %v658
      %v668 = vunpack.i.l.s16 %v641
      %v669 = vunpack.i.h.s16 %v641
      %v670 = vunpack.i.l.s16 %v655
      %v671 = vunpack.i.h.s16 %v655
      %v672 = vunpack.i.l.s16 %v657
      %v673 = vunpack.i.h.s16 %v657
      %v674 = vunpack.i.l.s16 %v659
      %v675 = vunpack.i.h.s16 %v659
      %v676 = vpack.i.b16 %v594, %v594
      %v677 = vpack.i.b16 %v595, %v595
      %v678 = vpack.i.b16 %v596, %v596
      %v679 = vpack.i.b16 %v597, %v597
      %v680 = vpack.i.b16 %v598, %v598
      %v681 = vpack.i.b16 %v599, %v599
      %v682 = vpack.i.b16 %v600, %v600
      %v683 = vpack.i.b16 %v601, %v601
      %v684 = vpack.i.b16 %v602, %v602
      %v685 = vpack.i.b16 %v603, %v603
      %v686 = vpack.i.b16 %v604, %v604
      %v687 = vpack.i.b16 %v605, %v605
      %v688 = vpack.i.b16 %v606, %v606
      %v689 = vpack.i.b16 %v607, %v607
      %v690 = vpack.i.b16 %v608, %v608
      %v691 = vpack.i.b16 %v609, %v609
      %v692 = vlaneseq
      %v693 = vshrl.u32 %v692, 7
      %v694 = vsub.s32 0, %v693
      %v695 = vrot.slane %v676, %v694
      %v696 = vlaneseq
      %v697 = vshrl.u32 %v696, 7
      %v698 = vsub.s32 0, %v697
      %v699 = vrot.slane %v677, %v698
      %v700 = vlaneseq
      %v701 = vshrl.u32 %v700, 7
      %v702 = vsub.s32 0, %v701
      %v703 = vrot.slane %v678, %v702
      %v704 = vlaneseq
      %v705 = vshrl.u32 %v704, 7
      %v706 = vsub.s32 0, %v705
      %v707 = vrot.slane %v679, %v706
      %v708 = vlaneseq
      %v709 = vshrl.u32 %v708, 7
      %v710 = vsub.s32 0, %v709
      %v711 = vrot.slane %v680, %v710
      %v712 = vlaneseq
      %v713 = vshrl.u32 %v712, 7
      %v714 = vsub.s32 0, %v713
      %v715 = vrot.slane %v681, %v714
      %v716 = vlaneseq
      %v717 = vshrl.u32 %v716, 7
      %v718 = vsub.s32 0, %v717
      %v719 = vrot.slane %v682, %v718
      %v720 = vlaneseq
      %v721 = vshrl.u32 %v720, 7
      %v722 = vsub.s32 0, %v721
      %v723 = vrot.slane %v683, %v722
      %v724 = vlaneseq
      %v725 = vshrl.u32 %v724, 7
      %v726 = vsub.s32 0, %v725
      %v727 = vrot.slane %v684, %v726
      %v728 = vlaneseq
      %v729 = vshrl.u32 %v728, 7
      %v730 = vsub.s32 0, %v729
      %v731 = vrot.slane %v685, %v730
      %v732 = vlaneseq
      %v733 = vshrl.u32 %v732, 7
      %v734 = vsub.s32 0, %v733
      %v735 = vrot.slane %v686, %v734
      %v736 = vlaneseq
      %v737 = vshrl.u32 %v736, 7
      %v738 = vsub.s32 0, %v737
      %v739 = vrot.slane %v687, %v738
      %v740 = vlaneseq
      %v741 = vshrl.u32 %v740, 7
      %v742 = vsub.s32 0, %v741
      %v743 = vrot.slane %v688, %v742
      %v744 = vlaneseq
      %v745 = vshrl.u32 %v744, 7
      %v746 = vsub.s32 0, %v745
      %v747 = vrot.slane %v689, %v746
      %v748 = vlaneseq
      %v749 = vshrl.u32 %v748, 7
      %v750 = vsub.s32 0, %v749
      %v751 = vrot.slane %v690, %v750
      %v752 = vlaneseq
      %v753 = vshrl.u32 %v752, 7
      %v754 = vsub.s32 0, %v753
      %v755 = vrot.slane %v691, %v754
      %v772 = vpack.i.b16 %v660, %v660
      %v773 = vpack.i.b16 %v661, %v661
      %v774 = vpack.i.b16 %v662, %v662
      %v775 = vpack.i.b16 %v663, %v663
      %v776 = vpack.i.b16 %v664, %v664
      %v777 = vpack.i.b16 %v665, %v665
      %v778 = vpack.i.b16 %v666, %v666
      %v779 = vpack.i.b16 %v667, %v667
      %v780 = vpack.i.b16 %v668, %v668
      %v781 = vpack.i.b16 %v669, %v669
      %v782 = vpack.i.b16 %v670, %v670
      %v783 = vpack.i.b16 %v671, %v671
      %v784 = vpack.i.b16 %v672, %v672
      %v785 = vpack.i.b16 %v673, %v673
      %v786 = vpack.i.b16 %v674, %v674
      %v787 = vpack.i.b16 %v675, %v675
      %v788 = vlaneseq
      %v789 = vshrl.u32 %v788, 7
      %v790 = vsub.s32 0, %v789
      %v791 = vrot.slane %v772, %v790
      %v792 = vlaneseq
      %v793 = vshrl.u32 %v792, 7
      %v794 = vsub.s32 0, %v793
      %v795 = vrot.slane %v773, %v794
      %v796 = vlaneseq
      %v797 = vshrl.u32 %v796, 7
      %v798 = vsub.s32 0, %v797
      %v799 = vrot.slane %v774, %v798
      %v800 = vlaneseq
      %v801 = vshrl.u32 %v800, 7
      %v802 = vsub.s32 0, %v801
      %v803 = vrot.slane %v775, %v802
      %v804 = vlaneseq
      %v805 = vshrl.u32 %v804, 7
      %v806 = vsub.s32 0, %v805
      %v807 = vrot.slane %v776, %v806
      %v808 = vlaneseq
      %v809 = vshrl.u32 %v808, 7
      %v810 = vsub.s32 0, %v809
      %v811 = vrot.slane %v777, %v810
      %v812 = vlaneseq
      %v813 = vshrl.u32 %v812, 7
      %v814 = vsub.s32 0, %v813
      %v815 = vrot.slane %v778, %v814
      %v816 = vlaneseq
      %v817 = vshrl.u32 %v816, 7
      %v818 = vsub.s32 0, %v817
      %v819 = vrot.slane %v779, %v818
      %v820 = vlaneseq
      %v821 = vshrl.u32 %v820, 7
      %v822 = vsub.s32 0, %v821
      %v823 = vrot.slane %v780, %v822
      %v824 = vlaneseq
      %v825 = vshrl.u32 %v824, 7
      %v826 = vsub.s32 0, %v825
      %v827 = vrot.slane %v781, %v826
      %v828 = vlaneseq
      %v829 = vshrl.u32 %v828, 7
      %v830 = vsub.s32 0, %v829
      %v831 = vrot.slane %v782, %v830
      %v832 = vlaneseq
      %v833 = vshrl.u32 %v832, 7
      %v834 = vsub.s32 0, %v833
      %v835 = vrot.slane %v783, %v834
      %v836 = vlaneseq
      %v837 = vshrl.u32 %v836, 7
      %v838 = vsub.s32 0, %v837
      %v839 = vrot.slane %v784, %v838
      %v840 = vlaneseq
      %v841 = vshrl.u32 %v840, 7
      %v842 = vsub.s32 0, %v841
      %v843 = vrot.slane %v785, %v842
      %v844 = vlaneseq
      %v845 = vshrl.u32 %v844, 7
      %v846 = vsub.s32 0, %v845
      %v847 = vrot.slane %v786, %v846
      %v848 = vlaneseq
      %v849 = vshrl.u32 %v848, 7
      %v850 = vsub.s32 0, %v849
      %v851 = vrot.slane %v787, %v850
      %vm868 = vcmask 1040384
      %vm869 = vsmask.f32 256
      %vm870 = vmand %vm868, %vm869
      %v871 = vsel %vm870, %v695, %v791
      %v872 = vsel %vm870, %v699, %v795
      %v873 = vsel %vm870, %v703, %v799
      %v874 = vsel %vm870, %v707, %v803
      %v875 = vsel %vm870, %v711, %v807
      %v876 = vsel %vm870, %v715, %v811
      %v877 = vsel %vm870, %v719, %v815
      %v878 = vsel %vm870, %v723, %v819
      %v879 = vsel %vm870, %v727, %v823
      %v880 = vsel %vm870, %v731, %v827
      %v881 = vsel %vm870, %v735, %v831
      %v882 = vsel %vm870, %v739, %v835
      %v883 = vsel %vm870, %v743, %v839
      %v884 = vsel %vm870, %v747, %v843
      %v885 = vsel %vm870, %v751, %v847
      %v886 = vsel %vm870, %v755, %v851
      %s887 = scalar_lea.vmem %s1, 8
      %v888 = vld [vmem:[%s887] sm:$0xf]
      %v890 = vsel %vm447, %v888, 0
      %892 = vmatprep.subr.bf16.mxu0 0
      %893 = vmatpush1.bf16.msra.mxu0 0
      %894 = vmatprep.subr.bf16.mxu0 0
      %895 = vmatpush1.bf16.msra.mxu0 0
      %896 = vmatprep.subr.bf16.mxu0 0
      %897 = vmatpush1.bf16.msra.mxu0 0
      %898 = vmatprep.subr.bf16.mxu0 0
      %899 = vmatpush1.bf16.msra.mxu0 0
      %900 = vmatprep.subr.bf16.mxu0 0
      %901 = vmatpush1.bf16.msra.mxu0 0
      %902 = vmatprep.subr.bf16.mxu0 0
      %903 = vmatpush1.bf16.msra.mxu0 0
      %904 = vmatprep.subr.bf16.mxu0 0
      %905 = vmatpush1.bf16.msra.mxu0 0
      %906 = vmatprep.subr.bf16.mxu0 0
      %907 = vmatpush1.bf16.msra.mxu0 %v890
      %908 = vmatprep.subr.bf16.mxu0 0
      %909 = vmatpush2.bf16.msra.mxu0 0
      %910 = vmatprep.subr.bf16.mxu0 0
      %911 = vmatpush2.bf16.msra.mxu0 0
      %912 = vmatprep.subr.bf16.mxu0 0
      %913 = vmatpush2.bf16.msra.mxu0 0
      %914 = vmatprep.subr.bf16.mxu0 0
      %915 = vmatpush2.bf16.msra.mxu0 0
      %916 = vmatprep.subr.bf16.mxu0 0
      %917 = vmatpush2.bf16.msra.mxu0 0
      %918 = vmatprep.subr.bf16.mxu0 0
      %919 = vmatpush2.bf16.msra.mxu0 0
      %920 = vmatprep.subr.bf16.mxu0 0
      %921 = vmatpush2.bf16.msra.mxu0 0
      %922 = vmatprep.subr.bf16.mxu0 0
      %923 = vmatpush2.bf16.msra.mxu0 0
      %924 = vmatprep.mubr.bf16.mxu0 0
      %925 = vmatmul.mubr.bf16.gmra.mxu0 %v445
      %v926 = vpop.f32.mrf.mxu0
      %v927 = vadd.f32 %v420, %v926
      %v928 = vpop.f32.mrf.mxu0
      %v929 = vpop.f32.mrf.mxu0
      %v930 = vadd.f32 %v420, %v929
      %v931 = vpop.f32.mrf.mxu0
      %932 = vdwg.mxu0
      %v933 = vmax.f32 %v927, 0.0
      %v934 = vmax.f32 %v930, 0.0
      %v935 = vpack.c.bf16 %v934, %v933
      %s936 = scalar_lea.vmem %s1, 12
      %v937 = vld [vmem:[%s936] sm:$0xf]
      %v939 = vsel %vm447, %v937, 0
      %941 = vmatprep.subr.bf16.mxu0 0
      %942 = vmatpush1.bf16.msra.mxu0 0
      %943 = vmatprep.subr.bf16.mxu0 0
      %944 = vmatpush1.bf16.msra.mxu0 0
      %945 = vmatprep.subr.bf16.mxu0 0
      %946 = vmatpush1.bf16.msra.mxu0 0
      %947 = vmatprep.subr.bf16.mxu0 0
      %948 = vmatpush1.bf16.msra.mxu0 0
      %949 = vmatprep.subr.bf16.mxu0 0
      %950 = vmatpush1.bf16.msra.mxu0 0
      %951 = vmatprep.subr.bf16.mxu0 0
      %952 = vmatpush1.bf16.msra.mxu0 0
      %953 = vmatprep.subr.bf16.mxu0 0
      %954 = vmatpush1.bf16.msra.mxu0 0
      %955 = vmatprep.subr.bf16.mxu0 0
      %956 = vmatpush1.bf16.msra.mxu0 %v939
      %957 = vmatprep.subr.bf16.mxu0 0
      %958 = vmatpush2.bf16.msra.mxu0 0
      %959 = vmatprep.subr.bf16.mxu0 0
      %960 = vmatpush2.bf16.msra.mxu0 0
      %961 = vmatprep.subr.bf16.mxu0 0
      %962 = vmatpush2.bf16.msra.mxu0 0
      %963 = vmatprep.subr.bf16.mxu0 0
      %964 = vmatpush2.bf16.msra.mxu0 0
      %965 = vmatprep.subr.bf16.mxu0 0
      %966 = vmatpush2.bf16.msra.mxu0 0
      %967 = vmatprep.subr.bf16.mxu0 0
      %968 = vmatpush2.bf16.msra.mxu0 0
      %969 = vmatprep.subr.bf16.mxu0 0
      %970 = vmatpush2.bf16.msra.mxu0 0
      %971 = vmatprep.subr.bf16.mxu0 0
      %972 = vmatpush2.bf16.msra.mxu0 0
      %973 = vmatprep.mubr.bf16.mxu0 0
      %974 = vmatmul.mubr.bf16.gmra.mxu0 %v445
      %v975 = vpop.f32.mrf.mxu0
      %v976 = vadd.f32 %v420, %v975
      %v977 = vpop.f32.mrf.mxu0
      %v978 = vpop.f32.mrf.mxu0
      %v979 = vadd.f32 %v420, %v978
      %v980 = vpop.f32.mrf.mxu0
      %981 = vdwg.mxu0
      %v982 = vmax.f32 %v976, 0.0
      %v983 = vmax.f32 %v979, 0.0
      %v984 = vpack.c.bf16 %v983, %v982
      %v986 = vcombine.high %v935, %v935
      %v988 = vunpack.c.l.s4 1966171168
      %v989 = vunpack.c.0.s8 %v988
      %v990 = vlaneseq
      %v991 = vshrl.u32 %v990, 7
      %v992 = vsub.s32 %v989, %v991
      %v993 = vrot.slane %v935, %v992
      %v995 = vunpack.c.l.s4 1966171168
      %v996 = vunpack.c.0.s8 %v995
      %v997 = vlaneseq
      %v998 = vshrl.u32 %v997, 7
      %v999 = vsub.s32 %v996, %v998
      %v1000 = vrot.slane %v986, %v999
      %v1001 = vcombine.high %v993, %v993
      %v1002 = vcombine.high %v1000, %v1000
      %v1004 = vunpack.c.l.s4 1966171168
      %v1005 = vunpack.c.0.s8 %v1004
      %v1006 = vlaneseq
      %v1007 = vshrl.u32 %v1006, 7
      %v1008 = vsub.s32 %v1005, %v1007
      %v1009 = vrot.slane %v993, %v1008
      %v1011 = vunpack.c.l.s4 1966171168
      %v1012 = vunpack.c.0.s8 %v1011
      %v1013 = vlaneseq
      %v1014 = vshrl.u32 %v1013, 7
      %v1015 = vsub.s32 %v1012, %v1014
      %v1016 = vrot.slane %v1000, %v1015
      %v1018 = vunpack.c.l.s4 1966171168
      %v1019 = vunpack.c.0.s8 %v1018
      %v1020 = vlaneseq
      %v1021 = vshrl.u32 %v1020, 7
      %v1022 = vsub.s32 %v1019, %v1021
      %v1023 = vrot.slane %v1001, %v1022
      %v1025 = vunpack.c.l.s4 1966171168
      %v1026 = vunpack.c.0.s8 %v1025
      %v1027 = vlaneseq
      %v1028 = vshrl.u32 %v1027, 7
      %v1029 = vsub.s32 %v1026, %v1028
      %v1030 = vrot.slane %v1002, %v1029
      %v1031 = vcombine.high %v1009, %v1009
      %v1032 = vcombine.high %v1016, %v1016
      %v1033 = vcombine.high %v1023, %v1023
      %v1034 = vcombine.high %v1030, %v1030
      %v1035 = vunpack.i.l.s16 %v1009
      %v1036 = vunpack.i.h.s16 %v1009
      %v1037 = vunpack.i.l.s16 %v1023
      %v1038 = vunpack.i.h.s16 %v1023
      %v1039 = vunpack.i.l.s16 %v1031
      %v1040 = vunpack.i.h.s16 %v1031
      %v1041 = vunpack.i.l.s16 %v1033
      %v1042 = vunpack.i.h.s16 %v1033
      %v1043 = vunpack.i.l.s16 %v1016
      %v1044 = vunpack.i.h.s16 %v1016
      %v1045 = vunpack.i.l.s16 %v1030
      %v1046 = vunpack.i.h.s16 %v1030
      %v1047 = vunpack.i.l.s16 %v1032
      %v1048 = vunpack.i.h.s16 %v1032
      %v1049 = vunpack.i.l.s16 %v1034
      %v1050 = vunpack.i.h.s16 %v1034
      %v1052 = vcombine.high %v984, %v984
      %v1054 = vunpack.c.l.s4 1966171168
      %v1055 = vunpack.c.0.s8 %v1054
      %v1056 = vlaneseq
      %v1057 = vshrl.u32 %v1056, 7
      %v1058 = vsub.s32 %v1055, %v1057
      %v1059 = vrot.slane %v984, %v1058
      %v1061 = vunpack.c.l.s4 1966171168
      %v1062 = vunpack.c.0.s8 %v1061
      %v1063 = vlaneseq
      %v1064 = vshrl.u32 %v1063, 7
      %v1065 = vsub.s32 %v1062, %v1064
      %v1066 = vrot.slane %v1052, %v1065
      %v1067 = vcombine.high %v1059, %v1059
      %v1068 = vcombine.high %v1066, %v1066
      %v1070 = vunpack.c.l.s4 1966171168
      %v1071 = vunpack.c.0.s8 %v1070
      %v1072 = vlaneseq
      %v1073 = vshrl.u32 %v1072, 7
      %v1074 = vsub.s32 %v1071, %v1073
      %v1075 = vrot.slane %v1059, %v1074
      %v1077 = vunpack.c.l.s4 1966171168
      %v1078 = vunpack.c.0.s8 %v1077
      %v1079 = vlaneseq
      %v1080 = vshrl.u32 %v1079, 7
      %v1081 = vsub.s32 %v1078, %v1080
      %v1082 = vrot.slane %v1066, %v1081
      %v1084 = vunpack.c.l.s4 1966171168
      %v1085 = vunpack.c.0.s8 %v1084
      %v1086 = vlaneseq
      %v1087 = vshrl.u32 %v1086, 7
      %v1088 = vsub.s32 %v1085, %v1087
      %v1089 = vrot.slane %v1067, %v1088
      %v1091 = vunpack.c.l.s4 1966171168
      %v1092 = vunpack.c.0.s8 %v1091
      %v1093 = vlaneseq
      %v1094 = vshrl.u32 %v1093, 7
      %v1095 = vsub.s32 %v1092, %v1094
      %v1096 = vrot.slane %v1068, %v1095
      %v1097 = vcombine.high %v1075, %v1075
      %v1098 = vcombine.high %v1082, %v1082
      %v1099 = vcombine.high %v1089, %v1089
      %v1100 = vcombine.high %v1096, %v1096
      %v1101 = vunpack.i.l.s16 %v1075
      %v1102 = vunpack.i.h.s16 %v1075
      %v1103 = vunpack.i.l.s16 %v1089
      %v1104 = vunpack.i.h.s16 %v1089
      %v1105 = vunpack.i.l.s16 %v1097
      %v1106 = vunpack.i.h.s16 %v1097
      %v1107 = vunpack.i.l.s16 %v1099
      %v1108 = vunpack.i.h.s16 %v1099
      %v1109 = vunpack.i.l.s16 %v1082
      %v1110 = vunpack.i.h.s16 %v1082
      %v1111 = vunpack.i.l.s16 %v1096
      %v1112 = vunpack.i.h.s16 %v1096
      %v1113 = vunpack.i.l.s16 %v1098
      %v1114 = vunpack.i.h.s16 %v1098
      %v1115 = vunpack.i.l.s16 %v1100
      %v1116 = vunpack.i.h.s16 %v1100
      %v1117 = vpack.i.b16 %v1035, %v1035
      %v1118 = vpack.i.b16 %v1036, %v1036
      %v1119 = vpack.i.b16 %v1037, %v1037
      %v1120 = vpack.i.b16 %v1038, %v1038
      %v1121 = vpack.i.b16 %v1039, %v1039
      %v1122 = vpack.i.b16 %v1040, %v1040
      %v1123 = vpack.i.b16 %v1041, %v1041
      %v1124 = vpack.i.b16 %v1042, %v1042
      %v1125 = vpack.i.b16 %v1043, %v1043
      %v1126 = vpack.i.b16 %v1044, %v1044
      %v1127 = vpack.i.b16 %v1045, %v1045
      %v1128 = vpack.i.b16 %v1046, %v1046
      %v1129 = vpack.i.b16 %v1047, %v1047
      %v1130 = vpack.i.b16 %v1048, %v1048
      %v1131 = vpack.i.b16 %v1049, %v1049
      %v1132 = vpack.i.b16 %v1050, %v1050
      %v1133 = vlaneseq
      %v1134 = vshrl.u32 %v1133, 7
      %v1135 = vsub.s32 0, %v1134
      %v1136 = vrot.slane %v1117, %v1135
      %v1137 = vlaneseq
      %v1138 = vshrl.u32 %v1137, 7
      %v1139 = vsub.s32 0, %v1138
      %v1140 = vrot.slane %v1118, %v1139
      %v1141 = vlaneseq
      %v1142 = vshrl.u32 %v1141, 7
      %v1143 = vsub.s32 0, %v1142
      %v1144 = vrot.slane %v1119, %v1143
      %v1145 = vlaneseq
      %v1146 = vshrl.u32 %v1145, 7
      %v1147 = vsub.s32 0, %v1146
      %v1148 = vrot.slane %v1120, %v1147
      %v1149 = vlaneseq
      %v1150 = vshrl.u32 %v1149, 7
      %v1151 = vsub.s32 0, %v1150
      %v1152 = vrot.slane %v1121, %v1151
      %v1153 = vlaneseq
      %v1154 = vshrl.u32 %v1153, 7
      %v1155 = vsub.s32 0, %v1154
      %v1156 = vrot.slane %v1122, %v1155
      %v1157 = vlaneseq
      %v1158 = vshrl.u32 %v1157, 7
      %v1159 = vsub.s32 0, %v1158
      %v1160 = vrot.slane %v1123, %v1159
      %v1161 = vlaneseq
      %v1162 = vshrl.u32 %v1161, 7
      %v1163 = vsub.s32 0, %v1162
      %v1164 = vrot.slane %v1124, %v1163
      %v1165 = vlaneseq
      %v1166 = vshrl.u32 %v1165, 7
      %v1167 = vsub.s32 0, %v1166
      %v1168 = vrot.slane %v1125, %v1167
      %v1169 = vlaneseq
      %v1170 = vshrl.u32 %v1169, 7
      %v1171 = vsub.s32 0, %v1170
      %v1172 = vrot.slane %v1126, %v1171
      %v1173 = vlaneseq
      %v1174 = vshrl.u32 %v1173, 7
      %v1175 = vsub.s32 0, %v1174
      %v1176 = vrot.slane %v1127, %v1175
      %v1177 = vlaneseq
      %v1178 = vshrl.u32 %v1177, 7
      %v1179 = vsub.s32 0, %v1178
      %v1180 = vrot.slane %v1128, %v1179
      %v1181 = vlaneseq
      %v1182 = vshrl.u32 %v1181, 7
      %v1183 = vsub.s32 0, %v1182
      %v1184 = vrot.slane %v1129, %v1183
      %v1185 = vlaneseq
      %v1186 = vshrl.u32 %v1185, 7
      %v1187 = vsub.s32 0, %v1186
      %v1188 = vrot.slane %v1130, %v1187
      %v1189 = vlaneseq
      %v1190 = vshrl.u32 %v1189, 7
      %v1191 = vsub.s32 0, %v1190
      %v1192 = vrot.slane %v1131, %v1191
      %v1193 = vlaneseq
      %v1194 = vshrl.u32 %v1193, 7
      %v1195 = vsub.s32 0, %v1194
      %v1196 = vrot.slane %v1132, %v1195
      %v1213 = vpack.i.b16 %v1101, %v1101
      %v1214 = vpack.i.b16 %v1102, %v1102
      %v1215 = vpack.i.b16 %v1103, %v1103
      %v1216 = vpack.i.b16 %v1104, %v1104
      %v1217 = vpack.i.b16 %v1105, %v1105
      %v1218 = vpack.i.b16 %v1106, %v1106
      %v1219 = vpack.i.b16 %v1107, %v1107
      %v1220 = vpack.i.b16 %v1108, %v1108
      %v1221 = vpack.i.b16 %v1109, %v1109
      %v1222 = vpack.i.b16 %v1110, %v1110
      %v1223 = vpack.i.b16 %v1111, %v1111
      %v1224 = vpack.i.b16 %v1112, %v1112
      %v1225 = vpack.i.b16 %v1113, %v1113
      %v1226 = vpack.i.b16 %v1114, %v1114
      %v1227 = vpack.i.b16 %v1115, %v1115
      %v1228 = vpack.i.b16 %v1116, %v1116
      %v1229 = vlaneseq
      %v1230 = vshrl.u32 %v1229, 7
      %v1231 = vsub.s32 0, %v1230
      %v1232 = vrot.slane %v1213, %v1231
      %v1233 = vlaneseq
      %v1234 = vshrl.u32 %v1233, 7
      %v1235 = vsub.s32 0, %v1234
      %v1236 = vrot.slane %v1214, %v1235
      %v1237 = vlaneseq
      %v1238 = vshrl.u32 %v1237, 7
      %v1239 = vsub.s32 0, %v1238
      %v1240 = vrot.slane %v1215, %v1239
      %v1241 = vlaneseq
      %v1242 = vshrl.u32 %v1241, 7
      %v1243 = vsub.s32 0, %v1242
      %v1244 = vrot.slane %v1216, %v1243
      %v1245 = vlaneseq
      %v1246 = vshrl.u32 %v1245, 7
      %v1247 = vsub.s32 0, %v1246
      %v1248 = vrot.slane %v1217, %v1247
      %v1249 = vlaneseq
      %v1250 = vshrl.u32 %v1249, 7
      %v1251 = vsub.s32 0, %v1250
      %v1252 = vrot.slane %v1218, %v1251
      %v1253 = vlaneseq
      %v1254 = vshrl.u32 %v1253, 7
      %v1255 = vsub.s32 0, %v1254
      %v1256 = vrot.slane %v1219, %v1255
      %v1257 = vlaneseq
      %v1258 = vshrl.u32 %v1257, 7
      %v1259 = vsub.s32 0, %v1258
      %v1260 = vrot.slane %v1220, %v1259
      %v1261 = vlaneseq
      %v1262 = vshrl.u32 %v1261, 7
      %v1263 = vsub.s32 0, %v1262
      %v1264 = vrot.slane %v1221, %v1263
      %v1265 = vlaneseq
      %v1266 = vshrl.u32 %v1265, 7
      %v1267 = vsub.s32 0, %v1266
      %v1268 = vrot.slane %v1222, %v1267
      %v1269 = vlaneseq
      %v1270 = vshrl.u32 %v1269, 7
      %v1271 = vsub.s32 0, %v1270
      %v1272 = vrot.slane %v1223, %v1271
      %v1273 = vlaneseq
      %v1274 = vshrl.u32 %v1273, 7
      %v1275 = vsub.s32 0, %v1274
      %v1276 = vrot.slane %v1224, %v1275
      %v1277 = vlaneseq
      %v1278 = vshrl.u32 %v1277, 7
      %v1279 = vsub.s32 0, %v1278
      %v1280 = vrot.slane %v1225, %v1279
      %v1281 = vlaneseq
      %v1282 = vshrl.u32 %v1281, 7
      %v1283 = vsub.s32 0, %v1282
      %v1284 = vrot.slane %v1226, %v1283
      %v1285 = vlaneseq
      %v1286 = vshrl.u32 %v1285, 7
      %v1287 = vsub.s32 0, %v1286
      %v1288 = vrot.slane %v1227, %v1287
      %v1289 = vlaneseq
      %v1290 = vshrl.u32 %v1289, 7
      %v1291 = vsub.s32 0, %v1290
      %v1292 = vrot.slane %v1228, %v1291
      %v1309 = vsel %vm870, %v1136, %v1232
      %v1310 = vsel %vm870, %v1140, %v1236
      %v1311 = vsel %vm870, %v1144, %v1240
      %v1312 = vsel %vm870, %v1148, %v1244
      %v1313 = vsel %vm870, %v1152, %v1248
      %v1314 = vsel %vm870, %v1156, %v1252
      %v1315 = vsel %vm870, %v1160, %v1256
      %v1316 = vsel %vm870, %v1164, %v1260
      %v1317 = vsel %vm870, %v1168, %v1264
      %v1318 = vsel %vm870, %v1172, %v1268
      %v1319 = vsel %vm870, %v1176, %v1272
      %v1320 = vsel %vm870, %v1180, %v1276
      %v1321 = vsel %vm870, %v1184, %v1280
      %v1322 = vsel %vm870, %v1188, %v1284
      %v1323 = vsel %vm870, %v1192, %v1288
      %v1324 = vsel %vm870, %v1196, %v1292
      %v1357 = vcombine.low %v871, %v873
      %v1358 = vcombine.low %v872, %v874
      %v1360 = vunpack.c.l.s4 1935823168
      %v1361 = vunpack.c.0.s8 %v1360
      %v1362 = vlaneseq
      %v1363 = vshrl.u32 %v1362, 7
      %v1364 = vsub.s32 %v1361, %v1363
      %v1365 = vrot.slane %v1357, %v1364
      %v1367 = vunpack.c.l.s4 1935823168
      %v1368 = vunpack.c.0.s8 %v1367
      %v1369 = vlaneseq
      %v1370 = vshrl.u32 %v1369, 7
      %v1371 = vsub.s32 %v1368, %v1370
      %v1372 = vrot.slane %v1358, %v1371
      %v1373 = vcombine.low %v1365, %v1372
      %v1375 = vunpack.c.l.s4 1935823168
      %v1376 = vunpack.c.0.s8 %v1375
      %v1377 = vlaneseq
      %v1378 = vshrl.u32 %v1377, 7
      %v1379 = vsub.s32 %v1376, %v1378
      %v1380 = vrot.slane %v1373, %v1379
      %v1381 = vcombine.low %v1309, %v1311
      %v1382 = vcombine.low %v1310, %v1312
      %v1384 = vunpack.c.l.s4 1935823168
      %v1385 = vunpack.c.0.s8 %v1384
      %v1386 = vlaneseq
      %v1387 = vshrl.u32 %v1386, 7
      %v1388 = vsub.s32 %v1385, %v1387
      %v1389 = vrot.slane %v1381, %v1388
      %v1391 = vunpack.c.l.s4 1935823168
      %v1392 = vunpack.c.0.s8 %v1391
      %v1393 = vlaneseq
      %v1394 = vshrl.u32 %v1393, 7
      %v1395 = vsub.s32 %v1392, %v1394
      %v1396 = vrot.slane %v1382, %v1395
      %v1397 = vcombine.low %v1389, %v1396
      %v1399 = vunpack.c.l.s4 1935823168
      %v1400 = vunpack.c.0.s8 %v1399
      %v1401 = vlaneseq
      %v1402 = vshrl.u32 %v1401, 7
      %v1403 = vsub.s32 %v1400, %v1402
      %v1404 = vrot.slane %v1397, %v1403
      %v1405 = vcombine.low %v875, %v877
      %v1406 = vcombine.low %v876, %v878
      %v1408 = vunpack.c.l.s4 1935823168
      %v1409 = vunpack.c.0.s8 %v1408
      %v1410 = vlaneseq
      %v1411 = vshrl.u32 %v1410, 7
      %v1412 = vsub.s32 %v1409, %v1411
      %v1413 = vrot.slane %v1405, %v1412
      %v1415 = vunpack.c.l.s4 1935823168
      %v1416 = vunpack.c.0.s8 %v1415
      %v1417 = vlaneseq
      %v1418 = vshrl.u32 %v1417, 7
      %v1419 = vsub.s32 %v1416, %v1418
      %v1420 = vrot.slane %v1406, %v1419
      %v1421 = vcombine.low %v1413, %v1420
      %v1423 = vunpack.c.l.s4 1935823168
      %v1424 = vunpack.c.0.s8 %v1423
      %v1425 = vlaneseq
      %v1426 = vshrl.u32 %v1425, 7
      %v1427 = vsub.s32 %v1424, %v1426
      %v1428 = vrot.slane %v1421, %v1427
      %v1429 = vcombine.low %v1313, %v1315
      %v1430 = vcombine.low %v1314, %v1316
      %v1432 = vunpack.c.l.s4 1935823168
      %v1433 = vunpack.c.0.s8 %v1432
      %v1434 = vlaneseq
      %v1435 = vshrl.u32 %v1434, 7
      %v1436 = vsub.s32 %v1433, %v1435
      %v1437 = vrot.slane %v1429, %v1436
      %v1439 = vunpack.c.l.s4 1935823168
      %v1440 = vunpack.c.0.s8 %v1439
      %v1441 = vlaneseq
      %v1442 = vshrl.u32 %v1441, 7
      %v1443 = vsub.s32 %v1440, %v1442
      %v1444 = vrot.slane %v1430, %v1443
      %v1445 = vcombine.low %v1437, %v1444
      %v1447 = vunpack.c.l.s4 1935823168
      %v1448 = vunpack.c.0.s8 %v1447
      %v1449 = vlaneseq
      %v1450 = vshrl.u32 %v1449, 7
      %v1451 = vsub.s32 %v1448, %v1450
      %v1452 = vrot.slane %v1445, %v1451
      %v1453 = vcombine.low %v879, %v881
      %v1454 = vcombine.low %v880, %v882
      %v1456 = vunpack.c.l.s4 1935823168
      %v1457 = vunpack.c.0.s8 %v1456
      %v1458 = vlaneseq
      %v1459 = vshrl.u32 %v1458, 7
      %v1460 = vsub.s32 %v1457, %v1459
      %v1461 = vrot.slane %v1453, %v1460
      %v1463 = vunpack.c.l.s4 1935823168
      %v1464 = vunpack.c.0.s8 %v1463
      %v1465 = vlaneseq
      %v1466 = vshrl.u32 %v1465, 7
      %v1467 = vsub.s32 %v1464, %v1466
      %v1468 = vrot.slane %v1454, %v1467
      %v1469 = vcombine.low %v1461, %v1468
      %v1471 = vunpack.c.l.s4 1935823168
      %v1472 = vunpack.c.0.s8 %v1471
      %v1473 = vlaneseq
      %v1474 = vshrl.u32 %v1473, 7
      %v1475 = vsub.s32 %v1472, %v1474
      %v1476 = vrot.slane %v1469, %v1475
      %v1477 = vcombine.low %v1317, %v1319
      %v1478 = vcombine.low %v1318, %v1320
      %v1480 = vunpack.c.l.s4 1935823168
      %v1481 = vunpack.c.0.s8 %v1480
      %v1482 = vlaneseq
      %v1483 = vshrl.u32 %v1482, 7
      %v1484 = vsub.s32 %v1481, %v1483
      %v1485 = vrot.slane %v1477, %v1484
      %v1487 = vunpack.c.l.s4 1935823168
      %v1488 = vunpack.c.0.s8 %v1487
      %v1489 = vlaneseq
      %v1490 = vshrl.u32 %v1489, 7
      %v1491 = vsub.s32 %v1488, %v1490
      %v1492 = vrot.slane %v1478, %v1491
      %v1493 = vcombine.low %v1485, %v1492
      %v1495 = vunpack.c.l.s4 1935823168
      %v1496 = vunpack.c.0.s8 %v1495
      %v1497 = vlaneseq
      %v1498 = vshrl.u32 %v1497, 7
      %v1499 = vsub.s32 %v1496, %v1498
      %v1500 = vrot.slane %v1493, %v1499
      %v1501 = vcombine.low %v883, %v885
      %v1502 = vcombine.low %v884, %v886
      %v1504 = vunpack.c.l.s4 1935823168
      %v1505 = vunpack.c.0.s8 %v1504
      %v1506 = vlaneseq
      %v1507 = vshrl.u32 %v1506, 7
      %v1508 = vsub.s32 %v1505, %v1507
      %v1509 = vrot.slane %v1501, %v1508
      %v1511 = vunpack.c.l.s4 1935823168
      %v1512 = vunpack.c.0.s8 %v1511
      %v1513 = vlaneseq
      %v1514 = vshrl.u32 %v1513, 7
      %v1515 = vsub.s32 %v1512, %v1514
      %v1516 = vrot.slane %v1502, %v1515
      %v1517 = vcombine.low %v1509, %v1516
      %v1519 = vunpack.c.l.s4 1935823168
      %v1520 = vunpack.c.0.s8 %v1519
      %v1521 = vlaneseq
      %v1522 = vshrl.u32 %v1521, 7
      %v1523 = vsub.s32 %v1520, %v1522
      %v1524 = vrot.slane %v1517, %v1523
      %v1525 = vcombine.low %v1321, %v1323
      %v1526 = vcombine.low %v1322, %v1324
      %v1528 = vunpack.c.l.s4 1935823168
      %v1529 = vunpack.c.0.s8 %v1528
      %v1530 = vlaneseq
      %v1531 = vshrl.u32 %v1530, 7
      %v1532 = vsub.s32 %v1529, %v1531
      %v1533 = vrot.slane %v1525, %v1532
      %v1535 = vunpack.c.l.s4 1935823168
      %v1536 = vunpack.c.0.s8 %v1535
      %v1537 = vlaneseq
      %v1538 = vshrl.u32 %v1537, 7
      %v1539 = vsub.s32 %v1536, %v1538
      %v1540 = vrot.slane %v1526, %v1539
      %v1541 = vcombine.low %v1533, %v1540
      %v1543 = vunpack.c.l.s4 1935823168
      %v1544 = vunpack.c.0.s8 %v1543
      %v1545 = vlaneseq
      %v1546 = vshrl.u32 %v1545, 7
      %v1547 = vsub.s32 %v1544, %v1546
      %v1548 = vrot.slane %v1541, %v1547
      %v1550 = vshrl.u32 %v1380, 16
      %v1552 = vrot.slane %v1550, 7
      %v1553 = vshll.u32 %v1380, 16
      %v1555 = vor.u32 %v1552, %v1553
      %v1556 = vrot.slane %v1552, 4
      %v1558 = vshrl.u32 %v1404, 16
      %v1560 = vrot.slane %v1558, 7
      %v1561 = vshll.u32 %v1404, 16
      %v1563 = vor.u32 %v1560, %v1561
      %v1564 = vrot.slane %v1560, 4
      %v1566 = vshrl.u32 %v1428, 16
      %v1568 = vrot.slane %v1566, 7
      %v1569 = vshll.u32 %v1428, 16
      %v1571 = vor.u32 %v1568, %v1569
      %v1572 = vrot.slane %v1568, 4
      %v1574 = vshrl.u32 %v1452, 16
      %v1576 = vrot.slane %v1574, 7
      %v1577 = vshll.u32 %v1452, 16
      %v1579 = vor.u32 %v1576, %v1577
      %v1580 = vrot.slane %v1576, 4
      %v1582 = vshrl.u32 %v1476, 16
      %v1584 = vrot.slane %v1582, 7
      %v1585 = vshll.u32 %v1476, 16
      %v1587 = vor.u32 %v1584, %v1585
      %v1588 = vrot.slane %v1584, 4
      %v1590 = vshrl.u32 %v1500, 16
      %v1592 = vrot.slane %v1590, 7
      %v1593 = vshll.u32 %v1500, 16
      %v1595 = vor.u32 %v1592, %v1593
      %v1596 = vrot.slane %v1592, 4
      %v1598 = vshrl.u32 %v1524, 16
      %v1600 = vrot.slane %v1598, 7
      %v1601 = vshll.u32 %v1524, 16
      %v1603 = vor.u32 %v1600, %v1601
      %v1604 = vrot.slane %v1600, 4
      %v1606 = vshrl.u32 %v1548, 16
      %v1608 = vrot.slane %v1606, 7
      %v1609 = vshll.u32 %v1548, 16
      %v1611 = vor.u32 %v1608, %v1609
      %v1612 = vrot.slane %v1608, 4
      %s1629 = scalar_lea.vmem [#allocation2], 8
      %vm1630 = vcmask 60416
      %vm1631 = vsmask.f32 7938
      %vm1632 = vmand %vm1630, %vm1631
      %v1633 = vld [vmem:[%s1629] sm:$0xf]
      %v1634 = vsel %vm1632, %v1555, %v1633
      %1635 = vst [vmem:[%s1629] sm:$0xf] %v1634
      %vm1636 = vcmask 57344
      %vm1637 = vmand %vm1636, %vm869
      %v1638 = vld [vmem:[%s1629 + $0x4] sm:$0x1]
      %v1639 = vsel %vm1637, %v1556, %v1638
      %1640 = vst [vmem:[%s1629 + $0x4] sm:$0x1] %v1639
      %v1641 = vld [vmem:[%s1629 + $0x8] sm:$0xf]
      %v1642 = vsel %vm1632, %v1563, %v1641
      %1643 = vst [vmem:[%s1629 + $0x8] sm:$0xf] %v1642
      %v1644 = vld [vmem:[%s1629 + $0xc] sm:$0x1]
      %v1645 = vsel %vm1637, %v1564, %v1644
      %1646 = vst [vmem:[%s1629 + $0xc] sm:$0x1] %v1645
      %v1647 = vld [vmem:[%s1629 + $0x10] sm:$0xf]
      %v1648 = vsel %vm1632, %v1571, %v1647
      %1649 = vst [vmem:[%s1629 + $0x10] sm:$0xf] %v1648
      %v1650 = vld [vmem:[%s1629 + $0x14] sm:$0x1]
      %v1651 = vsel %vm1637, %v1572, %v1650
      %1652 = vst [vmem:[%s1629 + $0x14] sm:$0x1] %v1651
      %v1653 = vld [vmem:[%s1629 + $0x18] sm:$0xf]
      %v1654 = vsel %vm1632, %v1579, %v1653
      %1655 = vst [vmem:[%s1629 + $0x18] sm:$0xf] %v1654
      %v1656 = vld [vmem:[%s1629 + $0x1c] sm:$0x1]
      %v1657 = vsel %vm1637, %v1580, %v1656
      %1658 = vst [vmem:[%s1629 + $0x1c] sm:$0x1] %v1657
      %v1659 = vld [vmem:[%s1629 + $0x20] sm:$0xf]
      %v1660 = vsel %vm1632, %v1587, %v1659
      %1661 = vst [vmem:[%s1629 + $0x20] sm:$0xf] %v1660
      %v1662 = vld [vmem:[%s1629 + $0x24] sm:$0x1]
      %v1663 = vsel %vm1637, %v1588, %v1662
      %1664 = vst [vmem:[%s1629 + $0x24] sm:$0x1] %v1663
      %v1665 = vld [vmem:[%s1629 + $0x28] sm:$0xf]
      %v1666 = vsel %vm1632, %v1595, %v1665
      %1667 = vst [vmem:[%s1629 + $0x28] sm:$0xf] %v1666
      %v1668 = vld [vmem:[%s1629 + $0x2c] sm:$0x1]
      %v1669 = vsel %vm1637, %v1596, %v1668
      %1670 = vst [vmem:[%s1629 + $0x2c] sm:$0x1] %v1669
      %v1671 = vld [vmem:[%s1629 + $0x30] sm:$0xf]
      %v1672 = vsel %vm1632, %v1603, %v1671
      %1673 = vst [vmem:[%s1629 + $0x30] sm:$0xf] %v1672
      %v1674 = vld [vmem:[%s1629 + $0x34] sm:$0x1]
      %v1675 = vsel %vm1637, %v1604, %v1674
      %1676 = vst [vmem:[%s1629 + $0x34] sm:$0x1] %v1675
      %v1677 = vld [vmem:[%s1629 + $0x38] sm:$0xf]
      %v1678 = vsel %vm1632, %v1611, %v1677
      %1679 = vst [vmem:[%s1629 + $0x38] sm:$0xf] %v1678
      %v1680 = vld [vmem:[%s1629 + $0x3c] sm:$0x1]
      %v1681 = vsel %vm1637, %v1612, %v1680
      %1682 = vst [vmem:[%s1629 + $0x3c] sm:$0x1] %v1681
      %v1683 = vld [vmem:[%s4] sm:$0x1]
      %v1685 = vlaneseq
      %v1686 = vshrl.u32 %v1685, 7
      %v1687 = vsub.s32 0, %v1686
      %v1688 = vrot.slane %v1683, %v1687
      %v1690 = vld [vmem:[#allocation2] sm:$0xf]
      %v1691 = vld [vmem:[#allocation2 + $0x8] sm:$0xf]
      %v1692 = vld [vmem:[#allocation2 + $0x10] sm:$0xf]
      %v1693 = vld [vmem:[#allocation2 + $0x18] sm:$0xf]
      %v1694 = vld [vmem:[#allocation2 + $0x20] sm:$0xf]
      %v1695 = vld [vmem:[#allocation2 + $0x28] sm:$0xf]
      %v1696 = vld [vmem:[#allocation2 + $0x30] sm:$0xf]
      %v1697 = vld [vmem:[#allocation2 + $0x38] sm:$0xf]
      %v1698 = vld [vmem:[%s3] sm:$0xf]
      %v1707 = vunpack.c.l.b16 %v1690
      %v1708 = vunpack.c.l.b16 %v1691
      %v1709 = vunpack.c.l.b16 %v1692
      %v1710 = vunpack.c.l.b16 %v1693
      %v1711 = vunpack.c.l.b16 %v1694
      %v1712 = vunpack.c.l.b16 %v1695
      %v1713 = vunpack.c.l.b16 %v1696
      %v1714 = vunpack.c.l.b16 %v1697
      %v1715 = vpack.c.b16 %v1708, %v1707
      %v1716 = vpack.c.b16 %v1710, %v1709
      %v1717 = vpack.c.b16 %v1712, %v1711
      %v1718 = vpack.c.b16 %v1714, %v1713
      %v1720 = vsel %vm443, %v1715, 0
      %v1723 = vsel %vm443, %v1716, 0
      %v1726 = vsel %vm443, %v1717, 0
      %v1729 = vsel %vm443, %v1718, 0
      %v1732 = vsel %vm447, %v1698, 0
      %1734 = vmatprep.subr.bf16.mxu0 0
      %1735 = vmatpush1.bf16.msra.mxu0 0
      %1736 = vmatprep.subr.bf16.mxu0 0
      %1737 = vmatpush1.bf16.msra.mxu0 0
      %1738 = vmatprep.subr.bf16.mxu0 0
      %1739 = vmatpush1.bf16.msra.mxu0 0
      %1740 = vmatprep.subr.bf16.mxu0 0
      %1741 = vmatpush1.bf16.msra.mxu0 0
      %1742 = vmatprep.subr.bf16.mxu0 0
      %1743 = vmatpush1.bf16.msra.mxu0 0
      %1744 = vmatprep.subr.bf16.mxu0 0
      %1745 = vmatpush1.bf16.msra.mxu0 0
      %1746 = vmatprep.subr.bf16.mxu0 0
      %1747 = vmatpush1.bf16.msra.mxu0 0
      %1748 = vmatprep.subr.bf16.mxu0 0
      %1749 = vmatpush1.bf16.msra.mxu0 %v1732
      %1750 = vmatprep.subr.bf16.mxu0 0
      %1751 = vmatpush2.bf16.msra.mxu0 0
      %1752 = vmatprep.subr.bf16.mxu0 0
      %1753 = vmatpush2.bf16.msra.mxu0 0
      %1754 = vmatprep.subr.bf16.mxu0 0
      %1755 = vmatpush2.bf16.msra.mxu0 0
      %1756 = vmatprep.subr.bf16.mxu0 0
      %1757 = vmatpush2.bf16.msra.mxu0 0
      %1758 = vmatprep.subr.bf16.mxu0 0
      %1759 = vmatpush2.bf16.msra.mxu0 0
      %1760 = vmatprep.subr.bf16.mxu0 0
      %1761 = vmatpush2.bf16.msra.mxu0 0
      %1762 = vmatprep.subr.bf16.mxu0 0
      %1763 = vmatpush2.bf16.msra.mxu0 0
      %1764 = vmatprep.subr.bf16.mxu0 0
      %1765 = vmatpush2.bf16.msra.mxu0 0
      %1766 = vmatprep.mubr.bf16.mxu0 0
      %1767 = vmatmul.mubr.bf16.gmra.mxu0 %v1720
      %v1768 = vpop.f32.mrf.mxu0
      %v1769 = vadd.f32 0.0, %v1768
      %v1770 = vpop.f32.mrf.mxu0
      %v1771 = vpop.f32.mrf.mxu0
      %v1772 = vadd.f32 0.0, %v1771
      %v1773 = vpop.f32.mrf.mxu0
      %1774 = vmatprep.mubr.bf16.mxu0 0
      %1775 = vmatmul.mubr.bf16.gmra.mxu0 %v1723
      %v1776 = vpop.f32.mrf.mxu0
      %v1777 = vadd.f32 0.0, %v1776
      %v1778 = vpop.f32.mrf.mxu0
      %v1779 = vpop.f32.mrf.mxu0
      %v1780 = vadd.f32 0.0, %v1779
      %v1781 = vpop.f32.mrf.mxu0
      %1782 = vmatprep.mubr.bf16.mxu0 0
      %1783 = vmatmul.mubr.bf16.gmra.mxu0 %v1726
      %v1784 = vpop.f32.mrf.mxu0
      %v1785 = vadd.f32 0.0, %v1784
      %v1786 = vpop.f32.mrf.mxu0
      %v1787 = vpop.f32.mrf.mxu0
      %v1788 = vadd.f32 0.0, %v1787
      %v1789 = vpop.f32.mrf.mxu0
      %1790 = vmatprep.mubr.bf16.mxu0 0
      %1791 = vmatmul.mubr.bf16.gmra.mxu0 %v1729
      %v1792 = vpop.f32.mrf.mxu0
      %v1793 = vadd.f32 0.0, %v1792
      %v1794 = vpop.f32.mrf.mxu0
      %v1795 = vpop.f32.mrf.mxu0
      %v1796 = vadd.f32 0.0, %v1795
      %v1797 = vpop.f32.mrf.mxu0
      %1798 = vdwg.mxu0
      %v1799 = vadd.f32 %v1688, %v1769
      %v1800 = vadd.f32 %v1688, %v1772
      %v1801 = vadd.f32 %v1688, %v1777
      %v1802 = vadd.f32 %v1688, %v1780
      %v1803 = vadd.f32 %v1688, %v1785
      %v1804 = vadd.f32 %v1688, %v1788
      %v1805 = vadd.f32 %v1688, %v1793
      %v1806 = vadd.f32 %v1688, %v1796
      %v1807 = vld [vmem:[#allocation2] sm:$0xf]
      %v1808 = vld [vmem:[#allocation2 + $0x4] sm:$0x1]
      %v1809 = vld [vmem:[#allocation2 + $0x8] sm:$0xf]
      %v1810 = vld [vmem:[#allocation2 + $0xc] sm:$0x1]
      %v1811 = vld [vmem:[#allocation2 + $0x10] sm:$0xf]
      %v1812 = vld [vmem:[#allocation2 + $0x14] sm:$0x1]
      %v1813 = vld [vmem:[#allocation2 + $0x18] sm:$0xf]
      %v1814 = vld [vmem:[#allocation2 + $0x1c] sm:$0x1]
      %v1815 = vld [vmem:[#allocation2 + $0x20] sm:$0xf]
      %v1816 = vld [vmem:[#allocation2 + $0x24] sm:$0x1]
      %v1817 = vld [vmem:[#allocation2 + $0x28] sm:$0xf]
      %v1818 = vld [vmem:[#allocation2 + $0x2c] sm:$0x1]
      %v1819 = vld [vmem:[#allocation2 + $0x30] sm:$0xf]
      %v1820 = vld [vmem:[#allocation2 + $0x34] sm:$0x1]
      %v1821 = vld [vmem:[#allocation2 + $0x38] sm:$0xf]
      %v1822 = vld [vmem:[#allocation2 + $0x3c] sm:$0x1]
      %vm1823 = vsmask.f32 3328
      %vm1824 = vsmask.f32 7440
      %vm1825 = vmor %vm1823, %vm1824
      %v1827 = vshrl.u32 %v1807, 16
      %v1829 = vrot.slane %v1827, 4
      %v1830 = vshll.u32 %v1807, 16
      %v1832 = vrot.slane %v1830, 5
      %v1833 = vor.u32 %v1829, %v1832
      %v1834 = vrot.slane %v1833, 4
      %v1836 = vshll.u32 %v1808, 16
      %v1838 = vrot.slane %v1836, 5
      %v1839 = vsel %vm1825, %v1834, %v1838
      %v1841 = vshrl.u32 %v1809, 16
      %v1843 = vrot.slane %v1841, 4
      %v1844 = vshll.u32 %v1809, 16
      %v1846 = vrot.slane %v1844, 5
      %v1847 = vor.u32 %v1843, %v1846
      %v1848 = vrot.slane %v1847, 4
      %v1850 = vshll.u32 %v1810, 16
      %v1852 = vrot.slane %v1850, 5
      %v1853 = vsel %vm1825, %v1848, %v1852
      %v1855 = vshrl.u32 %v1811, 16
      %v1857 = vrot.slane %v1855, 4
      %v1858 = vshll.u32 %v1811, 16
      %v1860 = vrot.slane %v1858, 5
      %v1861 = vor.u32 %v1857, %v1860
      %v1862 = vrot.slane %v1861, 4
      %v1864 = vshll.u32 %v1812, 16
      %v1866 = vrot.slane %v1864, 5
      %v1867 = vsel %vm1825, %v1862, %v1866
      %v1869 = vshrl.u32 %v1813, 16
      %v1871 = vrot.slane %v1869, 4
      %v1872 = vshll.u32 %v1813, 16
      %v1874 = vrot.slane %v1872, 5
      %v1875 = vor.u32 %v1871, %v1874
      %v1876 = vrot.slane %v1875, 4
      %v1878 = vshll.u32 %v1814, 16
      %v1880 = vrot.slane %v1878, 5
      %v1881 = vsel %vm1825, %v1876, %v1880
      %v1883 = vshrl.u32 %v1815, 16
      %v1885 = vrot.slane %v1883, 4
      %v1886 = vshll.u32 %v1815, 16
      %v1888 = vrot.slane %v1886, 5
      %v1889 = vor.u32 %v1885, %v1888
      %v1890 = vrot.slane %v1889, 4
      %v1892 = vshll.u32 %v1816, 16
      %v1894 = vrot.slane %v1892, 5
      %v1895 = vsel %vm1825, %v1890, %v1894
      %v1897 = vshrl.u32 %v1817, 16
      %v1899 = vrot.slane %v1897, 4
      %v1900 = vshll.u32 %v1817, 16
      %v1902 = vrot.slane %v1900, 5
      %v1903 = vor.u32 %v1899, %v1902
      %v1904 = vrot.slane %v1903, 4
      %v1906 = vshll.u32 %v1818, 16
      %v1908 = vrot.slane %v1906, 5
      %v1909 = vsel %vm1825, %v1904, %v1908
      %v1911 = vshrl.u32 %v1819, 16
      %v1913 = vrot.slane %v1911, 4
      %v1914 = vshll.u32 %v1819, 16
      %v1916 = vrot.slane %v1914, 5
      %v1917 = vor.u32 %v1913, %v1916
      %v1918 = vrot.slane %v1917, 4
      %v1920 = vshll.u32 %v1820, 16
      %v1922 = vrot.slane %v1920, 5
      %v1923 = vsel %vm1825, %v1918, %v1922
      %v1925 = vshrl.u32 %v1821, 16
      %v1927 = vrot.slane %v1925, 4
      %v1928 = vshll.u32 %v1821, 16
      %v1930 = vrot.slane %v1928, 5
      %v1931 = vor.u32 %v1927, %v1930
      %v1932 = vrot.slane %v1931, 4
      %v1934 = vshll.u32 %v1822, 16
      %v1936 = vrot.slane %v1934, 5
      %v1937 = vsel %vm1825, %v1932, %v1936
      %s1938 = scalar_lea.vmem %s3, 4
      %v1939 = vld [vmem:[%s1938] sm:$0xf]
      %v1940 = vunpack.c.l.b16 %v1839
      %v1941 = vunpack.c.l.b16 %v1853
      %v1942 = vunpack.c.l.b16 %v1867
      %v1943 = vunpack.c.l.b16 %v1881
      %v1944 = vunpack.c.l.b16 %v1895
      %v1945 = vunpack.c.l.b16 %v1909
      %v1946 = vunpack.c.l.b16 %v1923
      %v1947 = vunpack.c.l.b16 %v1937
      %v1948 = vpack.c.b16 %v1941, %v1940
      %v1949 = vpack.c.b16 %v1943, %v1942
      %v1950 = vpack.c.b16 %v1945, %v1944
      %v1951 = vpack.c.b16 %v1947, %v1946
      %v1953 = vsel %vm443, %v1948, 0
      %v1956 = vsel %vm443, %v1949, 0
      %v1959 = vsel %vm443, %v1950, 0
      %v1962 = vsel %vm443, %v1951, 0
      %v1965 = vsel %vm447, %v1939, 0
      %1967 = vmatprep.subr.bf16.mxu0 0
      %1968 = vmatpush1.bf16.msra.mxu0 0
      %1969 = vmatprep.subr.bf16.mxu0 0
      %1970 = vmatpush1.bf16.msra.mxu0 0
      %1971 = vmatprep.subr.bf16.mxu0 0
      %1972 = vmatpush1.bf16.msra.mxu0 0
      %1973 = vmatprep.subr.bf16.mxu0 0
      %1974 = vmatpush1.bf16.msra.mxu0 0
      %1975 = vmatprep.subr.bf16.mxu0 0
      %1976 = vmatpush1.bf16.msra.mxu0 0
      %1977 = vmatprep.subr.bf16.mxu0 0
      %1978 = vmatpush1.bf16.msra.mxu0 0
      %1979 = vmatprep.subr.bf16.mxu0 0
      %1980 = vmatpush1.bf16.msra.mxu0 0
      %1981 = vmatprep.subr.bf16.mxu0 0
      %1982 = vmatpush1.bf16.msra.mxu0 %v1965
      %1983 = vmatprep.subr.bf16.mxu0 0
      %1984 = vmatpush2.bf16.msra.mxu0 0
      %1985 = vmatprep.subr.bf16.mxu0 0
      %1986 = vmatpush2.bf16.msra.mxu0 0
      %1987 = vmatprep.subr.bf16.mxu0 0
      %1988 = vmatpush2.bf16.msra.mxu0 0
      %1989 = vmatprep.subr.bf16.mxu0 0
      %1990 = vmatpush2.bf16.msra.mxu0 0
      %1991 = vmatprep.subr.bf16.mxu0 0
      %1992 = vmatpush2.bf16.msra.mxu0 0
      %1993 = vmatprep.subr.bf16.mxu0 0
      %1994 = vmatpush2.bf16.msra.mxu0 0
      %1995 = vmatprep.subr.bf16.mxu0 0
      %1996 = vmatpush2.bf16.msra.mxu0 0
      %1997 = vmatprep.subr.bf16.mxu0 0
      %1998 = vmatpush2.bf16.msra.mxu0 0
      %1999 = vmatprep.mubr.bf16.mxu0 0
      %2000 = vmatmul.mubr.bf16.gmra.mxu0 %v1953
      %v2001 = vpop.f32.mrf.mxu0
      %v2002 = vadd.f32 0.0, %v2001
      %v2003 = vpop.f32.mrf.mxu0
      %v2004 = vpop.f32.mrf.mxu0
      %v2005 = vadd.f32 0.0, %v2004
      %v2006 = vpop.f32.mrf.mxu0
      %2007 = vmatprep.mubr.bf16.mxu0 0
      %2008 = vmatmul.mubr.bf16.gmra.mxu0 %v1956
      %v2009 = vpop.f32.mrf.mxu0
      %v2010 = vadd.f32 0.0, %v2009
      %v2011 = vpop.f32.mrf.mxu0
      %v2012 = vpop.f32.mrf.mxu0
      %v2013 = vadd.f32 0.0, %v2012
      %v2014 = vpop.f32.mrf.mxu0
      %2015 = vmatprep.mubr.bf16.mxu0 0
      %2016 = vmatmul.mubr.bf16.gmra.mxu0 %v1959
      %v2017 = vpop.f32.mrf.mxu0
      %v2018 = vadd.f32 0.0, %v2017
      %v2019 = vpop.f32.mrf.mxu0
      %v2020 = vpop.f32.mrf.mxu0
      %v2021 = vadd.f32 0.0, %v2020
      %v2022 = vpop.f32.mrf.mxu0
      %2023 = vmatprep.mubr.bf16.mxu0 0
      %2024 = vmatmul.mubr.bf16.gmra.mxu0 %v1962
      %v2025 = vpop.f32.mrf.mxu0
      %v2026 = vadd.f32 0.0, %v2025
      %v2027 = vpop.f32.mrf.mxu0
      %v2028 = vpop.f32.mrf.mxu0
      %v2029 = vadd.f32 0.0, %v2028
      %v2030 = vpop.f32.mrf.mxu0
      %2031 = vdwg.mxu0
      %v2032 = vadd.f32 %v1799, %v2002
      %v2033 = vadd.f32 %v1800, %v2005
      %v2034 = vadd.f32 %v1801, %v2010
      %v2035 = vadd.f32 %v1802, %v2013
      %v2036 = vadd.f32 %v1803, %v2018
      %v2037 = vadd.f32 %v1804, %v2021
      %v2038 = vadd.f32 %v1805, %v2026
      %v2039 = vadd.f32 %v1806, %v2029
      %v2040 = vld [vmem:[#allocation2] sm:$0xe]
      %v2041 = vld [vmem:[#allocation2 + $0x8] sm:$0xe]
      %v2042 = vld [vmem:[#allocation2 + $0x10] sm:$0xe]
      %v2043 = vld [vmem:[#allocation2 + $0x18] sm:$0xe]
      %v2044 = vld [vmem:[#allocation2 + $0x20] sm:$0xe]
      %v2045 = vld [vmem:[#allocation2 + $0x28] sm:$0xe]
      %v2046 = vld [vmem:[#allocation2 + $0x30] sm:$0xe]
      %v2047 = vld [vmem:[#allocation2 + $0x38] sm:$0xe]
      %vm2064 = vcmask 1042432
      %vm2065 = vcmask 1046532
      %vm2066 = vmor %vm2064, %vm2065
      %v2067 = vrot.slane %v2040, 5
      %v2068 = vrot.slane %v2067, 4
      %v2069 = vrot.slane %v1808, 5
      %v2070 = vsel %vm2066, %v2068, %v2069
      %v2071 = vrot.slane %v2041, 5
      %v2072 = vrot.slane %v2071, 4
      %v2073 = vrot.slane %v1810, 5
      %v2074 = vsel %vm2066, %v2072, %v2073
      %v2075 = vrot.slane %v2042, 5
      %v2076 = vrot.slane %v2075, 4
      %v2077 = vrot.slane %v1812, 5
      %v2078 = vsel %vm2066, %v2076, %v2077
      %v2079 = vrot.slane %v2043, 5
      %v2080 = vrot.slane %v2079, 4
      %v2081 = vrot.slane %v1814, 5
      %v2082 = vsel %vm2066, %v2080, %v2081
      %v2083 = vrot.slane %v2044, 5
      %v2084 = vrot.slane %v2083, 4
      %v2085 = vrot.slane %v1816, 5
      %v2086 = vsel %vm2066, %v2084, %v2085
      %v2087 = vrot.slane %v2045, 5
      %v2088 = vrot.slane %v2087, 4
      %v2089 = vrot.slane %v1818, 5
      %v2090 = vsel %vm2066, %v2088, %v2089
      %v2091 = vrot.slane %v2046, 5
      %v2092 = vrot.slane %v2091, 4
      %v2093 = vrot.slane %v1820, 5
      %v2094 = vsel %vm2066, %v2092, %v2093
      %v2095 = vrot.slane %v2047, 5
      %v2096 = vrot.slane %v2095, 4
      %v2097 = vrot.slane %v1822, 5
      %v2098 = vsel %vm2066, %v2096, %v2097
      %s2099 = scalar_lea.vmem %s3, 8
      %v2100 = vld [vmem:[%s2099] sm:$0xf]
      %v2101 = vunpack.c.l.b16 %v2070
      %v2102 = vunpack.c.l.b16 %v2074
      %v2103 = vunpack.c.l.b16 %v2078
      %v2104 = vunpack.c.l.b16 %v2082
      %v2105 = vunpack.c.l.b16 %v2086
      %v2106 = vunpack.c.l.b16 %v2090
      %v2107 = vunpack.c.l.b16 %v2094
      %v2108 = vunpack.c.l.b16 %v2098
      %v2109 = vpack.c.b16 %v2102, %v2101
      %v2110 = vpack.c.b16 %v2104, %v2103
      %v2111 = vpack.c.b16 %v2106, %v2105
      %v2112 = vpack.c.b16 %v2108, %v2107
      %v2114 = vsel %vm443, %v2109, 0
      %v2117 = vsel %vm443, %v2110, 0
      %v2120 = vsel %vm443, %v2111, 0
      %v2123 = vsel %vm443, %v2112, 0
      %v2126 = vsel %vm447, %v2100, 0
      %2128 = vmatprep.subr.bf16.mxu0 0
      %2129 = vmatpush1.bf16.msra.mxu0 0
      %2130 = vmatprep.subr.bf16.mxu0 0
      %2131 = vmatpush1.bf16.msra.mxu0 0
      %2132 = vmatprep.subr.bf16.mxu0 0
      %2133 = vmatpush1.bf16.msra.mxu0 0
      %2134 = vmatprep.subr.bf16.mxu0 0
      %2135 = vmatpush1.bf16.msra.mxu0 0
      %2136 = vmatprep.subr.bf16.mxu0 0
      %2137 = vmatpush1.bf16.msra.mxu0 0
      %2138 = vmatprep.subr.bf16.mxu0 0
      %2139 = vmatpush1.bf16.msra.mxu0 0
      %2140 = vmatprep.subr.bf16.mxu0 0
      %2141 = vmatpush1.bf16.msra.mxu0 0
      %2142 = vmatprep.subr.bf16.mxu0 0
      %2143 = vmatpush1.bf16.msra.mxu0 %v2126
      %2144 = vmatprep.subr.bf16.mxu0 0
      %2145 = vmatpush2.bf16.msra.mxu0 0
      %2146 = vmatprep.subr.bf16.mxu0 0
      %2147 = vmatpush2.bf16.msra.mxu0 0
      %2148 = vmatprep.subr.bf16.mxu0 0
      %2149 = vmatpush2.bf16.msra.mxu0 0
      %2150 = vmatprep.subr.bf16.mxu0 0
      %2151 = vmatpush2.bf16.msra.mxu0 0
      %2152 = vmatprep.subr.bf16.mxu0 0
      %2153 = vmatpush2.bf16.msra.mxu0 0
      %2154 = vmatprep.subr.bf16.mxu0 0
      %2155 = vmatpush2.bf16.msra.mxu0 0
      %2156 = vmatprep.subr.bf16.mxu0 0
      %2157 = vmatpush2.bf16.msra.mxu0 0
      %2158 = vmatprep.subr.bf16.mxu0 0
      %2159 = vmatpush2.bf16.msra.mxu0 0
      %2160 = vmatprep.mubr.bf16.mxu0 0
      %2161 = vmatmul.mubr.bf16.gmra.mxu0 %v2114
      %v2162 = vpop.f32.mrf.mxu0
      %v2163 = vadd.f32 0.0, %v2162
      %v2164 = vpop.f32.mrf.mxu0
      %v2165 = vpop.f32.mrf.mxu0
      %v2166 = vadd.f32 0.0, %v2165
      %v2167 = vpop.f32.mrf.mxu0
      %2168 = vmatprep.mubr.bf16.mxu0 0
      %2169 = vmatmul.mubr.bf16.gmra.mxu0 %v2117
      %v2170 = vpop.f32.mrf.mxu0
      %v2171 = vadd.f32 0.0, %v2170
      %v2172 = vpop.f32.mrf.mxu0
      %v2173 = vpop.f32.mrf.mxu0
      %v2174 = vadd.f32 0.0, %v2173
      %v2175 = vpop.f32.mrf.mxu0
      %2176 = vmatprep.mubr.bf16.mxu0 0
      %2177 = vmatmul.mubr.bf16.gmra.mxu0 %v2120
      %v2178 = vpop.f32.mrf.mxu0
      %v2179 = vadd.f32 0.0, %v2178
      %v2180 = vpop.f32.mrf.mxu0
      %v2181 = vpop.f32.mrf.mxu0
      %v2182 = vadd.f32 0.0, %v2181
      %v2183 = vpop.f32.mrf.mxu0
      %2184 = vmatprep.mubr.bf16.mxu0 0
      %2185 = vmatmul.mubr.bf16.gmra.mxu0 %v2123
      %v2186 = vpop.f32.mrf.mxu0
      %v2187 = vadd.f32 0.0, %v2186
      %v2188 = vpop.f32.mrf.mxu0
      %v2189 = vpop.f32.mrf.mxu0
      %v2190 = vadd.f32 0.0, %v2189
      %v2191 = vpop.f32.mrf.mxu0
      %2192 = vdwg.mxu0
      %v2193 = vadd.f32 %v2032, %v2163
      %v2194 = vadd.f32 %v2033, %v2166
      %v2195 = vadd.f32 %v2034, %v2171
      %v2196 = vadd.f32 %v2035, %v2174
      %v2197 = vadd.f32 %v2036, %v2179
      %v2198 = vadd.f32 %v2037, %v2182
      %v2199 = vadd.f32 %v2038, %v2187
      %v2200 = vadd.f32 %v2039, %v2190
      %v2201 = vld [vmem:[%s1629] sm:$0xf]
      %v2202 = vld [vmem:[%s1629 + $0x8] sm:$0xf]
      %v2203 = vld [vmem:[%s1629 + $0x10] sm:$0xf]
      %v2204 = vld [vmem:[%s1629 + $0x18] sm:$0xf]
      %v2205 = vld [vmem:[%s1629 + $0x20] sm:$0xf]
      %v2206 = vld [vmem:[%s1629 + $0x28] sm:$0xf]
      %v2207 = vld [vmem:[%s1629 + $0x30] sm:$0xf]
      %v2208 = vld [vmem:[%s1629 + $0x38] sm:$0xf]
      %s2209 = scalar_lea.vmem %s3, 12
      %v2210 = vld [vmem:[%s2209] sm:$0xf]
      %v2219 = vunpack.c.l.b16 %v2201
      %v2220 = vunpack.c.l.b16 %v2202
      %v2221 = vunpack.c.l.b16 %v2203
      %v2222 = vunpack.c.l.b16 %v2204
      %v2223 = vunpack.c.l.b16 %v2205
      %v2224 = vunpack.c.l.b16 %v2206
      %v2225 = vunpack.c.l.b16 %v2207
      %v2226 = vunpack.c.l.b16 %v2208
      %v2227 = vpack.c.b16 %v2220, %v2219
      %v2228 = vpack.c.b16 %v2222, %v2221
      %v2229 = vpack.c.b16 %v2224, %v2223
      %v2230 = vpack.c.b16 %v2226, %v2225
      %v2232 = vsel %vm443, %v2227, 0
      %v2235 = vsel %vm443, %v2228, 0
      %v2238 = vsel %vm443, %v2229, 0
      %v2241 = vsel %vm443, %v2230, 0
      %v2244 = vsel %vm447, %v2210, 0
      %2246 = vmatprep.subr.bf16.mxu0 0
      %2247 = vmatpush1.bf16.msra.mxu0 0
      %2248 = vmatprep.subr.bf16.mxu0 0
      %2249 = vmatpush1.bf16.msra.mxu0 0
      %2250 = vmatprep.subr.bf16.mxu0 0
      %2251 = vmatpush1.bf16.msra.mxu0 0
      %2252 = vmatprep.subr.bf16.mxu0 0
      %2253 = vmatpush1.bf16.msra.mxu0 0
      %2254 = vmatprep.subr.bf16.mxu0 0
      %2255 = vmatpush1.bf16.msra.mxu0 0
      %2256 = vmatprep.subr.bf16.mxu0 0
      %2257 = vmatpush1.bf16.msra.mxu0 0
      %2258 = vmatprep.subr.bf16.mxu0 0
      %2259 = vmatpush1.bf16.msra.mxu0 0
      %2260 = vmatprep.subr.bf16.mxu0 0
      %2261 = vmatpush1.bf16.msra.mxu0 %v2244
      %2262 = vmatprep.subr.bf16.mxu0 0
      %2263 = vmatpush2.bf16.msra.mxu0 0
      %2264 = vmatprep.subr.bf16.mxu0 0
      %2265 = vmatpush2.bf16.msra.mxu0 0
      %2266 = vmatprep.subr.bf16.mxu0 0
      %2267 = vmatpush2.bf16.msra.mxu0 0
      %2268 = vmatprep.subr.bf16.mxu0 0
      %2269 = vmatpush2.bf16.msra.mxu0 0
      %2270 = vmatprep.subr.bf16.mxu0 0
      %2271 = vmatpush2.bf16.msra.mxu0 0
      %2272 = vmatprep.subr.bf16.mxu0 0
      %2273 = vmatpush2.bf16.msra.mxu0 0
      %2274 = vmatprep.subr.bf16.mxu0 0
      %2275 = vmatpush2.bf16.msra.mxu0 0
      %2276 = vmatprep.subr.bf16.mxu0 0
      %2277 = vmatpush2.bf16.msra.mxu0 0
      %2278 = vmatprep.mubr.bf16.mxu0 0
      %2279 = vmatmul.mubr.bf16.gmra.mxu0 %v2232
      %v2280 = vpop.f32.mrf.mxu0
      %v2281 = vadd.f32 0.0, %v2280
      %v2282 = vpop.f32.mrf.mxu0
      %v2283 = vpop.f32.mrf.mxu0
      %v2284 = vadd.f32 0.0, %v2283
      %v2285 = vpop.f32.mrf.mxu0
      %2286 = vmatprep.mubr.bf16.mxu0 0
      %2287 = vmatmul.mubr.bf16.gmra.mxu0 %v2235
      %v2288 = vpop.f32.mrf.mxu0
      %v2289 = vadd.f32 0.0, %v2288
      %v2290 = vpop.f32.mrf.mxu0
      %v2291 = vpop.f32.mrf.mxu0
      %v2292 = vadd.f32 0.0, %v2291
      %v2293 = vpop.f32.mrf.mxu0
      %2294 = vmatprep.mubr.bf16.mxu0 0
      %2295 = vmatmul.mubr.bf16.gmra.mxu0 %v2238
      %v2296 = vpop.f32.mrf.mxu0
      %v2297 = vadd.f32 0.0, %v2296
      %v2298 = vpop.f32.mrf.mxu0
      %v2299 = vpop.f32.mrf.mxu0
      %v2300 = vadd.f32 0.0, %v2299
      %v2301 = vpop.f32.mrf.mxu0
      %2302 = vmatprep.mubr.bf16.mxu0 0
      %2303 = vmatmul.mubr.bf16.gmra.mxu0 %v2241
      %v2304 = vpop.f32.mrf.mxu0
      %v2305 = vadd.f32 0.0, %v2304
      %v2306 = vpop.f32.mrf.mxu0
      %v2307 = vpop.f32.mrf.mxu0
      %v2308 = vadd.f32 0.0, %v2307
      %v2309 = vpop.f32.mrf.mxu0
      %2310 = vdwg.mxu0
      %v2311 = vadd.f32 %v2193, %v2281
      %v2312 = vadd.f32 %v2194, %v2284
      %v2313 = vadd.f32 %v2195, %v2289
      %v2314 = vadd.f32 %v2196, %v2292
      %v2315 = vadd.f32 %v2197, %v2297
      %v2316 = vadd.f32 %v2198, %v2300
      %v2317 = vadd.f32 %v2199, %v2305
      %v2318 = vadd.f32 %v2200, %v2308
      %v2319 = vld [vmem:[%s1629] sm:$0xf]
      %v2320 = vld [vmem:[%s1629 + $0x4] sm:$0x1]
      %v2321 = vld [vmem:[%s1629 + $0x8] sm:$0xf]
      %v2322 = vld [vmem:[%s1629 + $0xc] sm:$0x1]
      %v2323 = vld [vmem:[%s1629 + $0x10] sm:$0xf]
      %v2324 = vld [vmem:[%s1629 + $0x14] sm:$0x1]
      %v2325 = vld [vmem:[%s1629 + $0x18] sm:$0xf]
      %v2326 = vld [vmem:[%s1629 + $0x1c] sm:$0x1]
      %v2327 = vld [vmem:[%s1629 + $0x20] sm:$0xf]
      %v2328 = vld [vmem:[%s1629 + $0x24] sm:$0x1]
      %v2329 = vld [vmem:[%s1629 + $0x28] sm:$0xf]
      %v2330 = vld [vmem:[%s1629 + $0x2c] sm:$0x1]
      %v2331 = vld [vmem:[%s1629 + $0x30] sm:$0xf]
      %v2332 = vld [vmem:[%s1629 + $0x34] sm:$0x1]
      %v2333 = vld [vmem:[%s1629 + $0x38] sm:$0xf]
      %v2334 = vld [vmem:[%s1629 + $0x3c] sm:$0x1]
      %v2336 = vshrl.u32 %v2319, 16
      %v2338 = vrot.slane %v2336, 4
      %v2339 = vshll.u32 %v2319, 16
      %v2341 = vrot.slane %v2339, 5
      %v2342 = vor.u32 %v2338, %v2341
      %v2343 = vrot.slane %v2342, 4
      %v2345 = vshll.u32 %v2320, 16
      %v2347 = vrot.slane %v2345, 5
      %v2348 = vsel %vm1825, %v2343, %v2347
      %v2350 = vshrl.u32 %v2321, 16
      %v2352 = vrot.slane %v2350, 4
      %v2353 = vshll.u32 %v2321, 16
      %v2355 = vrot.slane %v2353, 5
      %v2356 = vor.u32 %v2352, %v2355
      %v2357 = vrot.slane %v2356, 4
      %v2359 = vshll.u32 %v2322, 16
      %v2361 = vrot.slane %v2359, 5
      %v2362 = vsel %vm1825, %v2357, %v2361
      %v2364 = vshrl.u32 %v2323, 16
      %v2366 = vrot.slane %v2364, 4
      %v2367 = vshll.u32 %v2323, 16
      %v2369 = vrot.slane %v2367, 5
      %v2370 = vor.u32 %v2366, %v2369
      %v2371 = vrot.slane %v2370, 4
      %v2373 = vshll.u32 %v2324, 16
      %v2375 = vrot.slane %v2373, 5
      %v2376 = vsel %vm1825, %v2371, %v2375
      %v2378 = vshrl.u32 %v2325, 16
      %v2380 = vrot.slane %v2378, 4
      %v2381 = vshll.u32 %v2325, 16
      %v2383 = vrot.slane %v2381, 5
      %v2384 = vor.u32 %v2380, %v2383
      %v2385 = vrot.slane %v2384, 4
      %v2387 = vshll.u32 %v2326, 16
      %v2389 = vrot.slane %v2387, 5
      %v2390 = vsel %vm1825, %v2385, %v2389
      %v2392 = vshrl.u32 %v2327, 16
      %v2394 = vrot.slane %v2392, 4
      %v2395 = vshll.u32 %v2327, 16
      %v2397 = vrot.slane %v2395, 5
      %v2398 = vor.u32 %v2394, %v2397
      %v2399 = vrot.slane %v2398, 4
      %v2401 = vshll.u32 %v2328, 16
      %v2403 = vrot.slane %v2401, 5
      %v2404 = vsel %vm1825, %v2399, %v2403
      %v2406 = vshrl.u32 %v2329, 16
      %v2408 = vrot.slane %v2406, 4
      %v2409 = vshll.u32 %v2329, 16
      %v2411 = vrot.slane %v2409, 5
      %v2412 = vor.u32 %v2408, %v2411
      %v2413 = vrot.slane %v2412, 4
      %v2415 = vshll.u32 %v2330, 16
      %v2417 = vrot.slane %v2415, 5
      %v2418 = vsel %vm1825, %v2413, %v2417
      %v2420 = vshrl.u32 %v2331, 16
      %v2422 = vrot.slane %v2420, 4
      %v2423 = vshll.u32 %v2331, 16
      %v2425 = vrot.slane %v2423, 5
      %v2426 = vor.u32 %v2422, %v2425
      %v2427 = vrot.slane %v2426, 4
      %v2429 = vshll.u32 %v2332, 16
      %v2431 = vrot.slane %v2429, 5
      %v2432 = vsel %vm1825, %v2427, %v2431
      %v2434 = vshrl.u32 %v2333, 16
      %v2436 = vrot.slane %v2434, 4
      %v2437 = vshll.u32 %v2333, 16
      %v2439 = vrot.slane %v2437, 5
      %v2440 = vor.u32 %v2436, %v2439
      %v2441 = vrot.slane %v2440, 4
      %v2443 = vshll.u32 %v2334, 16
      %v2445 = vrot.slane %v2443, 5
      %v2446 = vsel %vm1825, %v2441, %v2445
      %s2447 = scalar_lea.vmem %s3, 16
      %v2448 = vld [vmem:[%s2447] sm:$0xf]
      %v2449 = vunpack.c.l.b16 %v2348
      %v2450 = vunpack.c.l.b16 %v2362
      %v2451 = vunpack.c.l.b16 %v2376
      %v2452 = vunpack.c.l.b16 %v2390
      %v2453 = vunpack.c.l.b16 %v2404
      %v2454 = vunpack.c.l.b16 %v2418
      %v2455 = vunpack.c.l.b16 %v2432
      %v2456 = vunpack.c.l.b16 %v2446
      %v2457 = vpack.c.b16 %v2450, %v2449
      %v2458 = vpack.c.b16 %v2452, %v2451
      %v2459 = vpack.c.b16 %v2454, %v2453
      %v2460 = vpack.c.b16 %v2456, %v2455
      %v2462 = vsel %vm443, %v2457, 0
      %v2465 = vsel %vm443, %v2458, 0
      %v2468 = vsel %vm443, %v2459, 0
      %v2471 = vsel %vm443, %v2460, 0
      %v2474 = vsel %vm447, %v2448, 0
      %2476 = vmatprep.subr.bf16.mxu0 0
      %2477 = vmatpush1.bf16.msra.mxu0 0
      %2478 = vmatprep.subr.bf16.mxu0 0
      %2479 = vmatpush1.bf16.msra.mxu0 0
      %2480 = vmatprep.subr.bf16.mxu0 0
      %2481 = vmatpush1.bf16.msra.mxu0 0
      %2482 = vmatprep.subr.bf16.mxu0 0
      %2483 = vmatpush1.bf16.msra.mxu0 0
      %2484 = vmatprep.subr.bf16.mxu0 0
      %2485 = vmatpush1.bf16.msra.mxu0 0
      %2486 = vmatprep.subr.bf16.mxu0 0
      %2487 = vmatpush1.bf16.msra.mxu0 0
      %2488 = vmatprep.subr.bf16.mxu0 0
      %2489 = vmatpush1.bf16.msra.mxu0 0
      %2490 = vmatprep.subr.bf16.mxu0 0
      %2491 = vmatpush1.bf16.msra.mxu0 %v2474
      %2492 = vmatprep.subr.bf16.mxu0 0
      %2493 = vmatpush2.bf16.msra.mxu0 0
      %2494 = vmatprep.subr.bf16.mxu0 0
      %2495 = vmatpush2.bf16.msra.mxu0 0
      %2496 = vmatprep.subr.bf16.mxu0 0
      %2497 = vmatpush2.bf16.msra.mxu0 0
      %2498 = vmatprep.subr.bf16.mxu0 0
      %2499 = vmatpush2.bf16.msra.mxu0 0
      %2500 = vmatprep.subr.bf16.mxu0 0
      %2501 = vmatpush2.bf16.msra.mxu0 0
      %2502 = vmatprep.subr.bf16.mxu0 0
      %2503 = vmatpush2.bf16.msra.mxu0 0
      %2504 = vmatprep.subr.bf16.mxu0 0
      %2505 = vmatpush2.bf16.msra.mxu0 0
      %2506 = vmatprep.subr.bf16.mxu0 0
      %2507 = vmatpush2.bf16.msra.mxu0 0
      %2508 = vmatprep.mubr.bf16.mxu0 0
      %2509 = vmatmul.mubr.bf16.gmra.mxu0 %v2462
      %v2510 = vpop.f32.mrf.mxu0
      %v2511 = vadd.f32 0.0, %v2510
      %v2512 = vpop.f32.mrf.mxu0
      %v2513 = vpop.f32.mrf.mxu0
      %v2514 = vadd.f32 0.0, %v2513
      %v2515 = vpop.f32.mrf.mxu0
      %2516 = vmatprep.mubr.bf16.mxu0 0
      %2517 = vmatmul.mubr.bf16.gmra.mxu0 %v2465
      %v2518 = vpop.f32.mrf.mxu0
      %v2519 = vadd.f32 0.0, %v2518
      %v2520 = vpop.f32.mrf.mxu0
      %v2521 = vpop.f32.mrf.mxu0
      %v2522 = vadd.f32 0.0, %v2521
      %v2523 = vpop.f32.mrf.mxu0
      %2524 = vmatprep.mubr.bf16.mxu0 0
      %2525 = vmatmul.mubr.bf16.gmra.mxu0 %v2468
      %v2526 = vpop.f32.mrf.mxu0
      %v2527 = vadd.f32 0.0, %v2526
      %v2528 = vpop.f32.mrf.mxu0
      %v2529 = vpop.f32.mrf.mxu0
      %v2530 = vadd.f32 0.0, %v2529
      %v2531 = vpop.f32.mrf.mxu0
      %2532 = vmatprep.mubr.bf16.mxu0 0
      %2533 = vmatmul.mubr.bf16.gmra.mxu0 %v2471
      %v2534 = vpop.f32.mrf.mxu0
      %v2535 = vadd.f32 0.0, %v2534
      %v2536 = vpop.f32.mrf.mxu0
      %v2537 = vpop.f32.mrf.mxu0
      %v2538 = vadd.f32 0.0, %v2537
      %v2539 = vpop.f32.mrf.mxu0
      %2540 = vdwg.mxu0
      %v2541 = vadd.f32 %v2311, %v2511
      %v2542 = vadd.f32 %v2312, %v2514
      %v2543 = vadd.f32 %v2313, %v2519
      %v2544 = vadd.f32 %v2314, %v2522
      %v2545 = vadd.f32 %v2315, %v2527
      %v2546 = vadd.f32 %v2316, %v2530
      %v2547 = vadd.f32 %v2317, %v2535
      %v2548 = vadd.f32 %v2318, %v2538
      %v2549 = vld [vmem:[%s1629] sm:$0xe]
      %v2550 = vld [vmem:[%s1629 + $0x8] sm:$0xe]
      %v2551 = vld [vmem:[%s1629 + $0x10] sm:$0xe]
      %v2552 = vld [vmem:[%s1629 + $0x18] sm:$0xe]
      %v2553 = vld [vmem:[%s1629 + $0x20] sm:$0xe]
      %v2554 = vld [vmem:[%s1629 + $0x28] sm:$0xe]
      %v2555 = vld [vmem:[%s1629 + $0x30] sm:$0xe]
      %v2556 = vld [vmem:[%s1629 + $0x38] sm:$0xe]
      %v2573 = vrot.slane %v2549, 5
      %v2574 = vrot.slane %v2573, 4
      %v2575 = vrot.slane %v2320, 5
      %v2576 = vsel %vm2066, %v2574, %v2575
      %v2577 = vrot.slane %v2550, 5
      %v2578 = vrot.slane %v2577, 4
      %v2579 = vrot.slane %v2322, 5
      %v2580 = vsel %vm2066, %v2578, %v2579
      %v2581 = vrot.slane %v2551, 5
      %v2582 = vrot.slane %v2581, 4
      %v2583 = vrot.slane %v2324, 5
      %v2584 = vsel %vm2066, %v2582, %v2583
      %v2585 = vrot.slane %v2552, 5
      %v2586 = vrot.slane %v2585, 4
      %v2587 = vrot.slane %v2326, 5
      %v2588 = vsel %vm2066, %v2586, %v2587
      %v2589 = vrot.slane %v2553, 5
      %v2590 = vrot.slane %v2589, 4
      %v2591 = vrot.slane %v2328, 5
      %v2592 = vsel %vm2066, %v2590, %v2591
      %v2593 = vrot.slane %v2554, 5
      %v2594 = vrot.slane %v2593, 4
      %v2595 = vrot.slane %v2330, 5
      %v2596 = vsel %vm2066, %v2594, %v2595
      %v2597 = vrot.slane %v2555, 5
      %v2598 = vrot.slane %v2597, 4
      %v2599 = vrot.slane %v2332, 5
      %v2600 = vsel %vm2066, %v2598, %v2599
      %v2601 = vrot.slane %v2556, 5
      %v2602 = vrot.slane %v2601, 4
      %v2603 = vrot.slane %v2334, 5
      %v2604 = vsel %vm2066, %v2602, %v2603
      %s2605 = scalar_lea.vmem %s3, 20
      %v2606 = vld [vmem:[%s2605] sm:$0xf]
      %v2607 = vunpack.c.l.b16 %v2576
      %v2608 = vunpack.c.l.b16 %v2580
      %v2609 = vunpack.c.l.b16 %v2584
      %v2610 = vunpack.c.l.b16 %v2588
      %v2611 = vunpack.c.l.b16 %v2592
      %v2612 = vunpack.c.l.b16 %v2596
      %v2613 = vunpack.c.l.b16 %v2600
      %v2614 = vunpack.c.l.b16 %v2604
      %v2615 = vpack.c.b16 %v2608, %v2607
      %v2616 = vpack.c.b16 %v2610, %v2609
      %v2617 = vpack.c.b16 %v2612, %v2611
      %v2618 = vpack.c.b16 %v2614, %v2613
      %v2620 = vsel %vm443, %v2615, 0
      %v2623 = vsel %vm443, %v2616, 0
      %v2626 = vsel %vm443, %v2617, 0
      %v2629 = vsel %vm443, %v2618, 0
      %v2632 = vsel %vm447, %v2606, 0
      %2634 = vmatprep.subr.bf16.mxu0 0
      %2635 = vmatpush1.bf16.msra.mxu0 0
      %2636 = vmatprep.subr.bf16.mxu0 0
      %2637 = vmatpush1.bf16.msra.mxu0 0
      %2638 = vmatprep.subr.bf16.mxu0 0
      %2639 = vmatpush1.bf16.msra.mxu0 0
      %2640 = vmatprep.subr.bf16.mxu0 0
      %2641 = vmatpush1.bf16.msra.mxu0 0
      %2642 = vmatprep.subr.bf16.mxu0 0
      %2643 = vmatpush1.bf16.msra.mxu0 0
      %2644 = vmatprep.subr.bf16.mxu0 0
      %2645 = vmatpush1.bf16.msra.mxu0 0
      %2646 = vmatprep.subr.bf16.mxu0 0
      %2647 = vmatpush1.bf16.msra.mxu0 0
      %2648 = vmatprep.subr.bf16.mxu0 0
      %2649 = vmatpush1.bf16.msra.mxu0 %v2632
      %2650 = vmatprep.subr.bf16.mxu0 0
      %2651 = vmatpush2.bf16.msra.mxu0 0
      %2652 = vmatprep.subr.bf16.mxu0 0
      %2653 = vmatpush2.bf16.msra.mxu0 0
      %2654 = vmatprep.subr.bf16.mxu0 0
      %2655 = vmatpush2.bf16.msra.mxu0 0
      %2656 = vmatprep.subr.bf16.mxu0 0
      %2657 = vmatpush2.bf16.msra.mxu0 0
      %2658 = vmatprep.subr.bf16.mxu0 0
      %2659 = vmatpush2.bf16.msra.mxu0 0
      %2660 = vmatprep.subr.bf16.mxu0 0
      %2661 = vmatpush2.bf16.msra.mxu0 0
      %2662 = vmatprep.subr.bf16.mxu0 0
      %2663 = vmatpush2.bf16.msra.mxu0 0
      %2664 = vmatprep.subr.bf16.mxu0 0
      %2665 = vmatpush2.bf16.msra.mxu0 0
      %2666 = vmatprep.mubr.bf16.mxu0 0
      %2667 = vmatmul.mubr.bf16.gmra.mxu0 %v2620
      %v2668 = vpop.f32.mrf.mxu0
      %v2669 = vadd.f32 0.0, %v2668
      %v2670 = vpop.f32.mrf.mxu0
      %v2671 = vpop.f32.mrf.mxu0
      %v2672 = vadd.f32 0.0, %v2671
      %v2673 = vpop.f32.mrf.mxu0
      %2674 = vmatprep.mubr.bf16.mxu0 0
      %2675 = vmatmul.mubr.bf16.gmra.mxu0 %v2623
      %v2676 = vpop.f32.mrf.mxu0
      %v2677 = vadd.f32 0.0, %v2676
      %v2678 = vpop.f32.mrf.mxu0
      %v2679 = vpop.f32.mrf.mxu0
      %v2680 = vadd.f32 0.0, %v2679
      %v2681 = vpop.f32.mrf.mxu0
      %2682 = vmatprep.mubr.bf16.mxu0 0
      %2683 = vmatmul.mubr.bf16.gmra.mxu0 %v2626
      %v2684 = vpop.f32.mrf.mxu0
      %v2685 = vadd.f32 0.0, %v2684
      %v2686 = vpop.f32.mrf.mxu0
      %v2687 = vpop.f32.mrf.mxu0
      %v2688 = vadd.f32 0.0, %v2687
      %v2689 = vpop.f32.mrf.mxu0
      %2690 = vmatprep.mubr.bf16.mxu0 0
      %2691 = vmatmul.mubr.bf16.gmra.mxu0 %v2629
      %v2692 = vpop.f32.mrf.mxu0
      %v2693 = vadd.f32 0.0, %v2692
      %v2694 = vpop.f32.mrf.mxu0
      %v2695 = vpop.f32.mrf.mxu0
      %v2696 = vadd.f32 0.0, %v2695
      %v2697 = vpop.f32.mrf.mxu0
      %2698 = vdwg.mxu0
      %v2699 = vadd.f32 %v2541, %v2669
      %v2700 = vadd.f32 %v2542, %v2672
      %v2701 = vadd.f32 %v2543, %v2677
      %v2702 = vadd.f32 %v2544, %v2680
      %v2703 = vadd.f32 %v2545, %v2685
      %v2704 = vadd.f32 %v2546, %v2688
      %v2705 = vadd.f32 %v2547, %v2693
      %v2706 = vadd.f32 %v2548, %v2696
      %s2707 = scalar_lea.vmem [#allocation2], 16
      %v2708 = vld [vmem:[%s2707] sm:$0xf]
      %v2709 = vld [vmem:[%s2707 + $0x8] sm:$0xf]
      %v2710 = vld [vmem:[%s2707 + $0x10] sm:$0xf]
      %v2711 = vld [vmem:[%s2707 + $0x18] sm:$0xf]
      %v2712 = vld [vmem:[%s2707 + $0x20] sm:$0xf]
      %v2713 = vld [vmem:[%s2707 + $0x28] sm:$0xf]
      %v2714 = vld [vmem:[%s2707 + $0x30] sm:$0xf]
      %v2715 = vld [vmem:[%s2707 + $0x38] sm:$0xf]
      %s2716 = scalar_lea.vmem %s3, 24
      %v2717 = vld [vmem:[%s2716] sm:$0xf]
      %v2726 = vunpack.c.l.b16 %v2708
      %v2727 = vunpack.c.l.b16 %v2709
      %v2728 = vunpack.c.l.b16 %v2710
      %v2729 = vunpack.c.l.b16 %v2711
      %v2730 = vunpack.c.l.b16 %v2712
      %v2731 = vunpack.c.l.b16 %v2713
      %v2732 = vunpack.c.l.b16 %v2714
      %v2733 = vunpack.c.l.b16 %v2715
      %v2734 = vpack.c.b16 %v2727, %v2726
      %v2735 = vpack.c.b16 %v2729, %v2728
      %v2736 = vpack.c.b16 %v2731, %v2730
      %v2737 = vpack.c.b16 %v2733, %v2732
      %v2739 = vsel %vm443, %v2734, 0
      %v2742 = vsel %vm443, %v2735, 0
      %v2745 = vsel %vm443, %v2736, 0
      %v2748 = vsel %vm443, %v2737, 0
      %v2751 = vsel %vm447, %v2717, 0
      %2753 = vmatprep.subr.bf16.mxu0 0
      %2754 = vmatpush1.bf16.msra.mxu0 0
      %2755 = vmatprep.subr.bf16.mxu0 0
      %2756 = vmatpush1.bf16.msra.mxu0 0
      %2757 = vmatprep.subr.bf16.mxu0 0
      %2758 = vmatpush1.bf16.msra.mxu0 0
      %2759 = vmatprep.subr.bf16.mxu0 0
      %2760 = vmatpush1.bf16.msra.mxu0 0
      %2761 = vmatprep.subr.bf16.mxu0 0
      %2762 = vmatpush1.bf16.msra.mxu0 0
      %2763 = vmatprep.subr.bf16.mxu0 0
      %2764 = vmatpush1.bf16.msra.mxu0 0
      %2765 = vmatprep.subr.bf16.mxu0 0
      %2766 = vmatpush1.bf16.msra.mxu0 0
      %2767 = vmatprep.subr.bf16.mxu0 0
      %2768 = vmatpush1.bf16.msra.mxu0 %v2751
      %2769 = vmatprep.subr.bf16.mxu0 0
      %2770 = vmatpush2.bf16.msra.mxu0 0
      %2771 = vmatprep.subr.bf16.mxu0 0
      %2772 = vmatpush2.bf16.msra.mxu0 0
      %2773 = vmatprep.subr.bf16.mxu0 0
      %2774 = vmatpush2.bf16.msra.mxu0 0
      %2775 = vmatprep.subr.bf16.mxu0 0
      %2776 = vmatpush2.bf16.msra.mxu0 0
      %2777 = vmatprep.subr.bf16.mxu0 0
      %2778 = vmatpush2.bf16.msra.mxu0 0
      %2779 = vmatprep.subr.bf16.mxu0 0
      %2780 = vmatpush2.bf16.msra.mxu0 0
      %2781 = vmatprep.subr.bf16.mxu0 0
      %2782 = vmatpush2.bf16.msra.mxu0 0
      %2783 = vmatprep.subr.bf16.mxu0 0
      %2784 = vmatpush2.bf16.msra.mxu0 0
      %2785 = vmatprep.mubr.bf16.mxu0 0
      %2786 = vmatmul.mubr.bf16.gmra.mxu0 %v2739
      %v2787 = vpop.f32.mrf.mxu0
      %v2788 = vadd.f32 0.0, %v2787
      %v2789 = vpop.f32.mrf.mxu0
      %v2790 = vpop.f32.mrf.mxu0
      %v2791 = vadd.f32 0.0, %v2790
      %v2792 = vpop.f32.mrf.mxu0
      %2793 = vmatprep.mubr.bf16.mxu0 0
      %2794 = vmatmul.mubr.bf16.gmra.mxu0 %v2742
      %v2795 = vpop.f32.mrf.mxu0
      %v2796 = vadd.f32 0.0, %v2795
      %v2797 = vpop.f32.mrf.mxu0
      %v2798 = vpop.f32.mrf.mxu0
      %v2799 = vadd.f32 0.0, %v2798
      %v2800 = vpop.f32.mrf.mxu0
      %2801 = vmatprep.mubr.bf16.mxu0 0
      %2802 = vmatmul.mubr.bf16.gmra.mxu0 %v2745
      %v2803 = vpop.f32.mrf.mxu0
      %v2804 = vadd.f32 0.0, %v2803
      %v2805 = vpop.f32.mrf.mxu0
      %v2806 = vpop.f32.mrf.mxu0
      %v2807 = vadd.f32 0.0, %v2806
      %v2808 = vpop.f32.mrf.mxu0
      %2809 = vmatprep.mubr.bf16.mxu0 0
      %2810 = vmatmul.mubr.bf16.gmra.mxu0 %v2748
      %v2811 = vpop.f32.mrf.mxu0
      %v2812 = vadd.f32 0.0, %v2811
      %v2813 = vpop.f32.mrf.mxu0
      %v2814 = vpop.f32.mrf.mxu0
      %v2815 = vadd.f32 0.0, %v2814
      %v2816 = vpop.f32.mrf.mxu0
      %2817 = vdwg.mxu0
      %v2818 = vadd.f32 %v2699, %v2788
      %v2819 = vadd.f32 %v2700, %v2791
      %v2820 = vadd.f32 %v2701, %v2796
      %v2821 = vadd.f32 %v2702, %v2799
      %v2822 = vadd.f32 %v2703, %v2804
      %v2823 = vadd.f32 %v2704, %v2807
      %v2824 = vadd.f32 %v2705, %v2812
      %v2825 = vadd.f32 %v2706, %v2815
      %v2826 = vld [vmem:[%s2707] sm:$0xf]
      %v2827 = vld [vmem:[%s2707 + $0x4] sm:$0x1]
      %v2828 = vld [vmem:[%s2707 + $0x8] sm:$0xf]
      %v2829 = vld [vmem:[%s2707 + $0xc] sm:$0x1]
      %v2830 = vld [vmem:[%s2707 + $0x10] sm:$0xf]
      %v2831 = vld [vmem:[%s2707 + $0x14] sm:$0x1]
      %v2832 = vld [vmem:[%s2707 + $0x18] sm:$0xf]
      %v2833 = vld [vmem:[%s2707 + $0x1c] sm:$0x1]
      %v2834 = vld [vmem:[%s2707 + $0x20] sm:$0xf]
      %v2835 = vld [vmem:[%s2707 + $0x24] sm:$0x1]
      %v2836 = vld [vmem:[%s2707 + $0x28] sm:$0xf]
      %v2837 = vld [vmem:[%s2707 + $0x2c] sm:$0x1]
      %v2838 = vld [vmem:[%s2707 + $0x30] sm:$0xf]
      %v2839 = vld [vmem:[%s2707 + $0x34] sm:$0x1]
      %v2840 = vld [vmem:[%s2707 + $0x38] sm:$0xf]
      %v2841 = vld [vmem:[%s2707 + $0x3c] sm:$0x1]
      %v2843 = vshrl.u32 %v2826, 16
      %v2845 = vrot.slane %v2843, 4
      %v2846 = vshll.u32 %v2826, 16
      %v2848 = vrot.slane %v2846, 5
      %v2849 = vor.u32 %v2845, %v2848
      %v2850 = vrot.slane %v2849, 4
      %v2852 = vshll.u32 %v2827, 16
      %v2854 = vrot.slane %v2852, 5
      %v2855 = vsel %vm1825, %v2850, %v2854
      %v2857 = vshrl.u32 %v2828, 16
      %v2859 = vrot.slane %v2857, 4
      %v2860 = vshll.u32 %v2828, 16
      %v2862 = vrot.slane %v2860, 5
      %v2863 = vor.u32 %v2859, %v2862
      %v2864 = vrot.slane %v2863, 4
      %v2866 = vshll.u32 %v2829, 16
      %v2868 = vrot.slane %v2866, 5
      %v2869 = vsel %vm1825, %v2864, %v2868
      %v2871 = vshrl.u32 %v2830, 16
      %v2873 = vrot.slane %v2871, 4
      %v2874 = vshll.u32 %v2830, 16
      %v2876 = vrot.slane %v2874, 5
      %v2877 = vor.u32 %v2873, %v2876
      %v2878 = vrot.slane %v2877, 4
      %v2880 = vshll.u32 %v2831, 16
      %v2882 = vrot.slane %v2880, 5
      %v2883 = vsel %vm1825, %v2878, %v2882
      %v2885 = vshrl.u32 %v2832, 16
      %v2887 = vrot.slane %v2885, 4
      %v2888 = vshll.u32 %v2832, 16
      %v2890 = vrot.slane %v2888, 5
      %v2891 = vor.u32 %v2887, %v2890
      %v2892 = vrot.slane %v2891, 4
      %v2894 = vshll.u32 %v2833, 16
      %v2896 = vrot.slane %v2894, 5
      %v2897 = vsel %vm1825, %v2892, %v2896
      %v2899 = vshrl.u32 %v2834, 16
      %v2901 = vrot.slane %v2899, 4
      %v2902 = vshll.u32 %v2834, 16
      %v2904 = vrot.slane %v2902, 5
      %v2905 = vor.u32 %v2901, %v2904
      %v2906 = vrot.slane %v2905, 4
      %v2908 = vshll.u32 %v2835, 16
      %v2910 = vrot.slane %v2908, 5
      %v2911 = vsel %vm1825, %v2906, %v2910
      %v2913 = vshrl.u32 %v2836, 16
      %v2915 = vrot.slane %v2913, 4
      %v2916 = vshll.u32 %v2836, 16
      %v2918 = vrot.slane %v2916, 5
      %v2919 = vor.u32 %v2915, %v2918
      %v2920 = vrot.slane %v2919, 4
      %v2922 = vshll.u32 %v2837, 16
      %v2924 = vrot.slane %v2922, 5
      %v2925 = vsel %vm1825, %v2920, %v2924
      %v2927 = vshrl.u32 %v2838, 16
      %v2929 = vrot.slane %v2927, 4
      %v2930 = vshll.u32 %v2838, 16
      %v2932 = vrot.slane %v2930, 5
      %v2933 = vor.u32 %v2929, %v2932
      %v2934 = vrot.slane %v2933, 4
      %v2936 = vshll.u32 %v2839, 16
      %v2938 = vrot.slane %v2936, 5
      %v2939 = vsel %vm1825, %v2934, %v2938
      %v2941 = vshrl.u32 %v2840, 16
      %v2943 = vrot.slane %v2941, 4
      %v2944 = vshll.u32 %v2840, 16
      %v2946 = vrot.slane %v2944, 5
      %v2947 = vor.u32 %v2943, %v2946
      %v2948 = vrot.slane %v2947, 4
      %v2950 = vshll.u32 %v2841, 16
      %v2952 = vrot.slane %v2950, 5
      %v2953 = vsel %vm1825, %v2948, %v2952
      %s2954 = scalar_lea.vmem %s3, 28
      %v2955 = vld [vmem:[%s2954] sm:$0xf]
      %v2956 = vunpack.c.l.b16 %v2855
      %v2957 = vunpack.c.l.b16 %v2869
      %v2958 = vunpack.c.l.b16 %v2883
      %v2959 = vunpack.c.l.b16 %v2897
      %v2960 = vunpack.c.l.b16 %v2911
      %v2961 = vunpack.c.l.b16 %v2925
      %v2962 = vunpack.c.l.b16 %v2939
      %v2963 = vunpack.c.l.b16 %v2953
      %v2964 = vpack.c.b16 %v2957, %v2956
      %v2965 = vpack.c.b16 %v2959, %v2958
      %v2966 = vpack.c.b16 %v2961, %v2960
      %v2967 = vpack.c.b16 %v2963, %v2962
      %v2969 = vsel %vm443, %v2964, 0
      %v2972 = vsel %vm443, %v2965, 0
      %v2975 = vsel %vm443, %v2966, 0
      %v2978 = vsel %vm443, %v2967, 0
      %v2981 = vsel %vm447, %v2955, 0
      %2983 = vmatprep.subr.bf16.mxu0 0
      %2984 = vmatpush1.bf16.msra.mxu0 0
      %2985 = vmatprep.subr.bf16.mxu0 0
      %2986 = vmatpush1.bf16.msra.mxu0 0
      %2987 = vmatprep.subr.bf16.mxu0 0
      %2988 = vmatpush1.bf16.msra.mxu0 0
      %2989 = vmatprep.subr.bf16.mxu0 0
      %2990 = vmatpush1.bf16.msra.mxu0 0
      %2991 = vmatprep.subr.bf16.mxu0 0
      %2992 = vmatpush1.bf16.msra.mxu0 0
      %2993 = vmatprep.subr.bf16.mxu0 0
      %2994 = vmatpush1.bf16.msra.mxu0 0
      %2995 = vmatprep.subr.bf16.mxu0 0
      %2996 = vmatpush1.bf16.msra.mxu0 0
      %2997 = vmatprep.subr.bf16.mxu0 0
      %2998 = vmatpush1.bf16.msra.mxu0 %v2981
      %2999 = vmatprep.subr.bf16.mxu0 0
      %3000 = vmatpush2.bf16.msra.mxu0 0
      %3001 = vmatprep.subr.bf16.mxu0 0
      %3002 = vmatpush2.bf16.msra.mxu0 0
      %3003 = vmatprep.subr.bf16.mxu0 0
      %3004 = vmatpush2.bf16.msra.mxu0 0
      %3005 = vmatprep.subr.bf16.mxu0 0
      %3006 = vmatpush2.bf16.msra.mxu0 0
      %3007 = vmatprep.subr.bf16.mxu0 0
      %3008 = vmatpush2.bf16.msra.mxu0 0
      %3009 = vmatprep.subr.bf16.mxu0 0
      %3010 = vmatpush2.bf16.msra.mxu0 0
      %3011 = vmatprep.subr.bf16.mxu0 0
      %3012 = vmatpush2.bf16.msra.mxu0 0
      %3013 = vmatprep.subr.bf16.mxu0 0
      %3014 = vmatpush2.bf16.msra.mxu0 0
      %3015 = vmatprep.mubr.bf16.mxu0 0
      %3016 = vmatmul.mubr.bf16.gmra.mxu0 %v2969
      %v3017 = vpop.f32.mrf.mxu0
      %v3018 = vadd.f32 0.0, %v3017
      %v3019 = vpop.f32.mrf.mxu0
      %v3020 = vpop.f32.mrf.mxu0
      %v3021 = vadd.f32 0.0, %v3020
      %v3022 = vpop.f32.mrf.mxu0
      %3023 = vmatprep.mubr.bf16.mxu0 0
      %3024 = vmatmul.mubr.bf16.gmra.mxu0 %v2972
      %v3025 = vpop.f32.mrf.mxu0
      %v3026 = vadd.f32 0.0, %v3025
      %v3027 = vpop.f32.mrf.mxu0
      %v3028 = vpop.f32.mrf.mxu0
      %v3029 = vadd.f32 0.0, %v3028
      %v3030 = vpop.f32.mrf.mxu0
      %3031 = vmatprep.mubr.bf16.mxu0 0
      %3032 = vmatmul.mubr.bf16.gmra.mxu0 %v2975
      %v3033 = vpop.f32.mrf.mxu0
      %v3034 = vadd.f32 0.0, %v3033
      %v3035 = vpop.f32.mrf.mxu0
      %v3036 = vpop.f32.mrf.mxu0
      %v3037 = vadd.f32 0.0, %v3036
      %v3038 = vpop.f32.mrf.mxu0
      %3039 = vmatprep.mubr.bf16.mxu0 0
      %3040 = vmatmul.mubr.bf16.gmra.mxu0 %v2978
      %v3041 = vpop.f32.mrf.mxu0
      %v3042 = vadd.f32 0.0, %v3041
      %v3043 = vpop.f32.mrf.mxu0
      %v3044 = vpop.f32.mrf.mxu0
      %v3045 = vadd.f32 0.0, %v3044
      %v3046 = vpop.f32.mrf.mxu0
      %3047 = vdwg.mxu0
      %v3048 = vadd.f32 %v2818, %v3018
      %v3049 = vadd.f32 %v2819, %v3021
      %v3050 = vadd.f32 %v2820, %v3026
      %v3051 = vadd.f32 %v2821, %v3029
      %v3052 = vadd.f32 %v2822, %v3034
      %v3053 = vadd.f32 %v2823, %v3037
      %v3054 = vadd.f32 %v2824, %v3042
      %v3055 = vadd.f32 %v2825, %v3045
      %v3056 = vld [vmem:[%s2707] sm:$0xe]
      %v3057 = vld [vmem:[%s2707 + $0x8] sm:$0xe]
      %v3058 = vld [vmem:[%s2707 + $0x10] sm:$0xe]
      %v3059 = vld [vmem:[%s2707 + $0x18] sm:$0xe]
      %v3060 = vld [vmem:[%s2707 + $0x20] sm:$0xe]
      %v3061 = vld [vmem:[%s2707 + $0x28] sm:$0xe]
      %v3062 = vld [vmem:[%s2707 + $0x30] sm:$0xe]
      %v3063 = vld [vmem:[%s2707 + $0x38] sm:$0xe]
      %v3080 = vrot.slane %v3056, 5
      %v3081 = vrot.slane %v3080, 4
      %v3082 = vrot.slane %v2827, 5
      %v3083 = vsel %vm2066, %v3081, %v3082
      %v3084 = vrot.slane %v3057, 5
      %v3085 = vrot.slane %v3084, 4
      %v3086 = vrot.slane %v2829, 5
      %v3087 = vsel %vm2066, %v3085, %v3086
      %v3088 = vrot.slane %v3058, 5
      %v3089 = vrot.slane %v3088, 4
      %v3090 = vrot.slane %v2831, 5
      %v3091 = vsel %vm2066, %v3089, %v3090
      %v3092 = vrot.slane %v3059, 5
      %v3093 = vrot.slane %v3092, 4
      %v3094 = vrot.slane %v2833, 5
      %v3095 = vsel %vm2066, %v3093, %v3094
      %v3096 = vrot.slane %v3060, 5
      %v3097 = vrot.slane %v3096, 4
      %v3098 = vrot.slane %v2835, 5
      %v3099 = vsel %vm2066, %v3097, %v3098
      %v3100 = vrot.slane %v3061, 5
      %v3101 = vrot.slane %v3100, 4
      %v3102 = vrot.slane %v2837, 5
      %v3103 = vsel %vm2066, %v3101, %v3102
      %v3104 = vrot.slane %v3062, 5
      %v3105 = vrot.slane %v3104, 4
      %v3106 = vrot.slane %v2839, 5
      %v3107 = vsel %vm2066, %v3105, %v3106
      %v3108 = vrot.slane %v3063, 5
      %v3109 = vrot.slane %v3108, 4
      %v3110 = vrot.slane %v2841, 5
      %v3111 = vsel %vm2066, %v3109, %v3110
      %s3112 = scalar_lea.vmem %s3, 32
      %v3113 = vld [vmem:[%s3112] sm:$0xf]
      %v3114 = vunpack.c.l.b16 %v3083
      %v3115 = vunpack.c.l.b16 %v3087
      %v3116 = vunpack.c.l.b16 %v3091
      %v3117 = vunpack.c.l.b16 %v3095
      %v3118 = vunpack.c.l.b16 %v3099
      %v3119 = vunpack.c.l.b16 %v3103
      %v3120 = vunpack.c.l.b16 %v3107
      %v3121 = vunpack.c.l.b16 %v3111
      %v3122 = vpack.c.b16 %v3115, %v3114
      %v3123 = vpack.c.b16 %v3117, %v3116
      %v3124 = vpack.c.b16 %v3119, %v3118
      %v3125 = vpack.c.b16 %v3121, %v3120
      %v3127 = vsel %vm443, %v3122, 0
      %v3130 = vsel %vm443, %v3123, 0
      %v3133 = vsel %vm443, %v3124, 0
      %v3136 = vsel %vm443, %v3125, 0
      %v3139 = vsel %vm447, %v3113, 0
      %3141 = vmatprep.subr.bf16.mxu0 0
      %3142 = vmatpush1.bf16.msra.mxu0 0
      %3143 = vmatprep.subr.bf16.mxu0 0
      %3144 = vmatpush1.bf16.msra.mxu0 0
      %3145 = vmatprep.subr.bf16.mxu0 0
      %3146 = vmatpush1.bf16.msra.mxu0 0
      %3147 = vmatprep.subr.bf16.mxu0 0
      %3148 = vmatpush1.bf16.msra.mxu0 0
      %3149 = vmatprep.subr.bf16.mxu0 0
      %3150 = vmatpush1.bf16.msra.mxu0 0
      %3151 = vmatprep.subr.bf16.mxu0 0
      %3152 = vmatpush1.bf16.msra.mxu0 0
      %3153 = vmatprep.subr.bf16.mxu0 0
      %3154 = vmatpush1.bf16.msra.mxu0 0
      %3155 = vmatprep.subr.bf16.mxu0 0
      %3156 = vmatpush1.bf16.msra.mxu0 %v3139
      %3157 = vmatprep.subr.bf16.mxu0 0
      %3158 = vmatpush2.bf16.msra.mxu0 0
      %3159 = vmatprep.subr.bf16.mxu0 0
      %3160 = vmatpush2.bf16.msra.mxu0 0
      %3161 = vmatprep.subr.bf16.mxu0 0
      %3162 = vmatpush2.bf16.msra.mxu0 0
      %3163 = vmatprep.subr.bf16.mxu0 0
      %3164 = vmatpush2.bf16.msra.mxu0 0
      %3165 = vmatprep.subr.bf16.mxu0 0
      %3166 = vmatpush2.bf16.msra.mxu0 0
      %3167 = vmatprep.subr.bf16.mxu0 0
      %3168 = vmatpush2.bf16.msra.mxu0 0
      %3169 = vmatprep.subr.bf16.mxu0 0
      %3170 = vmatpush2.bf16.msra.mxu0 0
      %3171 = vmatprep.subr.bf16.mxu0 0
      %3172 = vmatpush2.bf16.msra.mxu0 0
      %3173 = vmatprep.mubr.bf16.mxu0 0
      %3174 = vmatmul.mubr.bf16.gmra.mxu0 %v3127
      %v3175 = vpop.f32.mrf.mxu0
      %v3176 = vadd.f32 0.0, %v3175
      %v3177 = vpop.f32.mrf.mxu0
      %v3178 = vpop.f32.mrf.mxu0
      %v3179 = vadd.f32 0.0, %v3178
      %v3180 = vpop.f32.mrf.mxu0
      %3181 = vmatprep.mubr.bf16.mxu0 0
      %3182 = vmatmul.mubr.bf16.gmra.mxu0 %v3130
      %v3183 = vpop.f32.mrf.mxu0
      %v3184 = vadd.f32 0.0, %v3183
      %v3185 = vpop.f32.mrf.mxu0
      %v3186 = vpop.f32.mrf.mxu0
      %v3187 = vadd.f32 0.0, %v3186
      %v3188 = vpop.f32.mrf.mxu0
      %3189 = vmatprep.mubr.bf16.mxu0 0
      %3190 = vmatmul.mubr.bf16.gmra.mxu0 %v3133
      %v3191 = vpop.f32.mrf.mxu0
      %v3192 = vadd.f32 0.0, %v3191
      %v3193 = vpop.f32.mrf.mxu0
      %v3194 = vpop.f32.mrf.mxu0
      %v3195 = vadd.f32 0.0, %v3194
      %v3196 = vpop.f32.mrf.mxu0
      %3197 = vmatprep.mubr.bf16.mxu0 0
      %3198 = vmatmul.mubr.bf16.gmra.mxu0 %v3136
      %v3199 = vpop.f32.mrf.mxu0
      %v3200 = vadd.f32 0.0, %v3199
      %v3201 = vpop.f32.mrf.mxu0
      %v3202 = vpop.f32.mrf.mxu0
      %v3203 = vadd.f32 0.0, %v3202
      %v3204 = vpop.f32.mrf.mxu0
      %3205 = vdwg.mxu0
      %v3206 = vadd.f32 %v3048, %v3176
      %v3207 = vadd.f32 %v3049, %v3179
      %v3208 = vadd.f32 %v3050, %v3184
      %v3209 = vadd.f32 %v3051, %v3187
      %v3210 = vadd.f32 %v3052, %v3192
      %v3211 = vadd.f32 %v3053, %v3195
      %v3212 = vadd.f32 %v3054, %v3200
      %v3213 = vadd.f32 %v3055, %v3203
      %v3214 = vmax.f32 %v3206, 0.0
      %v3215 = vmax.f32 %v3207, 0.0
      %v3216 = vmax.f32 %v3208, 0.0
      %v3217 = vmax.f32 %v3209, 0.0
      %v3218 = vmax.f32 %v3210, 0.0
      %v3219 = vmax.f32 %v3211, 0.0
      %v3220 = vmax.f32 %v3212, 0.0
      %v3221 = vmax.f32 %v3213, 0.0
      %v3222 = vpack.c.bf16 %v3215, %v3214
      %v3223 = vpack.c.bf16 %v3217, %v3216
      %v3224 = vpack.c.bf16 %v3219, %v3218
      %v3225 = vpack.c.bf16 %v3221, %v3220
      %v3230 = vunpack.c.l.b16 %v3222
      %v3231 = vunpack.c.h.b16 %v3222
      %v3232 = vunpack.c.l.b16 %v3223
      %v3233 = vunpack.c.h.b16 %v3223
      %v3234 = vunpack.c.l.b16 %v3224
      %v3235 = vunpack.c.h.b16 %v3224
      %v3236 = vunpack.c.l.b16 %v3225
      %v3237 = vunpack.c.h.b16 %v3225
      %v3238 = vpack.c.b16 %v3230, %v3230
      %v3239 = vpack.c.b16 %v3231, %v3231
      %v3240 = vpack.c.b16 %v3232, %v3232
      %v3241 = vpack.c.b16 %v3233, %v3233
      %v3242 = vpack.c.b16 %v3234, %v3234
      %v3243 = vpack.c.b16 %v3235, %v3235
      %v3244 = vpack.c.b16 %v3236, %v3236
      %v3245 = vpack.c.b16 %v3237, %v3237
      %v3247 = vshrl.u32 %v3238, 16
      %v3249 = vrot.slane %v3247, 7
      %v3250 = vshll.u32 %v3238, 16
      %v3252 = vor.u32 %v3249, %v3250
      %v3253 = vrot.slane %v3249, 4
      %v3255 = vshrl.u32 %v3239, 16
      %v3257 = vrot.slane %v3255, 7
      %v3258 = vshll.u32 %v3239, 16
      %v3260 = vor.u32 %v3257, %v3258
      %v3261 = vrot.slane %v3257, 4
      %v3263 = vshrl.u32 %v3240, 16
      %v3265 = vrot.slane %v3263, 7
      %v3266 = vshll.u32 %v3240, 16
      %v3268 = vor.u32 %v3265, %v3266
      %v3269 = vrot.slane %v3265, 4
      %v3271 = vshrl.u32 %v3241, 16
      %v3273 = vrot.slane %v3271, 7
      %v3274 = vshll.u32 %v3241, 16
      %v3276 = vor.u32 %v3273, %v3274
      %v3277 = vrot.slane %v3273, 4
      %v3279 = vshrl.u32 %v3242, 16
      %v3281 = vrot.slane %v3279, 7
      %v3282 = vshll.u32 %v3242, 16
      %v3284 = vor.u32 %v3281, %v3282
      %v3285 = vrot.slane %v3281, 4
      %v3287 = vshrl.u32 %v3243, 16
      %v3289 = vrot.slane %v3287, 7
      %v3290 = vshll.u32 %v3243, 16
      %v3292 = vor.u32 %v3289, %v3290
      %v3293 = vrot.slane %v3289, 4
      %v3295 = vshrl.u32 %v3244, 16
      %v3297 = vrot.slane %v3295, 7
      %v3298 = vshll.u32 %v3244, 16
      %v3300 = vor.u32 %v3297, %v3298
      %v3301 = vrot.slane %v3297, 4
      %v3303 = vshrl.u32 %v3245, 16
      %v3305 = vrot.slane %v3303, 7
      %v3306 = vshll.u32 %v3245, 16
      %v3308 = vor.u32 %v3305, %v3306
      %v3309 = vrot.slane %v3305, 4
      %v3326 = vsel %vm1632, %v3252, %v2319
      %3327 = vst [vmem:[%s1629] sm:$0xf] %v3326
      %v3328 = vld [vmem:[%s1629 + $0x4] sm:$0x1]
      %v3329 = vsel %vm1637, %v3253, %v3328
      %3330 = vst [vmem:[%s1629 + $0x4] sm:$0x1] %v3329
      %v3331 = vld [vmem:[%s1629 + $0x8] sm:$0xf]
      %v3332 = vsel %vm1632, %v3260, %v3331
      %3333 = vst [vmem:[%s1629 + $0x8] sm:$0xf] %v3332
      %v3334 = vld [vmem:[%s1629 + $0xc] sm:$0x1]
      %v3335 = vsel %vm1637, %v3261, %v3334
      %3336 = vst [vmem:[%s1629 + $0xc] sm:$0x1] %v3335
      %v3337 = vld [vmem:[%s1629 + $0x10] sm:$0xf]
      %v3338 = vsel %vm1632, %v3268, %v3337
      %3339 = vst [vmem:[%s1629 + $0x10] sm:$0xf] %v3338
      %v3340 = vld [vmem:[%s1629 + $0x14] sm:$0x1]
      %v3341 = vsel %vm1637, %v3269, %v3340
      %3342 = vst [vmem:[%s1629 + $0x14] sm:$0x1] %v3341
      %v3343 = vld [vmem:[%s1629 + $0x18] sm:$0xf]
      %v3344 = vsel %vm1632, %v3276, %v3343
      %3345 = vst [vmem:[%s1629 + $0x18] sm:$0xf] %v3344
      %v3346 = vld [vmem:[%s1629 + $0x1c] sm:$0x1]
      %v3347 = vsel %vm1637, %v3277, %v3346
      %3348 = vst [vmem:[%s1629 + $0x1c] sm:$0x1] %v3347
      %v3349 = vld [vmem:[%s1629 + $0x20] sm:$0xf]
      %v3350 = vsel %vm1632, %v3284, %v3349
      %3351 = vst [vmem:[%s1629 + $0x20] sm:$0xf] %v3350
      %v3352 = vld [vmem:[%s1629 + $0x24] sm:$0x1]
      %v3353 = vsel %vm1637, %v3285, %v3352
      %3354 = vst [vmem:[%s1629 + $0x24] sm:$0x1] %v3353
      %v3355 = vld [vmem:[%s1629 + $0x28] sm:$0xf]
      %v3356 = vsel %vm1632, %v3292, %v3355
      %3357 = vst [vmem:[%s1629 + $0x28] sm:$0xf] %v3356
      %v3358 = vld [vmem:[%s1629 + $0x2c] sm:$0x1]
      %v3359 = vsel %vm1637, %v3293, %v3358
      %3360 = vst [vmem:[%s1629 + $0x2c] sm:$0x1] %v3359
      %v3361 = vld [vmem:[%s1629 + $0x30] sm:$0xf]
      %v3362 = vsel %vm1632, %v3300, %v3361
      %3363 = vst [vmem:[%s1629 + $0x30] sm:$0xf] %v3362
      %v3364 = vld [vmem:[%s1629 + $0x34] sm:$0x1]
      %v3365 = vsel %vm1637, %v3301, %v3364
      %3366 = vst [vmem:[%s1629 + $0x34] sm:$0x1] %v3365
      %v3367 = vld [vmem:[%s1629 + $0x38] sm:$0xf]
      %v3368 = vsel %vm1632, %v3308, %v3367
      %3369 = vst [vmem:[%s1629 + $0x38] sm:$0xf] %v3368
      %v3370 = vld [vmem:[%s1629 + $0x3c] sm:$0x1]
      %v3371 = vsel %vm1637, %v3309, %v3370
      %3372 = vst [vmem:[%s1629 + $0x3c] sm:$0x1] %v3371
      %v3373 = vld [vmem:[%s6] sm:$0x1]
      %v3375 = vlaneseq
      %v3376 = vshrl.u32 %v3375, 7
      %v3377 = vsub.s32 0, %v3376
      %v3378 = vrot.slane %v3373, %v3377
      %v3380 = vld [vmem:[#allocation2] sm:$0xf]
      %v3381 = vld [vmem:[#allocation2 + $0x8] sm:$0xf]
      %v3382 = vld [vmem:[#allocation2 + $0x10] sm:$0xf]
      %v3383 = vld [vmem:[#allocation2 + $0x18] sm:$0xf]
      %v3384 = vld [vmem:[#allocation2 + $0x20] sm:$0xf]
      %v3385 = vld [vmem:[#allocation2 + $0x28] sm:$0xf]
      %v3386 = vld [vmem:[#allocation2 + $0x30] sm:$0xf]
      %v3387 = vld [vmem:[#allocation2 + $0x38] sm:$0xf]
      %v3388 = vld [vmem:[%s5] sm:$0xf]
      %v3397 = vunpack.c.l.b16 %v3380
      %v3398 = vunpack.c.l.b16 %v3381
      %v3399 = vunpack.c.l.b16 %v3382
      %v3400 = vunpack.c.l.b16 %v3383
      %v3401 = vunpack.c.l.b16 %v3384
      %v3402 = vunpack.c.l.b16 %v3385
      %v3403 = vunpack.c.l.b16 %v3386
      %v3404 = vunpack.c.l.b16 %v3387
      %v3405 = vpack.c.b16 %v3398, %v3397
      %v3406 = vpack.c.b16 %v3400, %v3399
      %v3407 = vpack.c.b16 %v3402, %v3401
      %v3408 = vpack.c.b16 %v3404, %v3403
      %v3410 = vsel %vm443, %v3405, 0
      %v3413 = vsel %vm443, %v3406, 0
      %v3416 = vsel %vm443, %v3407, 0
      %v3419 = vsel %vm443, %v3408, 0
      %v3422 = vsel %vm447, %v3388, 0
      %3424 = vmatprep.subr.bf16.mxu0 0
      %3425 = vmatpush1.bf16.msra.mxu0 0
      %3426 = vmatprep.subr.bf16.mxu0 0
      %3427 = vmatpush1.bf16.msra.mxu0 0
      %3428 = vmatprep.subr.bf16.mxu0 0
      %3429 = vmatpush1.bf16.msra.mxu0 0
      %3430 = vmatprep.subr.bf16.mxu0 0
      %3431 = vmatpush1.bf16.msra.mxu0 0
      %3432 = vmatprep.subr.bf16.mxu0 0
      %3433 = vmatpush1.bf16.msra.mxu0 0
      %3434 = vmatprep.subr.bf16.mxu0 0
      %3435 = vmatpush1.bf16.msra.mxu0 0
      %3436 = vmatprep.subr.bf16.mxu0 0
      %3437 = vmatpush1.bf16.msra.mxu0 0
      %3438 = vmatprep.subr.bf16.mxu0 0
      %3439 = vmatpush1.bf16.msra.mxu0 %v3422
      %3440 = vmatprep.subr.bf16.mxu0 0
      %3441 = vmatpush2.bf16.msra.mxu0 0
      %3442 = vmatprep.subr.bf16.mxu0 0
      %3443 = vmatpush2.bf16.msra.mxu0 0
      %3444 = vmatprep.subr.bf16.mxu0 0
      %3445 = vmatpush2.bf16.msra.mxu0 0
      %3446 = vmatprep.subr.bf16.mxu0 0
      %3447 = vmatpush2.bf16.msra.mxu0 0
      %3448 = vmatprep.subr.bf16.mxu0 0
      %3449 = vmatpush2.bf16.msra.mxu0 0
      %3450 = vmatprep.subr.bf16.mxu0 0
      %3451 = vmatpush2.bf16.msra.mxu0 0
      %3452 = vmatprep.subr.bf16.mxu0 0
      %3453 = vmatpush2.bf16.msra.mxu0 0
      %3454 = vmatprep.subr.bf16.mxu0 0
      %3455 = vmatpush2.bf16.msra.mxu0 0
      %3456 = vmatprep.mubr.bf16.mxu0 0
      %3457 = vmatmul.mubr.bf16.gmra.mxu0 %v3410
      %v3458 = vpop.f32.mrf.mxu0
      %v3459 = vadd.f32 0.0, %v3458
      %v3460 = vpop.f32.mrf.mxu0
      %v3461 = vpop.f32.mrf.mxu0
      %v3462 = vadd.f32 0.0, %v3461
      %v3463 = vpop.f32.mrf.mxu0
      %3464 = vmatprep.mubr.bf16.mxu0 0
      %3465 = vmatmul.mubr.bf16.gmra.mxu0 %v3413
      %v3466 = vpop.f32.mrf.mxu0
      %v3467 = vadd.f32 0.0, %v3466
      %v3468 = vpop.f32.mrf.mxu0
      %v3469 = vpop.f32.mrf.mxu0
      %v3470 = vadd.f32 0.0, %v3469
      %v3471 = vpop.f32.mrf.mxu0
      %3472 = vmatprep.mubr.bf16.mxu0 0
      %3473 = vmatmul.mubr.bf16.gmra.mxu0 %v3416
      %v3474 = vpop.f32.mrf.mxu0
      %v3475 = vadd.f32 0.0, %v3474
      %v3476 = vpop.f32.mrf.mxu0
      %v3477 = vpop.f32.mrf.mxu0
      %v3478 = vadd.f32 0.0, %v3477
      %v3479 = vpop.f32.mrf.mxu0
      %3480 = vmatprep.mubr.bf16.mxu0 0
      %3481 = vmatmul.mubr.bf16.gmra.mxu0 %v3419
      %v3482 = vpop.f32.mrf.mxu0
      %v3483 = vadd.f32 0.0, %v3482
      %v3484 = vpop.f32.mrf.mxu0
      %v3485 = vpop.f32.mrf.mxu0
      %v3486 = vadd.f32 0.0, %v3485
      %v3487 = vpop.f32.mrf.mxu0
      %3488 = vdwg.mxu0
      %v3489 = vadd.f32 %v3378, %v3459
      %v3490 = vadd.f32 %v3378, %v3462
      %v3491 = vadd.f32 %v3378, %v3467
      %v3492 = vadd.f32 %v3378, %v3470
      %v3493 = vadd.f32 %v3378, %v3475
      %v3494 = vadd.f32 %v3378, %v3478
      %v3495 = vadd.f32 %v3378, %v3483
      %v3496 = vadd.f32 %v3378, %v3486
      %v3497 = vld [vmem:[#allocation2] sm:$0xf]
      %v3498 = vld [vmem:[#allocation2 + $0x4] sm:$0x1]
      %v3499 = vld [vmem:[#allocation2 + $0x8] sm:$0xf]
      %v3500 = vld [vmem:[#allocation2 + $0xc] sm:$0x1]
      %v3501 = vld [vmem:[#allocation2 + $0x10] sm:$0xf]
      %v3502 = vld [vmem:[#allocation2 + $0x14] sm:$0x1]
      %v3503 = vld [vmem:[#allocation2 + $0x18] sm:$0xf]
      %v3504 = vld [vmem:[#allocation2 + $0x1c] sm:$0x1]
      %v3505 = vld [vmem:[#allocation2 + $0x20] sm:$0xf]
      %v3506 = vld [vmem:[#allocation2 + $0x24] sm:$0x1]
      %v3507 = vld [vmem:[#allocation2 + $0x28] sm:$0xf]
      %v3508 = vld [vmem:[#allocation2 + $0x2c] sm:$0x1]
      %v3509 = vld [vmem:[#allocation2 + $0x30] sm:$0xf]
      %v3510 = vld [vmem:[#allocation2 + $0x34] sm:$0x1]
      %v3511 = vld [vmem:[#allocation2 + $0x38] sm:$0xf]
      %v3512 = vld [vmem:[#allocation2 + $0x3c] sm:$0x1]
      %v3514 = vshrl.u32 %v3497, 16
      %v3516 = vrot.slane %v3514, 4
      %v3517 = vshll.u32 %v3497, 16
      %v3519 = vrot.slane %v3517, 5
      %v3520 = vor.u32 %v3516, %v3519
      %v3521 = vrot.slane %v3520, 4
      %v3523 = vshll.u32 %v3498, 16
      %v3525 = vrot.slane %v3523, 5
      %v3526 = vsel %vm1825, %v3521, %v3525
      %v3528 = vshrl.u32 %v3499, 16
      %v3530 = vrot.slane %v3528, 4
      %v3531 = vshll.u32 %v3499, 16
      %v3533 = vrot.slane %v3531, 5
      %v3534 = vor.u32 %v3530, %v3533
      %v3535 = vrot.slane %v3534, 4
      %v3537 = vshll.u32 %v3500, 16
      %v3539 = vrot.slane %v3537, 5
      %v3540 = vsel %vm1825, %v3535, %v3539
      %v3542 = vshrl.u32 %v3501, 16
      %v3544 = vrot.slane %v3542, 4
      %v3545 = vshll.u32 %v3501, 16
      %v3547 = vrot.slane %v3545, 5
      %v3548 = vor.u32 %v3544, %v3547
      %v3549 = vrot.slane %v3548, 4
      %v3551 = vshll.u32 %v3502, 16
      %v3553 = vrot.slane %v3551, 5
      %v3554 = vsel %vm1825, %v3549, %v3553
      %v3556 = vshrl.u32 %v3503, 16
      %v3558 = vrot.slane %v3556, 4
      %v3559 = vshll.u32 %v3503, 16
      %v3561 = vrot.slane %v3559, 5
      %v3562 = vor.u32 %v3558, %v3561
      %v3563 = vrot.slane %v3562, 4
      %v3565 = vshll.u32 %v3504, 16
      %v3567 = vrot.slane %v3565, 5
      %v3568 = vsel %vm1825, %v3563, %v3567
      %v3570 = vshrl.u32 %v3505, 16
      %v3572 = vrot.slane %v3570, 4
      %v3573 = vshll.u32 %v3505, 16
      %v3575 = vrot.slane %v3573, 5
      %v3576 = vor.u32 %v3572, %v3575
      %v3577 = vrot.slane %v3576, 4
      %v3579 = vshll.u32 %v3506, 16
      %v3581 = vrot.slane %v3579, 5
      %v3582 = vsel %vm1825, %v3577, %v3581
      %v3584 = vshrl.u32 %v3507, 16
      %v3586 = vrot.slane %v3584, 4
      %v3587 = vshll.u32 %v3507, 16
      %v3589 = vrot.slane %v3587, 5
      %v3590 = vor.u32 %v3586, %v3589
      %v3591 = vrot.slane %v3590, 4
      %v3593 = vshll.u32 %v3508, 16
      %v3595 = vrot.slane %v3593, 5
      %v3596 = vsel %vm1825, %v3591, %v3595
      %v3598 = vshrl.u32 %v3509, 16
      %v3600 = vrot.slane %v3598, 4
      %v3601 = vshll.u32 %v3509, 16
      %v3603 = vrot.slane %v3601, 5
      %v3604 = vor.u32 %v3600, %v3603
      %v3605 = vrot.slane %v3604, 4
      %v3607 = vshll.u32 %v3510, 16
      %v3609 = vrot.slane %v3607, 5
      %v3610 = vsel %vm1825, %v3605, %v3609
      %v3612 = vshrl.u32 %v3511, 16
      %v3614 = vrot.slane %v3612, 4
      %v3615 = vshll.u32 %v3511, 16
      %v3617 = vrot.slane %v3615, 5
      %v3618 = vor.u32 %v3614, %v3617
      %v3619 = vrot.slane %v3618, 4
      %v3621 = vshll.u32 %v3512, 16
      %v3623 = vrot.slane %v3621, 5
      %v3624 = vsel %vm1825, %v3619, %v3623
      %s3625 = scalar_lea.vmem %s5, 4
      %v3626 = vld [vmem:[%s3625] sm:$0xf]
      %v3627 = vunpack.c.l.b16 %v3526
      %v3628 = vunpack.c.l.b16 %v3540
      %v3629 = vunpack.c.l.b16 %v3554
      %v3630 = vunpack.c.l.b16 %v3568
      %v3631 = vunpack.c.l.b16 %v3582
      %v3632 = vunpack.c.l.b16 %v3596
      %v3633 = vunpack.c.l.b16 %v3610
      %v3634 = vunpack.c.l.b16 %v3624
      %v3635 = vpack.c.b16 %v3628, %v3627
      %v3636 = vpack.c.b16 %v3630, %v3629
      %v3637 = vpack.c.b16 %v3632, %v3631
      %v3638 = vpack.c.b16 %v3634, %v3633
      %v3640 = vsel %vm443, %v3635, 0
      %v3643 = vsel %vm443, %v3636, 0
      %v3646 = vsel %vm443, %v3637, 0
      %v3649 = vsel %vm443, %v3638, 0
      %v3652 = vsel %vm447, %v3626, 0
      %3654 = vmatprep.subr.bf16.mxu0 0
      %3655 = vmatpush1.bf16.msra.mxu0 0
      %3656 = vmatprep.subr.bf16.mxu0 0
      %3657 = vmatpush1.bf16.msra.mxu0 0
      %3658 = vmatprep.subr.bf16.mxu0 0
      %3659 = vmatpush1.bf16.msra.mxu0 0
      %3660 = vmatprep.subr.bf16.mxu0 0
      %3661 = vmatpush1.bf16.msra.mxu0 0
      %3662 = vmatprep.subr.bf16.mxu0 0
      %3663 = vmatpush1.bf16.msra.mxu0 0
      %3664 = vmatprep.subr.bf16.mxu0 0
      %3665 = vmatpush1.bf16.msra.mxu0 0
      %3666 = vmatprep.subr.bf16.mxu0 0
      %3667 = vmatpush1.bf16.msra.mxu0 0
      %3668 = vmatprep.subr.bf16.mxu0 0
      %3669 = vmatpush1.bf16.msra.mxu0 %v3652
      %3670 = vmatprep.subr.bf16.mxu0 0
      %3671 = vmatpush2.bf16.msra.mxu0 0
      %3672 = vmatprep.subr.bf16.mxu0 0
      %3673 = vmatpush2.bf16.msra.mxu0 0
      %3674 = vmatprep.subr.bf16.mxu0 0
      %3675 = vmatpush2.bf16.msra.mxu0 0
      %3676 = vmatprep.subr.bf16.mxu0 0
      %3677 = vmatpush2.bf16.msra.mxu0 0
      %3678 = vmatprep.subr.bf16.mxu0 0
      %3679 = vmatpush2.bf16.msra.mxu0 0
      %3680 = vmatprep.subr.bf16.mxu0 0
      %3681 = vmatpush2.bf16.msra.mxu0 0
      %3682 = vmatprep.subr.bf16.mxu0 0
      %3683 = vmatpush2.bf16.msra.mxu0 0
      %3684 = vmatprep.subr.bf16.mxu0 0
      %3685 = vmatpush2.bf16.msra.mxu0 0
      %3686 = vmatprep.mubr.bf16.mxu0 0
      %3687 = vmatmul.mubr.bf16.gmra.mxu0 %v3640
      %v3688 = vpop.f32.mrf.mxu0
      %v3689 = vadd.f32 0.0, %v3688
      %v3690 = vpop.f32.mrf.mxu0
      %v3691 = vpop.f32.mrf.mxu0
      %v3692 = vadd.f32 0.0, %v3691
      %v3693 = vpop.f32.mrf.mxu0
      %3694 = vmatprep.mubr.bf16.mxu0 0
      %3695 = vmatmul.mubr.bf16.gmra.mxu0 %v3643
      %v3696 = vpop.f32.mrf.mxu0
      %v3697 = vadd.f32 0.0, %v3696
      %v3698 = vpop.f32.mrf.mxu0
      %v3699 = vpop.f32.mrf.mxu0
      %v3700 = vadd.f32 0.0, %v3699
      %v3701 = vpop.f32.mrf.mxu0
      %3702 = vmatprep.mubr.bf16.mxu0 0
      %3703 = vmatmul.mubr.bf16.gmra.mxu0 %v3646
      %v3704 = vpop.f32.mrf.mxu0
      %v3705 = vadd.f32 0.0, %v3704
      %v3706 = vpop.f32.mrf.mxu0
      %v3707 = vpop.f32.mrf.mxu0
      %v3708 = vadd.f32 0.0, %v3707
      %v3709 = vpop.f32.mrf.mxu0
      %3710 = vmatprep.mubr.bf16.mxu0 0
      %3711 = vmatmul.mubr.bf16.gmra.mxu0 %v3649
      %v3712 = vpop.f32.mrf.mxu0
      %v3713 = vadd.f32 0.0, %v3712
      %v3714 = vpop.f32.mrf.mxu0
      %v3715 = vpop.f32.mrf.mxu0
      %v3716 = vadd.f32 0.0, %v3715
      %v3717 = vpop.f32.mrf.mxu0
      %3718 = vdwg.mxu0
      %v3719 = vadd.f32 %v3489, %v3689
      %v3720 = vadd.f32 %v3490, %v3692
      %v3721 = vadd.f32 %v3491, %v3697
      %v3722 = vadd.f32 %v3492, %v3700
      %v3723 = vadd.f32 %v3493, %v3705
      %v3724 = vadd.f32 %v3494, %v3708
      %v3725 = vadd.f32 %v3495, %v3713
      %v3726 = vadd.f32 %v3496, %v3716
      %v3727 = vld [vmem:[#allocation2] sm:$0xe]
      %v3728 = vld [vmem:[#allocation2 + $0x8] sm:$0xe]
      %v3729 = vld [vmem:[#allocation2 + $0x10] sm:$0xe]
      %v3730 = vld [vmem:[#allocation2 + $0x18] sm:$0xe]
      %v3731 = vld [vmem:[#allocation2 + $0x20] sm:$0xe]
      %v3732 = vld [vmem:[#allocation2 + $0x28] sm:$0xe]
      %v3733 = vld [vmem:[#allocation2 + $0x30] sm:$0xe]
      %v3734 = vld [vmem:[#allocation2 + $0x38] sm:$0xe]
      %v3751 = vrot.slane %v3727, 5
      %v3752 = vrot.slane %v3751, 4
      %v3753 = vrot.slane %v3498, 5
      %v3754 = vsel %vm2066, %v3752, %v3753
      %v3755 = vrot.slane %v3728, 5
      %v3756 = vrot.slane %v3755, 4
      %v3757 = vrot.slane %v3500, 5
      %v3758 = vsel %vm2066, %v3756, %v3757
      %v3759 = vrot.slane %v3729, 5
      %v3760 = vrot.slane %v3759, 4
      %v3761 = vrot.slane %v3502, 5
      %v3762 = vsel %vm2066, %v3760, %v3761
      %v3763 = vrot.slane %v3730, 5
      %v3764 = vrot.slane %v3763, 4
      %v3765 = vrot.slane %v3504, 5
      %v3766 = vsel %vm2066, %v3764, %v3765
      %v3767 = vrot.slane %v3731, 5
      %v3768 = vrot.slane %v3767, 4
      %v3769 = vrot.slane %v3506, 5
      %v3770 = vsel %vm2066, %v3768, %v3769
      %v3771 = vrot.slane %v3732, 5
      %v3772 = vrot.slane %v3771, 4
      %v3773 = vrot.slane %v3508, 5
      %v3774 = vsel %vm2066, %v3772, %v3773
      %v3775 = vrot.slane %v3733, 5
      %v3776 = vrot.slane %v3775, 4
      %v3777 = vrot.slane %v3510, 5
      %v3778 = vsel %vm2066, %v3776, %v3777
      %v3779 = vrot.slane %v3734, 5
      %v3780 = vrot.slane %v3779, 4
      %v3781 = vrot.slane %v3512, 5
      %v3782 = vsel %vm2066, %v3780, %v3781
      %s3783 = scalar_lea.vmem %s5, 8
      %v3784 = vld [vmem:[%s3783] sm:$0xf]
      %v3785 = vunpack.c.l.b16 %v3754
      %v3786 = vunpack.c.l.b16 %v3758
      %v3787 = vunpack.c.l.b16 %v3762
      %v3788 = vunpack.c.l.b16 %v3766
      %v3789 = vunpack.c.l.b16 %v3770
      %v3790 = vunpack.c.l.b16 %v3774
      %v3791 = vunpack.c.l.b16 %v3778
      %v3792 = vunpack.c.l.b16 %v3782
      %v3793 = vpack.c.b16 %v3786, %v3785
      %v3794 = vpack.c.b16 %v3788, %v3787
      %v3795 = vpack.c.b16 %v3790, %v3789
      %v3796 = vpack.c.b16 %v3792, %v3791
      %v3798 = vsel %vm443, %v3793, 0
      %v3801 = vsel %vm443, %v3794, 0
      %v3804 = vsel %vm443, %v3795, 0
      %v3807 = vsel %vm443, %v3796, 0
      %v3810 = vsel %vm447, %v3784, 0
      %3812 = vmatprep.subr.bf16.mxu0 0
      %3813 = vmatpush1.bf16.msra.mxu0 0
      %3814 = vmatprep.subr.bf16.mxu0 0
      %3815 = vmatpush1.bf16.msra.mxu0 0
      %3816 = vmatprep.subr.bf16.mxu0 0
      %3817 = vmatpush1.bf16.msra.mxu0 0
      %3818 = vmatprep.subr.bf16.mxu0 0
      %3819 = vmatpush1.bf16.msra.mxu0 0
      %3820 = vmatprep.subr.bf16.mxu0 0
      %3821 = vmatpush1.bf16.msra.mxu0 0
      %3822 = vmatprep.subr.bf16.mxu0 0
      %3823 = vmatpush1.bf16.msra.mxu0 0
      %3824 = vmatprep.subr.bf16.mxu0 0
      %3825 = vmatpush1.bf16.msra.mxu0 0
      %3826 = vmatprep.subr.bf16.mxu0 0
      %3827 = vmatpush1.bf16.msra.mxu0 %v3810
      %3828 = vmatprep.subr.bf16.mxu0 0
      %3829 = vmatpush2.bf16.msra.mxu0 0
      %3830 = vmatprep.subr.bf16.mxu0 0
      %3831 = vmatpush2.bf16.msra.mxu0 0
      %3832 = vmatprep.subr.bf16.mxu0 0
      %3833 = vmatpush2.bf16.msra.mxu0 0
      %3834 = vmatprep.subr.bf16.mxu0 0
      %3835 = vmatpush2.bf16.msra.mxu0 0
      %3836 = vmatprep.subr.bf16.mxu0 0
      %3837 = vmatpush2.bf16.msra.mxu0 0
      %3838 = vmatprep.subr.bf16.mxu0 0
      %3839 = vmatpush2.bf16.msra.mxu0 0
      %3840 = vmatprep.subr.bf16.mxu0 0
      %3841 = vmatpush2.bf16.msra.mxu0 0
      %3842 = vmatprep.subr.bf16.mxu0 0
      %3843 = vmatpush2.bf16.msra.mxu0 0
      %3844 = vmatprep.mubr.bf16.mxu0 0
      %3845 = vmatmul.mubr.bf16.gmra.mxu0 %v3798
      %v3846 = vpop.f32.mrf.mxu0
      %v3847 = vadd.f32 0.0, %v3846
      %v3848 = vpop.f32.mrf.mxu0
      %v3849 = vpop.f32.mrf.mxu0
      %v3850 = vadd.f32 0.0, %v3849
      %v3851 = vpop.f32.mrf.mxu0
      %3852 = vmatprep.mubr.bf16.mxu0 0
      %3853 = vmatmul.mubr.bf16.gmra.mxu0 %v3801
      %v3854 = vpop.f32.mrf.mxu0
      %v3855 = vadd.f32 0.0, %v3854
      %v3856 = vpop.f32.mrf.mxu0
      %v3857 = vpop.f32.mrf.mxu0
      %v3858 = vadd.f32 0.0, %v3857
      %v3859 = vpop.f32.mrf.mxu0
      %3860 = vmatprep.mubr.bf16.mxu0 0
      %3861 = vmatmul.mubr.bf16.gmra.mxu0 %v3804
      %v3862 = vpop.f32.mrf.mxu0
      %v3863 = vadd.f32 0.0, %v3862
      %v3864 = vpop.f32.mrf.mxu0
      %v3865 = vpop.f32.mrf.mxu0
      %v3866 = vadd.f32 0.0, %v3865
      %v3867 = vpop.f32.mrf.mxu0
      %3868 = vmatprep.mubr.bf16.mxu0 0
      %3869 = vmatmul.mubr.bf16.gmra.mxu0 %v3807
      %v3870 = vpop.f32.mrf.mxu0
      %v3871 = vadd.f32 0.0, %v3870
      %v3872 = vpop.f32.mrf.mxu0
      %v3873 = vpop.f32.mrf.mxu0
      %v3874 = vadd.f32 0.0, %v3873
      %v3875 = vpop.f32.mrf.mxu0
      %3876 = vdwg.mxu0
      %v3877 = vadd.f32 %v3719, %v3847
      %v3878 = vadd.f32 %v3720, %v3850
      %v3879 = vadd.f32 %v3721, %v3855
      %v3880 = vadd.f32 %v3722, %v3858
      %v3881 = vadd.f32 %v3723, %v3863
      %v3882 = vadd.f32 %v3724, %v3866
      %v3883 = vadd.f32 %v3725, %v3871
      %v3884 = vadd.f32 %v3726, %v3874
      %v3885 = vld [vmem:[%s1629] sm:$0xf]
      %v3886 = vld [vmem:[%s1629 + $0x8] sm:$0xf]
      %v3887 = vld [vmem:[%s1629 + $0x10] sm:$0xf]
      %v3888 = vld [vmem:[%s1629 + $0x18] sm:$0xf]
      %v3889 = vld [vmem:[%s1629 + $0x20] sm:$0xf]
      %v3890 = vld [vmem:[%s1629 + $0x28] sm:$0xf]
      %v3891 = vld [vmem:[%s1629 + $0x30] sm:$0xf]
      %v3892 = vld [vmem:[%s1629 + $0x38] sm:$0xf]
      %s3893 = scalar_lea.vmem %s5, 12
      %v3894 = vld [vmem:[%s3893] sm:$0xf]
      %v3903 = vunpack.c.l.b16 %v3885
      %v3904 = vunpack.c.l.b16 %v3886
      %v3905 = vunpack.c.l.b16 %v3887
      %v3906 = vunpack.c.l.b16 %v3888
      %v3907 = vunpack.c.l.b16 %v3889
      %v3908 = vunpack.c.l.b16 %v3890
      %v3909 = vunpack.c.l.b16 %v3891
      %v3910 = vunpack.c.l.b16 %v3892
      %v3911 = vpack.c.b16 %v3904, %v3903
      %v3912 = vpack.c.b16 %v3906, %v3905
      %v3913 = vpack.c.b16 %v3908, %v3907
      %v3914 = vpack.c.b16 %v3910, %v3909
      %v3916 = vsel %vm443, %v3911, 0
      %v3919 = vsel %vm443, %v3912, 0
      %v3922 = vsel %vm443, %v3913, 0
      %v3925 = vsel %vm443, %v3914, 0
      %v3928 = vsel %vm447, %v3894, 0
      %3930 = vmatprep.subr.bf16.mxu0 0
      %3931 = vmatpush1.bf16.msra.mxu0 0
      %3932 = vmatprep.subr.bf16.mxu0 0
      %3933 = vmatpush1.bf16.msra.mxu0 0
      %3934 = vmatprep.subr.bf16.mxu0 0
      %3935 = vmatpush1.bf16.msra.mxu0 0
      %3936 = vmatprep.subr.bf16.mxu0 0
      %3937 = vmatpush1.bf16.msra.mxu0 0
      %3938 = vmatprep.subr.bf16.mxu0 0
      %3939 = vmatpush1.bf16.msra.mxu0 0
      %3940 = vmatprep.subr.bf16.mxu0 0
      %3941 = vmatpush1.bf16.msra.mxu0 0
      %3942 = vmatprep.subr.bf16.mxu0 0
      %3943 = vmatpush1.bf16.msra.mxu0 0
      %3944 = vmatprep.subr.bf16.mxu0 0
      %3945 = vmatpush1.bf16.msra.mxu0 %v3928
      %3946 = vmatprep.subr.bf16.mxu0 0
      %3947 = vmatpush2.bf16.msra.mxu0 0
      %3948 = vmatprep.subr.bf16.mxu0 0
      %3949 = vmatpush2.bf16.msra.mxu0 0
      %3950 = vmatprep.subr.bf16.mxu0 0
      %3951 = vmatpush2.bf16.msra.mxu0 0
      %3952 = vmatprep.subr.bf16.mxu0 0
      %3953 = vmatpush2.bf16.msra.mxu0 0
      %3954 = vmatprep.subr.bf16.mxu0 0
      %3955 = vmatpush2.bf16.msra.mxu0 0
      %3956 = vmatprep.subr.bf16.mxu0 0
      %3957 = vmatpush2.bf16.msra.mxu0 0
      %3958 = vmatprep.subr.bf16.mxu0 0
      %3959 = vmatpush2.bf16.msra.mxu0 0
      %3960 = vmatprep.subr.bf16.mxu0 0
      %3961 = vmatpush2.bf16.msra.mxu0 0
      %3962 = vmatprep.mubr.bf16.mxu0 0
      %3963 = vmatmul.mubr.bf16.gmra.mxu0 %v3916
      %v3964 = vpop.f32.mrf.mxu0
      %v3965 = vadd.f32 0.0, %v3964
      %v3966 = vpop.f32.mrf.mxu0
      %v3967 = vpop.f32.mrf.mxu0
      %v3968 = vadd.f32 0.0, %v3967
      %v3969 = vpop.f32.mrf.mxu0
      %3970 = vmatprep.mubr.bf16.mxu0 0
      %3971 = vmatmul.mubr.bf16.gmra.mxu0 %v3919
      %v3972 = vpop.f32.mrf.mxu0
      %v3973 = vadd.f32 0.0, %v3972
      %v3974 = vpop.f32.mrf.mxu0
      %v3975 = vpop.f32.mrf.mxu0
      %v3976 = vadd.f32 0.0, %v3975
      %v3977 = vpop.f32.mrf.mxu0
      %3978 = vmatprep.mubr.bf16.mxu0 0
      %3979 = vmatmul.mubr.bf16.gmra.mxu0 %v3922
      %v3980 = vpop.f32.mrf.mxu0
      %v3981 = vadd.f32 0.0, %v3980
      %v3982 = vpop.f32.mrf.mxu0
      %v3983 = vpop.f32.mrf.mxu0
      %v3984 = vadd.f32 0.0, %v3983
      %v3985 = vpop.f32.mrf.mxu0
      %3986 = vmatprep.mubr.bf16.mxu0 0
      %3987 = vmatmul.mubr.bf16.gmra.mxu0 %v3925
      %v3988 = vpop.f32.mrf.mxu0
      %v3989 = vadd.f32 0.0, %v3988
      %v3990 = vpop.f32.mrf.mxu0
      %v3991 = vpop.f32.mrf.mxu0
      %v3992 = vadd.f32 0.0, %v3991
      %v3993 = vpop.f32.mrf.mxu0
      %3994 = vdwg.mxu0
      %v3995 = vadd.f32 %v3877, %v3965
      %v3996 = vadd.f32 %v3878, %v3968
      %v3997 = vadd.f32 %v3879, %v3973
      %v3998 = vadd.f32 %v3880, %v3976
      %v3999 = vadd.f32 %v3881, %v3981
      %v4000 = vadd.f32 %v3882, %v3984
      %v4001 = vadd.f32 %v3883, %v3989
      %v4002 = vadd.f32 %v3884, %v3992
      %v4003 = vld [vmem:[%s1629] sm:$0xf]
      %v4004 = vld [vmem:[%s1629 + $0x4] sm:$0x1]
      %v4005 = vld [vmem:[%s1629 + $0x8] sm:$0xf]
      %v4006 = vld [vmem:[%s1629 + $0xc] sm:$0x1]
      %v4007 = vld [vmem:[%s1629 + $0x10] sm:$0xf]
      %v4008 = vld [vmem:[%s1629 + $0x14] sm:$0x1]
      %v4009 = vld [vmem:[%s1629 + $0x18] sm:$0xf]
      %v4010 = vld [vmem:[%s1629 + $0x1c] sm:$0x1]
      %v4011 = vld [vmem:[%s1629 + $0x20] sm:$0xf]
      %v4012 = vld [vmem:[%s1629 + $0x24] sm:$0x1]
      %v4013 = vld [vmem:[%s1629 + $0x28] sm:$0xf]
      %v4014 = vld [vmem:[%s1629 + $0x2c] sm:$0x1]
      %v4015 = vld [vmem:[%s1629 + $0x30] sm:$0xf]
      %v4016 = vld [vmem:[%s1629 + $0x34] sm:$0x1]
      %v4017 = vld [vmem:[%s1629 + $0x38] sm:$0xf]
      %v4018 = vld [vmem:[%s1629 + $0x3c] sm:$0x1]
      %v4020 = vshrl.u32 %v4003, 16
      %v4022 = vrot.slane %v4020, 4
      %v4023 = vshll.u32 %v4003, 16
      %v4025 = vrot.slane %v4023, 5
      %v4026 = vor.u32 %v4022, %v4025
      %v4027 = vrot.slane %v4026, 4
      %v4029 = vshll.u32 %v4004, 16
      %v4031 = vrot.slane %v4029, 5
      %v4032 = vsel %vm1825, %v4027, %v4031
      %v4034 = vshrl.u32 %v4005, 16
      %v4036 = vrot.slane %v4034, 4
      %v4037 = vshll.u32 %v4005, 16
      %v4039 = vrot.slane %v4037, 5
      %v4040 = vor.u32 %v4036, %v4039
      %v4041 = vrot.slane %v4040, 4
      %v4043 = vshll.u32 %v4006, 16
      %v4045 = vrot.slane %v4043, 5
      %v4046 = vsel %vm1825, %v4041, %v4045
      %v4048 = vshrl.u32 %v4007, 16
      %v4050 = vrot.slane %v4048, 4
      %v4051 = vshll.u32 %v4007, 16
      %v4053 = vrot.slane %v4051, 5
      %v4054 = vor.u32 %v4050, %v4053
      %v4055 = vrot.slane %v4054, 4
      %v4057 = vshll.u32 %v4008, 16
      %v4059 = vrot.slane %v4057, 5
      %v4060 = vsel %vm1825, %v4055, %v4059
      %v4062 = vshrl.u32 %v4009, 16
      %v4064 = vrot.slane %v4062, 4
      %v4065 = vshll.u32 %v4009, 16
      %v4067 = vrot.slane %v4065, 5
      %v4068 = vor.u32 %v4064, %v4067
      %v4069 = vrot.slane %v4068, 4
      %v4071 = vshll.u32 %v4010, 16
      %v4073 = vrot.slane %v4071, 5
      %v4074 = vsel %vm1825, %v4069, %v4073
      %v4076 = vshrl.u32 %v4011, 16
      %v4078 = vrot.slane %v4076, 4
      %v4079 = vshll.u32 %v4011, 16
      %v4081 = vrot.slane %v4079, 5
      %v4082 = vor.u32 %v4078, %v4081
      %v4083 = vrot.slane %v4082, 4
      %v4085 = vshll.u32 %v4012, 16
      %v4087 = vrot.slane %v4085, 5
      %v4088 = vsel %vm1825, %v4083, %v4087
      %v4090 = vshrl.u32 %v4013, 16
      %v4092 = vrot.slane %v4090, 4
      %v4093 = vshll.u32 %v4013, 16
      %v4095 = vrot.slane %v4093, 5
      %v4096 = vor.u32 %v4092, %v4095
      %v4097 = vrot.slane %v4096, 4
      %v4099 = vshll.u32 %v4014, 16
      %v4101 = vrot.slane %v4099, 5
      %v4102 = vsel %vm1825, %v4097, %v4101
      %v4104 = vshrl.u32 %v4015, 16
      %v4106 = vrot.slane %v4104, 4
      %v4107 = vshll.u32 %v4015, 16
      %v4109 = vrot.slane %v4107, 5
      %v4110 = vor.u32 %v4106, %v4109
      %v4111 = vrot.slane %v4110, 4
      %v4113 = vshll.u32 %v4016, 16
      %v4115 = vrot.slane %v4113, 5
      %v4116 = vsel %vm1825, %v4111, %v4115
      %v4118 = vshrl.u32 %v4017, 16
      %v4120 = vrot.slane %v4118, 4
      %v4121 = vshll.u32 %v4017, 16
      %v4123 = vrot.slane %v4121, 5
      %v4124 = vor.u32 %v4120, %v4123
      %v4125 = vrot.slane %v4124, 4
      %v4127 = vshll.u32 %v4018, 16
      %v4129 = vrot.slane %v4127, 5
      %v4130 = vsel %vm1825, %v4125, %v4129
      %s4131 = scalar_lea.vmem %s5, 16
      %v4132 = vld [vmem:[%s4131] sm:$0xf]
      %v4133 = vunpack.c.l.b16 %v4032
      %v4134 = vunpack.c.l.b16 %v4046
      %v4135 = vunpack.c.l.b16 %v4060
      %v4136 = vunpack.c.l.b16 %v4074
      %v4137 = vunpack.c.l.b16 %v4088
      %v4138 = vunpack.c.l.b16 %v4102
      %v4139 = vunpack.c.l.b16 %v4116
      %v4140 = vunpack.c.l.b16 %v4130
      %v4141 = vpack.c.b16 %v4134, %v4133
      %v4142 = vpack.c.b16 %v4136, %v4135
      %v4143 = vpack.c.b16 %v4138, %v4137
      %v4144 = vpack.c.b16 %v4140, %v4139
      %v4146 = vsel %vm443, %v4141, 0
      %v4149 = vsel %vm443, %v4142, 0
      %v4152 = vsel %vm443, %v4143, 0
      %v4155 = vsel %vm443, %v4144, 0
      %v4158 = vsel %vm447, %v4132, 0
      %4160 = vmatprep.subr.bf16.mxu0 0
      %4161 = vmatpush1.bf16.msra.mxu0 0
      %4162 = vmatprep.subr.bf16.mxu0 0
      %4163 = vmatpush1.bf16.msra.mxu0 0
      %4164 = vmatprep.subr.bf16.mxu0 0
      %4165 = vmatpush1.bf16.msra.mxu0 0
      %4166 = vmatprep.subr.bf16.mxu0 0
      %4167 = vmatpush1.bf16.msra.mxu0 0
      %4168 = vmatprep.subr.bf16.mxu0 0
      %4169 = vmatpush1.bf16.msra.mxu0 0
      %4170 = vmatprep.subr.bf16.mxu0 0
      %4171 = vmatpush1.bf16.msra.mxu0 0
      %4172 = vmatprep.subr.bf16.mxu0 0
      %4173 = vmatpush1.bf16.msra.mxu0 0
      %4174 = vmatprep.subr.bf16.mxu0 0
      %4175 = vmatpush1.bf16.msra.mxu0 %v4158
      %4176 = vmatprep.subr.bf16.mxu0 0
      %4177 = vmatpush2.bf16.msra.mxu0 0
      %4178 = vmatprep.subr.bf16.mxu0 0
      %4179 = vmatpush2.bf16.msra.mxu0 0
      %4180 = vmatprep.subr.bf16.mxu0 0
      %4181 = vmatpush2.bf16.msra.mxu0 0
      %4182 = vmatprep.subr.bf16.mxu0 0
      %4183 = vmatpush2.bf16.msra.mxu0 0
      %4184 = vmatprep.subr.bf16.mxu0 0
      %4185 = vmatpush2.bf16.msra.mxu0 0
      %4186 = vmatprep.subr.bf16.mxu0 0
      %4187 = vmatpush2.bf16.msra.mxu0 0
      %4188 = vmatprep.subr.bf16.mxu0 0
      %4189 = vmatpush2.bf16.msra.mxu0 0
      %4190 = vmatprep.subr.bf16.mxu0 0
      %4191 = vmatpush2.bf16.msra.mxu0 0
      %4192 = vmatprep.mubr.bf16.mxu0 0
      %4193 = vmatmul.mubr.bf16.gmra.mxu0 %v4146
      %v4194 = vpop.f32.mrf.mxu0
      %v4195 = vadd.f32 0.0, %v4194
      %v4196 = vpop.f32.mrf.mxu0
      %v4197 = vpop.f32.mrf.mxu0
      %v4198 = vadd.f32 0.0, %v4197
      %v4199 = vpop.f32.mrf.mxu0
      %4200 = vmatprep.mubr.bf16.mxu0 0
      %4201 = vmatmul.mubr.bf16.gmra.mxu0 %v4149
      %v4202 = vpop.f32.mrf.mxu0
      %v4203 = vadd.f32 0.0, %v4202
      %v4204 = vpop.f32.mrf.mxu0
      %v4205 = vpop.f32.mrf.mxu0
      %v4206 = vadd.f32 0.0, %v4205
      %v4207 = vpop.f32.mrf.mxu0
      %4208 = vmatprep.mubr.bf16.mxu0 0
      %4209 = vmatmul.mubr.bf16.gmra.mxu0 %v4152
      %v4210 = vpop.f32.mrf.mxu0
      %v4211 = vadd.f32 0.0, %v4210
      %v4212 = vpop.f32.mrf.mxu0
      %v4213 = vpop.f32.mrf.mxu0
      %v4214 = vadd.f32 0.0, %v4213
      %v4215 = vpop.f32.mrf.mxu0
      %4216 = vmatprep.mubr.bf16.mxu0 0
      %4217 = vmatmul.mubr.bf16.gmra.mxu0 %v4155
      %v4218 = vpop.f32.mrf.mxu0
      %v4219 = vadd.f32 0.0, %v4218
      %v4220 = vpop.f32.mrf.mxu0
      %v4221 = vpop.f32.mrf.mxu0
      %v4222 = vadd.f32 0.0, %v4221
      %v4223 = vpop.f32.mrf.mxu0
      %4224 = vdwg.mxu0
      %v4225 = vadd.f32 %v3995, %v4195
      %v4226 = vadd.f32 %v3996, %v4198
      %v4227 = vadd.f32 %v3997, %v4203
      %v4228 = vadd.f32 %v3998, %v4206
      %v4229 = vadd.f32 %v3999, %v4211
      %v4230 = vadd.f32 %v4000, %v4214
      %v4231 = vadd.f32 %v4001, %v4219
      %v4232 = vadd.f32 %v4002, %v4222
      %v4233 = vld [vmem:[%s1629] sm:$0xe]
      %v4234 = vld [vmem:[%s1629 + $0x8] sm:$0xe]
      %v4235 = vld [vmem:[%s1629 + $0x10] sm:$0xe]
      %v4236 = vld [vmem:[%s1629 + $0x18] sm:$0xe]
      %v4237 = vld [vmem:[%s1629 + $0x20] sm:$0xe]
      %v4238 = vld [vmem:[%s1629 + $0x28] sm:$0xe]
      %v4239 = vld [vmem:[%s1629 + $0x30] sm:$0xe]
      %v4240 = vld [vmem:[%s1629 + $0x38] sm:$0xe]
      %v4257 = vrot.slane %v4233, 5
      %v4258 = vrot.slane %v4257, 4
      %v4259 = vrot.slane %v4004, 5
      %v4260 = vsel %vm2066, %v4258, %v4259
      %v4261 = vrot.slane %v4234, 5
      %v4262 = vrot.slane %v4261, 4
      %v4263 = vrot.slane %v4006, 5
      %v4264 = vsel %vm2066, %v4262, %v4263
      %v4265 = vrot.slane %v4235, 5
      %v4266 = vrot.slane %v4265, 4
      %v4267 = vrot.slane %v4008, 5
      %v4268 = vsel %vm2066, %v4266, %v4267
      %v4269 = vrot.slane %v4236, 5
      %v4270 = vrot.slane %v4269, 4
      %v4271 = vrot.slane %v4010, 5
      %v4272 = vsel %vm2066, %v4270, %v4271
      %v4273 = vrot.slane %v4237, 5
      %v4274 = vrot.slane %v4273, 4
      %v4275 = vrot.slane %v4012, 5
      %v4276 = vsel %vm2066, %v4274, %v4275
      %v4277 = vrot.slane %v4238, 5
      %v4278 = vrot.slane %v4277, 4
      %v4279 = vrot.slane %v4014, 5
      %v4280 = vsel %vm2066, %v4278, %v4279
      %v4281 = vrot.slane %v4239, 5
      %v4282 = vrot.slane %v4281, 4
      %v4283 = vrot.slane %v4016, 5
      %v4284 = vsel %vm2066, %v4282, %v4283
      %v4285 = vrot.slane %v4240, 5
      %v4286 = vrot.slane %v4285, 4
      %v4287 = vrot.slane %v4018, 5
      %v4288 = vsel %vm2066, %v4286, %v4287
      %s4289 = scalar_lea.vmem %s5, 20
      %v4290 = vld [vmem:[%s4289] sm:$0xf]
      %v4291 = vunpack.c.l.b16 %v4260
      %v4292 = vunpack.c.l.b16 %v4264
      %v4293 = vunpack.c.l.b16 %v4268
      %v4294 = vunpack.c.l.b16 %v4272
      %v4295 = vunpack.c.l.b16 %v4276
      %v4296 = vunpack.c.l.b16 %v4280
      %v4297 = vunpack.c.l.b16 %v4284
      %v4298 = vunpack.c.l.b16 %v4288
      %v4299 = vpack.c.b16 %v4292, %v4291
      %v4300 = vpack.c.b16 %v4294, %v4293
      %v4301 = vpack.c.b16 %v4296, %v4295
      %v4302 = vpack.c.b16 %v4298, %v4297
      %v4304 = vsel %vm443, %v4299, 0
      %v4307 = vsel %vm443, %v4300, 0
      %v4310 = vsel %vm443, %v4301, 0
      %v4313 = vsel %vm443, %v4302, 0
      %v4316 = vsel %vm447, %v4290, 0
      %4318 = vmatprep.subr.bf16.mxu0 0
      %4319 = vmatpush1.bf16.msra.mxu0 0
      %4320 = vmatprep.subr.bf16.mxu0 0
      %4321 = vmatpush1.bf16.msra.mxu0 0
      %4322 = vmatprep.subr.bf16.mxu0 0
      %4323 = vmatpush1.bf16.msra.mxu0 0
      %4324 = vmatprep.subr.bf16.mxu0 0
      %4325 = vmatpush1.bf16.msra.mxu0 0
      %4326 = vmatprep.subr.bf16.mxu0 0
      %4327 = vmatpush1.bf16.msra.mxu0 0
      %4328 = vmatprep.subr.bf16.mxu0 0
      %4329 = vmatpush1.bf16.msra.mxu0 0
      %4330 = vmatprep.subr.bf16.mxu0 0
      %4331 = vmatpush1.bf16.msra.mxu0 0
      %4332 = vmatprep.subr.bf16.mxu0 0
      %4333 = vmatpush1.bf16.msra.mxu0 %v4316
      %4334 = vmatprep.subr.bf16.mxu0 0
      %4335 = vmatpush2.bf16.msra.mxu0 0
      %4336 = vmatprep.subr.bf16.mxu0 0
      %4337 = vmatpush2.bf16.msra.mxu0 0
      %4338 = vmatprep.subr.bf16.mxu0 0
      %4339 = vmatpush2.bf16.msra.mxu0 0
      %4340 = vmatprep.subr.bf16.mxu0 0
      %4341 = vmatpush2.bf16.msra.mxu0 0
      %4342 = vmatprep.subr.bf16.mxu0 0
      %4343 = vmatpush2.bf16.msra.mxu0 0
      %4344 = vmatprep.subr.bf16.mxu0 0
      %4345 = vmatpush2.bf16.msra.mxu0 0
      %4346 = vmatprep.subr.bf16.mxu0 0
      %4347 = vmatpush2.bf16.msra.mxu0 0
      %4348 = vmatprep.subr.bf16.mxu0 0
      %4349 = vmatpush2.bf16.msra.mxu0 0
      %4350 = vmatprep.mubr.bf16.mxu0 0
      %4351 = vmatmul.mubr.bf16.gmra.mxu0 %v4304
      %v4352 = vpop.f32.mrf.mxu0
      %v4353 = vadd.f32 0.0, %v4352
      %v4354 = vpop.f32.mrf.mxu0
      %v4355 = vpop.f32.mrf.mxu0
      %v4356 = vadd.f32 0.0, %v4355
      %v4357 = vpop.f32.mrf.mxu0
      %4358 = vmatprep.mubr.bf16.mxu0 0
      %4359 = vmatmul.mubr.bf16.gmra.mxu0 %v4307
      %v4360 = vpop.f32.mrf.mxu0
      %v4361 = vadd.f32 0.0, %v4360
      %v4362 = vpop.f32.mrf.mxu0
      %v4363 = vpop.f32.mrf.mxu0
      %v4364 = vadd.f32 0.0, %v4363
      %v4365 = vpop.f32.mrf.mxu0
      %4366 = vmatprep.mubr.bf16.mxu0 0
      %4367 = vmatmul.mubr.bf16.gmra.mxu0 %v4310
      %v4368 = vpop.f32.mrf.mxu0
      %v4369 = vadd.f32 0.0, %v4368
      %v4370 = vpop.f32.mrf.mxu0
      %v4371 = vpop.f32.mrf.mxu0
      %v4372 = vadd.f32 0.0, %v4371
      %v4373 = vpop.f32.mrf.mxu0
      %4374 = vmatprep.mubr.bf16.mxu0 0
      %4375 = vmatmul.mubr.bf16.gmra.mxu0 %v4313
      %v4376 = vpop.f32.mrf.mxu0
      %v4377 = vadd.f32 0.0, %v4376
      %v4378 = vpop.f32.mrf.mxu0
      %v4379 = vpop.f32.mrf.mxu0
      %v4380 = vadd.f32 0.0, %v4379
      %v4381 = vpop.f32.mrf.mxu0
      %4382 = vdwg.mxu0
      %v4383 = vadd.f32 %v4225, %v4353
      %v4384 = vadd.f32 %v4226, %v4356
      %v4385 = vadd.f32 %v4227, %v4361
      %v4386 = vadd.f32 %v4228, %v4364
      %v4387 = vadd.f32 %v4229, %v4369
      %v4388 = vadd.f32 %v4230, %v4372
      %v4389 = vadd.f32 %v4231, %v4377
      %v4390 = vadd.f32 %v4232, %v4380
      %v4391 = vld [vmem:[%s2707] sm:$0xf]
      %v4392 = vld [vmem:[%s2707 + $0x8] sm:$0xf]
      %v4393 = vld [vmem:[%s2707 + $0x10] sm:$0xf]
      %v4394 = vld [vmem:[%s2707 + $0x18] sm:$0xf]
      %v4395 = vld [vmem:[%s2707 + $0x20] sm:$0xf]
      %v4396 = vld [vmem:[%s2707 + $0x28] sm:$0xf]
      %v4397 = vld [vmem:[%s2707 + $0x30] sm:$0xf]
      %v4398 = vld [vmem:[%s2707 + $0x38] sm:$0xf]
      %s4399 = scalar_lea.vmem %s5, 24
      %v4400 = vld [vmem:[%s4399] sm:$0xf]
      %v4409 = vunpack.c.l.b16 %v4391
      %v4410 = vunpack.c.l.b16 %v4392
      %v4411 = vunpack.c.l.b16 %v4393
      %v4412 = vunpack.c.l.b16 %v4394
      %v4413 = vunpack.c.l.b16 %v4395
      %v4414 = vunpack.c.l.b16 %v4396
      %v4415 = vunpack.c.l.b16 %v4397
      %v4416 = vunpack.c.l.b16 %v4398
      %v4417 = vpack.c.b16 %v4410, %v4409
      %v4418 = vpack.c.b16 %v4412, %v4411
      %v4419 = vpack.c.b16 %v4414, %v4413
      %v4420 = vpack.c.b16 %v4416, %v4415
      %v4422 = vsel %vm443, %v4417, 0
      %v4425 = vsel %vm443, %v4418, 0
      %v4428 = vsel %vm443, %v4419, 0
      %v4431 = vsel %vm443, %v4420, 0
      %v4434 = vsel %vm447, %v4400, 0
      %4436 = vmatprep.subr.bf16.mxu0 0
      %4437 = vmatpush1.bf16.msra.mxu0 0
      %4438 = vmatprep.subr.bf16.mxu0 0
      %4439 = vmatpush1.bf16.msra.mxu0 0
      %4440 = vmatprep.subr.bf16.mxu0 0
      %4441 = vmatpush1.bf16.msra.mxu0 0
      %4442 = vmatprep.subr.bf16.mxu0 0
      %4443 = vmatpush1.bf16.msra.mxu0 0
      %4444 = vmatprep.subr.bf16.mxu0 0
      %4445 = vmatpush1.bf16.msra.mxu0 0
      %4446 = vmatprep.subr.bf16.mxu0 0
      %4447 = vmatpush1.bf16.msra.mxu0 0
      %4448 = vmatprep.subr.bf16.mxu0 0
      %4449 = vmatpush1.bf16.msra.mxu0 0
      %4450 = vmatprep.subr.bf16.mxu0 0
      %4451 = vmatpush1.bf16.msra.mxu0 %v4434
      %4452 = vmatprep.subr.bf16.mxu0 0
      %4453 = vmatpush2.bf16.msra.mxu0 0
      %4454 = vmatprep.subr.bf16.mxu0 0
      %4455 = vmatpush2.bf16.msra.mxu0 0
      %4456 = vmatprep.subr.bf16.mxu0 0
      %4457 = vmatpush2.bf16.msra.mxu0 0
      %4458 = vmatprep.subr.bf16.mxu0 0
      %4459 = vmatpush2.bf16.msra.mxu0 0
      %4460 = vmatprep.subr.bf16.mxu0 0
      %4461 = vmatpush2.bf16.msra.mxu0 0
      %4462 = vmatprep.subr.bf16.mxu0 0
      %4463 = vmatpush2.bf16.msra.mxu0 0
      %4464 = vmatprep.subr.bf16.mxu0 0
      %4465 = vmatpush2.bf16.msra.mxu0 0
      %4466 = vmatprep.subr.bf16.mxu0 0
      %4467 = vmatpush2.bf16.msra.mxu0 0
      %4468 = vmatprep.mubr.bf16.mxu0 0
      %4469 = vmatmul.mubr.bf16.gmra.mxu0 %v4422
      %v4470 = vpop.f32.mrf.mxu0
      %v4471 = vadd.f32 0.0, %v4470
      %v4472 = vpop.f32.mrf.mxu0
      %v4473 = vpop.f32.mrf.mxu0
      %v4474 = vadd.f32 0.0, %v4473
      %v4475 = vpop.f32.mrf.mxu0
      %4476 = vmatprep.mubr.bf16.mxu0 0
      %4477 = vmatmul.mubr.bf16.gmra.mxu0 %v4425
      %v4478 = vpop.f32.mrf.mxu0
      %v4479 = vadd.f32 0.0, %v4478
      %v4480 = vpop.f32.mrf.mxu0
      %v4481 = vpop.f32.mrf.mxu0
      %v4482 = vadd.f32 0.0, %v4481
      %v4483 = vpop.f32.mrf.mxu0
      %4484 = vmatprep.mubr.bf16.mxu0 0
      %4485 = vmatmul.mubr.bf16.gmra.mxu0 %v4428
      %v4486 = vpop.f32.mrf.mxu0
      %v4487 = vadd.f32 0.0, %v4486
      %v4488 = vpop.f32.mrf.mxu0
      %v4489 = vpop.f32.mrf.mxu0
      %v4490 = vadd.f32 0.0, %v4489
      %v4491 = vpop.f32.mrf.mxu0
      %4492 = vmatprep.mubr.bf16.mxu0 0
      %4493 = vmatmul.mubr.bf16.gmra.mxu0 %v4431
      %v4494 = vpop.f32.mrf.mxu0
      %v4495 = vadd.f32 0.0, %v4494
      %v4496 = vpop.f32.mrf.mxu0
      %v4497 = vpop.f32.mrf.mxu0
      %v4498 = vadd.f32 0.0, %v4497
      %v4499 = vpop.f32.mrf.mxu0
      %4500 = vdwg.mxu0
      %v4501 = vadd.f32 %v4383, %v4471
      %v4502 = vadd.f32 %v4384, %v4474
      %v4503 = vadd.f32 %v4385, %v4479
      %v4504 = vadd.f32 %v4386, %v4482
      %v4505 = vadd.f32 %v4387, %v4487
      %v4506 = vadd.f32 %v4388, %v4490
      %v4507 = vadd.f32 %v4389, %v4495
      %v4508 = vadd.f32 %v4390, %v4498
      %v4509 = vld [vmem:[%s2707] sm:$0xf]
      %v4510 = vld [vmem:[%s2707 + $0x4] sm:$0x1]
      %v4511 = vld [vmem:[%s2707 + $0x8] sm:$0xf]
      %v4512 = vld [vmem:[%s2707 + $0xc] sm:$0x1]
      %v4513 = vld [vmem:[%s2707 + $0x10] sm:$0xf]
      %v4514 = vld [vmem:[%s2707 + $0x14] sm:$0x1]
      %v4515 = vld [vmem:[%s2707 + $0x18] sm:$0xf]
      %v4516 = vld [vmem:[%s2707 + $0x1c] sm:$0x1]
      %v4517 = vld [vmem:[%s2707 + $0x20] sm:$0xf]
      %v4518 = vld [vmem:[%s2707 + $0x24] sm:$0x1]
      %v4519 = vld [vmem:[%s2707 + $0x28] sm:$0xf]
      %v4520 = vld [vmem:[%s2707 + $0x2c] sm:$0x1]
      %v4521 = vld [vmem:[%s2707 + $0x30] sm:$0xf]
      %v4522 = vld [vmem:[%s2707 + $0x34] sm:$0x1]
      %v4523 = vld [vmem:[%s2707 + $0x38] sm:$0xf]
      %v4524 = vld [vmem:[%s2707 + $0x3c] sm:$0x1]
      %v4526 = vshrl.u32 %v4509, 16
      %v4528 = vrot.slane %v4526, 4
      %v4529 = vshll.u32 %v4509, 16
      %v4531 = vrot.slane %v4529, 5
      %v4532 = vor.u32 %v4528, %v4531
      %v4533 = vrot.slane %v4532, 4
      %v4535 = vshll.u32 %v4510, 16
      %v4537 = vrot.slane %v4535, 5
      %v4538 = vsel %vm1825, %v4533, %v4537
      %v4540 = vshrl.u32 %v4511, 16
      %v4542 = vrot.slane %v4540, 4
      %v4543 = vshll.u32 %v4511, 16
      %v4545 = vrot.slane %v4543, 5
      %v4546 = vor.u32 %v4542, %v4545
      %v4547 = vrot.slane %v4546, 4
      %v4549 = vshll.u32 %v4512, 16
      %v4551 = vrot.slane %v4549, 5
      %v4552 = vsel %vm1825, %v4547, %v4551
      %v4554 = vshrl.u32 %v4513, 16
      %v4556 = vrot.slane %v4554, 4
      %v4557 = vshll.u32 %v4513, 16
      %v4559 = vrot.slane %v4557, 5
      %v4560 = vor.u32 %v4556, %v4559
      %v4561 = vrot.slane %v4560, 4
      %v4563 = vshll.u32 %v4514, 16
      %v4565 = vrot.slane %v4563, 5
      %v4566 = vsel %vm1825, %v4561, %v4565
      %v4568 = vshrl.u32 %v4515, 16
      %v4570 = vrot.slane %v4568, 4
      %v4571 = vshll.u32 %v4515, 16
      %v4573 = vrot.slane %v4571, 5
      %v4574 = vor.u32 %v4570, %v4573
      %v4575 = vrot.slane %v4574, 4
      %v4577 = vshll.u32 %v4516, 16
      %v4579 = vrot.slane %v4577, 5
      %v4580 = vsel %vm1825, %v4575, %v4579
      %v4582 = vshrl.u32 %v4517, 16
      %v4584 = vrot.slane %v4582, 4
      %v4585 = vshll.u32 %v4517, 16
      %v4587 = vrot.slane %v4585, 5
      %v4588 = vor.u32 %v4584, %v4587
      %v4589 = vrot.slane %v4588, 4
      %v4591 = vshll.u32 %v4518, 16
      %v4593 = vrot.slane %v4591, 5
      %v4594 = vsel %vm1825, %v4589, %v4593
      %v4596 = vshrl.u32 %v4519, 16
      %v4598 = vrot.slane %v4596, 4
      %v4599 = vshll.u32 %v4519, 16
      %v4601 = vrot.slane %v4599, 5
      %v4602 = vor.u32 %v4598, %v4601
      %v4603 = vrot.slane %v4602, 4
      %v4605 = vshll.u32 %v4520, 16
      %v4607 = vrot.slane %v4605, 5
      %v4608 = vsel %vm1825, %v4603, %v4607
      %v4610 = vshrl.u32 %v4521, 16
      %v4612 = vrot.slane %v4610, 4
      %v4613 = vshll.u32 %v4521, 16
      %v4615 = vrot.slane %v4613, 5
      %v4616 = vor.u32 %v4612, %v4615
      %v4617 = vrot.slane %v4616, 4
      %v4619 = vshll.u32 %v4522, 16
      %v4621 = vrot.slane %v4619, 5
      %v4622 = vsel %vm1825, %v4617, %v4621
      %v4624 = vshrl.u32 %v4523, 16
      %v4626 = vrot.slane %v4624, 4
      %v4627 = vshll.u32 %v4523, 16
      %v4629 = vrot.slane %v4627, 5
      %v4630 = vor.u32 %v4626, %v4629
      %v4631 = vrot.slane %v4630, 4
      %v4633 = vshll.u32 %v4524, 16
      %v4635 = vrot.slane %v4633, 5
      %v4636 = vsel %vm1825, %v4631, %v4635
      %s4637 = scalar_lea.vmem %s5, 28
      %v4638 = vld [vmem:[%s4637] sm:$0xf]
      %v4639 = vunpack.c.l.b16 %v4538
      %v4640 = vunpack.c.l.b16 %v4552
      %v4641 = vunpack.c.l.b16 %v4566
      %v4642 = vunpack.c.l.b16 %v4580
      %v4643 = vunpack.c.l.b16 %v4594
      %v4644 = vunpack.c.l.b16 %v4608
      %v4645 = vunpack.c.l.b16 %v4622
      %v4646 = vunpack.c.l.b16 %v4636
      %v4647 = vpack.c.b16 %v4640, %v4639
      %v4648 = vpack.c.b16 %v4642, %v4641
      %v4649 = vpack.c.b16 %v4644, %v4643
      %v4650 = vpack.c.b16 %v4646, %v4645
      %v4652 = vsel %vm443, %v4647, 0
      %v4655 = vsel %vm443, %v4648, 0
      %v4658 = vsel %vm443, %v4649, 0
      %v4661 = vsel %vm443, %v4650, 0
      %v4664 = vsel %vm447, %v4638, 0
      %4666 = vmatprep.subr.bf16.mxu0 0
      %4667 = vmatpush1.bf16.msra.mxu0 0
      %4668 = vmatprep.subr.bf16.mxu0 0
      %4669 = vmatpush1.bf16.msra.mxu0 0
      %4670 = vmatprep.subr.bf16.mxu0 0
      %4671 = vmatpush1.bf16.msra.mxu0 0
      %4672 = vmatprep.subr.bf16.mxu0 0
      %4673 = vmatpush1.bf16.msra.mxu0 0
      %4674 = vmatprep.subr.bf16.mxu0 0
      %4675 = vmatpush1.bf16.msra.mxu0 0
      %4676 = vmatprep.subr.bf16.mxu0 0
      %4677 = vmatpush1.bf16.msra.mxu0 0
      %4678 = vmatprep.subr.bf16.mxu0 0
      %4679 = vmatpush1.bf16.msra.mxu0 0
      %4680 = vmatprep.subr.bf16.mxu0 0
      %4681 = vmatpush1.bf16.msra.mxu0 %v4664
      %4682 = vmatprep.subr.bf16.mxu0 0
      %4683 = vmatpush2.bf16.msra.mxu0 0
      %4684 = vmatprep.subr.bf16.mxu0 0
      %4685 = vmatpush2.bf16.msra.mxu0 0
      %4686 = vmatprep.subr.bf16.mxu0 0
      %4687 = vmatpush2.bf16.msra.mxu0 0
      %4688 = vmatprep.subr.bf16.mxu0 0
      %4689 = vmatpush2.bf16.msra.mxu0 0
      %4690 = vmatprep.subr.bf16.mxu0 0
      %4691 = vmatpush2.bf16.msra.mxu0 0
      %4692 = vmatprep.subr.bf16.mxu0 0
      %4693 = vmatpush2.bf16.msra.mxu0 0
      %4694 = vmatprep.subr.bf16.mxu0 0
      %4695 = vmatpush2.bf16.msra.mxu0 0
      %4696 = vmatprep.subr.bf16.mxu0 0
      %4697 = vmatpush2.bf16.msra.mxu0 0
      %4698 = vmatprep.mubr.bf16.mxu0 0
      %4699 = vmatmul.mubr.bf16.gmra.mxu0 %v4652
      %v4700 = vpop.f32.mrf.mxu0
      %v4701 = vadd.f32 0.0, %v4700
      %v4702 = vpop.f32.mrf.mxu0
      %v4703 = vpop.f32.mrf.mxu0
      %v4704 = vadd.f32 0.0, %v4703
      %v4705 = vpop.f32.mrf.mxu0
      %4706 = vmatprep.mubr.bf16.mxu0 0
      %4707 = vmatmul.mubr.bf16.gmra.mxu0 %v4655
      %v4708 = vpop.f32.mrf.mxu0
      %v4709 = vadd.f32 0.0, %v4708
      %v4710 = vpop.f32.mrf.mxu0
      %v4711 = vpop.f32.mrf.mxu0
      %v4712 = vadd.f32 0.0, %v4711
      %v4713 = vpop.f32.mrf.mxu0
      %4714 = vmatprep.mubr.bf16.mxu0 0
      %4715 = vmatmul.mubr.bf16.gmra.mxu0 %v4658
      %v4716 = vpop.f32.mrf.mxu0
      %v4717 = vadd.f32 0.0, %v4716
      %v4718 = vpop.f32.mrf.mxu0
      %v4719 = vpop.f32.mrf.mxu0
      %v4720 = vadd.f32 0.0, %v4719
      %v4721 = vpop.f32.mrf.mxu0
      %4722 = vmatprep.mubr.bf16.mxu0 0
      %4723 = vmatmul.mubr.bf16.gmra.mxu0 %v4661
      %v4724 = vpop.f32.mrf.mxu0
      %v4725 = vadd.f32 0.0, %v4724
      %v4726 = vpop.f32.mrf.mxu0
      %v4727 = vpop.f32.mrf.mxu0
      %v4728 = vadd.f32 0.0, %v4727
      %v4729 = vpop.f32.mrf.mxu0
      %4730 = vdwg.mxu0
      %v4731 = vadd.f32 %v4501, %v4701
      %v4732 = vadd.f32 %v4502, %v4704
      %v4733 = vadd.f32 %v4503, %v4709
      %v4734 = vadd.f32 %v4504, %v4712
      %v4735 = vadd.f32 %v4505, %v4717
      %v4736 = vadd.f32 %v4506, %v4720
      %v4737 = vadd.f32 %v4507, %v4725
      %v4738 = vadd.f32 %v4508, %v4728
      %v4739 = vld [vmem:[%s2707] sm:$0xe]
      %v4740 = vld [vmem:[%s2707 + $0x8] sm:$0xe]
      %v4741 = vld [vmem:[%s2707 + $0x10] sm:$0xe]
      %v4742 = vld [vmem:[%s2707 + $0x18] sm:$0xe]
      %v4743 = vld [vmem:[%s2707 + $0x20] sm:$0xe]
      %v4744 = vld [vmem:[%s2707 + $0x28] sm:$0xe]
      %v4745 = vld [vmem:[%s2707 + $0x30] sm:$0xe]
      %v4746 = vld [vmem:[%s2707 + $0x38] sm:$0xe]
      %v4763 = vrot.slane %v4739, 5
      %v4764 = vrot.slane %v4763, 4
      %v4765 = vrot.slane %v4510, 5
      %v4766 = vsel %vm2066, %v4764, %v4765
      %v4767 = vrot.slane %v4740, 5
      %v4768 = vrot.slane %v4767, 4
      %v4769 = vrot.slane %v4512, 5
      %v4770 = vsel %vm2066, %v4768, %v4769
      %v4771 = vrot.slane %v4741, 5
      %v4772 = vrot.slane %v4771, 4
      %v4773 = vrot.slane %v4514, 5
      %v4774 = vsel %vm2066, %v4772, %v4773
      %v4775 = vrot.slane %v4742, 5
      %v4776 = vrot.slane %v4775, 4
      %v4777 = vrot.slane %v4516, 5
      %v4778 = vsel %vm2066, %v4776, %v4777
      %v4779 = vrot.slane %v4743, 5
      %v4780 = vrot.slane %v4779, 4
      %v4781 = vrot.slane %v4518, 5
      %v4782 = vsel %vm2066, %v4780, %v4781
      %v4783 = vrot.slane %v4744, 5
      %v4784 = vrot.slane %v4783, 4
      %v4785 = vrot.slane %v4520, 5
      %v4786 = vsel %vm2066, %v4784, %v4785
      %v4787 = vrot.slane %v4745, 5
      %v4788 = vrot.slane %v4787, 4
      %v4789 = vrot.slane %v4522, 5
      %v4790 = vsel %vm2066, %v4788, %v4789
      %v4791 = vrot.slane %v4746, 5
      %v4792 = vrot.slane %v4791, 4
      %v4793 = vrot.slane %v4524, 5
      %v4794 = vsel %vm2066, %v4792, %v4793
      %s4795 = scalar_lea.vmem %s5, 32
      %v4796 = vld [vmem:[%s4795] sm:$0xf]
      %v4797 = vunpack.c.l.b16 %v4766
      %v4798 = vunpack.c.l.b16 %v4770
      %v4799 = vunpack.c.l.b16 %v4774
      %v4800 = vunpack.c.l.b16 %v4778
      %v4801 = vunpack.c.l.b16 %v4782
      %v4802 = vunpack.c.l.b16 %v4786
      %v4803 = vunpack.c.l.b16 %v4790
      %v4804 = vunpack.c.l.b16 %v4794
      %v4805 = vpack.c.b16 %v4798, %v4797
      %v4806 = vpack.c.b16 %v4800, %v4799
      %v4807 = vpack.c.b16 %v4802, %v4801
      %v4808 = vpack.c.b16 %v4804, %v4803
      %v4810 = vsel %vm443, %v4805, 0
      %v4813 = vsel %vm443, %v4806, 0
      %v4816 = vsel %vm443, %v4807, 0
      %v4819 = vsel %vm443, %v4808, 0
      %v4822 = vsel %vm447, %v4796, 0
      %4824 = vmatprep.subr.bf16.mxu0 0
      %4825 = vmatpush1.bf16.msra.mxu0 0
      %4826 = vmatprep.subr.bf16.mxu0 0
      %4827 = vmatpush1.bf16.msra.mxu0 0
      %4828 = vmatprep.subr.bf16.mxu0 0
      %4829 = vmatpush1.bf16.msra.mxu0 0
      %4830 = vmatprep.subr.bf16.mxu0 0
      %4831 = vmatpush1.bf16.msra.mxu0 0
      %4832 = vmatprep.subr.bf16.mxu0 0
      %4833 = vmatpush1.bf16.msra.mxu0 0
      %4834 = vmatprep.subr.bf16.mxu0 0
      %4835 = vmatpush1.bf16.msra.mxu0 0
      %4836 = vmatprep.subr.bf16.mxu0 0
      %4837 = vmatpush1.bf16.msra.mxu0 0
      %4838 = vmatprep.subr.bf16.mxu0 0
      %4839 = vmatpush1.bf16.msra.mxu0 %v4822
      %4840 = vmatprep.subr.bf16.mxu0 0
      %4841 = vmatpush2.bf16.msra.mxu0 0
      %4842 = vmatprep.subr.bf16.mxu0 0
      %4843 = vmatpush2.bf16.msra.mxu0 0
      %4844 = vmatprep.subr.bf16.mxu0 0
      %4845 = vmatpush2.bf16.msra.mxu0 0
      %4846 = vmatprep.subr.bf16.mxu0 0
      %4847 = vmatpush2.bf16.msra.mxu0 0
      %4848 = vmatprep.subr.bf16.mxu0 0
      %4849 = vmatpush2.bf16.msra.mxu0 0
      %4850 = vmatprep.subr.bf16.mxu0 0
      %4851 = vmatpush2.bf16.msra.mxu0 0
      %4852 = vmatprep.subr.bf16.mxu0 0
      %4853 = vmatpush2.bf16.msra.mxu0 0
      %4854 = vmatprep.subr.bf16.mxu0 0
      %4855 = vmatpush2.bf16.msra.mxu0 0
      %4856 = vmatprep.mubr.bf16.mxu0 0
      %4857 = vmatmul.mubr.bf16.gmra.mxu0 %v4810
      %v4858 = vpop.f32.mrf.mxu0
      %v4859 = vadd.f32 0.0, %v4858
      %v4860 = vpop.f32.mrf.mxu0
      %v4861 = vpop.f32.mrf.mxu0
      %v4862 = vadd.f32 0.0, %v4861
      %v4863 = vpop.f32.mrf.mxu0
      %4864 = vmatprep.mubr.bf16.mxu0 0
      %4865 = vmatmul.mubr.bf16.gmra.mxu0 %v4813
      %v4866 = vpop.f32.mrf.mxu0
      %v4867 = vadd.f32 0.0, %v4866
      %v4868 = vpop.f32.mrf.mxu0
      %v4869 = vpop.f32.mrf.mxu0
      %v4870 = vadd.f32 0.0, %v4869
      %v4871 = vpop.f32.mrf.mxu0
      %4872 = vmatprep.mubr.bf16.mxu0 0
      %4873 = vmatmul.mubr.bf16.gmra.mxu0 %v4816
      %v4874 = vpop.f32.mrf.mxu0
      %v4875 = vadd.f32 0.0, %v4874
      %v4876 = vpop.f32.mrf.mxu0
      %v4877 = vpop.f32.mrf.mxu0
      %v4878 = vadd.f32 0.0, %v4877
      %v4879 = vpop.f32.mrf.mxu0
      %4880 = vmatprep.mubr.bf16.mxu0 0
      %4881 = vmatmul.mubr.bf16.gmra.mxu0 %v4819
      %v4882 = vpop.f32.mrf.mxu0
      %v4883 = vadd.f32 0.0, %v4882
      %v4884 = vpop.f32.mrf.mxu0
      %v4885 = vpop.f32.mrf.mxu0
      %v4886 = vadd.f32 0.0, %v4885
      %v4887 = vpop.f32.mrf.mxu0
      %4888 = vdwg.mxu0
      %v4889 = vadd.f32 %v4731, %v4859
      %v4890 = vadd.f32 %v4732, %v4862
      %v4891 = vadd.f32 %v4733, %v4867
      %v4892 = vadd.f32 %v4734, %v4870
      %v4893 = vadd.f32 %v4735, %v4875
      %v4894 = vadd.f32 %v4736, %v4878
      %v4895 = vadd.f32 %v4737, %v4883
      %v4896 = vadd.f32 %v4738, %v4886
      %v4897 = vmax.f32 %v4889, 0.0
      %v4898 = vmax.f32 %v4890, 0.0
      %v4899 = vmax.f32 %v4891, 0.0
      %v4900 = vmax.f32 %v4892, 0.0
      %v4901 = vmax.f32 %v4893, 0.0
      %v4902 = vmax.f32 %v4894, 0.0
      %v4903 = vmax.f32 %v4895, 0.0
      %v4904 = vmax.f32 %v4896, 0.0
      %v4905 = vpack.c.bf16 %v4898, %v4897
      %v4906 = vpack.c.bf16 %v4900, %v4899
      %v4907 = vpack.c.bf16 %v4902, %v4901
      %v4908 = vpack.c.bf16 %v4904, %v4903
      %v4913 = vunpack.c.l.b16 %v4905
      %v4914 = vunpack.c.h.b16 %v4905
      %v4915 = vunpack.c.l.b16 %v4906
      %v4916 = vunpack.c.h.b16 %v4906
      %v4917 = vunpack.c.l.b16 %v4907
      %v4918 = vunpack.c.h.b16 %v4907
      %v4919 = vunpack.c.l.b16 %v4908
      %v4920 = vunpack.c.h.b16 %v4908
      %v4921 = vpack.c.b16 %v4913, %v4913
      %v4922 = vpack.c.b16 %v4914, %v4914
      %v4923 = vpack.c.b16 %v4915, %v4915
      %v4924 = vpack.c.b16 %v4916, %v4916
      %v4925 = vpack.c.b16 %v4917, %v4917
      %v4926 = vpack.c.b16 %v4918, %v4918
      %v4927 = vpack.c.b16 %v4919, %v4919
      %v4928 = vpack.c.b16 %v4920, %v4920
      %v4930 = vshrl.u32 %v4921, 16
      %v4932 = vrot.slane %v4930, 7
      %v4933 = vshll.u32 %v4921, 16
      %v4935 = vor.u32 %v4932, %v4933
      %v4936 = vrot.slane %v4932, 4
      %v4938 = vshrl.u32 %v4922, 16
      %v4940 = vrot.slane %v4938, 7
      %v4941 = vshll.u32 %v4922, 16
      %v4943 = vor.u32 %v4940, %v4941
      %v4944 = vrot.slane %v4940, 4
      %v4946 = vshrl.u32 %v4923, 16
      %v4948 = vrot.slane %v4946, 7
      %v4949 = vshll.u32 %v4923, 16
      %v4951 = vor.u32 %v4948, %v4949
      %v4952 = vrot.slane %v4948, 4
      %v4954 = vshrl.u32 %v4924, 16
      %v4956 = vrot.slane %v4954, 7
      %v4957 = vshll.u32 %v4924, 16
      %v4959 = vor.u32 %v4956, %v4957
      %v4960 = vrot.slane %v4956, 4
      %v4962 = vshrl.u32 %v4925, 16
      %v4964 = vrot.slane %v4962, 7
      %v4965 = vshll.u32 %v4925, 16
      %v4967 = vor.u32 %v4964, %v4965
      %v4968 = vrot.slane %v4964, 4
      %v4970 = vshrl.u32 %v4926, 16
      %v4972 = vrot.slane %v4970, 7
      %v4973 = vshll.u32 %v4926, 16
      %v4975 = vor.u32 %v4972, %v4973
      %v4976 = vrot.slane %v4972, 4
      %v4978 = vshrl.u32 %v4927, 16
      %v4980 = vrot.slane %v4978, 7
      %v4981 = vshll.u32 %v4927, 16
      %v4983 = vor.u32 %v4980, %v4981
      %v4984 = vrot.slane %v4980, 4
      %v4986 = vshrl.u32 %v4928, 16
      %v4988 = vrot.slane %v4986, 7
      %v4989 = vshll.u32 %v4928, 16
      %v4991 = vor.u32 %v4988, %v4989
      %v4992 = vrot.slane %v4988, 4
      %v5009 = vsel %vm1632, %v4935, %v4003
      %5010 = vst [vmem:[%s1629] sm:$0xf] %v5009
      %v5011 = vld [vmem:[%s1629 + $0x4] sm:$0x1]
      %v5012 = vsel %vm1637, %v4936, %v5011
      %5013 = vst [vmem:[%s1629 + $0x4] sm:$0x1] %v5012
      %v5014 = vld [vmem:[%s1629 + $0x8] sm:$0xf]
      %v5015 = vsel %vm1632, %v4943, %v5014
      %5016 = vst [vmem:[%s1629 + $0x8] sm:$0xf] %v5015
      %v5017 = vld [vmem:[%s1629 + $0xc] sm:$0x1]
      %v5018 = vsel %vm1637, %v4944, %v5017
      %5019 = vst [vmem:[%s1629 + $0xc] sm:$0x1] %v5018
      %v5020 = vld [vmem:[%s1629 + $0x10] sm:$0xf]
      %v5021 = vsel %vm1632, %v4951, %v5020
      %5022 = vst [vmem:[%s1629 + $0x10] sm:$0xf] %v5021
      %v5023 = vld [vmem:[%s1629 + $0x14] sm:$0x1]
      %v5024 = vsel %vm1637, %v4952, %v5023
      %5025 = vst [vmem:[%s1629 + $0x14] sm:$0x1] %v5024
      %v5026 = vld [vmem:[%s1629 + $0x18] sm:$0xf]
      %v5027 = vsel %vm1632, %v4959, %v5026
      %5028 = vst [vmem:[%s1629 + $0x18] sm:$0xf] %v5027
      %v5029 = vld [vmem:[%s1629 + $0x1c] sm:$0x1]
      %v5030 = vsel %vm1637, %v4960, %v5029
      %5031 = vst [vmem:[%s1629 + $0x1c] sm:$0x1] %v5030
      %v5032 = vld [vmem:[%s1629 + $0x20] sm:$0xf]
      %v5033 = vsel %vm1632, %v4967, %v5032
      %5034 = vst [vmem:[%s1629 + $0x20] sm:$0xf] %v5033
      %v5035 = vld [vmem:[%s1629 + $0x24] sm:$0x1]
      %v5036 = vsel %vm1637, %v4968, %v5035
      %5037 = vst [vmem:[%s1629 + $0x24] sm:$0x1] %v5036
      %v5038 = vld [vmem:[%s1629 + $0x28] sm:$0xf]
      %v5039 = vsel %vm1632, %v4975, %v5038
      %5040 = vst [vmem:[%s1629 + $0x28] sm:$0xf] %v5039
      %v5041 = vld [vmem:[%s1629 + $0x2c] sm:$0x1]
      %v5042 = vsel %vm1637, %v4976, %v5041
      %5043 = vst [vmem:[%s1629 + $0x2c] sm:$0x1] %v5042
      %v5044 = vld [vmem:[%s1629 + $0x30] sm:$0xf]
      %v5045 = vsel %vm1632, %v4983, %v5044
      %5046 = vst [vmem:[%s1629 + $0x30] sm:$0xf] %v5045
      %v5047 = vld [vmem:[%s1629 + $0x34] sm:$0x1]
      %v5048 = vsel %vm1637, %v4984, %v5047
      %5049 = vst [vmem:[%s1629 + $0x34] sm:$0x1] %v5048
      %v5050 = vld [vmem:[%s1629 + $0x38] sm:$0xf]
      %v5051 = vsel %vm1632, %v4991, %v5050
      %5052 = vst [vmem:[%s1629 + $0x38] sm:$0xf] %v5051
      %v5053 = vld [vmem:[%s1629 + $0x3c] sm:$0x1]
      %v5054 = vsel %vm1637, %v4992, %v5053
      %5055 = vst [vmem:[%s1629 + $0x3c] sm:$0x1] %v5054
      %v5056 = vld [vmem:[%s8] sm:$0x1]
      %v5058 = vlaneseq
      %v5059 = vshrl.u32 %v5058, 7
      %v5060 = vsub.s32 0, %v5059
      %v5061 = vrot.slane %v5056, %v5060
      %v5063 = vld [vmem:[#allocation2] sm:$0xf]
      %v5064 = vld [vmem:[#allocation2 + $0x8] sm:$0xf]
      %v5065 = vld [vmem:[#allocation2 + $0x10] sm:$0xf]
      %v5066 = vld [vmem:[#allocation2 + $0x18] sm:$0xf]
      %v5067 = vld [vmem:[#allocation2 + $0x20] sm:$0xf]
      %v5068 = vld [vmem:[#allocation2 + $0x28] sm:$0xf]
      %v5069 = vld [vmem:[#allocation2 + $0x30] sm:$0xf]
      %v5070 = vld [vmem:[#allocation2 + $0x38] sm:$0xf]
      %v5071 = vld [vmem:[%s7] sm:$0xf]
      %v5080 = vunpack.c.l.b16 %v5063
      %v5081 = vunpack.c.l.b16 %v5064
      %v5082 = vunpack.c.l.b16 %v5065
      %v5083 = vunpack.c.l.b16 %v5066
      %v5084 = vunpack.c.l.b16 %v5067
      %v5085 = vunpack.c.l.b16 %v5068
      %v5086 = vunpack.c.l.b16 %v5069
      %v5087 = vunpack.c.l.b16 %v5070
      %v5088 = vpack.c.b16 %v5081, %v5080
      %v5089 = vpack.c.b16 %v5083, %v5082
      %v5090 = vpack.c.b16 %v5085, %v5084
      %v5091 = vpack.c.b16 %v5087, %v5086
      %v5093 = vsel %vm443, %v5088, 0
      %v5096 = vsel %vm443, %v5089, 0
      %v5099 = vsel %vm443, %v5090, 0
      %v5102 = vsel %vm443, %v5091, 0
      %v5105 = vsel %vm447, %v5071, 0
      %5107 = vmatprep.subr.bf16.mxu0 0
      %5108 = vmatpush1.bf16.msra.mxu0 0
      %5109 = vmatprep.subr.bf16.mxu0 0
      %5110 = vmatpush1.bf16.msra.mxu0 0
      %5111 = vmatprep.subr.bf16.mxu0 0
      %5112 = vmatpush1.bf16.msra.mxu0 0
      %5113 = vmatprep.subr.bf16.mxu0 0
      %5114 = vmatpush1.bf16.msra.mxu0 0
      %5115 = vmatprep.subr.bf16.mxu0 0
      %5116 = vmatpush1.bf16.msra.mxu0 0
      %5117 = vmatprep.subr.bf16.mxu0 0
      %5118 = vmatpush1.bf16.msra.mxu0 0
      %5119 = vmatprep.subr.bf16.mxu0 0
      %5120 = vmatpush1.bf16.msra.mxu0 0
      %5121 = vmatprep.subr.bf16.mxu0 0
      %5122 = vmatpush1.bf16.msra.mxu0 %v5105
      %5123 = vmatprep.subr.bf16.mxu0 0
      %5124 = vmatpush2.bf16.msra.mxu0 0
      %5125 = vmatprep.subr.bf16.mxu0 0
      %5126 = vmatpush2.bf16.msra.mxu0 0
      %5127 = vmatprep.subr.bf16.mxu0 0
      %5128 = vmatpush2.bf16.msra.mxu0 0
      %5129 = vmatprep.subr.bf16.mxu0 0
      %5130 = vmatpush2.bf16.msra.mxu0 0
      %5131 = vmatprep.subr.bf16.mxu0 0
      %5132 = vmatpush2.bf16.msra.mxu0 0
      %5133 = vmatprep.subr.bf16.mxu0 0
      %5134 = vmatpush2.bf16.msra.mxu0 0
      %5135 = vmatprep.subr.bf16.mxu0 0
      %5136 = vmatpush2.bf16.msra.mxu0 0
      %5137 = vmatprep.subr.bf16.mxu0 0
      %5138 = vmatpush2.bf16.msra.mxu0 0
      %5139 = vmatprep.mubr.bf16.mxu0 0
      %5140 = vmatmul.mubr.bf16.gmra.mxu0 %v5093
      %v5141 = vpop.f32.mrf.mxu0
      %v5142 = vadd.f32 0.0, %v5141
      %v5143 = vpop.f32.mrf.mxu0
      %v5144 = vpop.f32.mrf.mxu0
      %v5145 = vadd.f32 0.0, %v5144
      %v5146 = vpop.f32.mrf.mxu0
      %5147 = vmatprep.mubr.bf16.mxu0 0
      %5148 = vmatmul.mubr.bf16.gmra.mxu0 %v5096
      %v5149 = vpop.f32.mrf.mxu0
      %v5150 = vadd.f32 0.0, %v5149
      %v5151 = vpop.f32.mrf.mxu0
      %v5152 = vpop.f32.mrf.mxu0
      %v5153 = vadd.f32 0.0, %v5152
      %v5154 = vpop.f32.mrf.mxu0
      %5155 = vmatprep.mubr.bf16.mxu0 0
      %5156 = vmatmul.mubr.bf16.gmra.mxu0 %v5099
      %v5157 = vpop.f32.mrf.mxu0
      %v5158 = vadd.f32 0.0, %v5157
      %v5159 = vpop.f32.mrf.mxu0
      %v5160 = vpop.f32.mrf.mxu0
      %v5161 = vadd.f32 0.0, %v5160
      %v5162 = vpop.f32.mrf.mxu0
      %5163 = vmatprep.mubr.bf16.mxu0 0
      %5164 = vmatmul.mubr.bf16.gmra.mxu0 %v5102
      %v5165 = vpop.f32.mrf.mxu0
      %v5166 = vadd.f32 0.0, %v5165
      %v5167 = vpop.f32.mrf.mxu0
      %v5168 = vpop.f32.mrf.mxu0
      %v5169 = vadd.f32 0.0, %v5168
      %v5170 = vpop.f32.mrf.mxu0
      %5171 = vdwg.mxu0
      %v5172 = vadd.f32 %v5061, %v5142
      %v5173 = vadd.f32 %v5061, %v5145
      %v5174 = vadd.f32 %v5061, %v5150
      %v5175 = vadd.f32 %v5061, %v5153
      %v5176 = vadd.f32 %v5061, %v5158
      %v5177 = vadd.f32 %v5061, %v5161
      %v5178 = vadd.f32 %v5061, %v5166
      %v5179 = vadd.f32 %v5061, %v5169
      %v5180 = vld [vmem:[#allocation2] sm:$0xf]
      %v5181 = vld [vmem:[#allocation2 + $0x4] sm:$0x1]
      %v5182 = vld [vmem:[#allocation2 + $0x8] sm:$0xf]
      %v5183 = vld [vmem:[#allocation2 + $0xc] sm:$0x1]
      %v5184 = vld [vmem:[#allocation2 + $0x10] sm:$0xf]
      %v5185 = vld [vmem:[#allocation2 + $0x14] sm:$0x1]
      %v5186 = vld [vmem:[#allocation2 + $0x18] sm:$0xf]
      %v5187 = vld [vmem:[#allocation2 + $0x1c] sm:$0x1]
      %v5188 = vld [vmem:[#allocation2 + $0x20] sm:$0xf]
      %v5189 = vld [vmem:[#allocation2 + $0x24] sm:$0x1]
      %v5190 = vld [vmem:[#allocation2 + $0x28] sm:$0xf]
      %v5191 = vld [vmem:[#allocation2 + $0x2c] sm:$0x1]
      %v5192 = vld [vmem:[#allocation2 + $0x30] sm:$0xf]
      %v5193 = vld [vmem:[#allocation2 + $0x34] sm:$0x1]
      %v5194 = vld [vmem:[#allocation2 + $0x38] sm:$0xf]
      %v5195 = vld [vmem:[#allocation2 + $0x3c] sm:$0x1]
      %v5197 = vshrl.u32 %v5180, 16
      %v5199 = vrot.slane %v5197, 4
      %v5200 = vshll.u32 %v5180, 16
      %v5202 = vrot.slane %v5200, 5
      %v5203 = vor.u32 %v5199, %v5202
      %v5204 = vrot.slane %v5203, 4
      %v5206 = vshll.u32 %v5181, 16
      %v5208 = vrot.slane %v5206, 5
      %v5209 = vsel %vm1825, %v5204, %v5208
      %v5211 = vshrl.u32 %v5182, 16
      %v5213 = vrot.slane %v5211, 4
      %v5214 = vshll.u32 %v5182, 16
      %v5216 = vrot.slane %v5214, 5
      %v5217 = vor.u32 %v5213, %v5216
      %v5218 = vrot.slane %v5217, 4
      %v5220 = vshll.u32 %v5183, 16
      %v5222 = vrot.slane %v5220, 5
      %v5223 = vsel %vm1825, %v5218, %v5222
      %v5225 = vshrl.u32 %v5184, 16
      %v5227 = vrot.slane %v5225, 4
      %v5228 = vshll.u32 %v5184, 16
      %v5230 = vrot.slane %v5228, 5
      %v5231 = vor.u32 %v5227, %v5230
      %v5232 = vrot.slane %v5231, 4
      %v5234 = vshll.u32 %v5185, 16
      %v5236 = vrot.slane %v5234, 5
      %v5237 = vsel %vm1825, %v5232, %v5236
      %v5239 = vshrl.u32 %v5186, 16
      %v5241 = vrot.slane %v5239, 4
      %v5242 = vshll.u32 %v5186, 16
      %v5244 = vrot.slane %v5242, 5
      %v5245 = vor.u32 %v5241, %v5244
      %v5246 = vrot.slane %v5245, 4
      %v5248 = vshll.u32 %v5187, 16
      %v5250 = vrot.slane %v5248, 5
      %v5251 = vsel %vm1825, %v5246, %v5250
      %v5253 = vshrl.u32 %v5188, 16
      %v5255 = vrot.slane %v5253, 4
      %v5256 = vshll.u32 %v5188, 16
      %v5258 = vrot.slane %v5256, 5
      %v5259 = vor.u32 %v5255, %v5258
      %v5260 = vrot.slane %v5259, 4
      %v5262 = vshll.u32 %v5189, 16
      %v5264 = vrot.slane %v5262, 5
      %v5265 = vsel %vm1825, %v5260, %v5264
      %v5267 = vshrl.u32 %v5190, 16
      %v5269 = vrot.slane %v5267, 4
      %v5270 = vshll.u32 %v5190, 16
      %v5272 = vrot.slane %v5270, 5
      %v5273 = vor.u32 %v5269, %v5272
      %v5274 = vrot.slane %v5273, 4
      %v5276 = vshll.u32 %v5191, 16
      %v5278 = vrot.slane %v5276, 5
      %v5279 = vsel %vm1825, %v5274, %v5278
      %v5281 = vshrl.u32 %v5192, 16
      %v5283 = vrot.slane %v5281, 4
      %v5284 = vshll.u32 %v5192, 16
      %v5286 = vrot.slane %v5284, 5
      %v5287 = vor.u32 %v5283, %v5286
      %v5288 = vrot.slane %v5287, 4
      %v5290 = vshll.u32 %v5193, 16
      %v5292 = vrot.slane %v5290, 5
      %v5293 = vsel %vm1825, %v5288, %v5292
      %v5295 = vshrl.u32 %v5194, 16
      %v5297 = vrot.slane %v5295, 4
      %v5298 = vshll.u32 %v5194, 16
      %v5300 = vrot.slane %v5298, 5
      %v5301 = vor.u32 %v5297, %v5300
      %v5302 = vrot.slane %v5301, 4
      %v5304 = vshll.u32 %v5195, 16
      %v5306 = vrot.slane %v5304, 5
      %v5307 = vsel %vm1825, %v5302, %v5306
      %s5308 = scalar_lea.vmem %s7, 4
      %v5309 = vld [vmem:[%s5308] sm:$0xf]
      %v5310 = vunpack.c.l.b16 %v5209
      %v5311 = vunpack.c.l.b16 %v5223
      %v5312 = vunpack.c.l.b16 %v5237
      %v5313 = vunpack.c.l.b16 %v5251
      %v5314 = vunpack.c.l.b16 %v5265
      %v5315 = vunpack.c.l.b16 %v5279
      %v5316 = vunpack.c.l.b16 %v5293
      %v5317 = vunpack.c.l.b16 %v5307
      %v5318 = vpack.c.b16 %v5311, %v5310
      %v5319 = vpack.c.b16 %v5313, %v5312
      %v5320 = vpack.c.b16 %v5315, %v5314
      %v5321 = vpack.c.b16 %v5317, %v5316
      %v5323 = vsel %vm443, %v5318, 0
      %v5326 = vsel %vm443, %v5319, 0
      %v5329 = vsel %vm443, %v5320, 0
      %v5332 = vsel %vm443, %v5321, 0
      %v5335 = vsel %vm447, %v5309, 0
      %5337 = vmatprep.subr.bf16.mxu0 0
      %5338 = vmatpush1.bf16.msra.mxu0 0
      %5339 = vmatprep.subr.bf16.mxu0 0
      %5340 = vmatpush1.bf16.msra.mxu0 0
      %5341 = vmatprep.subr.bf16.mxu0 0
      %5342 = vmatpush1.bf16.msra.mxu0 0
      %5343 = vmatprep.subr.bf16.mxu0 0
      %5344 = vmatpush1.bf16.msra.mxu0 0
      %5345 = vmatprep.subr.bf16.mxu0 0
      %5346 = vmatpush1.bf16.msra.mxu0 0
      %5347 = vmatprep.subr.bf16.mxu0 0
      %5348 = vmatpush1.bf16.msra.mxu0 0
      %5349 = vmatprep.subr.bf16.mxu0 0
      %5350 = vmatpush1.bf16.msra.mxu0 0
      %5351 = vmatprep.subr.bf16.mxu0 0
      %5352 = vmatpush1.bf16.msra.mxu0 %v5335
      %5353 = vmatprep.subr.bf16.mxu0 0
      %5354 = vmatpush2.bf16.msra.mxu0 0
      %5355 = vmatprep.subr.bf16.mxu0 0
      %5356 = vmatpush2.bf16.msra.mxu0 0
      %5357 = vmatprep.subr.bf16.mxu0 0
      %5358 = vmatpush2.bf16.msra.mxu0 0
      %5359 = vmatprep.subr.bf16.mxu0 0
      %5360 = vmatpush2.bf16.msra.mxu0 0
      %5361 = vmatprep.subr.bf16.mxu0 0
      %5362 = vmatpush2.bf16.msra.mxu0 0
      %5363 = vmatprep.subr.bf16.mxu0 0
      %5364 = vmatpush2.bf16.msra.mxu0 0
      %5365 = vmatprep.subr.bf16.mxu0 0
      %5366 = vmatpush2.bf16.msra.mxu0 0
      %5367 = vmatprep.subr.bf16.mxu0 0
      %5368 = vmatpush2.bf16.msra.mxu0 0
      %5369 = vmatprep.mubr.bf16.mxu0 0
      %5370 = vmatmul.mubr.bf16.gmra.mxu0 %v5323
      %v5371 = vpop.f32.mrf.mxu0
      %v5372 = vadd.f32 0.0, %v5371
      %v5373 = vpop.f32.mrf.mxu0
      %v5374 = vpop.f32.mrf.mxu0
      %v5375 = vadd.f32 0.0, %v5374
      %v5376 = vpop.f32.mrf.mxu0
      %5377 = vmatprep.mubr.bf16.mxu0 0
      %5378 = vmatmul.mubr.bf16.gmra.mxu0 %v5326
      %v5379 = vpop.f32.mrf.mxu0
      %v5380 = vadd.f32 0.0, %v5379
      %v5381 = vpop.f32.mrf.mxu0
      %v5382 = vpop.f32.mrf.mxu0
      %v5383 = vadd.f32 0.0, %v5382
      %v5384 = vpop.f32.mrf.mxu0
      %5385 = vmatprep.mubr.bf16.mxu0 0
      %5386 = vmatmul.mubr.bf16.gmra.mxu0 %v5329
      %v5387 = vpop.f32.mrf.mxu0
      %v5388 = vadd.f32 0.0, %v5387
      %v5389 = vpop.f32.mrf.mxu0
      %v5390 = vpop.f32.mrf.mxu0
      %v5391 = vadd.f32 0.0, %v5390
      %v5392 = vpop.f32.mrf.mxu0
      %5393 = vmatprep.mubr.bf16.mxu0 0
      %5394 = vmatmul.mubr.bf16.gmra.mxu0 %v5332
      %v5395 = vpop.f32.mrf.mxu0
      %v5396 = vadd.f32 0.0, %v5395
      %v5397 = vpop.f32.mrf.mxu0
      %v5398 = vpop.f32.mrf.mxu0
      %v5399 = vadd.f32 0.0, %v5398
      %v5400 = vpop.f32.mrf.mxu0
      %5401 = vdwg.mxu0
      %v5402 = vadd.f32 %v5172, %v5372
      %v5403 = vadd.f32 %v5173, %v5375
      %v5404 = vadd.f32 %v5174, %v5380
      %v5405 = vadd.f32 %v5175, %v5383
      %v5406 = vadd.f32 %v5176, %v5388
      %v5407 = vadd.f32 %v5177, %v5391
      %v5408 = vadd.f32 %v5178, %v5396
      %v5409 = vadd.f32 %v5179, %v5399
      %v5410 = vld [vmem:[#allocation2] sm:$0xe]
      %v5411 = vld [vmem:[#allocation2 + $0x8] sm:$0xe]
      %v5412 = vld [vmem:[#allocation2 + $0x10] sm:$0xe]
      %v5413 = vld [vmem:[#allocation2 + $0x18] sm:$0xe]
      %v5414 = vld [vmem:[#allocation2 + $0x20] sm:$0xe]
      %v5415 = vld [vmem:[#allocation2 + $0x28] sm:$0xe]
      %v5416 = vld [vmem:[#allocation2 + $0x30] sm:$0xe]
      %v5417 = vld [vmem:[#allocation2 + $0x38] sm:$0xe]
      %v5434 = vrot.slane %v5410, 5
      %v5435 = vrot.slane %v5434, 4
      %v5436 = vrot.slane %v5181, 5
      %v5437 = vsel %vm2066, %v5435, %v5436
      %v5438 = vrot.slane %v5411, 5
      %v5439 = vrot.slane %v5438, 4
      %v5440 = vrot.slane %v5183, 5
      %v5441 = vsel %vm2066, %v5439, %v5440
      %v5442 = vrot.slane %v5412, 5
      %v5443 = vrot.slane %v5442, 4
      %v5444 = vrot.slane %v5185, 5
      %v5445 = vsel %vm2066, %v5443, %v5444
      %v5446 = vrot.slane %v5413, 5
      %v5447 = vrot.slane %v5446, 4
      %v5448 = vrot.slane %v5187, 5
      %v5449 = vsel %vm2066, %v5447, %v5448
      %v5450 = vrot.slane %v5414, 5
      %v5451 = vrot.slane %v5450, 4
      %v5452 = vrot.slane %v5189, 5
      %v5453 = vsel %vm2066, %v5451, %v5452
      %v5454 = vrot.slane %v5415, 5
      %v5455 = vrot.slane %v5454, 4
      %v5456 = vrot.slane %v5191, 5
      %v5457 = vsel %vm2066, %v5455, %v5456
      %v5458 = vrot.slane %v5416, 5
      %v5459 = vrot.slane %v5458, 4
      %v5460 = vrot.slane %v5193, 5
      %v5461 = vsel %vm2066, %v5459, %v5460
      %v5462 = vrot.slane %v5417, 5
      %v5463 = vrot.slane %v5462, 4
      %v5464 = vrot.slane %v5195, 5
      %v5465 = vsel %vm2066, %v5463, %v5464
      %s5466 = scalar_lea.vmem %s7, 8
      %v5467 = vld [vmem:[%s5466] sm:$0xf]
      %v5468 = vunpack.c.l.b16 %v5437
      %v5469 = vunpack.c.l.b16 %v5441
      %v5470 = vunpack.c.l.b16 %v5445
      %v5471 = vunpack.c.l.b16 %v5449
      %v5472 = vunpack.c.l.b16 %v5453
      %v5473 = vunpack.c.l.b16 %v5457
      %v5474 = vunpack.c.l.b16 %v5461
      %v5475 = vunpack.c.l.b16 %v5465
      %v5476 = vpack.c.b16 %v5469, %v5468
      %v5477 = vpack.c.b16 %v5471, %v5470
      %v5478 = vpack.c.b16 %v5473, %v5472
      %v5479 = vpack.c.b16 %v5475, %v5474
      %v5481 = vsel %vm443, %v5476, 0
      %v5484 = vsel %vm443, %v5477, 0
      %v5487 = vsel %vm443, %v5478, 0
      %v5490 = vsel %vm443, %v5479, 0
      %v5493 = vsel %vm447, %v5467, 0
      %5495 = vmatprep.subr.bf16.mxu0 0
      %5496 = vmatpush1.bf16.msra.mxu0 0
      %5497 = vmatprep.subr.bf16.mxu0 0
      %5498 = vmatpush1.bf16.msra.mxu0 0
      %5499 = vmatprep.subr.bf16.mxu0 0
      %5500 = vmatpush1.bf16.msra.mxu0 0
      %5501 = vmatprep.subr.bf16.mxu0 0
      %5502 = vmatpush1.bf16.msra.mxu0 0
      %5503 = vmatprep.subr.bf16.mxu0 0
      %5504 = vmatpush1.bf16.msra.mxu0 0
      %5505 = vmatprep.subr.bf16.mxu0 0
      %5506 = vmatpush1.bf16.msra.mxu0 0
      %5507 = vmatprep.subr.bf16.mxu0 0
      %5508 = vmatpush1.bf16.msra.mxu0 0
      %5509 = vmatprep.subr.bf16.mxu0 0
      %5510 = vmatpush1.bf16.msra.mxu0 %v5493
      %5511 = vmatprep.subr.bf16.mxu0 0
      %5512 = vmatpush2.bf16.msra.mxu0 0
      %5513 = vmatprep.subr.bf16.mxu0 0
      %5514 = vmatpush2.bf16.msra.mxu0 0
      %5515 = vmatprep.subr.bf16.mxu0 0
      %5516 = vmatpush2.bf16.msra.mxu0 0
      %5517 = vmatprep.subr.bf16.mxu0 0
      %5518 = vmatpush2.bf16.msra.mxu0 0
      %5519 = vmatprep.subr.bf16.mxu0 0
      %5520 = vmatpush2.bf16.msra.mxu0 0
      %5521 = vmatprep.subr.bf16.mxu0 0
      %5522 = vmatpush2.bf16.msra.mxu0 0
      %5523 = vmatprep.subr.bf16.mxu0 0
      %5524 = vmatpush2.bf16.msra.mxu0 0
      %5525 = vmatprep.subr.bf16.mxu0 0
      %5526 = vmatpush2.bf16.msra.mxu0 0
      %5527 = vmatprep.mubr.bf16.mxu0 0
      %5528 = vmatmul.mubr.bf16.gmra.mxu0 %v5481
      %v5529 = vpop.f32.mrf.mxu0
      %v5530 = vadd.f32 0.0, %v5529
      %v5531 = vpop.f32.mrf.mxu0
      %v5532 = vpop.f32.mrf.mxu0
      %v5533 = vadd.f32 0.0, %v5532
      %v5534 = vpop.f32.mrf.mxu0
      %5535 = vmatprep.mubr.bf16.mxu0 0
      %5536 = vmatmul.mubr.bf16.gmra.mxu0 %v5484
      %v5537 = vpop.f32.mrf.mxu0
      %v5538 = vadd.f32 0.0, %v5537
      %v5539 = vpop.f32.mrf.mxu0
      %v5540 = vpop.f32.mrf.mxu0
      %v5541 = vadd.f32 0.0, %v5540
      %v5542 = vpop.f32.mrf.mxu0
      %5543 = vmatprep.mubr.bf16.mxu0 0
      %5544 = vmatmul.mubr.bf16.gmra.mxu0 %v5487
      %v5545 = vpop.f32.mrf.mxu0
      %v5546 = vadd.f32 0.0, %v5545
      %v5547 = vpop.f32.mrf.mxu0
      %v5548 = vpop.f32.mrf.mxu0
      %v5549 = vadd.f32 0.0, %v5548
      %v5550 = vpop.f32.mrf.mxu0
      %5551 = vmatprep.mubr.bf16.mxu0 0
      %5552 = vmatmul.mubr.bf16.gmra.mxu0 %v5490
      %v5553 = vpop.f32.mrf.mxu0
      %v5554 = vadd.f32 0.0, %v5553
      %v5555 = vpop.f32.mrf.mxu0
      %v5556 = vpop.f32.mrf.mxu0
      %v5557 = vadd.f32 0.0, %v5556
      %v5558 = vpop.f32.mrf.mxu0
      %5559 = vdwg.mxu0
      %v5560 = vadd.f32 %v5402, %v5530
      %v5561 = vadd.f32 %v5403, %v5533
      %v5562 = vadd.f32 %v5404, %v5538
      %v5563 = vadd.f32 %v5405, %v5541
      %v5564 = vadd.f32 %v5406, %v5546
      %v5565 = vadd.f32 %v5407, %v5549
      %v5566 = vadd.f32 %v5408, %v5554
      %v5567 = vadd.f32 %v5409, %v5557
      %v5568 = vld [vmem:[%s1629] sm:$0xf]
      %v5569 = vld [vmem:[%s1629 + $0x8] sm:$0xf]
      %v5570 = vld [vmem:[%s1629 + $0x10] sm:$0xf]
      %v5571 = vld [vmem:[%s1629 + $0x18] sm:$0xf]
      %v5572 = vld [vmem:[%s1629 + $0x20] sm:$0xf]
      %v5573 = vld [vmem:[%s1629 + $0x28] sm:$0xf]
      %v5574 = vld [vmem:[%s1629 + $0x30] sm:$0xf]
      %v5575 = vld [vmem:[%s1629 + $0x38] sm:$0xf]
      %s5576 = scalar_lea.vmem %s7, 12
      %v5577 = vld [vmem:[%s5576] sm:$0xf]
      %v5586 = vunpack.c.l.b16 %v5568
      %v5587 = vunpack.c.l.b16 %v5569
      %v5588 = vunpack.c.l.b16 %v5570
      %v5589 = vunpack.c.l.b16 %v5571
      %v5590 = vunpack.c.l.b16 %v5572
      %v5591 = vunpack.c.l.b16 %v5573
      %v5592 = vunpack.c.l.b16 %v5574
      %v5593 = vunpack.c.l.b16 %v5575
      %v5594 = vpack.c.b16 %v5587, %v5586
      %v5595 = vpack.c.b16 %v5589, %v5588
      %v5596 = vpack.c.b16 %v5591, %v5590
      %v5597 = vpack.c.b16 %v5593, %v5592
      %v5599 = vsel %vm443, %v5594, 0
      %v5602 = vsel %vm443, %v5595, 0
      %v5605 = vsel %vm443, %v5596, 0
      %v5608 = vsel %vm443, %v5597, 0
      %v5611 = vsel %vm447, %v5577, 0
      %5613 = vmatprep.subr.bf16.mxu0 0
      %5614 = vmatpush1.bf16.msra.mxu0 0
      %5615 = vmatprep.subr.bf16.mxu0 0
      %5616 = vmatpush1.bf16.msra.mxu0 0
      %5617 = vmatprep.subr.bf16.mxu0 0
      %5618 = vmatpush1.bf16.msra.mxu0 0
      %5619 = vmatprep.subr.bf16.mxu0 0
      %5620 = vmatpush1.bf16.msra.mxu0 0
      %5621 = vmatprep.subr.bf16.mxu0 0
      %5622 = vmatpush1.bf16.msra.mxu0 0
      %5623 = vmatprep.subr.bf16.mxu0 0
      %5624 = vmatpush1.bf16.msra.mxu0 0
      %5625 = vmatprep.subr.bf16.mxu0 0
      %5626 = vmatpush1.bf16.msra.mxu0 0
      %5627 = vmatprep.subr.bf16.mxu0 0
      %5628 = vmatpush1.bf16.msra.mxu0 %v5611
      %5629 = vmatprep.subr.bf16.mxu0 0
      %5630 = vmatpush2.bf16.msra.mxu0 0
      %5631 = vmatprep.subr.bf16.mxu0 0
      %5632 = vmatpush2.bf16.msra.mxu0 0
      %5633 = vmatprep.subr.bf16.mxu0 0
      %5634 = vmatpush2.bf16.msra.mxu0 0
      %5635 = vmatprep.subr.bf16.mxu0 0
      %5636 = vmatpush2.bf16.msra.mxu0 0
      %5637 = vmatprep.subr.bf16.mxu0 0
      %5638 = vmatpush2.bf16.msra.mxu0 0
      %5639 = vmatprep.subr.bf16.mxu0 0
      %5640 = vmatpush2.bf16.msra.mxu0 0
      %5641 = vmatprep.subr.bf16.mxu0 0
      %5642 = vmatpush2.bf16.msra.mxu0 0
      %5643 = vmatprep.subr.bf16.mxu0 0
      %5644 = vmatpush2.bf16.msra.mxu0 0
      %5645 = vmatprep.mubr.bf16.mxu0 0
      %5646 = vmatmul.mubr.bf16.gmra.mxu0 %v5599
      %v5647 = vpop.f32.mrf.mxu0
      %v5648 = vadd.f32 0.0, %v5647
      %v5649 = vpop.f32.mrf.mxu0
      %v5650 = vpop.f32.mrf.mxu0
      %v5651 = vadd.f32 0.0, %v5650
      %v5652 = vpop.f32.mrf.mxu0
      %5653 = vmatprep.mubr.bf16.mxu0 0
      %5654 = vmatmul.mubr.bf16.gmra.mxu0 %v5602
      %v5655 = vpop.f32.mrf.mxu0
      %v5656 = vadd.f32 0.0, %v5655
      %v5657 = vpop.f32.mrf.mxu0
      %v5658 = vpop.f32.mrf.mxu0
      %v5659 = vadd.f32 0.0, %v5658
      %v5660 = vpop.f32.mrf.mxu0
      %5661 = vmatprep.mubr.bf16.mxu0 0
      %5662 = vmatmul.mubr.bf16.gmra.mxu0 %v5605
      %v5663 = vpop.f32.mrf.mxu0
      %v5664 = vadd.f32 0.0, %v5663
      %v5665 = vpop.f32.mrf.mxu0
      %v5666 = vpop.f32.mrf.mxu0
      %v5667 = vadd.f32 0.0, %v5666
      %v5668 = vpop.f32.mrf.mxu0
      %5669 = vmatprep.mubr.bf16.mxu0 0
      %5670 = vmatmul.mubr.bf16.gmra.mxu0 %v5608
      %v5671 = vpop.f32.mrf.mxu0
      %v5672 = vadd.f32 0.0, %v5671
      %v5673 = vpop.f32.mrf.mxu0
      %v5674 = vpop.f32.mrf.mxu0
      %v5675 = vadd.f32 0.0, %v5674
      %v5676 = vpop.f32.mrf.mxu0
      %5677 = vdwg.mxu0
      %v5678 = vadd.f32 %v5560, %v5648
      %v5679 = vadd.f32 %v5561, %v5651
      %v5680 = vadd.f32 %v5562, %v5656
      %v5681 = vadd.f32 %v5563, %v5659
      %v5682 = vadd.f32 %v5564, %v5664
      %v5683 = vadd.f32 %v5565, %v5667
      %v5684 = vadd.f32 %v5566, %v5672
      %v5685 = vadd.f32 %v5567, %v5675
      %v5686 = vld [vmem:[%s1629] sm:$0xf]
      %v5687 = vld [vmem:[%s1629 + $0x4] sm:$0x1]
      %v5688 = vld [vmem:[%s1629 + $0x8] sm:$0xf]
      %v5689 = vld [vmem:[%s1629 + $0xc] sm:$0x1]
      %v5690 = vld [vmem:[%s1629 + $0x10] sm:$0xf]
      %v5691 = vld [vmem:[%s1629 + $0x14] sm:$0x1]
      %v5692 = vld [vmem:[%s1629 + $0x18] sm:$0xf]
      %v5693 = vld [vmem:[%s1629 + $0x1c] sm:$0x1]
      %v5694 = vld [vmem:[%s1629 + $0x20] sm:$0xf]
      %v5695 = vld [vmem:[%s1629 + $0x24] sm:$0x1]
      %v5696 = vld [vmem:[%s1629 + $0x28] sm:$0xf]
      %v5697 = vld [vmem:[%s1629 + $0x2c] sm:$0x1]
      %v5698 = vld [vmem:[%s1629 + $0x30] sm:$0xf]
      %v5699 = vld [vmem:[%s1629 + $0x34] sm:$0x1]
      %v5700 = vld [vmem:[%s1629 + $0x38] sm:$0xf]
      %v5701 = vld [vmem:[%s1629 + $0x3c] sm:$0x1]
      %v5703 = vshrl.u32 %v5686, 16
      %v5705 = vrot.slane %v5703, 4
      %v5706 = vshll.u32 %v5686, 16
      %v5708 = vrot.slane %v5706, 5
      %v5709 = vor.u32 %v5705, %v5708
      %v5710 = vrot.slane %v5709, 4
      %v5712 = vshll.u32 %v5687, 16
      %v5714 = vrot.slane %v5712, 5
      %v5715 = vsel %vm1825, %v5710, %v5714
      %v5717 = vshrl.u32 %v5688, 16
      %v5719 = vrot.slane %v5717, 4
      %v5720 = vshll.u32 %v5688, 16
      %v5722 = vrot.slane %v5720, 5
      %v5723 = vor.u32 %v5719, %v5722
      %v5724 = vrot.slane %v5723, 4
      %v5726 = vshll.u32 %v5689, 16
      %v5728 = vrot.slane %v5726, 5
      %v5729 = vsel %vm1825, %v5724, %v5728
      %v5731 = vshrl.u32 %v5690, 16
      %v5733 = vrot.slane %v5731, 4
      %v5734 = vshll.u32 %v5690, 16
      %v5736 = vrot.slane %v5734, 5
      %v5737 = vor.u32 %v5733, %v5736
      %v5738 = vrot.slane %v5737, 4
      %v5740 = vshll.u32 %v5691, 16
      %v5742 = vrot.slane %v5740, 5
      %v5743 = vsel %vm1825, %v5738, %v5742
      %v5745 = vshrl.u32 %v5692, 16
      %v5747 = vrot.slane %v5745, 4
      %v5748 = vshll.u32 %v5692, 16
      %v5750 = vrot.slane %v5748, 5
      %v5751 = vor.u32 %v5747, %v5750
      %v5752 = vrot.slane %v5751, 4
      %v5754 = vshll.u32 %v5693, 16
      %v5756 = vrot.slane %v5754, 5
      %v5757 = vsel %vm1825, %v5752, %v5756
      %v5759 = vshrl.u32 %v5694, 16
      %v5761 = vrot.slane %v5759, 4
      %v5762 = vshll.u32 %v5694, 16
      %v5764 = vrot.slane %v5762, 5
      %v5765 = vor.u32 %v5761, %v5764
      %v5766 = vrot.slane %v5765, 4
      %v5768 = vshll.u32 %v5695, 16
      %v5770 = vrot.slane %v5768, 5
      %v5771 = vsel %vm1825, %v5766, %v5770
      %v5773 = vshrl.u32 %v5696, 16
      %v5775 = vrot.slane %v5773, 4
      %v5776 = vshll.u32 %v5696, 16
      %v5778 = vrot.slane %v5776, 5
      %v5779 = vor.u32 %v5775, %v5778
      %v5780 = vrot.slane %v5779, 4
      %v5782 = vshll.u32 %v5697, 16
      %v5784 = vrot.slane %v5782, 5
      %v5785 = vsel %vm1825, %v5780, %v5784
      %v5787 = vshrl.u32 %v5698, 16
      %v5789 = vrot.slane %v5787, 4
      %v5790 = vshll.u32 %v5698, 16
      %v5792 = vrot.slane %v5790, 5
      %v5793 = vor.u32 %v5789, %v5792
      %v5794 = vrot.slane %v5793, 4
      %v5796 = vshll.u32 %v5699, 16
      %v5798 = vrot.slane %v5796, 5
      %v5799 = vsel %vm1825, %v5794, %v5798
      %v5801 = vshrl.u32 %v5700, 16
      %v5803 = vrot.slane %v5801, 4
      %v5804 = vshll.u32 %v5700, 16
      %v5806 = vrot.slane %v5804, 5
      %v5807 = vor.u32 %v5803, %v5806
      %v5808 = vrot.slane %v5807, 4
      %v5810 = vshll.u32 %v5701, 16
      %v5812 = vrot.slane %v5810, 5
      %v5813 = vsel %vm1825, %v5808, %v5812
      %s5814 = scalar_lea.vmem %s7, 16
      %v5815 = vld [vmem:[%s5814] sm:$0xf]
      %v5816 = vunpack.c.l.b16 %v5715
      %v5817 = vunpack.c.l.b16 %v5729
      %v5818 = vunpack.c.l.b16 %v5743
      %v5819 = vunpack.c.l.b16 %v5757
      %v5820 = vunpack.c.l.b16 %v5771
      %v5821 = vunpack.c.l.b16 %v5785
      %v5822 = vunpack.c.l.b16 %v5799
      %v5823 = vunpack.c.l.b16 %v5813
      %v5824 = vpack.c.b16 %v5817, %v5816
      %v5825 = vpack.c.b16 %v5819, %v5818
      %v5826 = vpack.c.b16 %v5821, %v5820
      %v5827 = vpack.c.b16 %v5823, %v5822
      %v5829 = vsel %vm443, %v5824, 0
      %v5832 = vsel %vm443, %v5825, 0
      %v5835 = vsel %vm443, %v5826, 0
      %v5838 = vsel %vm443, %v5827, 0
      %v5841 = vsel %vm447, %v5815, 0
      %5843 = vmatprep.subr.bf16.mxu0 0
      %5844 = vmatpush1.bf16.msra.mxu0 0
      %5845 = vmatprep.subr.bf16.mxu0 0
      %5846 = vmatpush1.bf16.msra.mxu0 0
      %5847 = vmatprep.subr.bf16.mxu0 0
      %5848 = vmatpush1.bf16.msra.mxu0 0
      %5849 = vmatprep.subr.bf16.mxu0 0
      %5850 = vmatpush1.bf16.msra.mxu0 0
      %5851 = vmatprep.subr.bf16.mxu0 0
      %5852 = vmatpush1.bf16.msra.mxu0 0
      %5853 = vmatprep.subr.bf16.mxu0 0
      %5854 = vmatpush1.bf16.msra.mxu0 0
      %5855 = vmatprep.subr.bf16.mxu0 0
      %5856 = vmatpush1.bf16.msra.mxu0 0
      %5857 = vmatprep.subr.bf16.mxu0 0
      %5858 = vmatpush1.bf16.msra.mxu0 %v5841
      %5859 = vmatprep.subr.bf16.mxu0 0
      %5860 = vmatpush2.bf16.msra.mxu0 0
      %5861 = vmatprep.subr.bf16.mxu0 0
      %5862 = vmatpush2.bf16.msra.mxu0 0
      %5863 = vmatprep.subr.bf16.mxu0 0
      %5864 = vmatpush2.bf16.msra.mxu0 0
      %5865 = vmatprep.subr.bf16.mxu0 0
      %5866 = vmatpush2.bf16.msra.mxu0 0
      %5867 = vmatprep.subr.bf16.mxu0 0
      %5868 = vmatpush2.bf16.msra.mxu0 0
      %5869 = vmatprep.subr.bf16.mxu0 0
      %5870 = vmatpush2.bf16.msra.mxu0 0
      %5871 = vmatprep.subr.bf16.mxu0 0
      %5872 = vmatpush2.bf16.msra.mxu0 0
      %5873 = vmatprep.subr.bf16.mxu0 0
      %5874 = vmatpush2.bf16.msra.mxu0 0
      %5875 = vmatprep.mubr.bf16.mxu0 0
      %5876 = vmatmul.mubr.bf16.gmra.mxu0 %v5829
      %v5877 = vpop.f32.mrf.mxu0
      %v5878 = vadd.f32 0.0, %v5877
      %v5879 = vpop.f32.mrf.mxu0
      %v5880 = vpop.f32.mrf.mxu0
      %v5881 = vadd.f32 0.0, %v5880
      %v5882 = vpop.f32.mrf.mxu0
      %5883 = vmatprep.mubr.bf16.mxu0 0
      %5884 = vmatmul.mubr.bf16.gmra.mxu0 %v5832
      %v5885 = vpop.f32.mrf.mxu0
      %v5886 = vadd.f32 0.0, %v5885
      %v5887 = vpop.f32.mrf.mxu0
      %v5888 = vpop.f32.mrf.mxu0
      %v5889 = vadd.f32 0.0, %v5888
      %v5890 = vpop.f32.mrf.mxu0
      %5891 = vmatprep.mubr.bf16.mxu0 0
      %5892 = vmatmul.mubr.bf16.gmra.mxu0 %v5835
      %v5893 = vpop.f32.mrf.mxu0
      %v5894 = vadd.f32 0.0, %v5893
      %v5895 = vpop.f32.mrf.mxu0
      %v5896 = vpop.f32.mrf.mxu0
      %v5897 = vadd.f32 0.0, %v5896
      %v5898 = vpop.f32.mrf.mxu0
      %5899 = vmatprep.mubr.bf16.mxu0 0
      %5900 = vmatmul.mubr.bf16.gmra.mxu0 %v5838
      %v5901 = vpop.f32.mrf.mxu0
      %v5902 = vadd.f32 0.0, %v5901
      %v5903 = vpop.f32.mrf.mxu0
      %v5904 = vpop.f32.mrf.mxu0
      %v5905 = vadd.f32 0.0, %v5904
      %v5906 = vpop.f32.mrf.mxu0
      %5907 = vdwg.mxu0
      %v5908 = vadd.f32 %v5678, %v5878
      %v5909 = vadd.f32 %v5679, %v5881
      %v5910 = vadd.f32 %v5680, %v5886
      %v5911 = vadd.f32 %v5681, %v5889
      %v5912 = vadd.f32 %v5682, %v5894
      %v5913 = vadd.f32 %v5683, %v5897
      %v5914 = vadd.f32 %v5684, %v5902
      %v5915 = vadd.f32 %v5685, %v5905
      %v5916 = vld [vmem:[%s1629] sm:$0xe]
      %v5917 = vld [vmem:[%s1629 + $0x8] sm:$0xe]
      %v5918 = vld [vmem:[%s1629 + $0x10] sm:$0xe]
      %v5919 = vld [vmem:[%s1629 + $0x18] sm:$0xe]
      %v5920 = vld [vmem:[%s1629 + $0x20] sm:$0xe]
      %v5921 = vld [vmem:[%s1629 + $0x28] sm:$0xe]
      %v5922 = vld [vmem:[%s1629 + $0x30] sm:$0xe]
      %v5923 = vld [vmem:[%s1629 + $0x38] sm:$0xe]
      %v5940 = vrot.slane %v5916, 5
      %v5941 = vrot.slane %v5940, 4
      %v5942 = vrot.slane %v5687, 5
      %v5943 = vsel %vm2066, %v5941, %v5942
      %v5944 = vrot.slane %v5917, 5
      %v5945 = vrot.slane %v5944, 4
      %v5946 = vrot.slane %v5689, 5
      %v5947 = vsel %vm2066, %v5945, %v5946
      %v5948 = vrot.slane %v5918, 5
      %v5949 = vrot.slane %v5948, 4
      %v5950 = vrot.slane %v5691, 5
      %v5951 = vsel %vm2066, %v5949, %v5950
      %v5952 = vrot.slane %v5919, 5
      %v5953 = vrot.slane %v5952, 4
      %v5954 = vrot.slane %v5693, 5
      %v5955 = vsel %vm2066, %v5953, %v5954
      %v5956 = vrot.slane %v5920, 5
      %v5957 = vrot.slane %v5956, 4
      %v5958 = vrot.slane %v5695, 5
      %v5959 = vsel %vm2066, %v5957, %v5958
      %v5960 = vrot.slane %v5921, 5
      %v5961 = vrot.slane %v5960, 4
      %v5962 = vrot.slane %v5697, 5
      %v5963 = vsel %vm2066, %v5961, %v5962
      %v5964 = vrot.slane %v5922, 5
      %v5965 = vrot.slane %v5964, 4
      %v5966 = vrot.slane %v5699, 5
      %v5967 = vsel %vm2066, %v5965, %v5966
      %v5968 = vrot.slane %v5923, 5
      %v5969 = vrot.slane %v5968, 4
      %v5970 = vrot.slane %v5701, 5
      %v5971 = vsel %vm2066, %v5969, %v5970
      %s5972 = scalar_lea.vmem %s7, 20
      %v5973 = vld [vmem:[%s5972] sm:$0xf]
      %v5974 = vunpack.c.l.b16 %v5943
      %v5975 = vunpack.c.l.b16 %v5947
      %v5976 = vunpack.c.l.b16 %v5951
      %v5977 = vunpack.c.l.b16 %v5955
      %v5978 = vunpack.c.l.b16 %v5959
      %v5979 = vunpack.c.l.b16 %v5963
      %v5980 = vunpack.c.l.b16 %v5967
      %v5981 = vunpack.c.l.b16 %v5971
      %v5982 = vpack.c.b16 %v5975, %v5974
      %v5983 = vpack.c.b16 %v5977, %v5976
      %v5984 = vpack.c.b16 %v5979, %v5978
      %v5985 = vpack.c.b16 %v5981, %v5980
      %v5987 = vsel %vm443, %v5982, 0
      %v5990 = vsel %vm443, %v5983, 0
      %v5993 = vsel %vm443, %v5984, 0
      %v5996 = vsel %vm443, %v5985, 0
      %v5999 = vsel %vm447, %v5973, 0
      %6001 = vmatprep.subr.bf16.mxu0 0
      %6002 = vmatpush1.bf16.msra.mxu0 0
      %6003 = vmatprep.subr.bf16.mxu0 0
      %6004 = vmatpush1.bf16.msra.mxu0 0
      %6005 = vmatprep.subr.bf16.mxu0 0
      %6006 = vmatpush1.bf16.msra.mxu0 0
      %6007 = vmatprep.subr.bf16.mxu0 0
      %6008 = vmatpush1.bf16.msra.mxu0 0
      %6009 = vmatprep.subr.bf16.mxu0 0
      %6010 = vmatpush1.bf16.msra.mxu0 0
      %6011 = vmatprep.subr.bf16.mxu0 0
      %6012 = vmatpush1.bf16.msra.mxu0 0
      %6013 = vmatprep.subr.bf16.mxu0 0
      %6014 = vmatpush1.bf16.msra.mxu0 0
      %6015 = vmatprep.subr.bf16.mxu0 0
      %6016 = vmatpush1.bf16.msra.mxu0 %v5999
      %6017 = vmatprep.subr.bf16.mxu0 0
      %6018 = vmatpush2.bf16.msra.mxu0 0
      %6019 = vmatprep.subr.bf16.mxu0 0
      %6020 = vmatpush2.bf16.msra.mxu0 0
      %6021 = vmatprep.subr.bf16.mxu0 0
      %6022 = vmatpush2.bf16.msra.mxu0 0
      %6023 = vmatprep.subr.bf16.mxu0 0
      %6024 = vmatpush2.bf16.msra.mxu0 0
      %6025 = vmatprep.subr.bf16.mxu0 0
      %6026 = vmatpush2.bf16.msra.mxu0 0
      %6027 = vmatprep.subr.bf16.mxu0 0
      %6028 = vmatpush2.bf16.msra.mxu0 0
      %6029 = vmatprep.subr.bf16.mxu0 0
      %6030 = vmatpush2.bf16.msra.mxu0 0
      %6031 = vmatprep.subr.bf16.mxu0 0
      %6032 = vmatpush2.bf16.msra.mxu0 0
      %6033 = vmatprep.mubr.bf16.mxu0 0
      %6034 = vmatmul.mubr.bf16.gmra.mxu0 %v5987
      %v6035 = vpop.f32.mrf.mxu0
      %v6036 = vadd.f32 0.0, %v6035
      %v6037 = vpop.f32.mrf.mxu0
      %v6038 = vpop.f32.mrf.mxu0
      %v6039 = vadd.f32 0.0, %v6038
      %v6040 = vpop.f32.mrf.mxu0
      %6041 = vmatprep.mubr.bf16.mxu0 0
      %6042 = vmatmul.mubr.bf16.gmra.mxu0 %v5990
      %v6043 = vpop.f32.mrf.mxu0
      %v6044 = vadd.f32 0.0, %v6043
      %v6045 = vpop.f32.mrf.mxu0
      %v6046 = vpop.f32.mrf.mxu0
      %v6047 = vadd.f32 0.0, %v6046
      %v6048 = vpop.f32.mrf.mxu0
      %6049 = vmatprep.mubr.bf16.mxu0 0
      %6050 = vmatmul.mubr.bf16.gmra.mxu0 %v5993
      %v6051 = vpop.f32.mrf.mxu0
      %v6052 = vadd.f32 0.0, %v6051
      %v6053 = vpop.f32.mrf.mxu0
      %v6054 = vpop.f32.mrf.mxu0
      %v6055 = vadd.f32 0.0, %v6054
      %v6056 = vpop.f32.mrf.mxu0
      %6057 = vmatprep.mubr.bf16.mxu0 0
      %6058 = vmatmul.mubr.bf16.gmra.mxu0 %v5996
      %v6059 = vpop.f32.mrf.mxu0
      %v6060 = vadd.f32 0.0, %v6059
      %v6061 = vpop.f32.mrf.mxu0
      %v6062 = vpop.f32.mrf.mxu0
      %v6063 = vadd.f32 0.0, %v6062
      %v6064 = vpop.f32.mrf.mxu0
      %6065 = vdwg.mxu0
      %v6066 = vadd.f32 %v5908, %v6036
      %v6067 = vadd.f32 %v5909, %v6039
      %v6068 = vadd.f32 %v5910, %v6044
      %v6069 = vadd.f32 %v5911, %v6047
      %v6070 = vadd.f32 %v5912, %v6052
      %v6071 = vadd.f32 %v5913, %v6055
      %v6072 = vadd.f32 %v5914, %v6060
      %v6073 = vadd.f32 %v5915, %v6063
      %v6074 = vld [vmem:[%s2707] sm:$0xf]
      %v6075 = vld [vmem:[%s2707 + $0x8] sm:$0xf]
      %v6076 = vld [vmem:[%s2707 + $0x10] sm:$0xf]
      %v6077 = vld [vmem:[%s2707 + $0x18] sm:$0xf]
      %v6078 = vld [vmem:[%s2707 + $0x20] sm:$0xf]
      %v6079 = vld [vmem:[%s2707 + $0x28] sm:$0xf]
      %v6080 = vld [vmem:[%s2707 + $0x30] sm:$0xf]
      %v6081 = vld [vmem:[%s2707 + $0x38] sm:$0xf]
      %s6082 = scalar_lea.vmem %s7, 24
      %v6083 = vld [vmem:[%s6082] sm:$0xf]
      %v6092 = vunpack.c.l.b16 %v6074
      %v6093 = vunpack.c.l.b16 %v6075
      %v6094 = vunpack.c.l.b16 %v6076
      %v6095 = vunpack.c.l.b16 %v6077
      %v6096 = vunpack.c.l.b16 %v6078
      %v6097 = vunpack.c.l.b16 %v6079
      %v6098 = vunpack.c.l.b16 %v6080
      %v6099 = vunpack.c.l.b16 %v6081
      %v6100 = vpack.c.b16 %v6093, %v6092
      %v6101 = vpack.c.b16 %v6095, %v6094
      %v6102 = vpack.c.b16 %v6097, %v6096
      %v6103 = vpack.c.b16 %v6099, %v6098
      %v6105 = vsel %vm443, %v6100, 0
      %v6108 = vsel %vm443, %v6101, 0
      %v6111 = vsel %vm443, %v6102, 0
      %v6114 = vsel %vm443, %v6103, 0
      %v6117 = vsel %vm447, %v6083, 0
      %6119 = vmatprep.subr.bf16.mxu0 0
      %6120 = vmatpush1.bf16.msra.mxu0 0
      %6121 = vmatprep.subr.bf16.mxu0 0
      %6122 = vmatpush1.bf16.msra.mxu0 0
      %6123 = vmatprep.subr.bf16.mxu0 0
      %6124 = vmatpush1.bf16.msra.mxu0 0
      %6125 = vmatprep.subr.bf16.mxu0 0
      %6126 = vmatpush1.bf16.msra.mxu0 0
      %6127 = vmatprep.subr.bf16.mxu0 0
      %6128 = vmatpush1.bf16.msra.mxu0 0
      %6129 = vmatprep.subr.bf16.mxu0 0
      %6130 = vmatpush1.bf16.msra.mxu0 0
      %6131 = vmatprep.subr.bf16.mxu0 0
      %6132 = vmatpush1.bf16.msra.mxu0 0
      %6133 = vmatprep.subr.bf16.mxu0 0
      %6134 = vmatpush1.bf16.msra.mxu0 %v6117
      %6135 = vmatprep.subr.bf16.mxu0 0
      %6136 = vmatpush2.bf16.msra.mxu0 0
      %6137 = vmatprep.subr.bf16.mxu0 0
      %6138 = vmatpush2.bf16.msra.mxu0 0
      %6139 = vmatprep.subr.bf16.mxu0 0
      %6140 = vmatpush2.bf16.msra.mxu0 0
      %6141 = vmatprep.subr.bf16.mxu0 0
      %6142 = vmatpush2.bf16.msra.mxu0 0
      %6143 = vmatprep.subr.bf16.mxu0 0
      %6144 = vmatpush2.bf16.msra.mxu0 0
      %6145 = vmatprep.subr.bf16.mxu0 0
      %6146 = vmatpush2.bf16.msra.mxu0 0
      %6147 = vmatprep.subr.bf16.mxu0 0
      %6148 = vmatpush2.bf16.msra.mxu0 0
      %6149 = vmatprep.subr.bf16.mxu0 0
      %6150 = vmatpush2.bf16.msra.mxu0 0
      %6151 = vmatprep.mubr.bf16.mxu0 0
      %6152 = vmatmul.mubr.bf16.gmra.mxu0 %v6105
      %v6153 = vpop.f32.mrf.mxu0
      %v6154 = vadd.f32 0.0, %v6153
      %v6155 = vpop.f32.mrf.mxu0
      %v6156 = vpop.f32.mrf.mxu0
      %v6157 = vadd.f32 0.0, %v6156
      %v6158 = vpop.f32.mrf.mxu0
      %6159 = vmatprep.mubr.bf16.mxu0 0
      %6160 = vmatmul.mubr.bf16.gmra.mxu0 %v6108
      %v6161 = vpop.f32.mrf.mxu0
      %v6162 = vadd.f32 0.0, %v6161
      %v6163 = vpop.f32.mrf.mxu0
      %v6164 = vpop.f32.mrf.mxu0
      %v6165 = vadd.f32 0.0, %v6164
      %v6166 = vpop.f32.mrf.mxu0
      %6167 = vmatprep.mubr.bf16.mxu0 0
      %6168 = vmatmul.mubr.bf16.gmra.mxu0 %v6111
      %v6169 = vpop.f32.mrf.mxu0
      %v6170 = vadd.f32 0.0, %v6169
      %v6171 = vpop.f32.mrf.mxu0
      %v6172 = vpop.f32.mrf.mxu0
      %v6173 = vadd.f32 0.0, %v6172
      %v6174 = vpop.f32.mrf.mxu0
      %6175 = vmatprep.mubr.bf16.mxu0 0
      %6176 = vmatmul.mubr.bf16.gmra.mxu0 %v6114
      %v6177 = vpop.f32.mrf.mxu0
      %v6178 = vadd.f32 0.0, %v6177
      %v6179 = vpop.f32.mrf.mxu0
      %v6180 = vpop.f32.mrf.mxu0
      %v6181 = vadd.f32 0.0, %v6180
      %v6182 = vpop.f32.mrf.mxu0
      %6183 = vdwg.mxu0
      %v6184 = vadd.f32 %v6066, %v6154
      %v6185 = vadd.f32 %v6067, %v6157
      %v6186 = vadd.f32 %v6068, %v6162
      %v6187 = vadd.f32 %v6069, %v6165
      %v6188 = vadd.f32 %v6070, %v6170
      %v6189 = vadd.f32 %v6071, %v6173
      %v6190 = vadd.f32 %v6072, %v6178
      %v6191 = vadd.f32 %v6073, %v6181
      %v6192 = vld [vmem:[%s2707] sm:$0xf]
      %v6193 = vld [vmem:[%s2707 + $0x4] sm:$0x1]
      %v6194 = vld [vmem:[%s2707 + $0x8] sm:$0xf]
      %v6195 = vld [vmem:[%s2707 + $0xc] sm:$0x1]
      %v6196 = vld [vmem:[%s2707 + $0x10] sm:$0xf]
      %v6197 = vld [vmem:[%s2707 + $0x14] sm:$0x1]
      %v6198 = vld [vmem:[%s2707 + $0x18] sm:$0xf]
      %v6199 = vld [vmem:[%s2707 + $0x1c] sm:$0x1]
      %v6200 = vld [vmem:[%s2707 + $0x20] sm:$0xf]
      %v6201 = vld [vmem:[%s2707 + $0x24] sm:$0x1]
      %v6202 = vld [vmem:[%s2707 + $0x28] sm:$0xf]
      %v6203 = vld [vmem:[%s2707 + $0x2c] sm:$0x1]
      %v6204 = vld [vmem:[%s2707 + $0x30] sm:$0xf]
      %v6205 = vld [vmem:[%s2707 + $0x34] sm:$0x1]
      %v6206 = vld [vmem:[%s2707 + $0x38] sm:$0xf]
      %v6207 = vld [vmem:[%s2707 + $0x3c] sm:$0x1]
      %v6209 = vshrl.u32 %v6192, 16
      %v6211 = vrot.slane %v6209, 4
      %v6212 = vshll.u32 %v6192, 16
      %v6214 = vrot.slane %v6212, 5
      %v6215 = vor.u32 %v6211, %v6214
      %v6216 = vrot.slane %v6215, 4
      %v6218 = vshll.u32 %v6193, 16
      %v6220 = vrot.slane %v6218, 5
      %v6221 = vsel %vm1825, %v6216, %v6220
      %v6223 = vshrl.u32 %v6194, 16
      %v6225 = vrot.slane %v6223, 4
      %v6226 = vshll.u32 %v6194, 16
      %v6228 = vrot.slane %v6226, 5
      %v6229 = vor.u32 %v6225, %v6228
      %v6230 = vrot.slane %v6229, 4
      %v6232 = vshll.u32 %v6195, 16
      %v6234 = vrot.slane %v6232, 5
      %v6235 = vsel %vm1825, %v6230, %v6234
      %v6237 = vshrl.u32 %v6196, 16
      %v6239 = vrot.slane %v6237, 4
      %v6240 = vshll.u32 %v6196, 16
      %v6242 = vrot.slane %v6240, 5
      %v6243 = vor.u32 %v6239, %v6242
      %v6244 = vrot.slane %v6243, 4
      %v6246 = vshll.u32 %v6197, 16
      %v6248 = vrot.slane %v6246, 5
      %v6249 = vsel %vm1825, %v6244, %v6248
      %v6251 = vshrl.u32 %v6198, 16
      %v6253 = vrot.slane %v6251, 4
      %v6254 = vshll.u32 %v6198, 16
      %v6256 = vrot.slane %v6254, 5
      %v6257 = vor.u32 %v6253, %v6256
      %v6258 = vrot.slane %v6257, 4
      %v6260 = vshll.u32 %v6199, 16
      %v6262 = vrot.slane %v6260, 5
      %v6263 = vsel %vm1825, %v6258, %v6262
      %v6265 = vshrl.u32 %v6200, 16
      %v6267 = vrot.slane %v6265, 4
      %v6268 = vshll.u32 %v6200, 16
      %v6270 = vrot.slane %v6268, 5
      %v6271 = vor.u32 %v6267, %v6270
      %v6272 = vrot.slane %v6271, 4
      %v6274 = vshll.u32 %v6201, 16
      %v6276 = vrot.slane %v6274, 5
      %v6277 = vsel %vm1825, %v6272, %v6276
      %v6279 = vshrl.u32 %v6202, 16
      %v6281 = vrot.slane %v6279, 4
      %v6282 = vshll.u32 %v6202, 16
      %v6284 = vrot.slane %v6282, 5
      %v6285 = vor.u32 %v6281, %v6284
      %v6286 = vrot.slane %v6285, 4
      %v6288 = vshll.u32 %v6203, 16
      %v6290 = vrot.slane %v6288, 5
      %v6291 = vsel %vm1825, %v6286, %v6290
      %v6293 = vshrl.u32 %v6204, 16
      %v6295 = vrot.slane %v6293, 4
      %v6296 = vshll.u32 %v6204, 16
      %v6298 = vrot.slane %v6296, 5
      %v6299 = vor.u32 %v6295, %v6298
      %v6300 = vrot.slane %v6299, 4
      %v6302 = vshll.u32 %v6205, 16
      %v6304 = vrot.slane %v6302, 5
      %v6305 = vsel %vm1825, %v6300, %v6304
      %v6307 = vshrl.u32 %v6206, 16
      %v6309 = vrot.slane %v6307, 4
      %v6310 = vshll.u32 %v6206, 16
      %v6312 = vrot.slane %v6310, 5
      %v6313 = vor.u32 %v6309, %v6312
      %v6314 = vrot.slane %v6313, 4
      %v6316 = vshll.u32 %v6207, 16
      %v6318 = vrot.slane %v6316, 5
      %v6319 = vsel %vm1825, %v6314, %v6318
      %s6320 = scalar_lea.vmem %s7, 28
      %v6321 = vld [vmem:[%s6320] sm:$0xf]
      %v6322 = vunpack.c.l.b16 %v6221
      %v6323 = vunpack.c.l.b16 %v6235
      %v6324 = vunpack.c.l.b16 %v6249
      %v6325 = vunpack.c.l.b16 %v6263
      %v6326 = vunpack.c.l.b16 %v6277
      %v6327 = vunpack.c.l.b16 %v6291
      %v6328 = vunpack.c.l.b16 %v6305
      %v6329 = vunpack.c.l.b16 %v6319
      %v6330 = vpack.c.b16 %v6323, %v6322
      %v6331 = vpack.c.b16 %v6325, %v6324
      %v6332 = vpack.c.b16 %v6327, %v6326
      %v6333 = vpack.c.b16 %v6329, %v6328
      %v6335 = vsel %vm443, %v6330, 0
      %v6338 = vsel %vm443, %v6331, 0
      %v6341 = vsel %vm443, %v6332, 0
      %v6344 = vsel %vm443, %v6333, 0
      %v6347 = vsel %vm447, %v6321, 0
      %6349 = vmatprep.subr.bf16.mxu0 0
      %6350 = vmatpush1.bf16.msra.mxu0 0
      %6351 = vmatprep.subr.bf16.mxu0 0
      %6352 = vmatpush1.bf16.msra.mxu0 0
      %6353 = vmatprep.subr.bf16.mxu0 0
      %6354 = vmatpush1.bf16.msra.mxu0 0
      %6355 = vmatprep.subr.bf16.mxu0 0
      %6356 = vmatpush1.bf16.msra.mxu0 0
      %6357 = vmatprep.subr.bf16.mxu0 0
      %6358 = vmatpush1.bf16.msra.mxu0 0
      %6359 = vmatprep.subr.bf16.mxu0 0
      %6360 = vmatpush1.bf16.msra.mxu0 0
      %6361 = vmatprep.subr.bf16.mxu0 0
      %6362 = vmatpush1.bf16.msra.mxu0 0
      %6363 = vmatprep.subr.bf16.mxu0 0
      %6364 = vmatpush1.bf16.msra.mxu0 %v6347
      %6365 = vmatprep.subr.bf16.mxu0 0
      %6366 = vmatpush2.bf16.msra.mxu0 0
      %6367 = vmatprep.subr.bf16.mxu0 0
      %6368 = vmatpush2.bf16.msra.mxu0 0
      %6369 = vmatprep.subr.bf16.mxu0 0
      %6370 = vmatpush2.bf16.msra.mxu0 0
      %6371 = vmatprep.subr.bf16.mxu0 0
      %6372 = vmatpush2.bf16.msra.mxu0 0
      %6373 = vmatprep.subr.bf16.mxu0 0
      %6374 = vmatpush2.bf16.msra.mxu0 0
      %6375 = vmatprep.subr.bf16.mxu0 0
      %6376 = vmatpush2.bf16.msra.mxu0 0
      %6377 = vmatprep.subr.bf16.mxu0 0
      %6378 = vmatpush2.bf16.msra.mxu0 0
      %6379 = vmatprep.subr.bf16.mxu0 0
      %6380 = vmatpush2.bf16.msra.mxu0 0
      %6381 = vmatprep.mubr.bf16.mxu0 0
      %6382 = vmatmul.mubr.bf16.gmra.mxu0 %v6335
      %v6383 = vpop.f32.mrf.mxu0
      %v6384 = vadd.f32 0.0, %v6383
      %v6385 = vpop.f32.mrf.mxu0
      %v6386 = vpop.f32.mrf.mxu0
      %v6387 = vadd.f32 0.0, %v6386
      %v6388 = vpop.f32.mrf.mxu0
      %6389 = vmatprep.mubr.bf16.mxu0 0
      %6390 = vmatmul.mubr.bf16.gmra.mxu0 %v6338
      %v6391 = vpop.f32.mrf.mxu0
      %v6392 = vadd.f32 0.0, %v6391
      %v6393 = vpop.f32.mrf.mxu0
      %v6394 = vpop.f32.mrf.mxu0
      %v6395 = vadd.f32 0.0, %v6394
      %v6396 = vpop.f32.mrf.mxu0
      %6397 = vmatprep.mubr.bf16.mxu0 0
      %6398 = vmatmul.mubr.bf16.gmra.mxu0 %v6341
      %v6399 = vpop.f32.mrf.mxu0
      %v6400 = vadd.f32 0.0, %v6399
      %v6401 = vpop.f32.mrf.mxu0
      %v6402 = vpop.f32.mrf.mxu0
      %v6403 = vadd.f32 0.0, %v6402
      %v6404 = vpop.f32.mrf.mxu0
      %6405 = vmatprep.mubr.bf16.mxu0 0
      %6406 = vmatmul.mubr.bf16.gmra.mxu0 %v6344
      %v6407 = vpop.f32.mrf.mxu0
      %v6408 = vadd.f32 0.0, %v6407
      %v6409 = vpop.f32.mrf.mxu0
      %v6410 = vpop.f32.mrf.mxu0
      %v6411 = vadd.f32 0.0, %v6410
      %v6412 = vpop.f32.mrf.mxu0
      %6413 = vdwg.mxu0
      %v6414 = vadd.f32 %v6184, %v6384
      %v6415 = vadd.f32 %v6185, %v6387
      %v6416 = vadd.f32 %v6186, %v6392
      %v6417 = vadd.f32 %v6187, %v6395
      %v6418 = vadd.f32 %v6188, %v6400
      %v6419 = vadd.f32 %v6189, %v6403
      %v6420 = vadd.f32 %v6190, %v6408
      %v6421 = vadd.f32 %v6191, %v6411
      %v6422 = vld [vmem:[%s2707] sm:$0xe]
      %v6423 = vld [vmem:[%s2707 + $0x8] sm:$0xe]
      %v6424 = vld [vmem:[%s2707 + $0x10] sm:$0xe]
      %v6425 = vld [vmem:[%s2707 + $0x18] sm:$0xe]
      %v6426 = vld [vmem:[%s2707 + $0x20] sm:$0xe]
      %v6427 = vld [vmem:[%s2707 + $0x28] sm:$0xe]
      %v6428 = vld [vmem:[%s2707 + $0x30] sm:$0xe]
      %v6429 = vld [vmem:[%s2707 + $0x38] sm:$0xe]
      %v6446 = vrot.slane %v6422, 5
      %v6447 = vrot.slane %v6446, 4
      %v6448 = vrot.slane %v6193, 5
      %v6449 = vsel %vm2066, %v6447, %v6448
      %v6450 = vrot.slane %v6423, 5
      %v6451 = vrot.slane %v6450, 4
      %v6452 = vrot.slane %v6195, 5
      %v6453 = vsel %vm2066, %v6451, %v6452
      %v6454 = vrot.slane %v6424, 5
      %v6455 = vrot.slane %v6454, 4
      %v6456 = vrot.slane %v6197, 5
      %v6457 = vsel %vm2066, %v6455, %v6456
      %v6458 = vrot.slane %v6425, 5
      %v6459 = vrot.slane %v6458, 4
      %v6460 = vrot.slane %v6199, 5
      %v6461 = vsel %vm2066, %v6459, %v6460
      %v6462 = vrot.slane %v6426, 5
      %v6463 = vrot.slane %v6462, 4
      %v6464 = vrot.slane %v6201, 5
      %v6465 = vsel %vm2066, %v6463, %v6464
      %v6466 = vrot.slane %v6427, 5
      %v6467 = vrot.slane %v6466, 4
      %v6468 = vrot.slane %v6203, 5
      %v6469 = vsel %vm2066, %v6467, %v6468
      %v6470 = vrot.slane %v6428, 5
      %v6471 = vrot.slane %v6470, 4
      %v6472 = vrot.slane %v6205, 5
      %v6473 = vsel %vm2066, %v6471, %v6472
      %v6474 = vrot.slane %v6429, 5
      %v6475 = vrot.slane %v6474, 4
      %v6476 = vrot.slane %v6207, 5
      %v6477 = vsel %vm2066, %v6475, %v6476
      %s6478 = scalar_lea.vmem %s7, 32
      %v6479 = vld [vmem:[%s6478] sm:$0xf]
      %v6480 = vunpack.c.l.b16 %v6449
      %v6481 = vunpack.c.l.b16 %v6453
      %v6482 = vunpack.c.l.b16 %v6457
      %v6483 = vunpack.c.l.b16 %v6461
      %v6484 = vunpack.c.l.b16 %v6465
      %v6485 = vunpack.c.l.b16 %v6469
      %v6486 = vunpack.c.l.b16 %v6473
      %v6487 = vunpack.c.l.b16 %v6477
      %v6488 = vpack.c.b16 %v6481, %v6480
      %v6489 = vpack.c.b16 %v6483, %v6482
      %v6490 = vpack.c.b16 %v6485, %v6484
      %v6491 = vpack.c.b16 %v6487, %v6486
      %v6493 = vsel %vm443, %v6488, 0
      %v6496 = vsel %vm443, %v6489, 0
      %v6499 = vsel %vm443, %v6490, 0
      %v6502 = vsel %vm443, %v6491, 0
      %v6505 = vsel %vm447, %v6479, 0
      %6507 = vmatprep.subr.bf16.mxu0 0
      %6508 = vmatpush1.bf16.msra.mxu0 0
      %6509 = vmatprep.subr.bf16.mxu0 0
      %6510 = vmatpush1.bf16.msra.mxu0 0
      %6511 = vmatprep.subr.bf16.mxu0 0
      %6512 = vmatpush1.bf16.msra.mxu0 0
      %6513 = vmatprep.subr.bf16.mxu0 0
      %6514 = vmatpush1.bf16.msra.mxu0 0
      %6515 = vmatprep.subr.bf16.mxu0 0
      %6516 = vmatpush1.bf16.msra.mxu0 0
      %6517 = vmatprep.subr.bf16.mxu0 0
      %6518 = vmatpush1.bf16.msra.mxu0 0
      %6519 = vmatprep.subr.bf16.mxu0 0
      %6520 = vmatpush1.bf16.msra.mxu0 0
      %6521 = vmatprep.subr.bf16.mxu0 0
      %6522 = vmatpush1.bf16.msra.mxu0 %v6505
      %6523 = vmatprep.subr.bf16.mxu0 0
      %6524 = vmatpush2.bf16.msra.mxu0 0
      %6525 = vmatprep.subr.bf16.mxu0 0
      %6526 = vmatpush2.bf16.msra.mxu0 0
      %6527 = vmatprep.subr.bf16.mxu0 0
      %6528 = vmatpush2.bf16.msra.mxu0 0
      %6529 = vmatprep.subr.bf16.mxu0 0
      %6530 = vmatpush2.bf16.msra.mxu0 0
      %6531 = vmatprep.subr.bf16.mxu0 0
      %6532 = vmatpush2.bf16.msra.mxu0 0
      %6533 = vmatprep.subr.bf16.mxu0 0
      %6534 = vmatpush2.bf16.msra.mxu0 0
      %6535 = vmatprep.subr.bf16.mxu0 0
      %6536 = vmatpush2.bf16.msra.mxu0 0
      %6537 = vmatprep.subr.bf16.mxu0 0
      %6538 = vmatpush2.bf16.msra.mxu0 0
      %6539 = vmatprep.mubr.bf16.mxu0 0
      %6540 = vmatmul.mubr.bf16.gmra.mxu0 %v6493
      %v6541 = vpop.f32.mrf.mxu0
      %v6542 = vadd.f32 0.0, %v6541
      %v6543 = vpop.f32.mrf.mxu0
      %v6544 = vpop.f32.mrf.mxu0
      %v6545 = vadd.f32 0.0, %v6544
      %v6546 = vpop.f32.mrf.mxu0
      %6547 = vmatprep.mubr.bf16.mxu0 0
      %6548 = vmatmul.mubr.bf16.gmra.mxu0 %v6496
      %v6549 = vpop.f32.mrf.mxu0
      %v6550 = vadd.f32 0.0, %v6549
      %v6551 = vpop.f32.mrf.mxu0
      %v6552 = vpop.f32.mrf.mxu0
      %v6553 = vadd.f32 0.0, %v6552
      %v6554 = vpop.f32.mrf.mxu0
      %6555 = vmatprep.mubr.bf16.mxu0 0
      %6556 = vmatmul.mubr.bf16.gmra.mxu0 %v6499
      %v6557 = vpop.f32.mrf.mxu0
      %v6558 = vadd.f32 0.0, %v6557
      %v6559 = vpop.f32.mrf.mxu0
      %v6560 = vpop.f32.mrf.mxu0
      %v6561 = vadd.f32 0.0, %v6560
      %v6562 = vpop.f32.mrf.mxu0
      %6563 = vmatprep.mubr.bf16.mxu0 0
      %6564 = vmatmul.mubr.bf16.gmra.mxu0 %v6502
      %v6565 = vpop.f32.mrf.mxu0
      %v6566 = vadd.f32 0.0, %v6565
      %v6567 = vpop.f32.mrf.mxu0
      %v6568 = vpop.f32.mrf.mxu0
      %v6569 = vadd.f32 0.0, %v6568
      %v6570 = vpop.f32.mrf.mxu0
      %6571 = vdwg.mxu0
      %v6572 = vadd.f32 %v6414, %v6542
      %v6573 = vadd.f32 %v6415, %v6545
      %v6574 = vadd.f32 %v6416, %v6550
      %v6575 = vadd.f32 %v6417, %v6553
      %v6576 = vadd.f32 %v6418, %v6558
      %v6577 = vadd.f32 %v6419, %v6561
      %v6578 = vadd.f32 %v6420, %v6566
      %v6579 = vadd.f32 %v6421, %v6569
      %v6580 = vmax.f32 %v6572, 0.0
      %v6581 = vmax.f32 %v6573, 0.0
      %v6582 = vmax.f32 %v6574, 0.0
      %v6583 = vmax.f32 %v6575, 0.0
      %v6584 = vmax.f32 %v6576, 0.0
      %v6585 = vmax.f32 %v6577, 0.0
      %v6586 = vmax.f32 %v6578, 0.0
      %v6587 = vmax.f32 %v6579, 0.0
      %v6588 = vpack.c.bf16 %v6581, %v6580
      %v6589 = vpack.c.bf16 %v6583, %v6582
      %v6590 = vpack.c.bf16 %v6585, %v6584
      %v6591 = vpack.c.bf16 %v6587, %v6586
      %v6596 = vunpack.c.l.b16 %v6588
      %v6597 = vunpack.c.h.b16 %v6588
      %v6598 = vunpack.c.l.b16 %v6589
      %v6599 = vunpack.c.h.b16 %v6589
      %v6600 = vunpack.c.l.b16 %v6590
      %v6601 = vunpack.c.h.b16 %v6590
      %v6602 = vunpack.c.l.b16 %v6591
      %v6603 = vunpack.c.h.b16 %v6591
      %v6604 = vpack.c.b16 %v6596, %v6596
      %v6605 = vpack.c.b16 %v6597, %v6597
      %v6606 = vpack.c.b16 %v6598, %v6598
      %v6607 = vpack.c.b16 %v6599, %v6599
      %v6608 = vpack.c.b16 %v6600, %v6600
      %v6609 = vpack.c.b16 %v6601, %v6601
      %v6610 = vpack.c.b16 %v6602, %v6602
      %v6611 = vpack.c.b16 %v6603, %v6603
      %v6613 = vshrl.u32 %v6604, 16
      %v6615 = vrot.slane %v6613, 7
      %v6616 = vshll.u32 %v6604, 16
      %v6618 = vor.u32 %v6615, %v6616
      %v6619 = vrot.slane %v6615, 4
      %v6621 = vshrl.u32 %v6605, 16
      %v6623 = vrot.slane %v6621, 7
      %v6624 = vshll.u32 %v6605, 16
      %v6626 = vor.u32 %v6623, %v6624
      %v6627 = vrot.slane %v6623, 4
      %v6629 = vshrl.u32 %v6606, 16
      %v6631 = vrot.slane %v6629, 7
      %v6632 = vshll.u32 %v6606, 16
      %v6634 = vor.u32 %v6631, %v6632
      %v6635 = vrot.slane %v6631, 4
      %v6637 = vshrl.u32 %v6607, 16
      %v6639 = vrot.slane %v6637, 7
      %v6640 = vshll.u32 %v6607, 16
      %v6642 = vor.u32 %v6639, %v6640
      %v6643 = vrot.slane %v6639, 4
      %v6645 = vshrl.u32 %v6608, 16
      %v6647 = vrot.slane %v6645, 7
      %v6648 = vshll.u32 %v6608, 16
      %v6650 = vor.u32 %v6647, %v6648
      %v6651 = vrot.slane %v6647, 4
      %v6653 = vshrl.u32 %v6609, 16
      %v6655 = vrot.slane %v6653, 7
      %v6656 = vshll.u32 %v6609, 16
      %v6658 = vor.u32 %v6655, %v6656
      %v6659 = vrot.slane %v6655, 4
      %v6661 = vshrl.u32 %v6610, 16
      %v6663 = vrot.slane %v6661, 7
      %v6664 = vshll.u32 %v6610, 16
      %v6666 = vor.u32 %v6663, %v6664
      %v6667 = vrot.slane %v6663, 4
      %v6669 = vshrl.u32 %v6611, 16
      %v6671 = vrot.slane %v6669, 7
      %v6672 = vshll.u32 %v6611, 16
      %v6674 = vor.u32 %v6671, %v6672
      %v6675 = vrot.slane %v6671, 4
      %v6692 = vsel %vm1632, %v6618, %v5686
      %6693 = vst [vmem:[%s1629] sm:$0xf] %v6692
      %v6694 = vld [vmem:[%s1629 + $0x4] sm:$0x1]
      %v6695 = vsel %vm1637, %v6619, %v6694
      %6696 = vst [vmem:[%s1629 + $0x4] sm:$0x1] %v6695
      %v6697 = vld [vmem:[%s1629 + $0x8] sm:$0xf]
      %v6698 = vsel %vm1632, %v6626, %v6697
      %6699 = vst [vmem:[%s1629 + $0x8] sm:$0xf] %v6698
      %v6700 = vld [vmem:[%s1629 + $0xc] sm:$0x1]
      %v6701 = vsel %vm1637, %v6627, %v6700
      %6702 = vst [vmem:[%s1629 + $0xc] sm:$0x1] %v6701
      %v6703 = vld [vmem:[%s1629 + $0x10] sm:$0xf]
      %v6704 = vsel %vm1632, %v6634, %v6703
      %6705 = vst [vmem:[%s1629 + $0x10] sm:$0xf] %v6704
      %v6706 = vld [vmem:[%s1629 + $0x14] sm:$0x1]
      %v6707 = vsel %vm1637, %v6635, %v6706
      %6708 = vst [vmem:[%s1629 + $0x14] sm:$0x1] %v6707
      %v6709 = vld [vmem:[%s1629 + $0x18] sm:$0xf]
      %v6710 = vsel %vm1632, %v6642, %v6709
      %6711 = vst [vmem:[%s1629 + $0x18] sm:$0xf] %v6710
      %v6712 = vld [vmem:[%s1629 + $0x1c] sm:$0x1]
      %v6713 = vsel %vm1637, %v6643, %v6712
      %6714 = vst [vmem:[%s1629 + $0x1c] sm:$0x1] %v6713
      %v6715 = vld [vmem:[%s1629 + $0x20] sm:$0xf]
      %v6716 = vsel %vm1632, %v6650, %v6715
      %6717 = vst [vmem:[%s1629 + $0x20] sm:$0xf] %v6716
      %v6718 = vld [vmem:[%s1629 + $0x24] sm:$0x1]
      %v6719 = vsel %vm1637, %v6651, %v6718
      %6720 = vst [vmem:[%s1629 + $0x24] sm:$0x1] %v6719
      %v6721 = vld [vmem:[%s1629 + $0x28] sm:$0xf]
      %v6722 = vsel %vm1632, %v6658, %v6721
      %6723 = vst [vmem:[%s1629 + $0x28] sm:$0xf] %v6722
      %v6724 = vld [vmem:[%s1629 + $0x2c] sm:$0x1]
      %v6725 = vsel %vm1637, %v6659, %v6724
      %6726 = vst [vmem:[%s1629 + $0x2c] sm:$0x1] %v6725
      %v6727 = vld [vmem:[%s1629 + $0x30] sm:$0xf]
      %v6728 = vsel %vm1632, %v6666, %v6727
      %6729 = vst [vmem:[%s1629 + $0x30] sm:$0xf] %v6728
      %v6730 = vld [vmem:[%s1629 + $0x34] sm:$0x1]
      %v6731 = vsel %vm1637, %v6667, %v6730
      %6732 = vst [vmem:[%s1629 + $0x34] sm:$0x1] %v6731
      %v6733 = vld [vmem:[%s1629 + $0x38] sm:$0xf]
      %v6734 = vsel %vm1632, %v6674, %v6733
      %6735 = vst [vmem:[%s1629 + $0x38] sm:$0xf] %v6734
      %v6736 = vld [vmem:[%s1629 + $0x3c] sm:$0x1]
      %v6737 = vsel %vm1637, %v6675, %v6736
      %6738 = vst [vmem:[%s1629 + $0x3c] sm:$0x1] %v6737
      %v6739 = vld [vmem:[%s10] sm:$0x1]
      %v6741 = vlaneseq
      %v6742 = vshrl.u32 %v6741, 7
      %v6743 = vsub.s32 0, %v6742
      %v6744 = vrot.slane %v6739, %v6743
      %v6746 = vld [vmem:[#allocation2] sm:$0xf]
      %v6747 = vld [vmem:[#allocation2 + $0x10] sm:$0xf]
      %v6748 = vld [vmem:[#allocation2 + $0x20] sm:$0xf]
      %v6749 = vld [vmem:[#allocation2 + $0x30] sm:$0xf]
      %v6750 = vld [vmem:[%s9] sm:$0xf]
      %v6755 = vunpack.c.l.b16 %v6746
      %v6756 = vunpack.c.l.b16 %v6747
      %v6757 = vunpack.c.l.b16 %v6748
      %v6758 = vunpack.c.l.b16 %v6749
      %v6759 = vpack.c.b16 %v6756, %v6755
      %v6760 = vpack.c.b16 %v6758, %v6757
      %v6762 = vsel %vm443, %v6759, 0
      %v6765 = vsel %vm443, %v6760, 0
      %v6768 = vsel %vm447, %v6750, 0
      %6770 = vmatprep.subr.bf16.mxu0 0
      %6771 = vmatpush1.bf16.msra.mxu0 0
      %6772 = vmatprep.subr.bf16.mxu0 0
      %6773 = vmatpush1.bf16.msra.mxu0 0
      %6774 = vmatprep.subr.bf16.mxu0 0
      %6775 = vmatpush1.bf16.msra.mxu0 0
      %6776 = vmatprep.subr.bf16.mxu0 0
      %6777 = vmatpush1.bf16.msra.mxu0 0
      %6778 = vmatprep.subr.bf16.mxu0 0
      %6779 = vmatpush1.bf16.msra.mxu0 0
      %6780 = vmatprep.subr.bf16.mxu0 0
      %6781 = vmatpush1.bf16.msra.mxu0 0
      %6782 = vmatprep.subr.bf16.mxu0 0
      %6783 = vmatpush1.bf16.msra.mxu0 0
      %6784 = vmatprep.subr.bf16.mxu0 0
      %6785 = vmatpush1.bf16.msra.mxu0 %v6768
      %6786 = vmatprep.subr.bf16.mxu0 0
      %6787 = vmatpush2.bf16.msra.mxu0 0
      %6788 = vmatprep.subr.bf16.mxu0 0
      %6789 = vmatpush2.bf16.msra.mxu0 0
      %6790 = vmatprep.subr.bf16.mxu0 0
      %6791 = vmatpush2.bf16.msra.mxu0 0
      %6792 = vmatprep.subr.bf16.mxu0 0
      %6793 = vmatpush2.bf16.msra.mxu0 0
      %6794 = vmatprep.subr.bf16.mxu0 0
      %6795 = vmatpush2.bf16.msra.mxu0 0
      %6796 = vmatprep.subr.bf16.mxu0 0
      %6797 = vmatpush2.bf16.msra.mxu0 0
      %6798 = vmatprep.subr.bf16.mxu0 0
      %6799 = vmatpush2.bf16.msra.mxu0 0
      %6800 = vmatprep.subr.bf16.mxu0 0
      %6801 = vmatpush2.bf16.msra.mxu0 0
      %6802 = vmatprep.mubr.bf16.mxu0 0
      %6803 = vmatmul.mubr.bf16.gmra.mxu0 %v6762
      %v6804 = vpop.f32.mrf.mxu0
      %v6805 = vadd.f32 0.0, %v6804
      %v6806 = vpop.f32.mrf.mxu0
      %v6807 = vpop.f32.mrf.mxu0
      %v6808 = vadd.f32 0.0, %v6807
      %v6809 = vpop.f32.mrf.mxu0
      %6810 = vmatprep.mubr.bf16.mxu0 0
      %6811 = vmatmul.mubr.bf16.gmra.mxu0 %v6765
      %v6812 = vpop.f32.mrf.mxu0
      %v6813 = vadd.f32 0.0, %v6812
      %v6814 = vpop.f32.mrf.mxu0
      %v6815 = vpop.f32.mrf.mxu0
      %v6816 = vadd.f32 0.0, %v6815
      %v6817 = vpop.f32.mrf.mxu0
      %6818 = vdwg.mxu0
      %v6819 = vadd.f32 %v6744, %v6805
      %v6820 = vadd.f32 %v6744, %v6808
      %v6821 = vadd.f32 %v6744, %v6813
      %v6822 = vadd.f32 %v6744, %v6816
      %v6823 = vld [vmem:[#allocation2] sm:$0xf]
      %v6824 = vld [vmem:[#allocation2 + $0x4] sm:$0x1]
      %v6825 = vld [vmem:[#allocation2 + $0x10] sm:$0xf]
      %v6826 = vld [vmem:[#allocation2 + $0x14] sm:$0x1]
      %v6827 = vld [vmem:[#allocation2 + $0x20] sm:$0xf]
      %v6828 = vld [vmem:[#allocation2 + $0x24] sm:$0x1]
      %v6829 = vld [vmem:[#allocation2 + $0x30] sm:$0xf]
      %v6830 = vld [vmem:[#allocation2 + $0x34] sm:$0x1]
      %v6832 = vshrl.u32 %v6823, 16
      %v6834 = vrot.slane %v6832, 4
      %v6835 = vshll.u32 %v6823, 16
      %v6837 = vrot.slane %v6835, 5
      %v6838 = vor.u32 %v6834, %v6837
      %v6839 = vrot.slane %v6838, 4
      %v6841 = vshll.u32 %v6824, 16
      %v6843 = vrot.slane %v6841, 5
      %v6844 = vsel %vm1825, %v6839, %v6843
      %v6846 = vshrl.u32 %v6825, 16
      %v6848 = vrot.slane %v6846, 4
      %v6849 = vshll.u32 %v6825, 16
      %v6851 = vrot.slane %v6849, 5
      %v6852 = vor.u32 %v6848, %v6851
      %v6853 = vrot.slane %v6852, 4
      %v6855 = vshll.u32 %v6826, 16
      %v6857 = vrot.slane %v6855, 5
      %v6858 = vsel %vm1825, %v6853, %v6857
      %v6860 = vshrl.u32 %v6827, 16
      %v6862 = vrot.slane %v6860, 4
      %v6863 = vshll.u32 %v6827, 16
      %v6865 = vrot.slane %v6863, 5
      %v6866 = vor.u32 %v6862, %v6865
      %v6867 = vrot.slane %v6866, 4
      %v6869 = vshll.u32 %v6828, 16
      %v6871 = vrot.slane %v6869, 5
      %v6872 = vsel %vm1825, %v6867, %v6871
      %v6874 = vshrl.u32 %v6829, 16
      %v6876 = vrot.slane %v6874, 4
      %v6877 = vshll.u32 %v6829, 16
      %v6879 = vrot.slane %v6877, 5
      %v6880 = vor.u32 %v6876, %v6879
      %v6881 = vrot.slane %v6880, 4
      %v6883 = vshll.u32 %v6830, 16
      %v6885 = vrot.slane %v6883, 5
      %v6886 = vsel %vm1825, %v6881, %v6885
      %s6887 = scalar_lea.vmem %s9, 4
      %v6888 = vld [vmem:[%s6887] sm:$0xf]
      %v6889 = vunpack.c.l.b16 %v6844
      %v6890 = vunpack.c.l.b16 %v6858
      %v6891 = vunpack.c.l.b16 %v6872
      %v6892 = vunpack.c.l.b16 %v6886
      %v6893 = vpack.c.b16 %v6890, %v6889
      %v6894 = vpack.c.b16 %v6892, %v6891
      %v6896 = vsel %vm443, %v6893, 0
      %v6899 = vsel %vm443, %v6894, 0
      %v6902 = vsel %vm447, %v6888, 0
      %6904 = vmatprep.subr.bf16.mxu0 0
      %6905 = vmatpush1.bf16.msra.mxu0 0
      %6906 = vmatprep.subr.bf16.mxu0 0
      %6907 = vmatpush1.bf16.msra.mxu0 0
      %6908 = vmatprep.subr.bf16.mxu0 0
      %6909 = vmatpush1.bf16.msra.mxu0 0
      %6910 = vmatprep.subr.bf16.mxu0 0
      %6911 = vmatpush1.bf16.msra.mxu0 0
      %6912 = vmatprep.subr.bf16.mxu0 0
      %6913 = vmatpush1.bf16.msra.mxu0 0
      %6914 = vmatprep.subr.bf16.mxu0 0
      %6915 = vmatpush1.bf16.msra.mxu0 0
      %6916 = vmatprep.subr.bf16.mxu0 0
      %6917 = vmatpush1.bf16.msra.mxu0 0
      %6918 = vmatprep.subr.bf16.mxu0 0
      %6919 = vmatpush1.bf16.msra.mxu0 %v6902
      %6920 = vmatprep.subr.bf16.mxu0 0
      %6921 = vmatpush2.bf16.msra.mxu0 0
      %6922 = vmatprep.subr.bf16.mxu0 0
      %6923 = vmatpush2.bf16.msra.mxu0 0
      %6924 = vmatprep.subr.bf16.mxu0 0
      %6925 = vmatpush2.bf16.msra.mxu0 0
      %6926 = vmatprep.subr.bf16.mxu0 0
      %6927 = vmatpush2.bf16.msra.mxu0 0
      %6928 = vmatprep.subr.bf16.mxu0 0
      %6929 = vmatpush2.bf16.msra.mxu0 0
      %6930 = vmatprep.subr.bf16.mxu0 0
      %6931 = vmatpush2.bf16.msra.mxu0 0
      %6932 = vmatprep.subr.bf16.mxu0 0
      %6933 = vmatpush2.bf16.msra.mxu0 0
      %6934 = vmatprep.subr.bf16.mxu0 0
      %6935 = vmatpush2.bf16.msra.mxu0 0
      %6936 = vmatprep.mubr.bf16.mxu0 0
      %6937 = vmatmul.mubr.bf16.gmra.mxu0 %v6896
      %v6938 = vpop.f32.mrf.mxu0
      %v6939 = vadd.f32 0.0, %v6938
      %v6940 = vpop.f32.mrf.mxu0
      %v6941 = vpop.f32.mrf.mxu0
      %v6942 = vadd.f32 0.0, %v6941
      %v6943 = vpop.f32.mrf.mxu0
      %6944 = vmatprep.mubr.bf16.mxu0 0
      %6945 = vmatmul.mubr.bf16.gmra.mxu0 %v6899
      %v6946 = vpop.f32.mrf.mxu0
      %v6947 = vadd.f32 0.0, %v6946
      %v6948 = vpop.f32.mrf.mxu0
      %v6949 = vpop.f32.mrf.mxu0
      %v6950 = vadd.f32 0.0, %v6949
      %v6951 = vpop.f32.mrf.mxu0
      %6952 = vdwg.mxu0
      %v6953 = vadd.f32 %v6819, %v6939
      %v6954 = vadd.f32 %v6820, %v6942
      %v6955 = vadd.f32 %v6821, %v6947
      %v6956 = vadd.f32 %v6822, %v6950
      %v6957 = vld [vmem:[#allocation2] sm:$0xe]
      %v6958 = vld [vmem:[#allocation2 + $0x10] sm:$0xe]
      %v6959 = vld [vmem:[#allocation2 + $0x20] sm:$0xe]
      %v6960 = vld [vmem:[#allocation2 + $0x30] sm:$0xe]
      %v6969 = vrot.slane %v6957, 5
      %v6970 = vrot.slane %v6969, 4
      %v6971 = vrot.slane %v6824, 5
      %v6972 = vsel %vm2066, %v6970, %v6971
      %v6973 = vrot.slane %v6958, 5
      %v6974 = vrot.slane %v6973, 4
      %v6975 = vrot.slane %v6826, 5
      %v6976 = vsel %vm2066, %v6974, %v6975
      %v6977 = vrot.slane %v6959, 5
      %v6978 = vrot.slane %v6977, 4
      %v6979 = vrot.slane %v6828, 5
      %v6980 = vsel %vm2066, %v6978, %v6979
      %v6981 = vrot.slane %v6960, 5
      %v6982 = vrot.slane %v6981, 4
      %v6983 = vrot.slane %v6830, 5
      %v6984 = vsel %vm2066, %v6982, %v6983
      %s6985 = scalar_lea.vmem %s9, 8
      %v6986 = vld [vmem:[%s6985] sm:$0xf]
      %v6987 = vunpack.c.l.b16 %v6972
      %v6988 = vunpack.c.l.b16 %v6976
      %v6989 = vunpack.c.l.b16 %v6980
      %v6990 = vunpack.c.l.b16 %v6984
      %v6991 = vpack.c.b16 %v6988, %v6987
      %v6992 = vpack.c.b16 %v6990, %v6989
      %v6994 = vsel %vm443, %v6991, 0
      %v6997 = vsel %vm443, %v6992, 0
      %v7000 = vsel %vm447, %v6986, 0
      %7002 = vmatprep.subr.bf16.mxu0 0
      %7003 = vmatpush1.bf16.msra.mxu0 0
      %7004 = vmatprep.subr.bf16.mxu0 0
      %7005 = vmatpush1.bf16.msra.mxu0 0
      %7006 = vmatprep.subr.bf16.mxu0 0
      %7007 = vmatpush1.bf16.msra.mxu0 0
      %7008 = vmatprep.subr.bf16.mxu0 0
      %7009 = vmatpush1.bf16.msra.mxu0 0
      %7010 = vmatprep.subr.bf16.mxu0 0
      %7011 = vmatpush1.bf16.msra.mxu0 0
      %7012 = vmatprep.subr.bf16.mxu0 0
      %7013 = vmatpush1.bf16.msra.mxu0 0
      %7014 = vmatprep.subr.bf16.mxu0 0
      %7015 = vmatpush1.bf16.msra.mxu0 0
      %7016 = vmatprep.subr.bf16.mxu0 0
      %7017 = vmatpush1.bf16.msra.mxu0 %v7000
      %7018 = vmatprep.subr.bf16.mxu0 0
      %7019 = vmatpush2.bf16.msra.mxu0 0
      %7020 = vmatprep.subr.bf16.mxu0 0
      %7021 = vmatpush2.bf16.msra.mxu0 0
      %7022 = vmatprep.subr.bf16.mxu0 0
      %7023 = vmatpush2.bf16.msra.mxu0 0
      %7024 = vmatprep.subr.bf16.mxu0 0
      %7025 = vmatpush2.bf16.msra.mxu0 0
      %7026 = vmatprep.subr.bf16.mxu0 0
      %7027 = vmatpush2.bf16.msra.mxu0 0
      %7028 = vmatprep.subr.bf16.mxu0 0
      %7029 = vmatpush2.bf16.msra.mxu0 0
      %7030 = vmatprep.subr.bf16.mxu0 0
      %7031 = vmatpush2.bf16.msra.mxu0 0
      %7032 = vmatprep.subr.bf16.mxu0 0
      %7033 = vmatpush2.bf16.msra.mxu0 0
      %7034 = vmatprep.mubr.bf16.mxu0 0
      %7035 = vmatmul.mubr.bf16.gmra.mxu0 %v6994
      %v7036 = vpop.f32.mrf.mxu0
      %v7037 = vadd.f32 0.0, %v7036
      %v7038 = vpop.f32.mrf.mxu0
      %v7039 = vpop.f32.mrf.mxu0
      %v7040 = vadd.f32 0.0, %v7039
      %v7041 = vpop.f32.mrf.mxu0
      %7042 = vmatprep.mubr.bf16.mxu0 0
      %7043 = vmatmul.mubr.bf16.gmra.mxu0 %v6997
      %v7044 = vpop.f32.mrf.mxu0
      %v7045 = vadd.f32 0.0, %v7044
      %v7046 = vpop.f32.mrf.mxu0
      %v7047 = vpop.f32.mrf.mxu0
      %v7048 = vadd.f32 0.0, %v7047
      %v7049 = vpop.f32.mrf.mxu0
      %7050 = vdwg.mxu0
      %v7051 = vadd.f32 %v6953, %v7037
      %v7052 = vadd.f32 %v6954, %v7040
      %v7053 = vadd.f32 %v6955, %v7045
      %v7054 = vadd.f32 %v6956, %v7048
      %v7055 = vld [vmem:[%s1629] sm:$0xf]
      %v7056 = vld [vmem:[%s1629 + $0x10] sm:$0xf]
      %v7057 = vld [vmem:[%s1629 + $0x20] sm:$0xf]
      %v7058 = vld [vmem:[%s1629 + $0x30] sm:$0xf]
      %s7059 = scalar_lea.vmem %s9, 12
      %v7060 = vld [vmem:[%s7059] sm:$0xf]
      %v7065 = vunpack.c.l.b16 %v7055
      %v7066 = vunpack.c.l.b16 %v7056
      %v7067 = vunpack.c.l.b16 %v7057
      %v7068 = vunpack.c.l.b16 %v7058
      %v7069 = vpack.c.b16 %v7066, %v7065
      %v7070 = vpack.c.b16 %v7068, %v7067
      %v7072 = vsel %vm443, %v7069, 0
      %v7075 = vsel %vm443, %v7070, 0
      %v7078 = vsel %vm447, %v7060, 0
      %7080 = vmatprep.subr.bf16.mxu0 0
      %7081 = vmatpush1.bf16.msra.mxu0 0
      %7082 = vmatprep.subr.bf16.mxu0 0
      %7083 = vmatpush1.bf16.msra.mxu0 0
      %7084 = vmatprep.subr.bf16.mxu0 0
      %7085 = vmatpush1.bf16.msra.mxu0 0
      %7086 = vmatprep.subr.bf16.mxu0 0
      %7087 = vmatpush1.bf16.msra.mxu0 0
      %7088 = vmatprep.subr.bf16.mxu0 0
      %7089 = vmatpush1.bf16.msra.mxu0 0
      %7090 = vmatprep.subr.bf16.mxu0 0
      %7091 = vmatpush1.bf16.msra.mxu0 0
      %7092 = vmatprep.subr.bf16.mxu0 0
      %7093 = vmatpush1.bf16.msra.mxu0 0
      %7094 = vmatprep.subr.bf16.mxu0 0
      %7095 = vmatpush1.bf16.msra.mxu0 %v7078
      %7096 = vmatprep.subr.bf16.mxu0 0
      %7097 = vmatpush2.bf16.msra.mxu0 0
      %7098 = vmatprep.subr.bf16.mxu0 0
      %7099 = vmatpush2.bf16.msra.mxu0 0
      %7100 = vmatprep.subr.bf16.mxu0 0
      %7101 = vmatpush2.bf16.msra.mxu0 0
      %7102 = vmatprep.subr.bf16.mxu0 0
      %7103 = vmatpush2.bf16.msra.mxu0 0
      %7104 = vmatprep.subr.bf16.mxu0 0
      %7105 = vmatpush2.bf16.msra.mxu0 0
      %7106 = vmatprep.subr.bf16.mxu0 0
      %7107 = vmatpush2.bf16.msra.mxu0 0
      %7108 = vmatprep.subr.bf16.mxu0 0
      %7109 = vmatpush2.bf16.msra.mxu0 0
      %7110 = vmatprep.subr.bf16.mxu0 0
      %7111 = vmatpush2.bf16.msra.mxu0 0
      %7112 = vmatprep.mubr.bf16.mxu0 0
      %7113 = vmatmul.mubr.bf16.gmra.mxu0 %v7072
      %v7114 = vpop.f32.mrf.mxu0
      %v7115 = vadd.f32 0.0, %v7114
      %v7116 = vpop.f32.mrf.mxu0
      %v7117 = vpop.f32.mrf.mxu0
      %v7118 = vadd.f32 0.0, %v7117
      %v7119 = vpop.f32.mrf.mxu0
      %7120 = vmatprep.mubr.bf16.mxu0 0
      %7121 = vmatmul.mubr.bf16.gmra.mxu0 %v7075
      %v7122 = vpop.f32.mrf.mxu0
      %v7123 = vadd.f32 0.0, %v7122
      %v7124 = vpop.f32.mrf.mxu0
      %v7125 = vpop.f32.mrf.mxu0
      %v7126 = vadd.f32 0.0, %v7125
      %v7127 = vpop.f32.mrf.mxu0
      %7128 = vdwg.mxu0
      %v7129 = vadd.f32 %v7051, %v7115
      %v7130 = vadd.f32 %v7052, %v7118
      %v7131 = vadd.f32 %v7053, %v7123
      %v7132 = vadd.f32 %v7054, %v7126
      %v7133 = vld [vmem:[%s1629] sm:$0xf]
      %v7134 = vld [vmem:[%s1629 + $0x4] sm:$0x1]
      %v7135 = vld [vmem:[%s1629 + $0x10] sm:$0xf]
      %v7136 = vld [vmem:[%s1629 + $0x14] sm:$0x1]
      %v7137 = vld [vmem:[%s1629 + $0x20] sm:$0xf]
      %v7138 = vld [vmem:[%s1629 + $0x24] sm:$0x1]
      %v7139 = vld [vmem:[%s1629 + $0x30] sm:$0xf]
      %v7140 = vld [vmem:[%s1629 + $0x34] sm:$0x1]
      %v7142 = vshrl.u32 %v7133, 16
      %v7144 = vrot.slane %v7142, 4
      %v7145 = vshll.u32 %v7133, 16
      %v7147 = vrot.slane %v7145, 5
      %v7148 = vor.u32 %v7144, %v7147
      %v7149 = vrot.slane %v7148, 4
      %v7151 = vshll.u32 %v7134, 16
      %v7153 = vrot.slane %v7151, 5
      %v7154 = vsel %vm1825, %v7149, %v7153
      %v7156 = vshrl.u32 %v7135, 16
      %v7158 = vrot.slane %v7156, 4
      %v7159 = vshll.u32 %v7135, 16
      %v7161 = vrot.slane %v7159, 5
      %v7162 = vor.u32 %v7158, %v7161
      %v7163 = vrot.slane %v7162, 4
      %v7165 = vshll.u32 %v7136, 16
      %v7167 = vrot.slane %v7165, 5
      %v7168 = vsel %vm1825, %v7163, %v7167
      %v7170 = vshrl.u32 %v7137, 16
      %v7172 = vrot.slane %v7170, 4
      %v7173 = vshll.u32 %v7137, 16
      %v7175 = vrot.slane %v7173, 5
      %v7176 = vor.u32 %v7172, %v7175
      %v7177 = vrot.slane %v7176, 4
      %v7179 = vshll.u32 %v7138, 16
      %v7181 = vrot.slane %v7179, 5
      %v7182 = vsel %vm1825, %v7177, %v7181
      %v7184 = vshrl.u32 %v7139, 16
      %v7186 = vrot.slane %v7184, 4
      %v7187 = vshll.u32 %v7139, 16
      %v7189 = vrot.slane %v7187, 5
      %v7190 = vor.u32 %v7186, %v7189
      %v7191 = vrot.slane %v7190, 4
      %v7193 = vshll.u32 %v7140, 16
      %v7195 = vrot.slane %v7193, 5
      %v7196 = vsel %vm1825, %v7191, %v7195
      %s7197 = scalar_lea.vmem %s9, 16
      %v7198 = vld [vmem:[%s7197] sm:$0xf]
      %v7199 = vunpack.c.l.b16 %v7154
      %v7200 = vunpack.c.l.b16 %v7168
      %v7201 = vunpack.c.l.b16 %v7182
      %v7202 = vunpack.c.l.b16 %v7196
      %v7203 = vpack.c.b16 %v7200, %v7199
      %v7204 = vpack.c.b16 %v7202, %v7201
      %v7206 = vsel %vm443, %v7203, 0
      %v7209 = vsel %vm443, %v7204, 0
      %v7212 = vsel %vm447, %v7198, 0
      %7214 = vmatprep.subr.bf16.mxu0 0
      %7215 = vmatpush1.bf16.msra.mxu0 0
      %7216 = vmatprep.subr.bf16.mxu0 0
      %7217 = vmatpush1.bf16.msra.mxu0 0
      %7218 = vmatprep.subr.bf16.mxu0 0
      %7219 = vmatpush1.bf16.msra.mxu0 0
      %7220 = vmatprep.subr.bf16.mxu0 0
      %7221 = vmatpush1.bf16.msra.mxu0 0
      %7222 = vmatprep.subr.bf16.mxu0 0
      %7223 = vmatpush1.bf16.msra.mxu0 0
      %7224 = vmatprep.subr.bf16.mxu0 0
      %7225 = vmatpush1.bf16.msra.mxu0 0
      %7226 = vmatprep.subr.bf16.mxu0 0
      %7227 = vmatpush1.bf16.msra.mxu0 0
      %7228 = vmatprep.subr.bf16.mxu0 0
      %7229 = vmatpush1.bf16.msra.mxu0 %v7212
      %7230 = vmatprep.subr.bf16.mxu0 0
      %7231 = vmatpush2.bf16.msra.mxu0 0
      %7232 = vmatprep.subr.bf16.mxu0 0
      %7233 = vmatpush2.bf16.msra.mxu0 0
      %7234 = vmatprep.subr.bf16.mxu0 0
      %7235 = vmatpush2.bf16.msra.mxu0 0
      %7236 = vmatprep.subr.bf16.mxu0 0
      %7237 = vmatpush2.bf16.msra.mxu0 0
      %7238 = vmatprep.subr.bf16.mxu0 0
      %7239 = vmatpush2.bf16.msra.mxu0 0
      %7240 = vmatprep.subr.bf16.mxu0 0
      %7241 = vmatpush2.bf16.msra.mxu0 0
      %7242 = vmatprep.subr.bf16.mxu0 0
      %7243 = vmatpush2.bf16.msra.mxu0 0
      %7244 = vmatprep.subr.bf16.mxu0 0
      %7245 = vmatpush2.bf16.msra.mxu0 0
      %7246 = vmatprep.mubr.bf16.mxu0 0
      %7247 = vmatmul.mubr.bf16.gmra.mxu0 %v7206
      %v7248 = vpop.f32.mrf.mxu0
      %v7249 = vadd.f32 0.0, %v7248
      %v7250 = vpop.f32.mrf.mxu0
      %v7251 = vpop.f32.mrf.mxu0
      %v7252 = vadd.f32 0.0, %v7251
      %v7253 = vpop.f32.mrf.mxu0
      %7254 = vmatprep.mubr.bf16.mxu0 0
      %7255 = vmatmul.mubr.bf16.gmra.mxu0 %v7209
      %v7256 = vpop.f32.mrf.mxu0
      %v7257 = vadd.f32 0.0, %v7256
      %v7258 = vpop.f32.mrf.mxu0
      %v7259 = vpop.f32.mrf.mxu0
      %v7260 = vadd.f32 0.0, %v7259
      %v7261 = vpop.f32.mrf.mxu0
      %7262 = vdwg.mxu0
      %v7263 = vadd.f32 %v7129, %v7249
      %v7264 = vadd.f32 %v7130, %v7252
      %v7265 = vadd.f32 %v7131, %v7257
      %v7266 = vadd.f32 %v7132, %v7260
      %v7267 = vld [vmem:[%s1629] sm:$0xe]
      %v7268 = vld [vmem:[%s1629 + $0x10] sm:$0xe]
      %v7269 = vld [vmem:[%s1629 + $0x20] sm:$0xe]
      %v7270 = vld [vmem:[%s1629 + $0x30] sm:$0xe]
      %v7279 = vrot.slane %v7267, 5
      %v7280 = vrot.slane %v7279, 4
      %v7281 = vrot.slane %v7134, 5
      %v7282 = vsel %vm2066, %v7280, %v7281
      %v7283 = vrot.slane %v7268, 5
      %v7284 = vrot.slane %v7283, 4
      %v7285 = vrot.slane %v7136, 5
      %v7286 = vsel %vm2066, %v7284, %v7285
      %v7287 = vrot.slane %v7269, 5
      %v7288 = vrot.slane %v7287, 4
      %v7289 = vrot.slane %v7138, 5
      %v7290 = vsel %vm2066, %v7288, %v7289
      %v7291 = vrot.slane %v7270, 5
      %v7292 = vrot.slane %v7291, 4
      %v7293 = vrot.slane %v7140, 5
      %v7294 = vsel %vm2066, %v7292, %v7293
      %s7295 = scalar_lea.vmem %s9, 20
      %v7296 = vld [vmem:[%s7295] sm:$0xf]
      %v7297 = vunpack.c.l.b16 %v7282
      %v7298 = vunpack.c.l.b16 %v7286
      %v7299 = vunpack.c.l.b16 %v7290
      %v7300 = vunpack.c.l.b16 %v7294
      %v7301 = vpack.c.b16 %v7298, %v7297
      %v7302 = vpack.c.b16 %v7300, %v7299
      %v7304 = vsel %vm443, %v7301, 0
      %v7307 = vsel %vm443, %v7302, 0
      %v7310 = vsel %vm447, %v7296, 0
      %7312 = vmatprep.subr.bf16.mxu0 0
      %7313 = vmatpush1.bf16.msra.mxu0 0
      %7314 = vmatprep.subr.bf16.mxu0 0
      %7315 = vmatpush1.bf16.msra.mxu0 0
      %7316 = vmatprep.subr.bf16.mxu0 0
      %7317 = vmatpush1.bf16.msra.mxu0 0
      %7318 = vmatprep.subr.bf16.mxu0 0
      %7319 = vmatpush1.bf16.msra.mxu0 0
      %7320 = vmatprep.subr.bf16.mxu0 0
      %7321 = vmatpush1.bf16.msra.mxu0 0
      %7322 = vmatprep.subr.bf16.mxu0 0
      %7323 = vmatpush1.bf16.msra.mxu0 0
      %7324 = vmatprep.subr.bf16.mxu0 0
      %7325 = vmatpush1.bf16.msra.mxu0 0
      %7326 = vmatprep.subr.bf16.mxu0 0
      %7327 = vmatpush1.bf16.msra.mxu0 %v7310
      %7328 = vmatprep.subr.bf16.mxu0 0
      %7329 = vmatpush2.bf16.msra.mxu0 0
      %7330 = vmatprep.subr.bf16.mxu0 0
      %7331 = vmatpush2.bf16.msra.mxu0 0
      %7332 = vmatprep.subr.bf16.mxu0 0
      %7333 = vmatpush2.bf16.msra.mxu0 0
      %7334 = vmatprep.subr.bf16.mxu0 0
      %7335 = vmatpush2.bf16.msra.mxu0 0
      %7336 = vmatprep.subr.bf16.mxu0 0
      %7337 = vmatpush2.bf16.msra.mxu0 0
      %7338 = vmatprep.subr.bf16.mxu0 0
      %7339 = vmatpush2.bf16.msra.mxu0 0
      %7340 = vmatprep.subr.bf16.mxu0 0
      %7341 = vmatpush2.bf16.msra.mxu0 0
      %7342 = vmatprep.subr.bf16.mxu0 0
      %7343 = vmatpush2.bf16.msra.mxu0 0
      %7344 = vmatprep.mubr.bf16.mxu0 0
      %7345 = vmatmul.mubr.bf16.gmra.mxu0 %v7304
      %v7346 = vpop.f32.mrf.mxu0
      %v7347 = vadd.f32 0.0, %v7346
      %v7348 = vpop.f32.mrf.mxu0
      %v7349 = vpop.f32.mrf.mxu0
      %v7350 = vadd.f32 0.0, %v7349
      %v7351 = vpop.f32.mrf.mxu0
      %7352 = vmatprep.mubr.bf16.mxu0 0
      %7353 = vmatmul.mubr.bf16.gmra.mxu0 %v7307
      %v7354 = vpop.f32.mrf.mxu0
      %v7355 = vadd.f32 0.0, %v7354
      %v7356 = vpop.f32.mrf.mxu0
      %v7357 = vpop.f32.mrf.mxu0
      %v7358 = vadd.f32 0.0, %v7357
      %v7359 = vpop.f32.mrf.mxu0
      %7360 = vdwg.mxu0
      %v7361 = vadd.f32 %v7263, %v7347
      %v7362 = vadd.f32 %v7264, %v7350
      %v7363 = vadd.f32 %v7265, %v7355
      %v7364 = vadd.f32 %v7266, %v7358
      %v7365 = vld [vmem:[%s2707] sm:$0xf]
      %v7366 = vld [vmem:[%s2707 + $0x10] sm:$0xf]
      %v7367 = vld [vmem:[%s2707 + $0x20] sm:$0xf]
      %v7368 = vld [vmem:[%s2707 + $0x30] sm:$0xf]
      %s7369 = scalar_lea.vmem %s9, 24
      %v7370 = vld [vmem:[%s7369] sm:$0xf]
      %v7375 = vunpack.c.l.b16 %v7365
      %v7376 = vunpack.c.l.b16 %v7366
      %v7377 = vunpack.c.l.b16 %v7367
      %v7378 = vunpack.c.l.b16 %v7368
      %v7379 = vpack.c.b16 %v7376, %v7375
      %v7380 = vpack.c.b16 %v7378, %v7377
      %v7382 = vsel %vm443, %v7379, 0
      %v7385 = vsel %vm443, %v7380, 0
      %v7388 = vsel %vm447, %v7370, 0
      %7390 = vmatprep.subr.bf16.mxu0 0
      %7391 = vmatpush1.bf16.msra.mxu0 0
      %7392 = vmatprep.subr.bf16.mxu0 0
      %7393 = vmatpush1.bf16.msra.mxu0 0
      %7394 = vmatprep.subr.bf16.mxu0 0
      %7395 = vmatpush1.bf16.msra.mxu0 0
      %7396 = vmatprep.subr.bf16.mxu0 0
      %7397 = vmatpush1.bf16.msra.mxu0 0
      %7398 = vmatprep.subr.bf16.mxu0 0
      %7399 = vmatpush1.bf16.msra.mxu0 0
      %7400 = vmatprep.subr.bf16.mxu0 0
      %7401 = vmatpush1.bf16.msra.mxu0 0
      %7402 = vmatprep.subr.bf16.mxu0 0
      %7403 = vmatpush1.bf16.msra.mxu0 0
      %7404 = vmatprep.subr.bf16.mxu0 0
      %7405 = vmatpush1.bf16.msra.mxu0 %v7388
      %7406 = vmatprep.subr.bf16.mxu0 0
      %7407 = vmatpush2.bf16.msra.mxu0 0
      %7408 = vmatprep.subr.bf16.mxu0 0
      %7409 = vmatpush2.bf16.msra.mxu0 0
      %7410 = vmatprep.subr.bf16.mxu0 0
      %7411 = vmatpush2.bf16.msra.mxu0 0
      %7412 = vmatprep.subr.bf16.mxu0 0
      %7413 = vmatpush2.bf16.msra.mxu0 0
      %7414 = vmatprep.subr.bf16.mxu0 0
      %7415 = vmatpush2.bf16.msra.mxu0 0
      %7416 = vmatprep.subr.bf16.mxu0 0
      %7417 = vmatpush2.bf16.msra.mxu0 0
      %7418 = vmatprep.subr.bf16.mxu0 0
      %7419 = vmatpush2.bf16.msra.mxu0 0
      %7420 = vmatprep.subr.bf16.mxu0 0
      %7421 = vmatpush2.bf16.msra.mxu0 0
      %7422 = vmatprep.mubr.bf16.mxu0 0
      %7423 = vmatmul.mubr.bf16.gmra.mxu0 %v7382
      %v7424 = vpop.f32.mrf.mxu0
      %v7425 = vadd.f32 0.0, %v7424
      %v7426 = vpop.f32.mrf.mxu0
      %v7427 = vpop.f32.mrf.mxu0
      %v7428 = vadd.f32 0.0, %v7427
      %v7429 = vpop.f32.mrf.mxu0
      %7430 = vmatprep.mubr.bf16.mxu0 0
      %7431 = vmatmul.mubr.bf16.gmra.mxu0 %v7385
      %v7432 = vpop.f32.mrf.mxu0
      %v7433 = vadd.f32 0.0, %v7432
      %v7434 = vpop.f32.mrf.mxu0
      %v7435 = vpop.f32.mrf.mxu0
      %v7436 = vadd.f32 0.0, %v7435
      %v7437 = vpop.f32.mrf.mxu0
      %7438 = vdwg.mxu0
      %v7439 = vadd.f32 %v7361, %v7425
      %v7440 = vadd.f32 %v7362, %v7428
      %v7441 = vadd.f32 %v7363, %v7433
      %v7442 = vadd.f32 %v7364, %v7436
      %v7443 = vld [vmem:[%s2707] sm:$0xf]
      %v7444 = vld [vmem:[%s2707 + $0x4] sm:$0x1]
      %v7445 = vld [vmem:[%s2707 + $0x10] sm:$0xf]
      %v7446 = vld [vmem:[%s2707 + $0x14] sm:$0x1]
      %v7447 = vld [vmem:[%s2707 + $0x20] sm:$0xf]
      %v7448 = vld [vmem:[%s2707 + $0x24] sm:$0x1]
      %v7449 = vld [vmem:[%s2707 + $0x30] sm:$0xf]
      %v7450 = vld [vmem:[%s2707 + $0x34] sm:$0x1]
      %v7452 = vshrl.u32 %v7443, 16
      %v7454 = vrot.slane %v7452, 4
      %v7455 = vshll.u32 %v7443, 16
      %v7457 = vrot.slane %v7455, 5
      %v7458 = vor.u32 %v7454, %v7457
      %v7459 = vrot.slane %v7458, 4
      %v7461 = vshll.u32 %v7444, 16
      %v7463 = vrot.slane %v7461, 5
      %v7464 = vsel %vm1825, %v7459, %v7463
      %v7466 = vshrl.u32 %v7445, 16
      %v7468 = vrot.slane %v7466, 4
      %v7469 = vshll.u32 %v7445, 16
      %v7471 = vrot.slane %v7469, 5
      %v7472 = vor.u32 %v7468, %v7471
      %v7473 = vrot.slane %v7472, 4
      %v7475 = vshll.u32 %v7446, 16
      %v7477 = vrot.slane %v7475, 5
      %v7478 = vsel %vm1825, %v7473, %v7477
      %v7480 = vshrl.u32 %v7447, 16
      %v7482 = vrot.slane %v7480, 4
      %v7483 = vshll.u32 %v7447, 16
      %v7485 = vrot.slane %v7483, 5
      %v7486 = vor.u32 %v7482, %v7485
      %v7487 = vrot.slane %v7486, 4
      %v7489 = vshll.u32 %v7448, 16
      %v7491 = vrot.slane %v7489, 5
      %v7492 = vsel %vm1825, %v7487, %v7491
      %v7494 = vshrl.u32 %v7449, 16
      %v7496 = vrot.slane %v7494, 4
      %v7497 = vshll.u32 %v7449, 16
      %v7499 = vrot.slane %v7497, 5
      %v7500 = vor.u32 %v7496, %v7499
      %v7501 = vrot.slane %v7500, 4
      %v7503 = vshll.u32 %v7450, 16
      %v7505 = vrot.slane %v7503, 5
      %v7506 = vsel %vm1825, %v7501, %v7505
      %s7507 = scalar_lea.vmem %s9, 28
      %v7508 = vld [vmem:[%s7507] sm:$0xf]
      %v7509 = vunpack.c.l.b16 %v7464
      %v7510 = vunpack.c.l.b16 %v7478
      %v7511 = vunpack.c.l.b16 %v7492
      %v7512 = vunpack.c.l.b16 %v7506
      %v7513 = vpack.c.b16 %v7510, %v7509
      %v7514 = vpack.c.b16 %v7512, %v7511
      %v7516 = vsel %vm443, %v7513, 0
      %v7519 = vsel %vm443, %v7514, 0
      %v7522 = vsel %vm447, %v7508, 0
      %7524 = vmatprep.subr.bf16.mxu0 0
      %7525 = vmatpush1.bf16.msra.mxu0 0
      %7526 = vmatprep.subr.bf16.mxu0 0
      %7527 = vmatpush1.bf16.msra.mxu0 0
      %7528 = vmatprep.subr.bf16.mxu0 0
      %7529 = vmatpush1.bf16.msra.mxu0 0
      %7530 = vmatprep.subr.bf16.mxu0 0
      %7531 = vmatpush1.bf16.msra.mxu0 0
      %7532 = vmatprep.subr.bf16.mxu0 0
      %7533 = vmatpush1.bf16.msra.mxu0 0
      %7534 = vmatprep.subr.bf16.mxu0 0
      %7535 = vmatpush1.bf16.msra.mxu0 0
      %7536 = vmatprep.subr.bf16.mxu0 0
      %7537 = vmatpush1.bf16.msra.mxu0 0
      %7538 = vmatprep.subr.bf16.mxu0 0
      %7539 = vmatpush1.bf16.msra.mxu0 %v7522
      %7540 = vmatprep.subr.bf16.mxu0 0
      %7541 = vmatpush2.bf16.msra.mxu0 0
      %7542 = vmatprep.subr.bf16.mxu0 0
      %7543 = vmatpush2.bf16.msra.mxu0 0
      %7544 = vmatprep.subr.bf16.mxu0 0
      %7545 = vmatpush2.bf16.msra.mxu0 0
      %7546 = vmatprep.subr.bf16.mxu0 0
      %7547 = vmatpush2.bf16.msra.mxu0 0
      %7548 = vmatprep.subr.bf16.mxu0 0
      %7549 = vmatpush2.bf16.msra.mxu0 0
      %7550 = vmatprep.subr.bf16.mxu0 0
      %7551 = vmatpush2.bf16.msra.mxu0 0
      %7552 = vmatprep.subr.bf16.mxu0 0
      %7553 = vmatpush2.bf16.msra.mxu0 0
      %7554 = vmatprep.subr.bf16.mxu0 0
      %7555 = vmatpush2.bf16.msra.mxu0 0
      %7556 = vmatprep.mubr.bf16.mxu0 0
      %7557 = vmatmul.mubr.bf16.gmra.mxu0 %v7516
      %v7558 = vpop.f32.mrf.mxu0
      %v7559 = vadd.f32 0.0, %v7558
      %v7560 = vpop.f32.mrf.mxu0
      %v7561 = vpop.f32.mrf.mxu0
      %v7562 = vadd.f32 0.0, %v7561
      %v7563 = vpop.f32.mrf.mxu0
      %7564 = vmatprep.mubr.bf16.mxu0 0
      %7565 = vmatmul.mubr.bf16.gmra.mxu0 %v7519
      %v7566 = vpop.f32.mrf.mxu0
      %v7567 = vadd.f32 0.0, %v7566
      %v7568 = vpop.f32.mrf.mxu0
      %v7569 = vpop.f32.mrf.mxu0
      %v7570 = vadd.f32 0.0, %v7569
      %v7571 = vpop.f32.mrf.mxu0
      %7572 = vdwg.mxu0
      %v7573 = vadd.f32 %v7439, %v7559
      %v7574 = vadd.f32 %v7440, %v7562
      %v7575 = vadd.f32 %v7441, %v7567
      %v7576 = vadd.f32 %v7442, %v7570
      %v7577 = vld [vmem:[%s2707] sm:$0xe]
      %v7578 = vld [vmem:[%s2707 + $0x10] sm:$0xe]
      %v7579 = vld [vmem:[%s2707 + $0x20] sm:$0xe]
      %v7580 = vld [vmem:[%s2707 + $0x30] sm:$0xe]
      %v7589 = vrot.slane %v7577, 5
      %v7590 = vrot.slane %v7589, 4
      %v7591 = vrot.slane %v7444, 5
      %v7592 = vsel %vm2066, %v7590, %v7591
      %v7593 = vrot.slane %v7578, 5
      %v7594 = vrot.slane %v7593, 4
      %v7595 = vrot.slane %v7446, 5
      %v7596 = vsel %vm2066, %v7594, %v7595
      %v7597 = vrot.slane %v7579, 5
      %v7598 = vrot.slane %v7597, 4
      %v7599 = vrot.slane %v7448, 5
      %v7600 = vsel %vm2066, %v7598, %v7599
      %v7601 = vrot.slane %v7580, 5
      %v7602 = vrot.slane %v7601, 4
      %v7603 = vrot.slane %v7450, 5
      %v7604 = vsel %vm2066, %v7602, %v7603
      %s7605 = scalar_lea.vmem %s9, 32
      %v7606 = vld [vmem:[%s7605] sm:$0xf]
      %v7607 = vunpack.c.l.b16 %v7592
      %v7608 = vunpack.c.l.b16 %v7596
      %v7609 = vunpack.c.l.b16 %v7600
      %v7610 = vunpack.c.l.b16 %v7604
      %v7611 = vpack.c.b16 %v7608, %v7607
      %v7612 = vpack.c.b16 %v7610, %v7609
      %v7614 = vsel %vm443, %v7611, 0
      %v7617 = vsel %vm443, %v7612, 0
      %v7620 = vsel %vm447, %v7606, 0
      %7622 = vmatprep.subr.bf16.mxu0 0
      %7623 = vmatpush1.bf16.msra.mxu0 0
      %7624 = vmatprep.subr.bf16.mxu0 0
      %7625 = vmatpush1.bf16.msra.mxu0 0
      %7626 = vmatprep.subr.bf16.mxu0 0
      %7627 = vmatpush1.bf16.msra.mxu0 0
      %7628 = vmatprep.subr.bf16.mxu0 0
      %7629 = vmatpush1.bf16.msra.mxu0 0
      %7630 = vmatprep.subr.bf16.mxu0 0
      %7631 = vmatpush1.bf16.msra.mxu0 0
      %7632 = vmatprep.subr.bf16.mxu0 0
      %7633 = vmatpush1.bf16.msra.mxu0 0
      %7634 = vmatprep.subr.bf16.mxu0 0
      %7635 = vmatpush1.bf16.msra.mxu0 0
      %7636 = vmatprep.subr.bf16.mxu0 0
      %7637 = vmatpush1.bf16.msra.mxu0 %v7620
      %7638 = vmatprep.subr.bf16.mxu0 0
      %7639 = vmatpush2.bf16.msra.mxu0 0
      %7640 = vmatprep.subr.bf16.mxu0 0
      %7641 = vmatpush2.bf16.msra.mxu0 0
      %7642 = vmatprep.subr.bf16.mxu0 0
      %7643 = vmatpush2.bf16.msra.mxu0 0
      %7644 = vmatprep.subr.bf16.mxu0 0
      %7645 = vmatpush2.bf16.msra.mxu0 0
      %7646 = vmatprep.subr.bf16.mxu0 0
      %7647 = vmatpush2.bf16.msra.mxu0 0
      %7648 = vmatprep.subr.bf16.mxu0 0
      %7649 = vmatpush2.bf16.msra.mxu0 0
      %7650 = vmatprep.subr.bf16.mxu0 0
      %7651 = vmatpush2.bf16.msra.mxu0 0
      %7652 = vmatprep.subr.bf16.mxu0 0
      %7653 = vmatpush2.bf16.msra.mxu0 0
      %7654 = vmatprep.mubr.bf16.mxu0 0
      %7655 = vmatmul.mubr.bf16.gmra.mxu0 %v7614
      %v7656 = vpop.f32.mrf.mxu0
      %v7657 = vadd.f32 0.0, %v7656
      %v7658 = vpop.f32.mrf.mxu0
      %v7659 = vpop.f32.mrf.mxu0
      %v7660 = vadd.f32 0.0, %v7659
      %v7661 = vpop.f32.mrf.mxu0
      %7662 = vmatprep.mubr.bf16.mxu0 0
      %7663 = vmatmul.mubr.bf16.gmra.mxu0 %v7617
      %v7664 = vpop.f32.mrf.mxu0
      %v7665 = vadd.f32 0.0, %v7664
      %v7666 = vpop.f32.mrf.mxu0
      %v7667 = vpop.f32.mrf.mxu0
      %v7668 = vadd.f32 0.0, %v7667
      %v7669 = vpop.f32.mrf.mxu0
      %7670 = vdwg.mxu0
      %v7671 = vadd.f32 %v7573, %v7657
      %v7672 = vadd.f32 %v7574, %v7660
      %v7673 = vadd.f32 %v7575, %v7665
      %v7674 = vadd.f32 %v7576, %v7668
      %v7675 = vmax.f32 %v7671, 0.0
      %v7676 = vmax.f32 %v7672, 0.0
      %v7677 = vmax.f32 %v7673, 0.0
      %v7678 = vmax.f32 %v7674, 0.0
      %v7679 = vpack.c.bf16 %v7676, %v7675
      %v7680 = vpack.c.bf16 %v7678, %v7677
      %v7683 = vcombine.high %v7679, %v7679
      %v7685 = vunpack.c.l.s4 1966171168
      %v7686 = vunpack.c.0.s8 %v7685
      %v7687 = vlaneseq
      %v7688 = vshrl.u32 %v7687, 7
      %v7689 = vsub.s32 %v7686, %v7688
      %v7690 = vrot.slane %v7679, %v7689
      %v7692 = vunpack.c.l.s4 1966171168
      %v7693 = vunpack.c.0.s8 %v7692
      %v7694 = vlaneseq
      %v7695 = vshrl.u32 %v7694, 7
      %v7696 = vsub.s32 %v7693, %v7695
      %v7697 = vrot.slane %v7683, %v7696
      %v7698 = vcombine.high %v7690, %v7690
      %v7699 = vcombine.high %v7697, %v7697
      %v7701 = vunpack.c.l.s4 1966171168
      %v7702 = vunpack.c.0.s8 %v7701
      %v7703 = vlaneseq
      %v7704 = vshrl.u32 %v7703, 7
      %v7705 = vsub.s32 %v7702, %v7704
      %v7706 = vrot.slane %v7690, %v7705
      %v7708 = vunpack.c.l.s4 1966171168
      %v7709 = vunpack.c.0.s8 %v7708
      %v7710 = vlaneseq
      %v7711 = vshrl.u32 %v7710, 7
      %v7712 = vsub.s32 %v7709, %v7711
      %v7713 = vrot.slane %v7697, %v7712
      %v7715 = vunpack.c.l.s4 1966171168
      %v7716 = vunpack.c.0.s8 %v7715
      %v7717 = vlaneseq
      %v7718 = vshrl.u32 %v7717, 7
      %v7719 = vsub.s32 %v7716, %v7718
      %v7720 = vrot.slane %v7698, %v7719
      %v7722 = vunpack.c.l.s4 1966171168
      %v7723 = vunpack.c.0.s8 %v7722
      %v7724 = vlaneseq
      %v7725 = vshrl.u32 %v7724, 7
      %v7726 = vsub.s32 %v7723, %v7725
      %v7727 = vrot.slane %v7699, %v7726
      %v7728 = vcombine.high %v7706, %v7706
      %v7729 = vcombine.high %v7713, %v7713
      %v7730 = vcombine.high %v7720, %v7720
      %v7731 = vcombine.high %v7727, %v7727
      %v7732 = vcombine.high %v7680, %v7680
      %v7734 = vunpack.c.l.s4 1966171168
      %v7735 = vunpack.c.0.s8 %v7734
      %v7736 = vlaneseq
      %v7737 = vshrl.u32 %v7736, 7
      %v7738 = vsub.s32 %v7735, %v7737
      %v7739 = vrot.slane %v7680, %v7738
      %v7741 = vunpack.c.l.s4 1966171168
      %v7742 = vunpack.c.0.s8 %v7741
      %v7743 = vlaneseq
      %v7744 = vshrl.u32 %v7743, 7
      %v7745 = vsub.s32 %v7742, %v7744
      %v7746 = vrot.slane %v7732, %v7745
      %v7747 = vcombine.high %v7739, %v7739
      %v7748 = vcombine.high %v7746, %v7746
      %v7750 = vunpack.c.l.s4 1966171168
      %v7751 = vunpack.c.0.s8 %v7750
      %v7752 = vlaneseq
      %v7753 = vshrl.u32 %v7752, 7
      %v7754 = vsub.s32 %v7751, %v7753
      %v7755 = vrot.slane %v7739, %v7754
      %v7757 = vunpack.c.l.s4 1966171168
      %v7758 = vunpack.c.0.s8 %v7757
      %v7759 = vlaneseq
      %v7760 = vshrl.u32 %v7759, 7
      %v7761 = vsub.s32 %v7758, %v7760
      %v7762 = vrot.slane %v7746, %v7761
      %v7764 = vunpack.c.l.s4 1966171168
      %v7765 = vunpack.c.0.s8 %v7764
      %v7766 = vlaneseq
      %v7767 = vshrl.u32 %v7766, 7
      %v7768 = vsub.s32 %v7765, %v7767
      %v7769 = vrot.slane %v7747, %v7768
      %v7771 = vunpack.c.l.s4 1966171168
      %v7772 = vunpack.c.0.s8 %v7771
      %v7773 = vlaneseq
      %v7774 = vshrl.u32 %v7773, 7
      %v7775 = vsub.s32 %v7772, %v7774
      %v7776 = vrot.slane %v7748, %v7775
      %v7777 = vcombine.high %v7755, %v7755
      %v7778 = vcombine.high %v7762, %v7762
      %v7779 = vcombine.high %v7769, %v7769
      %v7780 = vcombine.high %v7776, %v7776
      %v7782 = vunpack.c.l.s4 1935823168
      %v7783 = vunpack.c.0.s8 %v7782
      %v7784 = vlaneseq
      %v7785 = vshrl.u32 %v7784, 7
      %v7786 = vsub.s32 %v7783, %v7785
      %v7787 = vrot.slane %v7706, %v7786
      %v7789 = vunpack.c.l.s4 1935823168
      %v7790 = vunpack.c.0.s8 %v7789
      %v7791 = vlaneseq
      %v7792 = vshrl.u32 %v7791, 7
      %v7793 = vsub.s32 %v7790, %v7792
      %v7794 = vrot.slane %v7720, %v7793
      %v7796 = vunpack.c.l.s4 1935823168
      %v7797 = vunpack.c.0.s8 %v7796
      %v7798 = vlaneseq
      %v7799 = vshrl.u32 %v7798, 7
      %v7800 = vsub.s32 %v7797, %v7799
      %v7801 = vrot.slane %v7728, %v7800
      %v7803 = vunpack.c.l.s4 1935823168
      %v7804 = vunpack.c.0.s8 %v7803
      %v7805 = vlaneseq
      %v7806 = vshrl.u32 %v7805, 7
      %v7807 = vsub.s32 %v7804, %v7806
      %v7808 = vrot.slane %v7730, %v7807
      %v7810 = vunpack.c.l.s4 1935823168
      %v7811 = vunpack.c.0.s8 %v7810
      %v7812 = vlaneseq
      %v7813 = vshrl.u32 %v7812, 7
      %v7814 = vsub.s32 %v7811, %v7813
      %v7815 = vrot.slane %v7713, %v7814
      %v7817 = vunpack.c.l.s4 1935823168
      %v7818 = vunpack.c.0.s8 %v7817
      %v7819 = vlaneseq
      %v7820 = vshrl.u32 %v7819, 7
      %v7821 = vsub.s32 %v7818, %v7820
      %v7822 = vrot.slane %v7727, %v7821
      %v7824 = vunpack.c.l.s4 1935823168
      %v7825 = vunpack.c.0.s8 %v7824
      %v7826 = vlaneseq
      %v7827 = vshrl.u32 %v7826, 7
      %v7828 = vsub.s32 %v7825, %v7827
      %v7829 = vrot.slane %v7729, %v7828
      %v7831 = vunpack.c.l.s4 1935823168
      %v7832 = vunpack.c.0.s8 %v7831
      %v7833 = vlaneseq
      %v7834 = vshrl.u32 %v7833, 7
      %v7835 = vsub.s32 %v7832, %v7834
      %v7836 = vrot.slane %v7731, %v7835
      %v7838 = vunpack.c.l.s4 1935823168
      %v7839 = vunpack.c.0.s8 %v7838
      %v7840 = vlaneseq
      %v7841 = vshrl.u32 %v7840, 7
      %v7842 = vsub.s32 %v7839, %v7841
      %v7843 = vrot.slane %v7755, %v7842
      %v7845 = vunpack.c.l.s4 1935823168
      %v7846 = vunpack.c.0.s8 %v7845
      %v7847 = vlaneseq
      %v7848 = vshrl.u32 %v7847, 7
      %v7849 = vsub.s32 %v7846, %v7848
      %v7850 = vrot.slane %v7769, %v7849
      %v7852 = vunpack.c.l.s4 1935823168
      %v7853 = vunpack.c.0.s8 %v7852
      %v7854 = vlaneseq
      %v7855 = vshrl.u32 %v7854, 7
      %v7856 = vsub.s32 %v7853, %v7855
      %v7857 = vrot.slane %v7777, %v7856
      %v7859 = vunpack.c.l.s4 1935823168
      %v7860 = vunpack.c.0.s8 %v7859
      %v7861 = vlaneseq
      %v7862 = vshrl.u32 %v7861, 7
      %v7863 = vsub.s32 %v7860, %v7862
      %v7864 = vrot.slane %v7779, %v7863
      %v7866 = vunpack.c.l.s4 1935823168
      %v7867 = vunpack.c.0.s8 %v7866
      %v7868 = vlaneseq
      %v7869 = vshrl.u32 %v7868, 7
      %v7870 = vsub.s32 %v7867, %v7869
      %v7871 = vrot.slane %v7762, %v7870
      %v7873 = vunpack.c.l.s4 1935823168
      %v7874 = vunpack.c.0.s8 %v7873
      %v7875 = vlaneseq
      %v7876 = vshrl.u32 %v7875, 7
      %v7877 = vsub.s32 %v7874, %v7876
      %v7878 = vrot.slane %v7776, %v7877
      %v7880 = vunpack.c.l.s4 1935823168
      %v7881 = vunpack.c.0.s8 %v7880
      %v7882 = vlaneseq
      %v7883 = vshrl.u32 %v7882, 7
      %v7884 = vsub.s32 %v7881, %v7883
      %v7885 = vrot.slane %v7778, %v7884
      %v7887 = vunpack.c.l.s4 1935823168
      %v7888 = vunpack.c.0.s8 %v7887
      %v7889 = vlaneseq
      %v7890 = vshrl.u32 %v7889, 7
      %v7891 = vsub.s32 %v7888, %v7890
      %v7892 = vrot.slane %v7780, %v7891
      %v7894 = vunpack.c.l.s4 1983009808
      %v7895 = vunpack.c.0.s8 %v7894
      %v7896 = vlaneseq
      %v7897 = vshrl.u32 %v7896, 7
      %v7898 = vsub.s32 %v7895, %v7897
      %v7899 = vrot.slane %v7787, %v7898
      %v7901 = vunpack.c.l.s4 1983009808
      %v7902 = vunpack.c.0.s8 %v7901
      %v7903 = vlaneseq
      %v7904 = vshrl.u32 %v7903, 7
      %v7905 = vsub.s32 %v7902, %v7904
      %v7906 = vrot.slane %v7794, %v7905
      %v7908 = vunpack.c.l.s4 1983009808
      %v7909 = vunpack.c.0.s8 %v7908
      %v7910 = vlaneseq
      %v7911 = vshrl.u32 %v7910, 7
      %v7912 = vsub.s32 %v7909, %v7911
      %v7913 = vrot.slane %v7801, %v7912
      %v7915 = vunpack.c.l.s4 1983009808
      %v7916 = vunpack.c.0.s8 %v7915
      %v7917 = vlaneseq
      %v7918 = vshrl.u32 %v7917, 7
      %v7919 = vsub.s32 %v7916, %v7918
      %v7920 = vrot.slane %v7808, %v7919
      %v7922 = vunpack.c.l.s4 1983009808
      %v7923 = vunpack.c.0.s8 %v7922
      %v7924 = vlaneseq
      %v7925 = vshrl.u32 %v7924, 7
      %v7926 = vsub.s32 %v7923, %v7925
      %v7927 = vrot.slane %v7815, %v7926
      %v7929 = vunpack.c.l.s4 1983009808
      %v7930 = vunpack.c.0.s8 %v7929
      %v7931 = vlaneseq
      %v7932 = vshrl.u32 %v7931, 7
      %v7933 = vsub.s32 %v7930, %v7932
      %v7934 = vrot.slane %v7822, %v7933
      %v7936 = vunpack.c.l.s4 1983009808
      %v7937 = vunpack.c.0.s8 %v7936
      %v7938 = vlaneseq
      %v7939 = vshrl.u32 %v7938, 7
      %v7940 = vsub.s32 %v7937, %v7939
      %v7941 = vrot.slane %v7829, %v7940
      %v7943 = vunpack.c.l.s4 1983009808
      %v7944 = vunpack.c.0.s8 %v7943
      %v7945 = vlaneseq
      %v7946 = vshrl.u32 %v7945, 7
      %v7947 = vsub.s32 %v7944, %v7946
      %v7948 = vrot.slane %v7836, %v7947
      %v7950 = vunpack.c.l.s4 1983009808
      %v7951 = vunpack.c.0.s8 %v7950
      %v7952 = vlaneseq
      %v7953 = vshrl.u32 %v7952, 7
      %v7954 = vsub.s32 %v7951, %v7953
      %v7955 = vrot.slane %v7843, %v7954
      %v7957 = vunpack.c.l.s4 1983009808
      %v7958 = vunpack.c.0.s8 %v7957
      %v7959 = vlaneseq
      %v7960 = vshrl.u32 %v7959, 7
      %v7961 = vsub.s32 %v7958, %v7960
      %v7962 = vrot.slane %v7850, %v7961
      %v7964 = vunpack.c.l.s4 1983009808
      %v7965 = vunpack.c.0.s8 %v7964
      %v7966 = vlaneseq
      %v7967 = vshrl.u32 %v7966, 7
      %v7968 = vsub.s32 %v7965, %v7967
      %v7969 = vrot.slane %v7857, %v7968
      %v7971 = vunpack.c.l.s4 1983009808
      %v7972 = vunpack.c.0.s8 %v7971
      %v7973 = vlaneseq
      %v7974 = vshrl.u32 %v7973, 7
      %v7975 = vsub.s32 %v7972, %v7974
      %v7976 = vrot.slane %v7864, %v7975
      %v7978 = vunpack.c.l.s4 1983009808
      %v7979 = vunpack.c.0.s8 %v7978
      %v7980 = vlaneseq
      %v7981 = vshrl.u32 %v7980, 7
      %v7982 = vsub.s32 %v7979, %v7981
      %v7983 = vrot.slane %v7871, %v7982
      %v7985 = vunpack.c.l.s4 1983009808
      %v7986 = vunpack.c.0.s8 %v7985
      %v7987 = vlaneseq
      %v7988 = vshrl.u32 %v7987, 7
      %v7989 = vsub.s32 %v7986, %v7988
      %v7990 = vrot.slane %v7878, %v7989
      %v7992 = vunpack.c.l.s4 1983009808
      %v7993 = vunpack.c.0.s8 %v7992
      %v7994 = vlaneseq
      %v7995 = vshrl.u32 %v7994, 7
      %v7996 = vsub.s32 %v7993, %v7995
      %v7997 = vrot.slane %v7885, %v7996
      %v7999 = vunpack.c.l.s4 1983009808
      %v8000 = vunpack.c.0.s8 %v7999
      %v8001 = vlaneseq
      %v8002 = vshrl.u32 %v8001, 7
      %v8003 = vsub.s32 %v8000, %v8002
      %v8004 = vrot.slane %v7892, %v8003
      %v8005 = vunpack.c.l.b16 %v7899
      %v8006 = vunpack.c.l.b16 %v7906
      %v8007 = vunpack.c.l.b16 %v7913
      %v8008 = vunpack.c.l.b16 %v7920
      %v8009 = vunpack.c.l.b16 %v7927
      %v8010 = vunpack.c.l.b16 %v7934
      %v8011 = vunpack.c.l.b16 %v7941
      %v8012 = vunpack.c.l.b16 %v7948
      %v8013 = vunpack.c.l.b16 %v7955
      %v8014 = vunpack.c.l.b16 %v7962
      %v8015 = vunpack.c.l.b16 %v7969
      %v8016 = vunpack.c.l.b16 %v7976
      %v8017 = vunpack.c.l.b16 %v7983
      %v8018 = vunpack.c.l.b16 %v7990
      %v8019 = vunpack.c.l.b16 %v7997
      %v8020 = vunpack.c.l.b16 %v8004
      %v8021 = vrot.slane %v8006, 7
      %vm8022 = vcmask 1041409
      %v8023 = vsel %vm8022, %v8021, %v8005
      %v8024 = vrot.slane %v8007, 6
      %vm8025 = vcmask 1042434
      %v8026 = vsel %vm8025, %v8024, %v8023
      %v8027 = vrot.slane %v8008, 5
      %vm8028 = vcmask 1043459
      %v8029 = vsel %vm8028, %v8027, %v8026
      %v8030 = vrot.slane %v8010, 7
      %v8031 = vsel %vm8022, %v8030, %v8009
      %v8032 = vrot.slane %v8011, 6
      %v8033 = vsel %vm8025, %v8032, %v8031
      %v8034 = vrot.slane %v8012, 5
      %v8035 = vsel %vm8028, %v8034, %v8033
      %v8036 = vrot.slane %v8014, 7
      %v8037 = vsel %vm8022, %v8036, %v8013
      %v8038 = vrot.slane %v8015, 6
      %v8039 = vsel %vm8025, %v8038, %v8037
      %v8040 = vrot.slane %v8016, 5
      %v8041 = vsel %vm8028, %v8040, %v8039
      %v8042 = vrot.slane %v8018, 7
      %v8043 = vsel %vm8022, %v8042, %v8017
      %v8044 = vrot.slane %v8019, 6
      %v8045 = vsel %vm8025, %v8044, %v8043
      %v8046 = vrot.slane %v8020, 5
      %v8047 = vsel %vm8028, %v8046, %v8045
      %v8048 = vpack.c.b16 %v8029, %v8029
      %v8049 = vpack.c.b16 %v8035, %v8035
      %v8050 = vpack.c.b16 %v8041, %v8041
      %v8051 = vpack.c.b16 %v8047, %v8047
      %v8053 = vunpack.c.l.s4 1983009808
      %v8054 = vunpack.c.0.s8 %v8053
      %v8055 = vlaneseq
      %v8056 = vshrl.u32 %v8055, 7
      %v8057 = vsub.s32 %v8054, %v8056
      %v8058 = vrot.slane %v8048, %v8057
      %v8060 = vunpack.c.l.s4 1983009808
      %v8061 = vunpack.c.0.s8 %v8060
      %v8062 = vlaneseq
      %v8063 = vshrl.u32 %v8062, 7
      %v8064 = vsub.s32 %v8061, %v8063
      %v8065 = vrot.slane %v8049, %v8064
      %v8067 = vunpack.c.l.s4 1983009808
      %v8068 = vunpack.c.0.s8 %v8067
      %v8069 = vlaneseq
      %v8070 = vshrl.u32 %v8069, 7
      %v8071 = vsub.s32 %v8068, %v8070
      %v8072 = vrot.slane %v8050, %v8071
      %v8074 = vunpack.c.l.s4 1983009808
      %v8075 = vunpack.c.0.s8 %v8074
      %v8076 = vlaneseq
      %v8077 = vshrl.u32 %v8076, 7
      %v8078 = vsub.s32 %v8075, %v8077
      %v8079 = vrot.slane %v8051, %v8078
      %vm8084 = vcmask 58368
      %8085 = vst.msk [vmem:[%s386] sm:$0x3] %vm8084, %v8058
      %8086 = vst.msk [vmem:[%s386 + $0x2] sm:$0x3] %vm8084, %v8065
      %8087 = vst.msk [vmem:[%s386 + $0x4] sm:$0x3] %vm8084, %v8072
      %8088 = vst.msk [vmem:[%s386 + $0x6] sm:$0x3] %vm8084, %v8079
      %p8089 = scmp.lt.s32.totalorder %s22, 1
      %s8090 = scalar_select %p8089, %s22, 1
      %s8091 = smul.addr %s8090, 4
      %s8092 = smul.addr %s8091, 2
      %s8093 = scalar_lea.vmem %s11, %s8092
      // Predicated region
      $region65: #{bbox_iou_head_forward.2} parent=63 // pred_check
        %p8094 = pneg %p276
      $region66: #{bbox_iou_head_forward.2} parent=63 // pred_check_branch
        %8096 = sbr.rel (%p8094) target = $region68
      $region67: #{bbox_iou_head_forward.2} parent=63 // pred_region
        _
      $region68: #{bbox_iou_head_forward.2} parent=63 // pred_fallthru
        _
    $region64: #{bbox_iou_head_forward.2} parent=5 // pred_fallthru
      _
    %p8097 = scmp.le.s32.totalorder 2, %s17
    // Predicated region
    $region69: #{bbox_iou_head_forward.2} parent=5 // pred_check
      %p8098 = pneg %p8097
    $region70: #{bbox_iou_head_forward.2} parent=5 // pred_check_branch
      %8100 = sbr.rel (%p8098) target = $region72
    $region71: #{bbox_iou_head_forward.2} parent=5 // pred_region
      %s8101 = ssub.s32 %s17, 2
      // Predicated region
      $region73: #{bbox_iou_head_forward.2} parent=71 // pred_check
        %p8102 = pneg %p282
      $region74: #{bbox_iou_head_forward.2} parent=71 // pred_check_branch
        %8104 = sbr.rel (%p8102) target = $region76
      $region75: #{bbox_iou_head_forward.2} parent=71 // pred_region
        %p8105 = scmp.lt.s32.totalorder %s23, 1
        %s8106 = scalar_select %p8105, %s23, 1
        %s8107 = smul.addr %s8106, 4
        %s8108 = smul.addr %s8107, 2
        %s8109 = scalar_lea.vmem %s11, %s8108
      $region76: #{bbox_iou_head_forward.2} parent=71 // pred_fallthru
        _
    $region72: #{bbox_iou_head_forward.2} parent=5 // pred_fallthru
      _
  $region6: #{bbox_iou_head_forward.2} parent=0 // loop_footer
    %s21 = sadd.s32 1, %s17
  $region7: #{bbox_iou_head_forward.2} parent=0 // loop_footer_branch
    %16 = sbr.rel target = $region3
  $region8: #{bbox_iou_head_forward.2} parent=0 // loop_exit
    _

</llo_original>
